<compile_context>
chip_gen: v5e
topology: v5e:2x2
jax: 0.10.0
libtpu: 0.0.40
codegen_flags: <defaults>
</compile_context>

<pallas_src>
import functools

import jax
import jax.numpy as jnp
from jax import lax
from jax.experimental import pallas as pl
from jax.experimental.pallas import tpu as pltpu

LN = 512          # padded lane width of the conv-output activation slabs


# ----------------------------- Pallas kernel -------------------------------

def _fused_cnn_kernel(x_ref, bd1_ref, b1_ref, bd2_ref, b2_ref,
                      fw1_ref, fb1_ref, fw2_ref, fb2_ref, o_ref):
    """Processes NB images per grid step.

    Activation slabs are (H, NB, lanes): H-major / image-minor rows, so the
    3x3 kh taps and the 2x2 poolings are static tile-aligned sublane slices.
    Conv output lane layout: lane = w*Cout + c (448 used lanes, padded to 512).
    The W direction of each 2x2 pool leaves its max at the even w groups; the
    stride-2 selection is folded into the *next* layer's prepacked weight.
    """
    f32 = jnp.float32
    bf16 = jnp.bfloat16
    nb = x_ref.shape[1]

    # ---- conv1 (1->16, 3x3, pad=1) + bias + ReLU: one GEMM, K = 3 kh taps --
    x = x_ref[...]                                      # (28, NB, 28) bf16
    zr = jnp.zeros((1, nb, 28), bf16)
    t0 = jnp.concatenate([zr, x[0:27]], axis=0)         # padded rows h + 0
    t2 = jnp.concatenate([x[1:28], zr], axis=0)         # padded rows h + 2
    lhs1 = jnp.concatenate([t0, x, t2], axis=-1)        # (28, NB, 84)
    y1 = jnp.dot(lhs1.reshape(28 * nb, 84), bd1_ref[...],
                 preferred_element_type=f32)            # (28*NB, 512)
    y1 = jnp.maximum(y1 + b1_ref[...], 0.0).astype(bf16)

    # ---- maxpool1 2x2: W via 16-lane shift (selection folded into bd2),
    #      H via a tile-aligned sublane split --------------------------------
    y1s = jnp.concatenate([y1[:, 16:], jnp.zeros((28 * nb, 16), bf16)], axis=-1)
    y1w = jnp.maximum(y1, y1s)                          # even 16-lane groups = W max
    y1r = y1w.reshape(14, 2 * nb, LN)
    p1 = jnp.maximum(y1r[:, :nb], y1r[:, nb:])          # (14, NB, 512)

    # ---- conv2 (16->32, 3x3, pad=1) + bias + ReLU: one GEMM ----------------
    zr2 = jnp.zeros((1, nb, LN), bf16)
    u0 = jnp.concatenate([zr2, p1[0:13]], axis=0)       # padded rows h + 0
    u2 = jnp.concatenate([p1[1:14], zr2], axis=0)       # padded rows h + 2
    lhs2 = jnp.concatenate([u0, p1, u2], axis=-1)       # (14, NB, 1536)
    y2 = jnp.dot(lhs2.reshape(14 * nb, 3 * LN), bd2_ref[...],
                 preferred_element_type=f32)            # (14*NB, 512)
    y2 = jnp.maximum(y2 + b2_ref[...], 0.0).astype(bf16)

    # ---- maxpool2 2x2 (W via 32-lane shift) + fc1: one GEMM, K = 7 rows ----
    y2s = jnp.concatenate([y2[:, 32:], jnp.zeros((14 * nb, 32), bf16)], axis=-1)
    y2w = jnp.maximum(y2, y2s).reshape(14, nb, LN)      # even 32-lane groups = W max
    rows = [jnp.maximum(y2w[2 * h], y2w[2 * h + 1]) for h in range(7)]
    lhs3 = jnp.concatenate(rows, axis=-1)               # (NB, 3584)
    h1 = jnp.dot(lhs3, fw1_ref[...], preferred_element_type=f32) + fb1_ref[...]
    h1 = jnp.maximum(h1, 0.0).astype(bf16)              # (NB, 128)

    # ---- fc2 -> logits: one dense (NB, 10) store per grid step -------------
    o_ref[...] = jnp.dot(h1, fw2_ref[...],
                         preferred_element_type=f32) + fb2_ref[...]


# --------------------------- one-time weight prep ---------------------------

def prepare_params(params):
    """Repack the torch weights once so the hot path is 4 plain GEMMs.

    * conv weights become block-banded lane maps with kw shift + W padding
      folded in; the 3 kh taps are pre-concatenated along K.
    * the 2x2-pool stride-2 W selection is folded into the consumer weights
      (bd2 / fc1), so the kernel never compacts lanes.
    * torch's NCHW flatten (c*49 + h*7 + w) is folded into fc1; fc1/fc2 are
      pre-transposed.  GEMM operands are cast to bf16, biases stay f32.
    """
    (w1, b1, w2, b2, fw1, fb1, fw2, fb2) = params
    f32, bf16 = jnp.float32, jnp.bfloat16

    # conv1: lane_in = w_in (0..27), lane_out = v*16 + co (v 0..27, co 0..15).
    w_in = jnp.arange(28)[:, None]
    v = jnp.arange(28)[None, :]
    kw = w_in - v + 1
    ok = (kw >= 0) & (kw <= 2)
    w1r = jnp.transpose(w1[:, 0], (1, 2, 0))                       # (3,3,16) [kh,kw,co]
    a1 = jnp.where(ok[None, :, :, None], w1r[:, jnp.clip(kw, 0, 2), :], 0.0)
    a1 = a1.reshape(3, 28, 28 * 16)
    a1 = jnp.pad(a1, ((0, 0), (0, 0), (0, LN - 448)))
    bd1 = jnp.concatenate([a1[0], a1[1], a1[2]], axis=0).astype(bf16)   # (84, 512)
    b1t = jnp.pad(jnp.tile(b1, 28), (0, LN - 448)).reshape(1, LN).astype(f32)

    # conv2: input lanes are the un-compacted W-pooled conv1 lanes
    # (pooled column wq, channel ci at lane 32*wq + ci); output lane v2*32+co.
    wq = jnp.arange(14)[:, None]
    v2 = jnp.arange(14)[None, :]
    kw2 = wq - v2 + 1
    ok2 = (kw2 >= 0) & (kw2 <= 2)
    w2r = jnp.transpose(w2, (2, 3, 1, 0))                          # (3,3,16,32) [kh,kw,ci,co]
    a2 = jnp.where(ok2[None, :, :, None, None], w2r[:, jnp.clip(kw2, 0, 2)], 0.0)
    a2 = jnp.transpose(a2, (0, 1, 3, 2, 4))                        # [kh, wq, ci, v2, co]
    a2 = jnp.pad(a2, ((0, 0), (0, 0), (0, 16), (0, 0), (0, 0)))    # ci 16 -> 32 (zeros)
    a2 = a2.reshape(3, 448, 448)
    a2 = jnp.pad(a2, ((0, 0), (0, LN - 448), (0, LN - 448)))
    bd2 = jnp.concatenate([a2[0], a2[1], a2[2]], axis=0).astype(bf16)   # (1536, 512)
    b2t = jnp.pad(jnp.tile(b2, 14), (0, LN - 448)).reshape(1, LN).astype(f32)

    # fc1: input lanes are the un-compacted W-pooled conv2 lanes
    # (pooled column wq2, channel co at lane 64*wq2 + co), 7 pooled rows along K.
    fw1r = jnp.transpose(fw1.reshape(128, 32, 7, 7), (2, 3, 1, 0))  # [hq, wq2, co, j]
    fw1r = jnp.pad(fw1r, ((0, 0), (0, 0), (0, 32), (0, 0)))         # co 32 -> 64 (zeros)
    fw1r = fw1r.reshape(7, 448, 128)
    fw1r = jnp.pad(fw1r, ((0, 0), (0, LN - 448), (0, 0)))
    fw1c = fw1r.reshape(7 * LN, 128).astype(bf16)                   # (3584, 128)
    fb1r = fb1.reshape(1, 128).astype(f32)

    fw2t = fw2.T.astype(bf16)                                       # (128, 10)
    fb2r = fb2.reshape(1, 10).astype(f32)

    return dict(bd1=bd1, b1=b1t, bd2=bd2, b2=b2t,
                fw1=fw1c, fb1=fb1r, fw2=fw2t, fb2=fb2r)


# --------------------------------- forward ----------------------------------

@functools.partial(jax.jit, static_argnames=("nb",))
def cnn_forward(x_nchw, prep, nb=8):
    B = x_nchw.shape[0]
    nb = max(8, (nb // 8) * 8)                 # tile-aligned image batch per step
    bp = ((B + nb - 1) // nb) * nb
    x = x_nchw.reshape(B, 28, 28)
    if bp != B:
        x = jnp.concatenate([x, jnp.zeros((bp - B, 28, 28), x.dtype)], axis=0)
    # layout plumbing only: H-major / image-minor input slab, bf16.
    x_t = jnp.transpose(x, (1, 0, 2)).astype(jnp.bfloat16)     # (28, Bp, 28)

    def wspec(shape):
        return pl.BlockSpec(shape, lambda b: (0, 0))           # VMEM-resident weights

    out = pl.pallas_call(
        _fused_cnn_kernel,
        out_shape=jax.ShapeDtypeStruct((bp, 10), jnp.float32),
        grid=(bp // nb,),
        in_specs=[
            pl.BlockSpec((28, nb, 28), lambda b: (0, b, 0)),   # NB images
            wspec((3 * 28, LN)),                               # conv1 (kh-concat K)
            wspec((1, LN)),                                    # conv1 bias (tiled)
            wspec((3 * LN, LN)),                               # conv2 (kh-concat K)
            wspec((1, LN)),                                    # conv2 bias (tiled)
            wspec((7 * LN, 128)),                              # fc1 (rows-concat K)
            wspec((1, 128)),                                   # fc1 bias
            wspec((128, 10)),                                  # fc2 (pre-T)
            wspec((1, 10)),                                    # fc2 bias
        ],
        out_specs=pl.BlockSpec((nb, 10), lambda b: (b, 0)),
        compiler_params=pltpu.CompilerParams(
            dimension_semantics=("parallel",),                 # shard batch over cores
            vmem_limit_bytes=32 * 1024 * 1024,
        ),
    )(x_t, prep["bd1"], prep["b1"], prep["bd2"], prep["b2"],
      prep["fw1"], prep["fb1"], prep["fw2"], prep["fb2"])
    return out[:B]


# ------------------------------ params & reference --------------------------

def init_params(key):
    ks = jax.random.split(key, 8)

    def rnd(k, shape, scale):
        return jax.random.normal(k, shape, jnp.float32) * scale

    w1 = rnd(ks[0], (16, 1, 3, 3), 0.2)        # Conv2d(1, 16, 3, padding=1)
    b1 = rnd(ks[1], (16,), 0.1)
    w2 = rnd(ks[2], (32, 16, 3, 3), 0.08)      # Conv2d(16, 32, 3, padding=1)
    b2 = rnd(ks[3], (32,), 0.1)
    fw1 = rnd(ks[4], (128, 32 * 7 * 7), 0.02)  # Linear(1568, 128)
    fb1 = rnd(ks[5], (128,), 0.1)
    fw2 = rnd(ks[6], (10, 128), 0.08)          # Linear(128, 10)
    fb2 = rnd(ks[7], (10,), 0.1)
    return (w1, b1, w2, b2, fw1, fb1, fw2, fb2)


def ref_forward(x, params):
    """Plain-JAX f32 reference reproducing the torch forward pass."""
    (w1, b1, w2, b2, fw1, fb1, fw2, fb2) = params
    prec = lax.Precision.HIGHEST
    y = lax.conv_general_dilated(x, w1, (1, 1), ((1, 1), (1, 1)),
                                 dimension_numbers=("NCHW", "OIHW", "NCHW"),
                                 precision=prec)
    y = jax.nn.relu(y + b1[None, :, None, None])
    y = lax.reduce_window(y, -jnp.inf, lax.max, (1, 1, 2, 2), (1, 1, 2, 2), "VALID")
    y = lax.conv_general_dilated(y, w2, (1, 1), ((1, 1), (1, 1)),
                                 dimension_numbers=("NCHW", "OIHW", "NCHW"),
                                 precision=prec)
    y = jax.nn.relu(y + b2[None, :, None, None])
    y = lax.reduce_window(y, -jnp.inf, lax.max, (1, 1, 2, 2), (1, 1, 2, 2), "VALID")
    y = y.reshape(y.shape[0], -1)
    y = jax.nn.relu(jnp.dot(y, fw1.T, precision=prec) + fb1)
    return jnp.dot(y, fw2.T, precision=prec) + fb2


if __name__ == "__main__":
    key = jax.random.PRNGKey(0)
    kp, kx1, kx2 = jax.random.split(key, 3)
    params = init_params(kp)
    prep = prepare_params(params)            # one-time weight repack (bf16)

    # Small-batch path (B=2, padded to a single NB=8 grid step).
    x_small = jax.random.normal(kx1, (2, 1, 28, 28), jnp.float32)
    out_s = jax.block_until_ready(cnn_forward(x_small, prep))
    ref_s = jax.block_until_ready(ref_forward(x_small, params))
    assert out_s.shape == (2, 10), out_s.shape
    if not bool(jnp.allclose(out_s, ref_s, rtol=2e-2, atol=2e-2)):  # bf16 MXU operands
        raise AssertionError(
            f"small-batch mismatch, max abs err="
            f"{float(jnp.max(jnp.abs(out_s - ref_s)))}")

    # Batched path (B=16, NB=8 -> 2 grid steps, exercises the batch tiling).
    x_big = jax.random.normal(kx2, (16, 1, 28, 28), jnp.float32)
    out_b = jax.block_until_ready(cnn_forward(x_big, prep, nb=8))
    ref_b = jax.block_until_ready(ref_forward(x_big, params))
    assert out_b.shape == (16, 10), out_b.shape
    if not bool(jnp.allclose(out_b, ref_b, rtol=2e-2, atol=2e-2)):
        raise AssertionError(
            f"batched mismatch, max abs err="
            f"{float(jnp.max(jnp.abs(out_b - ref_b)))}")

    print("KERNEL_OK")
</pallas_src>

<mosaic_0001>
module attributes {stable_mosaic.version = 11 : i64} {
  func.func @_fused_cnn_kernel(%arg0: i32, %arg1: memref<28x8x28xbf16, #tpu.memory_space<vmem>>, %arg2: memref<84x512xbf16, #tpu.memory_space<vmem>>, %arg3: memref<1x512xf32, #tpu.memory_space<vmem>>, %arg4: memref<1536x512xbf16, #tpu.memory_space<vmem>>, %arg5: memref<1x512xf32, #tpu.memory_space<vmem>>, %arg6: memref<3584x128xbf16, #tpu.memory_space<vmem>>, %arg7: memref<1x128xf32, #tpu.memory_space<vmem>>, %arg8: memref<128x10xbf16, #tpu.memory_space<vmem>>, %arg9: memref<1x10xf32, #tpu.memory_space<vmem>>, %arg10: memref<8x10xf32, #tpu.memory_space<vmem>>) attributes {dimension_semantics = [#tpu.dimension_semantics<parallel>], iteration_bounds = array<i64: 1>, scalar_prefetch = 0 : i64, scratch_operands = 0 : i64, tpu.core_type = #tpu.core_type<tc>, window_params = [{transform_indices = @transform_0, window_bounds = array<i64: 28, 8, 28>}, {pipeline_mode = #tpu.pipeline_mode<synchronous>, transform_indices = @transform_1, window_bounds = array<i64: 84, 512>}, {pipeline_mode = #tpu.pipeline_mode<synchronous>, transform_indices = @transform_2, window_bounds = array<i64: 1, 512>}, {pipeline_mode = #tpu.pipeline_mode<synchronous>, transform_indices = @transform_3, window_bounds = array<i64: 1536, 512>}, {pipeline_mode = #tpu.pipeline_mode<synchronous>, transform_indices = @transform_4, window_bounds = array<i64: 1, 512>}, {pipeline_mode = #tpu.pipeline_mode<synchronous>, transform_indices = @transform_5, window_bounds = array<i64: 3584, 128>}, {pipeline_mode = #tpu.pipeline_mode<synchronous>, transform_indices = @transform_6, window_bounds = array<i64: 1, 128>}, {pipeline_mode = #tpu.pipeline_mode<synchronous>, transform_indices = @transform_7, window_bounds = array<i64: 128, 10>}, {pipeline_mode = #tpu.pipeline_mode<synchronous>, transform_indices = @transform_8, window_bounds = array<i64: 1, 10>}, {transform_indices = @transform_9, window_bounds = array<i64: 8, 10>}]} {
    %c0 = arith.constant 0 : index
    %c0_0 = arith.constant 0 : index
    %c0_1 = arith.constant 0 : index
    %0 = vector.load %arg1[%c0, %c0_0, %c0_1] : memref<28x8x28xbf16, #tpu.memory_space<vmem>>, vector<28x8x28xbf16>
    %cst = arith.constant 0.000000e+00 : bf16
    %1 = vector.broadcast %cst : bf16 to vector<1x8x28xbf16>
    %2 = vector.extract_strided_slice %0 {offsets = [0, 0, 0], sizes = [27, 8, 28], strides = [1, 1, 1]} : vector<28x8x28xbf16> to vector<27x8x28xbf16>
    %3 = tpu.concatenate %1, %2 in 0 : vector<1x8x28xbf16>, vector<27x8x28xbf16> -> vector<28x8x28xbf16>
    %4 = vector.extract_strided_slice %0 {offsets = [1, 0, 0], sizes = [27, 8, 28], strides = [1, 1, 1]} : vector<28x8x28xbf16> to vector<27x8x28xbf16>
    %5 = tpu.concatenate %4, %1 in 0 : vector<27x8x28xbf16>, vector<1x8x28xbf16> -> vector<28x8x28xbf16>
    %6 = tpu.concatenate %3, %0, %5 in 2 : vector<28x8x28xbf16>, vector<28x8x28xbf16>, vector<28x8x28xbf16> -> vector<28x8x84xbf16>
    %7 = vector.shape_cast %6 : vector<28x8x84xbf16> to vector<224x84xbf16>
    %c0_2 = arith.constant 0 : index
    %c0_3 = arith.constant 0 : index
    %8 = vector.load %arg2[%c0_2, %c0_3] : memref<84x512xbf16, #tpu.memory_space<vmem>>, vector<84x512xbf16>
    %cst_4 = arith.constant dense<0.000000e+00> : vector<224x512xf32>
    %9 = tpu.matmul %7, %8, %cst_4 {dimension_numbers = #tpu.dot_dimension_numbers<[1], [0], [0], [1], [0, 0, 1, 1], [], []>} : vector<224x84xbf16>, vector<84x512xbf16>, vector<224x512xf32> -> vector<224x512xf32>
    %c0_5 = arith.constant 0 : index
    %c0_6 = arith.constant 0 : index
    %10 = vector.load %arg3[%c0_5, %c0_6] : memref<1x512xf32, #tpu.memory_space<vmem>>, vector<1x512xf32>
    %11 = vector.broadcast %10 : vector<1x512xf32> to vector<224x512xf32>
    %12 = arith.addf %9, %11 : vector<224x512xf32>
    %cst_7 = arith.constant 0.000000e+00 : f32
    %13 = vector.broadcast %cst_7 : f32 to vector<224x512xf32>
    %14 = arith.maximumf %12, %13 : vector<224x512xf32>
    %15 = arith.truncf %14 : vector<224x512xf32> to vector<224x512xbf16>
    %16 = vector.extract_strided_slice %15 {offsets = [0, 16], sizes = [224, 496], strides = [1, 1]} : vector<224x512xbf16> to vector<224x496xbf16>
    %cst_8 = arith.constant 0.000000e+00 : bf16
    %17 = vector.broadcast %cst_8 : bf16 to vector<224x16xbf16>
    %18 = tpu.concatenate %16, %17 in 1 : vector<224x496xbf16>, vector<224x16xbf16> -> vector<224x512xbf16>
    %19 = arith.maximumf %15, %18 : vector<224x512xbf16>
    %20 = vector.shape_cast %19 : vector<224x512xbf16> to vector<14x16x512xbf16>
    %21 = vector.extract_strided_slice %20 {offsets = [0, 0, 0], sizes = [14, 8, 512], strides = [1, 1, 1]} : vector<14x16x512xbf16> to vector<14x8x512xbf16>
    %22 = vector.extract_strided_slice %20 {offsets = [0, 8, 0], sizes = [14, 8, 512], strides = [1, 1, 1]} : vector<14x16x512xbf16> to vector<14x8x512xbf16>
    %23 = arith.maximumf %21, %22 : vector<14x8x512xbf16>
    %cst_9 = arith.constant 0.000000e+00 : bf16
    %24 = vector.broadcast %cst_9 : bf16 to vector<1x8x512xbf16>
    %25 = vector.extract_strided_slice %23 {offsets = [0, 0, 0], sizes = [13, 8, 512], strides = [1, 1, 1]} : vector<14x8x512xbf16> to vector<13x8x512xbf16>
    %26 = tpu.concatenate %24, %25 in 0 : vector<1x8x512xbf16>, vector<13x8x512xbf16> -> vector<14x8x512xbf16>
    %27 = vector.extract_strided_slice %23 {offsets = [1, 0, 0], sizes = [13, 8, 512], strides = [1, 1, 1]} : vector<14x8x512xbf16> to vector<13x8x512xbf16>
    %28 = tpu.concatenate %27, %24 in 0 : vector<13x8x512xbf16>, vector<1x8x512xbf16> -> vector<14x8x512xbf16>
    %29 = tpu.concatenate %26, %23, %28 in 2 : vector<14x8x512xbf16>, vector<14x8x512xbf16>, vector<14x8x512xbf16> -> vector<14x8x1536xbf16>
    %30 = vector.shape_cast %29 : vector<14x8x1536xbf16> to vector<112x1536xbf16>
    %c0_10 = arith.constant 0 : index
    %c0_11 = arith.constant 0 : index
    %31 = vector.load %arg4[%c0_10, %c0_11] : memref<1536x512xbf16, #tpu.memory_space<vmem>>, vector<1536x512xbf16>
    %cst_12 = arith.constant dense<0.000000e+00> : vector<112x512xf32>
    %32 = tpu.matmul %30, %31, %cst_12 {dimension_numbers = #tpu.dot_dimension_numbers<[1], [0], [0], [1], [0, 0, 1, 1], [], []>} : vector<112x1536xbf16>, vector<1536x512xbf16>, vector<112x512xf32> -> vector<112x512xf32>
    %c0_13 = arith.constant 0 : index
    %c0_14 = arith.constant 0 : index
    %33 = vector.load %arg5[%c0_13, %c0_14] : memref<1x512xf32, #tpu.memory_space<vmem>>, vector<1x512xf32>
    %34 = vector.broadcast %33 : vector<1x512xf32> to vector<112x512xf32>
    %35 = arith.addf %32, %34 : vector<112x512xf32>
    %cst_15 = arith.constant 0.000000e+00 : f32
    %36 = vector.broadcast %cst_15 : f32 to vector<112x512xf32>
    %37 = arith.maximumf %35, %36 : vector<112x512xf32>
    %38 = arith.truncf %37 : vector<112x512xf32> to vector<112x512xbf16>
    %39 = vector.extract_strided_slice %38 {offsets = [0, 32], sizes = [112, 480], strides = [1, 1]} : vector<112x512xbf16> to vector<112x480xbf16>
    %cst_16 = arith.constant 0.000000e+00 : bf16
    %40 = vector.broadcast %cst_16 : bf16 to vector<112x32xbf16>
    %41 = tpu.concatenate %39, %40 in 1 : vector<112x480xbf16>, vector<112x32xbf16> -> vector<112x512xbf16>
    %42 = arith.maximumf %38, %41 : vector<112x512xbf16>
    %43 = vector.shape_cast %42 : vector<112x512xbf16> to vector<14x8x512xbf16>
    %44 = vector.extract_strided_slice %43 {offsets = [0, 0, 0], sizes = [1, 8, 512], strides = [1, 1, 1]} : vector<14x8x512xbf16> to vector<1x8x512xbf16>
    %45 = vector.shape_cast %44 : vector<1x8x512xbf16> to vector<8x512xbf16>
    %46 = vector.extract_strided_slice %43 {offsets = [1, 0, 0], sizes = [1, 8, 512], strides = [1, 1, 1]} : vector<14x8x512xbf16> to vector<1x8x512xbf16>
    %47 = vector.shape_cast %46 : vector<1x8x512xbf16> to vector<8x512xbf16>
    %48 = arith.maximumf %45, %47 : vector<8x512xbf16>
    %49 = vector.extract_strided_slice %43 {offsets = [2, 0, 0], sizes = [1, 8, 512], strides = [1, 1, 1]} : vector<14x8x512xbf16> to vector<1x8x512xbf16>
    %50 = vector.shape_cast %49 : vector<1x8x512xbf16> to vector<8x512xbf16>
    %51 = vector.extract_strided_slice %43 {offsets = [3, 0, 0], sizes = [1, 8, 512], strides = [1, 1, 1]} : vector<14x8x512xbf16> to vector<1x8x512xbf16>
    %52 = vector.shape_cast %51 : vector<1x8x512xbf16> to vector<8x512xbf16>
    %53 = arith.maximumf %50, %52 : vector<8x512xbf16>
    %54 = vector.extract_strided_slice %43 {offsets = [4, 0, 0], sizes = [1, 8, 512], strides = [1, 1, 1]} : vector<14x8x512xbf16> to vector<1x8x512xbf16>
    %55 = vector.shape_cast %54 : vector<1x8x512xbf16> to vector<8x512xbf16>
    %56 = vector.extract_strided_slice %43 {offsets = [5, 0, 0], sizes = [1, 8, 512], strides = [1, 1, 1]} : vector<14x8x512xbf16> to vector<1x8x512xbf16>
    %57 = vector.shape_cast %56 : vector<1x8x512xbf16> to vector<8x512xbf16>
    %58 = arith.maximumf %55, %57 : vector<8x512xbf16>
    %59 = vector.extract_strided_slice %43 {offsets = [6, 0, 0], sizes = [1, 8, 512], strides = [1, 1, 1]} : vector<14x8x512xbf16> to vector<1x8x512xbf16>
    %60 = vector.shape_cast %59 : vector<1x8x512xbf16> to vector<8x512xbf16>
    %61 = vector.extract_strided_slice %43 {offsets = [7, 0, 0], sizes = [1, 8, 512], strides = [1, 1, 1]} : vector<14x8x512xbf16> to vector<1x8x512xbf16>
    %62 = vector.shape_cast %61 : vector<1x8x512xbf16> to vector<8x512xbf16>
    %63 = arith.maximumf %60, %62 : vector<8x512xbf16>
    %64 = vector.extract_strided_slice %43 {offsets = [8, 0, 0], sizes = [1, 8, 512], strides = [1, 1, 1]} : vector<14x8x512xbf16> to vector<1x8x512xbf16>
    %65 = vector.shape_cast %64 : vector<1x8x512xbf16> to vector<8x512xbf16>
    %66 = vector.extract_strided_slice %43 {offsets = [9, 0, 0], sizes = [1, 8, 512], strides = [1, 1, 1]} : vector<14x8x512xbf16> to vector<1x8x512xbf16>
    %67 = vector.shape_cast %66 : vector<1x8x512xbf16> to vector<8x512xbf16>
    %68 = arith.maximumf %65, %67 : vector<8x512xbf16>
    %69 = vector.extract_strided_slice %43 {offsets = [10, 0, 0], sizes = [1, 8, 512], strides = [1, 1, 1]} : vector<14x8x512xbf16> to vector<1x8x512xbf16>
    %70 = vector.shape_cast %69 : vector<1x8x512xbf16> to vector<8x512xbf16>
    %71 = vector.extract_strided_slice %43 {offsets = [11, 0, 0], sizes = [1, 8, 512], strides = [1, 1, 1]} : vector<14x8x512xbf16> to vector<1x8x512xbf16>
    %72 = vector.shape_cast %71 : vector<1x8x512xbf16> to vector<8x512xbf16>
    %73 = arith.maximumf %70, %72 : vector<8x512xbf16>
    %74 = vector.extract_strided_slice %43 {offsets = [12, 0, 0], sizes = [1, 8, 512], strides = [1, 1, 1]} : vector<14x8x512xbf16> to vector<1x8x512xbf16>
    %75 = vector.shape_cast %74 : vector<1x8x512xbf16> to vector<8x512xbf16>
    %76 = vector.extract_strided_slice %43 {offsets = [13, 0, 0], sizes = [1, 8, 512], strides = [1, 1, 1]} : vector<14x8x512xbf16> to vector<1x8x512xbf16>
    %77 = vector.shape_cast %76 : vector<1x8x512xbf16> to vector<8x512xbf16>
    %78 = arith.maximumf %75, %77 : vector<8x512xbf16>
    %79 = tpu.concatenate %48, %53, %58, %63, %68, %73, %78 in 1 : vector<8x512xbf16>, vector<8x512xbf16>, vector<8x512xbf16>, vector<8x512xbf16>, vector<8x512xbf16>, vector<8x512xbf16>, vector<8x512xbf16> -> vector<8x3584xbf16>
    %c0_17 = arith.constant 0 : index
    %c0_18 = arith.constant 0 : index
    %80 = vector.load %arg6[%c0_17, %c0_18] : memref<3584x128xbf16, #tpu.memory_space<vmem>>, vector<3584x128xbf16>
    %cst_19 = arith.constant dense<0.000000e+00> : vector<8x128xf32>
    %81 = tpu.matmul %79, %80, %cst_19 {dimension_numbers = #tpu.dot_dimension_numbers<[1], [0], [0], [1], [0, 0, 1, 1], [], []>} : vector<8x3584xbf16>, vector<3584x128xbf16>, vector<8x128xf32> -> vector<8x128xf32>
    %c0_20 = arith.constant 0 : index
    %c0_21 = arith.constant 0 : index
    %82 = vector.load %arg7[%c0_20, %c0_21] : memref<1x128xf32, #tpu.memory_space<vmem>>, vector<1x128xf32>
    %83 = vector.broadcast %82 : vector<1x128xf32> to vector<8x128xf32>
    %84 = arith.addf %81, %83 : vector<8x128xf32>
    %cst_22 = arith.constant 0.000000e+00 : f32
    %85 = vector.broadcast %cst_22 : f32 to vector<8x128xf32>
    %86 = arith.maximumf %84, %85 : vector<8x128xf32>
    %87 = arith.truncf %86 : vector<8x128xf32> to vector<8x128xbf16>
    %c0_23 = arith.constant 0 : index
    %c0_24 = arith.constant 0 : index
    %88 = vector.load %arg8[%c0_23, %c0_24] : memref<128x10xbf16, #tpu.memory_space<vmem>>, vector<128x10xbf16>
    %cst_25 = arith.constant dense<0.000000e+00> : vector<8x10xf32>
    %89 = tpu.matmul %87, %88, %cst_25 {dimension_numbers = #tpu.dot_dimension_numbers<[1], [0], [0], [1], [0, 0, 1, 1], [], []>} : vector<8x128xbf16>, vector<128x10xbf16>, vector<8x10xf32> -> vector<8x10xf32>
    %c0_26 = arith.constant 0 : index
    %c0_27 = arith.constant 0 : index
    %90 = vector.load %arg9[%c0_26, %c0_27] : memref<1x10xf32, #tpu.memory_space<vmem>>, vector<1x10xf32>
    %91 = vector.broadcast %90 : vector<1x10xf32> to vector<8x10xf32>
    %92 = arith.addf %89, %91 : vector<8x10xf32>
    %c0_28 = arith.constant 0 : index
    %c0_29 = arith.constant 0 : index
    %93 = vector.load %arg10[%c0_28, %c0_29] : memref<8x10xf32, #tpu.memory_space<vmem>>, vector<8x10xf32>
    tpu.vector_store %arg10[%c0_28, %c0_29], %92 {strides = array<i32>} : memref<8x10xf32, #tpu.memory_space<vmem>>, vector<8x10xf32>,
    return
  }
  func.func @transform_0(%arg0: i32) -> (i32, i32, i32) {
    %c0_i32 = arith.constant 0 : i32
    %c0_i32_0 = arith.constant 0 : i32
    %c0_i32_1 = arith.constant 0 : i32
    return %c0_i32, %arg0, %c0_i32_0 : i32, i32, i32
  }
  func.func @transform_1(%arg0: i32) -> (i32, i32) {
    %c0_i32 = arith.constant 0 : i32
    %c0_i32_0 = arith.constant 0 : i32
    %c0_i32_1 = arith.constant 0 : i32
    return %c0_i32, %c0_i32_0 : i32, i32
  }
  func.func @transform_2(%arg0: i32) -> (i32, i32) {
    %c0_i32 = arith.constant 0 : i32
    %c0_i32_0 = arith.constant 0 : i32
    %c0_i32_1 = arith.constant 0 : i32
    return %c0_i32, %c0_i32_0 : i32, i32
  }
  func.func @transform_3(%arg0: i32) -> (i32, i32) {
    %c0_i32 = arith.constant 0 : i32
    %c0_i32_0 = arith.constant 0 : i32
    %c0_i32_1 = arith.constant 0 : i32
    return %c0_i32, %c0_i32_0 : i32, i32
  }
  func.func @transform_4(%arg0: i32) -> (i32, i32) {
    %c0_i32 = arith.constant 0 : i32
    %c0_i32_0 = arith.constant 0 : i32
    %c0_i32_1 = arith.constant 0 : i32
    return %c0_i32, %c0_i32_0 : i32, i32
  }
  func.func @transform_5(%arg0: i32) -> (i32, i32) {
    %c0_i32 = arith.constant 0 : i32
    %c0_i32_0 = arith.constant 0 : i32
    %c0_i32_1 = arith.constant 0 : i32
    return %c0_i32, %c0_i32_0 : i32, i32
  }
  func.func @transform_6(%arg0: i32) -> (i32, i32) {
    %c0_i32 = arith.constant 0 : i32
    %c0_i32_0 = arith.constant 0 : i32
    %c0_i32_1 = arith.constant 0 : i32
    return %c0_i32, %c0_i32_0 : i32, i32
  }
  func.func @transform_7(%arg0: i32) -> (i32, i32) {
    %c0_i32 = arith.constant 0 : i32
    %c0_i32_0 = arith.constant 0 : i32
    %c0_i32_1 = arith.constant 0 : i32
    return %c0_i32, %c0_i32_0 : i32, i32
  }
  func.func @transform_8(%arg0: i32) -> (i32, i32) {
    %c0_i32 = arith.constant 0 : i32
    %c0_i32_0 = arith.constant 0 : i32
    %c0_i32_1 = arith.constant 0 : i32
    return %c0_i32, %c0_i32_0 : i32, i32
  }
  func.func @transform_9(%arg0: i32) -> (i32, i32) {
    %c0_i32 = arith.constant 0 : i32
    %c0_i32_0 = arith.constant 0 : i32
    return %arg0, %c0_i32 : i32, i32
  }
}

</mosaic_0001>

<llo_original>
// kernel: cnn_forward.1
$region0: #{cnn_forward.1}
  #allocation0 [shape = 'u32[]', space=smem, size = 0x4, offset = 0x4, fixed_abs, tag = 'smem constant byte address 0x4 - core index']
  #allocation1 [shape = 'u32[72,128]{1,0:T(1,128)}', space=vmem, size = 0x9000, scoped, tag = 'internal scratch']
  %s0 = inlined_call_operand.vmem [shape: bf16[28,8,28], index: 0, kind: input, shape index: {}]
  %s1 = inlined_call_operand.hbm [shape: bf16[84,512], index: 1, kind: input, shape index: {}]
  %s2 = inlined_call_operand.hbm [shape: f32[1,512], index: 2, kind: input, shape index: {}]
  %s3 = inlined_call_operand.hbm [shape: bf16[1536,512], index: 3, kind: input, shape index: {}]
  %s4 = inlined_call_operand.hbm [shape: f32[1,512], index: 4, kind: input, shape index: {}]
  %s5 = inlined_call_operand.hbm [shape: bf16[3584,128], index: 5, kind: input, shape index: {}]
  %s6 = inlined_call_operand.hbm [shape: f32[1,128], index: 6, kind: input, shape index: {}]
  %s7 = inlined_call_operand.vmem [shape: bf16[128,10], index: 7, kind: input, shape index: {}]
  %s8 = inlined_call_operand.hbm [shape: f32[1,10], index: 8, kind: input, shape index: {}]
  %s9 = inlined_call_operand.vmem [shape: f32[8,10], index: 9, kind: output, shape index: {}]
  %s10 = sld [smem:[#allocation0]]
  $region74: #{cnn_forward.1} parent=0
    _
  %s12 = ssub.s32 1, %s10
  %s13 = scalar_select 0, %s12, %s10
  $region1: #{cnn_forward.1} parent=0
    #allocation2 [shape = 'u8[90112]{0}', space=vmem, size = 0x16000, scoped, tag = 'input window, operand 1, single buffered']
    #allocation3 [shape = 's32[1]{0}', space=sflag, size = 0x4, scoped, tag = 'scoped memory for cnn_forward.1']
    #allocation4 [shape = 'u8[2048]{0}', space=vmem, size = 0x800, scoped, tag = 'input window, operand 2, single buffered']
    #allocation5 [shape = 's32[1]{0}', space=sflag, size = 0x4, scoped, tag = 'scoped memory for cnn_forward.1']
    #allocation6 [shape = 'u8[1572864]{0}', space=vmem, size = 0x180000, scoped, tag = 'input window, operand 3, single buffered']
    #allocation7 [shape = 'u8[2048]{0}', space=vmem, size = 0x800, scoped, tag = 'input window, operand 4, single buffered']
    #allocation8 [shape = 's32[1]{0}', space=sflag, size = 0x4, scoped, tag = 'scoped memory for cnn_forward.1']
    #allocation9 [shape = 'u8[917504]{0}', space=vmem, size = 0xe0000, scoped, tag = 'input window, operand 5, single buffered']
    #allocation10 [shape = 'u8[512]{0}', space=vmem, size = 0x400, scoped, tag = 'input window, operand 6, single buffered']
    #allocation11 [shape = 's32[1]{0}', space=sflag, size = 0x4, scoped, tag = 'scoped memory for cnn_forward.1']
    #allocation12 [shape = 'u8[512]{0}', space=vmem, size = 0x400, scoped, tag = 'input window, operand 8, single buffered']
    %14 = vsyncpa [#allocation3], 0
    %15 = vsyncpa [#allocation5], 0
    %16 = vsyncpa [#allocation8], 0
    %17 = vsyncpa [#allocation11], 0
    // Predicated region
    $region2: #{cnn_forward.1} parent=1 // pred_check
      _
    $region3: #{cnn_forward.1} parent=1 // pred_check_branch
      %19 = sbr.rel (0) target = $region5
    $region4: #{cnn_forward.1} parent=1 // pred_region
      _
    $region5: #{cnn_forward.1} parent=1 // pred_fallthru
      _
    // Predicated region
    $region6: #{cnn_forward.1} parent=1 // pred_check
      _
    $region7: #{cnn_forward.1} parent=1 // pred_check_branch
      %21 = sbr.rel (0) target = $region9
    $region8: #{cnn_forward.1} parent=1 // pred_region
      %23 = vsyncadd [#allocation3], 0
      %s24 = sshll.u32 %s1, 4
      %s25 = int_to_ptr.hbm [resolvable:$true] %s24
      %s26 = sshll.u32 [#allocation2], 4
      %s27 = int_to_ptr.vmem [resolvable:$true] %s26
      %32 = dma.hbm_to_vmem [thread:$0]  %s25, 2816, %s27, [#allocation3], 256, 256, 16
    $region9: #{cnn_forward.1} parent=1 // pred_fallthru
      _
    // Predicated region
    $region10: #{cnn_forward.1} parent=1 // pred_check
      _
    $region11: #{cnn_forward.1} parent=1 // pred_check_branch
      %34 = sbr.rel (0) target = $region13
    $region12: #{cnn_forward.1} parent=1 // pred_region
      %36 = vsyncadd [#allocation5], 0
      %s38 = sshll.u32 %s2, 4
      %s39 = int_to_ptr.hbm [resolvable:$true] %s38
      %s40 = sshll.u32 [#allocation4], 4
      %s41 = int_to_ptr.vmem [resolvable:$true] %s40
      %43 = dma.hbm_to_vmem [thread:$0]  %s39, 64, %s41, [#allocation5]
    $region13: #{cnn_forward.1} parent=1 // pred_fallthru
      _
    // Predicated region
    $region14: #{cnn_forward.1} parent=1 // pred_check
      _
    $region15: #{cnn_forward.1} parent=1 // pred_check_branch
      %45 = sbr.rel (0) target = $region17
    $region16: #{cnn_forward.1} parent=1 // pred_region
      %47 = vsyncadd [#allocation5], 0
      %s48 = sshll.u32 %s3, 4
      %s49 = int_to_ptr.hbm [resolvable:$true] %s48
      %s50 = sshll.u32 [#allocation6], 4
      %s51 = int_to_ptr.vmem [resolvable:$true] %s50
      %56 = dma.hbm_to_vmem [thread:$0]  %s49, 49152, %s51, [#allocation5], 256, 256, 16
    $region17: #{cnn_forward.1} parent=1 // pred_fallthru
      _
    // Predicated region
    $region18: #{cnn_forward.1} parent=1 // pred_check
      _
    $region19: #{cnn_forward.1} parent=1 // pred_check_branch
      %58 = sbr.rel (0) target = $region21
    $region20: #{cnn_forward.1} parent=1 // pred_region
      %60 = vsyncadd [#allocation8], 0
      %s62 = sshll.u32 %s4, 4
      %s63 = int_to_ptr.hbm [resolvable:$true] %s62
      %s64 = sshll.u32 [#allocation7], 4
      %s65 = int_to_ptr.vmem [resolvable:$true] %s64
      %67 = dma.hbm_to_vmem [thread:$0]  %s63, 64, %s65, [#allocation8]
    $region21: #{cnn_forward.1} parent=1 // pred_fallthru
      _
    // Predicated region
    $region22: #{cnn_forward.1} parent=1 // pred_check
      _
    $region23: #{cnn_forward.1} parent=1 // pred_check_branch
      %69 = sbr.rel (0) target = $region25
    $region24: #{cnn_forward.1} parent=1 // pred_region
      %71 = vsyncadd [#allocation8], 0
      %s72 = sshll.u32 %s5, 4
      %s73 = int_to_ptr.hbm [resolvable:$true] %s72
      %s74 = sshll.u32 [#allocation9], 4
      %s75 = int_to_ptr.vmem [resolvable:$true] %s74
      %80 = dma.hbm_to_vmem [thread:$0]  %s73, 28672, %s75, [#allocation8], 64, 64, 4
    $region25: #{cnn_forward.1} parent=1 // pred_fallthru
      _
    // Predicated region
    $region26: #{cnn_forward.1} parent=1 // pred_check
      _
    $region27: #{cnn_forward.1} parent=1 // pred_check_branch
      %82 = sbr.rel (0) target = $region29
    $region28: #{cnn_forward.1} parent=1 // pred_region
      %84 = vsyncadd [#allocation11], 0
      %s86 = sshll.u32 %s6, 4
      %s87 = int_to_ptr.hbm [resolvable:$true] %s86
      %s88 = sshll.u32 [#allocation10], 4
      %s89 = int_to_ptr.vmem [resolvable:$true] %s88
      %91 = dma.hbm_to_vmem [thread:$0]  %s87, 16, %s89, [#allocation11]
    $region29: #{cnn_forward.1} parent=1 // pred_fallthru
      _
    // Predicated region
    $region30: #{cnn_forward.1} parent=1 // pred_check
      _
    $region31: #{cnn_forward.1} parent=1 // pred_check_branch
      %93 = sbr.rel (0) target = $region33
    $region32: #{cnn_forward.1} parent=1 // pred_region
      _
    $region33: #{cnn_forward.1} parent=1 // pred_fallthru
      _
    // Predicated region
    $region34: #{cnn_forward.1} parent=1 // pred_check
      _
    $region35: #{cnn_forward.1} parent=1 // pred_check_branch
      %95 = sbr.rel (0) target = $region37
    $region36: #{cnn_forward.1} parent=1 // pred_region
      %97 = vsyncadd [#allocation11], 0
      %s99 = sshll.u32 %s8, 4
      %s100 = int_to_ptr.hbm [resolvable:$true] %s99
      %s101 = sshll.u32 [#allocation12], 4
      %s102 = int_to_ptr.vmem [resolvable:$true] %s101
      %104 = dma.hbm_to_vmem [thread:$0]  %s100, 16, %s102, [#allocation11]
    $region37: #{cnn_forward.1} parent=1 // pred_fallthru
      _
    // Predicated region
    $region38: #{cnn_forward.1} parent=1 // pred_check
      _
    $region39: #{cnn_forward.1} parent=1 // pred_check_branch
      %106 = sbr.rel (0) target = $region41
    $region40: #{cnn_forward.1} parent=1 // pred_region
      %108 = dma.done [#allocation3], 2816
    $region41: #{cnn_forward.1} parent=1 // pred_fallthru
      _
    // Predicated region
    $region42: #{cnn_forward.1} parent=1 // pred_check
      _
    $region43: #{cnn_forward.1} parent=1 // pred_check_branch
      %110 = sbr.rel (0) target = $region45
    $region44: #{cnn_forward.1} parent=1 // pred_region
      %112 = dma.done [#allocation5], 64
    $region45: #{cnn_forward.1} parent=1 // pred_fallthru
      _
    // Predicated region
    $region46: #{cnn_forward.1} parent=1 // pred_check
      _
    $region47: #{cnn_forward.1} parent=1 // pred_check_branch
      %114 = sbr.rel (0) target = $region49
    $region48: #{cnn_forward.1} parent=1 // pred_region
      %116 = dma.done [#allocation5], 49152
    $region49: #{cnn_forward.1} parent=1 // pred_fallthru
      _
    // Predicated region
    $region50: #{cnn_forward.1} parent=1 // pred_check
      _
    $region51: #{cnn_forward.1} parent=1 // pred_check_branch
      %118 = sbr.rel (0) target = $region53
    $region52: #{cnn_forward.1} parent=1 // pred_region
      %120 = dma.done [#allocation8], 64
    $region53: #{cnn_forward.1} parent=1 // pred_fallthru
      _
    // Predicated region
    $region54: #{cnn_forward.1} parent=1 // pred_check
      _
    $region55: #{cnn_forward.1} parent=1 // pred_check_branch
      %122 = sbr.rel (0) target = $region57
    $region56: #{cnn_forward.1} parent=1 // pred_region
      %124 = dma.done [#allocation8], 28672
    $region57: #{cnn_forward.1} parent=1 // pred_fallthru
      _
    // Predicated region
    $region58: #{cnn_forward.1} parent=1 // pred_check
      _
    $region59: #{cnn_forward.1} parent=1 // pred_check_branch
      %126 = sbr.rel (0) target = $region61
    $region60: #{cnn_forward.1} parent=1 // pred_region
      %128 = dma.done [#allocation11], 16
    $region61: #{cnn_forward.1} parent=1 // pred_fallthru
      _
    // Predicated region
    $region62: #{cnn_forward.1} parent=1 // pred_check
      _
    $region63: #{cnn_forward.1} parent=1 // pred_check_branch
      %130 = sbr.rel (0) target = $region65
    $region64: #{cnn_forward.1} parent=1 // pred_region
      %132 = dma.done [#allocation11], 16
    $region65: #{cnn_forward.1} parent=1 // pred_fallthru
      _
    %v134 = vld [vmem:[%s0] sm:$0xf]
    %v135 = vld [vmem:[%s0 + $0x4] sm:$0xf]
    %v136 = vld [vmem:[%s0 + $0x8] sm:$0xf]
    %v137 = vld [vmem:[%s0 + $0xc] sm:$0xf]
    %v138 = vld [vmem:[%s0 + $0x10] sm:$0xf]
    %v139 = vld [vmem:[%s0 + $0x14] sm:$0xf]
    %v140 = vld [vmem:[%s0 + $0x18] sm:$0xf]
    %v141 = vld [vmem:[%s0 + $0x1c] sm:$0xf]
    %v142 = vld [vmem:[%s0 + $0x20] sm:$0xf]
    %v143 = vld [vmem:[%s0 + $0x24] sm:$0xf]
    %v144 = vld [vmem:[%s0 + $0x28] sm:$0xf]
    %v145 = vld [vmem:[%s0 + $0x2c] sm:$0xf]
    %v146 = vld [vmem:[%s0 + $0x30] sm:$0xf]
    %v147 = vld [vmem:[%s0 + $0x34] sm:$0xf]
    %v148 = vld [vmem:[%s0 + $0x38] sm:$0xf]
    %v149 = vld [vmem:[%s0 + $0x3c] sm:$0xf]
    %v150 = vld [vmem:[%s0 + $0x40] sm:$0xf]
    %v151 = vld [vmem:[%s0 + $0x44] sm:$0xf]
    %v152 = vld [vmem:[%s0 + $0x48] sm:$0xf]
    %v153 = vld [vmem:[%s0 + $0x4c] sm:$0xf]
    %v154 = vld [vmem:[%s0 + $0x50] sm:$0xf]
    %v155 = vld [vmem:[%s0 + $0x54] sm:$0xf]
    %v156 = vld [vmem:[%s0 + $0x58] sm:$0xf]
    %v157 = vld [vmem:[%s0 + $0x5c] sm:$0xf]
    %v158 = vld [vmem:[%s0 + $0x60] sm:$0xf]
    %v159 = vld [vmem:[%s0 + $0x64] sm:$0xf]
    %v160 = vld [vmem:[%s0 + $0x68] sm:$0xf]
    %v161 = vld [vmem:[%s0 + $0x6c] sm:$0xf]
    %v190 = vunpack.c.l.b16 %v134
    %v191 = vunpack.c.l.b16 %v135
    %v192 = vunpack.c.l.b16 %v136
    %v193 = vunpack.c.l.b16 %v137
    %v194 = vunpack.c.l.b16 %v138
    %v195 = vunpack.c.l.b16 %v139
    %v196 = vunpack.c.l.b16 %v140
    %v197 = vunpack.c.l.b16 %v141
    %v198 = vunpack.c.l.b16 %v142
    %v199 = vunpack.c.l.b16 %v143
    %v200 = vunpack.c.l.b16 %v144
    %v201 = vunpack.c.l.b16 %v145
    %v202 = vunpack.c.l.b16 %v146
    %v203 = vunpack.c.l.b16 %v147
    %v204 = vunpack.c.l.b16 %v148
    %v205 = vunpack.c.l.b16 %v149
    %v206 = vunpack.c.l.b16 %v150
    %v207 = vunpack.c.l.b16 %v151
    %v208 = vunpack.c.l.b16 %v152
    %v209 = vunpack.c.l.b16 %v153
    %v210 = vunpack.c.l.b16 %v154
    %v211 = vunpack.c.l.b16 %v155
    %v212 = vunpack.c.l.b16 %v156
    %v213 = vunpack.c.l.b16 %v157
    %v214 = vunpack.c.l.b16 %v158
    %v215 = vunpack.c.l.b16 %v159
    %v216 = vunpack.c.l.b16 %v160
    %v217 = vunpack.c.l.b16 %v161
    %v218 = vpack.c.b16 %v190, %v190
    %v219 = vpack.c.b16 %v191, %v191
    %v220 = vpack.c.b16 %v192, %v192
    %v221 = vpack.c.b16 %v193, %v193
    %v222 = vpack.c.b16 %v194, %v194
    %v223 = vpack.c.b16 %v195, %v195
    %v224 = vpack.c.b16 %v196, %v196
    %v225 = vpack.c.b16 %v197, %v197
    %v226 = vpack.c.b16 %v198, %v198
    %v227 = vpack.c.b16 %v199, %v199
    %v228 = vpack.c.b16 %v200, %v200
    %v229 = vpack.c.b16 %v201, %v201
    %v230 = vpack.c.b16 %v202, %v202
    %v231 = vpack.c.b16 %v203, %v203
    %v232 = vpack.c.b16 %v204, %v204
    %v233 = vpack.c.b16 %v205, %v205
    %v234 = vpack.c.b16 %v206, %v206
    %v235 = vpack.c.b16 %v207, %v207
    %v236 = vpack.c.b16 %v208, %v208
    %v237 = vpack.c.b16 %v209, %v209
    %v238 = vpack.c.b16 %v210, %v210
    %v239 = vpack.c.b16 %v211, %v211
    %v240 = vpack.c.b16 %v212, %v212
    %v241 = vpack.c.b16 %v213, %v213
    %v242 = vpack.c.b16 %v214, %v214
    %v243 = vpack.c.b16 %v215, %v215
    %v244 = vpack.c.b16 %v216, %v216
    %v245 = vpack.c.b16 %v217, %v217
    %246 = vrot.lane.b32.xlu0 %v218, 28
    %v247 = vpop.permute.xlu0 %246
    %248 = vrot.lane.b32.xlu0 %v219, 28
    %v249 = vpop.permute.xlu0 %248
    %250 = vrot.lane.b32.xlu0 %v220, 28
    %v251 = vpop.permute.xlu0 %250
    %252 = vrot.lane.b32.xlu0 %v221, 28
    %v253 = vpop.permute.xlu0 %252
    %254 = vrot.lane.b32.xlu0 %v222, 28
    %v255 = vpop.permute.xlu0 %254
    %256 = vrot.lane.b32.xlu0 %v223, 28
    %v257 = vpop.permute.xlu0 %256
    %258 = vrot.lane.b32.xlu0 %v224, 28
    %v259 = vpop.permute.xlu0 %258
    %260 = vrot.lane.b32.xlu0 %v225, 28
    %v261 = vpop.permute.xlu0 %260
    %262 = vrot.lane.b32.xlu0 %v226, 28
    %v263 = vpop.permute.xlu0 %262
    %264 = vrot.lane.b32.xlu0 %v227, 28
    %v265 = vpop.permute.xlu0 %264
    %266 = vrot.lane.b32.xlu0 %v228, 28
    %v267 = vpop.permute.xlu0 %266
    %268 = vrot.lane.b32.xlu0 %v229, 28
    %v269 = vpop.permute.xlu0 %268
    %270 = vrot.lane.b32.xlu0 %v230, 28
    %v271 = vpop.permute.xlu0 %270
    %272 = vrot.lane.b32.xlu0 %v231, 28
    %v273 = vpop.permute.xlu0 %272
    %274 = vrot.lane.b32.xlu0 %v232, 28
    %v275 = vpop.permute.xlu0 %274
    %276 = vrot.lane.b32.xlu0 %v233, 28
    %v277 = vpop.permute.xlu0 %276
    %278 = vrot.lane.b32.xlu0 %v234, 28
    %v279 = vpop.permute.xlu0 %278
    %280 = vrot.lane.b32.xlu0 %v235, 28
    %v281 = vpop.permute.xlu0 %280
    %282 = vrot.lane.b32.xlu0 %v236, 28
    %v283 = vpop.permute.xlu0 %282
    %284 = vrot.lane.b32.xlu0 %v237, 28
    %v285 = vpop.permute.xlu0 %284
    %286 = vrot.lane.b32.xlu0 %v238, 28
    %v287 = vpop.permute.xlu0 %286
    %288 = vrot.lane.b32.xlu0 %v239, 28
    %v289 = vpop.permute.xlu0 %288
    %290 = vrot.lane.b32.xlu0 %v240, 28
    %v291 = vpop.permute.xlu0 %290
    %292 = vrot.lane.b32.xlu0 %v241, 28
    %v293 = vpop.permute.xlu0 %292
    %294 = vrot.lane.b32.xlu0 %v242, 28
    %v295 = vpop.permute.xlu0 %294
    %296 = vrot.lane.b32.xlu0 %v243, 28
    %v297 = vpop.permute.xlu0 %296
    %298 = vrot.lane.b32.xlu0 %v244, 28
    %v299 = vpop.permute.xlu0 %298
    %300 = vrot.lane.b32.xlu0 %v245, 28
    %v301 = vpop.permute.xlu0 %300
    %v303 = vunpack.c.l.b16 0
    %v304 = vpack.c.b16 %v303, %v303
    %305 = vrot.lane.b32.xlu0 %v219, 56
    %v306 = vpop.permute.xlu0 %305
    %307 = vrot.lane.b32.xlu0 %v220, 56
    %v308 = vpop.permute.xlu0 %307
    %309 = vrot.lane.b32.xlu0 %v221, 56
    %v310 = vpop.permute.xlu0 %309
    %311 = vrot.lane.b32.xlu0 %v222, 56
    %v312 = vpop.permute.xlu0 %311
    %313 = vrot.lane.b32.xlu0 %v223, 56
    %v314 = vpop.permute.xlu0 %313
    %315 = vrot.lane.b32.xlu0 %v224, 56
    %v316 = vpop.permute.xlu0 %315
    %317 = vrot.lane.b32.xlu0 %v225, 56
    %v318 = vpop.permute.xlu0 %317
    %319 = vrot.lane.b32.xlu0 %v226, 56
    %v320 = vpop.permute.xlu0 %319
    %321 = vrot.lane.b32.xlu0 %v227, 56
    %v322 = vpop.permute.xlu0 %321
    %323 = vrot.lane.b32.xlu0 %v228, 56
    %v324 = vpop.permute.xlu0 %323
    %325 = vrot.lane.b32.xlu0 %v229, 56
    %v326 = vpop.permute.xlu0 %325
    %327 = vrot.lane.b32.xlu0 %v230, 56
    %v328 = vpop.permute.xlu0 %327
    %329 = vrot.lane.b32.xlu0 %v231, 56
    %v330 = vpop.permute.xlu0 %329
    %331 = vrot.lane.b32.xlu0 %v232, 56
    %v332 = vpop.permute.xlu0 %331
    %333 = vrot.lane.b32.xlu0 %v233, 56
    %v334 = vpop.permute.xlu0 %333
    %335 = vrot.lane.b32.xlu0 %v234, 56
    %v336 = vpop.permute.xlu0 %335
    %337 = vrot.lane.b32.xlu0 %v235, 56
    %v338 = vpop.permute.xlu0 %337
    %339 = vrot.lane.b32.xlu0 %v236, 56
    %v340 = vpop.permute.xlu0 %339
    %341 = vrot.lane.b32.xlu0 %v237, 56
    %v342 = vpop.permute.xlu0 %341
    %343 = vrot.lane.b32.xlu0 %v238, 56
    %v344 = vpop.permute.xlu0 %343
    %345 = vrot.lane.b32.xlu0 %v239, 56
    %v346 = vpop.permute.xlu0 %345
    %347 = vrot.lane.b32.xlu0 %v240, 56
    %v348 = vpop.permute.xlu0 %347
    %349 = vrot.lane.b32.xlu0 %v241, 56
    %v350 = vpop.permute.xlu0 %349
    %351 = vrot.lane.b32.xlu0 %v242, 56
    %v352 = vpop.permute.xlu0 %351
    %353 = vrot.lane.b32.xlu0 %v243, 56
    %v354 = vpop.permute.xlu0 %353
    %355 = vrot.lane.b32.xlu0 %v244, 56
    %v356 = vpop.permute.xlu0 %355
    %357 = vrot.lane.b32.xlu0 %v245, 56
    %v358 = vpop.permute.xlu0 %357
    %359 = vrot.lane.b32.xlu0 %v304, 56
    %v360 = vpop.permute.xlu0 %359
    %vm361 = vcmask 228352
    %v364 = vsel %vm361, 0, %v247
    %v367 = vsel %vm361, %v134, %v249
    %v370 = vsel %vm361, %v135, %v251
    %v373 = vsel %vm361, %v136, %v253
    %v376 = vsel %vm361, %v137, %v255
    %v379 = vsel %vm361, %v138, %v257
    %v382 = vsel %vm361, %v139, %v259
    %v385 = vsel %vm361, %v140, %v261
    %v388 = vsel %vm361, %v141, %v263
    %v391 = vsel %vm361, %v142, %v265
    %v394 = vsel %vm361, %v143, %v267
    %v397 = vsel %vm361, %v144, %v269
    %v400 = vsel %vm361, %v145, %v271
    %v403 = vsel %vm361, %v146, %v273
    %v406 = vsel %vm361, %v147, %v275
    %v409 = vsel %vm361, %v148, %v277
    %v412 = vsel %vm361, %v149, %v279
    %v415 = vsel %vm361, %v150, %v281
    %v418 = vsel %vm361, %v151, %v283
    %v421 = vsel %vm361, %v152, %v285
    %v424 = vsel %vm361, %v153, %v287
    %v427 = vsel %vm361, %v154, %v289
    %v430 = vsel %vm361, %v155, %v291
    %v433 = vsel %vm361, %v156, %v293
    %v436 = vsel %vm361, %v157, %v295
    %v439 = vsel %vm361, %v158, %v297
    %v442 = vsel %vm361, %v159, %v299
    %v445 = vsel %vm361, %v160, %v301
    %vm446 = vcmask 457728
    %v448 = vsel %vm446, %v364, %v306
    %v450 = vsel %vm446, %v367, %v308
    %v452 = vsel %vm446, %v370, %v310
    %v454 = vsel %vm446, %v373, %v312
    %v456 = vsel %vm446, %v376, %v314
    %v458 = vsel %vm446, %v379, %v316
    %v460 = vsel %vm446, %v382, %v318
    %v462 = vsel %vm446, %v385, %v320
    %v464 = vsel %vm446, %v388, %v322
    %v466 = vsel %vm446, %v391, %v324
    %v468 = vsel %vm446, %v394, %v326
    %v470 = vsel %vm446, %v397, %v328
    %v472 = vsel %vm446, %v400, %v330
    %v474 = vsel %vm446, %v403, %v332
    %v476 = vsel %vm446, %v406, %v334
    %v478 = vsel %vm446, %v409, %v336
    %v480 = vsel %vm446, %v412, %v338
    %v482 = vsel %vm446, %v415, %v340
    %v484 = vsel %vm446, %v418, %v342
    %v486 = vsel %vm446, %v421, %v344
    %v488 = vsel %vm446, %v424, %v346
    %v490 = vsel %vm446, %v427, %v348
    %v492 = vsel %vm446, %v430, %v350
    %v494 = vsel %vm446, %v433, %v352
    %v496 = vsel %vm446, %v436, %v354
    %v498 = vsel %vm446, %v439, %v356
    %v500 = vsel %vm446, %v442, %v358
    %v502 = vsel %vm446, %v445, %v360
    %v503 = vld [vmem:[#allocation2] sm:$0xff]
    %v504 = vld [vmem:[#allocation2 + $0x8] sm:$0xff]
    %v505 = vld [vmem:[#allocation2 + $0x10] sm:$0xff]
    %v506 = vld [vmem:[#allocation2 + $0x18] sm:$0xff]
    %v507 = vld [vmem:[#allocation2 + $0x20] sm:$0xff]
    %v508 = vld [vmem:[#allocation2 + $0x28] sm:$0xff]
    %v509 = vld [vmem:[#allocation2 + $0x30] sm:$0xff]
    %v510 = vld [vmem:[#allocation2 + $0x38] sm:$0xff]
    %v511 = vld [vmem:[#allocation2 + $0x40] sm:$0xff]
    %v512 = vld [vmem:[#allocation2 + $0x48] sm:$0xff]
    %v513 = vld [vmem:[#allocation2 + $0x50] sm:$0xff]
    %v514 = vld [vmem:[#allocation2 + $0x58] sm:$0xff]
    %v515 = vld [vmem:[#allocation2 + $0x60] sm:$0xff]
    %v516 = vld [vmem:[#allocation2 + $0x68] sm:$0xff]
    %v517 = vld [vmem:[#allocation2 + $0x70] sm:$0xff]
    %v518 = vld [vmem:[#allocation2 + $0x78] sm:$0xff]
    %v519 = vld [vmem:[#allocation2 + $0x80] sm:$0xff]
    %v520 = vld [vmem:[#allocation2 + $0x88] sm:$0xff]
    %v521 = vld [vmem:[#allocation2 + $0x90] sm:$0xff]
    %v522 = vld [vmem:[#allocation2 + $0x98] sm:$0xff]
    %v523 = vld [vmem:[#allocation2 + $0xa0] sm:$0x33]
    %v524 = vld [vmem:[#allocation2 + $0xa8] sm:$0x33]
    %v525 = vld [vmem:[#allocation4] sm:$0xf]
    %v527 = vperm.slane %v525, 0
    %v528 = vperm.slane %v525, 1
    %v529 = vperm.slane %v525, 2
    %v530 = vperm.slane %v525, 3
    %v563 = vunpack.c.l.b16 %v448
    %v564 = vunpack.c.l.b16 %v450
    %v565 = vunpack.c.l.b16 %v452
    %v566 = vunpack.c.l.b16 %v454
    %v567 = vunpack.c.l.b16 %v456
    %v568 = vunpack.c.l.b16 %v458
    %v569 = vunpack.c.l.b16 %v460
    %v570 = vunpack.c.l.b16 %v462
    %v571 = vunpack.c.l.b16 %v464
    %v572 = vunpack.c.l.b16 %v466
    %v573 = vunpack.c.l.b16 %v468
    %v574 = vunpack.c.l.b16 %v470
    %v575 = vunpack.c.l.b16 %v472
    %v576 = vunpack.c.l.b16 %v474
    %v577 = vunpack.c.l.b16 %v476
    %v578 = vunpack.c.l.b16 %v478
    %v579 = vunpack.c.l.b16 %v480
    %v580 = vunpack.c.l.b16 %v482
    %v581 = vunpack.c.l.b16 %v484
    %v582 = vunpack.c.l.b16 %v486
    %v583 = vunpack.c.l.b16 %v488
    %v584 = vunpack.c.l.b16 %v490
    %v585 = vunpack.c.l.b16 %v492
    %v586 = vunpack.c.l.b16 %v494
    %v587 = vunpack.c.l.b16 %v496
    %v588 = vunpack.c.l.b16 %v498
    %v589 = vunpack.c.l.b16 %v500
    %v590 = vunpack.c.l.b16 %v502
    %v591 = vpack.c.b16 %v564, %v563
    %v592 = vpack.c.b16 %v566, %v565
    %v593 = vpack.c.b16 %v568, %v567
    %v594 = vpack.c.b16 %v570, %v569
    %v595 = vpack.c.b16 %v572, %v571
    %v596 = vpack.c.b16 %v574, %v573
    %v597 = vpack.c.b16 %v576, %v575
    %v598 = vpack.c.b16 %v578, %v577
    %v599 = vpack.c.b16 %v580, %v579
    %v600 = vpack.c.b16 %v582, %v581
    %v601 = vpack.c.b16 %v584, %v583
    %v602 = vpack.c.b16 %v586, %v585
    %v603 = vpack.c.b16 %v588, %v587
    %v604 = vpack.c.b16 %v590, %v589
    %v627 = vunpack.c.l.b16 %v503
    %v628 = vunpack.c.h.b16 %v503
    %v629 = vunpack.c.l.b16 %v504
    %v630 = vunpack.c.h.b16 %v504
    %v631 = vunpack.c.l.b16 %v505
    %v632 = vunpack.c.h.b16 %v505
    %v633 = vunpack.c.l.b16 %v506
    %v634 = vunpack.c.h.b16 %v506
    %v635 = vunpack.c.l.b16 %v507
    %v636 = vunpack.c.h.b16 %v507
    %v637 = vunpack.c.l.b16 %v508
    %v638 = vunpack.c.h.b16 %v508
    %v639 = vunpack.c.l.b16 %v509
    %v640 = vunpack.c.h.b16 %v509
    %v641 = vunpack.c.l.b16 %v510
    %v642 = vunpack.c.h.b16 %v510
    %v643 = vunpack.c.l.b16 %v511
    %v644 = vunpack.c.h.b16 %v511
    %v645 = vunpack.c.l.b16 %v512
    %v646 = vunpack.c.h.b16 %v512
    %v647 = vunpack.c.l.b16 %v513
    %v648 = vunpack.c.h.b16 %v513
    %v649 = vunpack.c.l.b16 %v514
    %v650 = vunpack.c.h.b16 %v514
    %v651 = vunpack.c.l.b16 %v515
    %v652 = vunpack.c.h.b16 %v515
    %v653 = vunpack.c.l.b16 %v516
    %v654 = vunpack.c.h.b16 %v516
    %v655 = vunpack.c.l.b16 %v517
    %v656 = vunpack.c.h.b16 %v517
    %v657 = vunpack.c.l.b16 %v518
    %v658 = vunpack.c.h.b16 %v518
    %v659 = vunpack.c.l.b16 %v519
    %v660 = vunpack.c.h.b16 %v519
    %v661 = vunpack.c.l.b16 %v520
    %v662 = vunpack.c.h.b16 %v520
    %v663 = vunpack.c.l.b16 %v521
    %v664 = vunpack.c.h.b16 %v521
    %v665 = vunpack.c.l.b16 %v522
    %v666 = vunpack.c.h.b16 %v522
    %v667 = vunpack.c.l.b16 %v523
    %v668 = vunpack.c.h.b16 %v523
    %v669 = vunpack.c.l.b16 %v524
    %v670 = vunpack.c.h.b16 %v524
    %v671 = vpack.c.b16 %v631, %v627
    %v672 = vpack.c.b16 %v632, %v628
    %v673 = vpack.c.b16 %v633, %v629
    %v674 = vpack.c.b16 %v634, %v630
    %v675 = vpack.c.b16 %v639, %v635
    %v676 = vpack.c.b16 %v640, %v636
    %v677 = vpack.c.b16 %v641, %v637
    %v678 = vpack.c.b16 %v642, %v638
    %v679 = vpack.c.b16 %v647, %v643
    %v680 = vpack.c.b16 %v648, %v644
    %v681 = vpack.c.b16 %v649, %v645
    %v682 = vpack.c.b16 %v650, %v646
    %v683 = vpack.c.b16 %v655, %v651
    %v684 = vpack.c.b16 %v656, %v652
    %v685 = vpack.c.b16 %v657, %v653
    %v686 = vpack.c.b16 %v658, %v654
    %v687 = vpack.c.b16 %v663, %v659
    %v688 = vpack.c.b16 %v664, %v660
    %v689 = vpack.c.b16 %v665, %v661
    %v690 = vpack.c.b16 %v666, %v662
    %v691 = vpack.c.b16 %v667, %v667
    %v692 = vpack.c.b16 %v668, %v668
    %v693 = vpack.c.b16 %v669, %v669
    %v694 = vpack.c.b16 %v670, %v670
    %vm715 = vcmask 687104
    %v717 = vsel %vm715, %v591, 0
    %v720 = vsel %vm715, %v592, 0
    %v723 = vsel %vm715, %v593, 0
    %v726 = vsel %vm715, %v594, 0
    %v729 = vsel %vm715, %v595, 0
    %v732 = vsel %vm715, %v596, 0
    %v735 = vsel %vm715, %v597, 0
    %v738 = vsel %vm715, %v598, 0
    %v741 = vsel %vm715, %v599, 0
    %v744 = vsel %vm715, %v600, 0
    %v747 = vsel %vm715, %v601, 0
    %v750 = vsel %vm715, %v602, 0
    %v753 = vsel %vm715, %v603, 0
    %v756 = vsel %vm715, %v604, 0
    %vm758 = vcmask 1041408
    %v760 = vsel %vm758, %v691, 0
    %v763 = vsel %vm758, %v692, 0
    %v766 = vsel %vm758, %v693, 0
    %v769 = vsel %vm758, %v694, 0
    %771 = vmatpush.bf16.msra.mxu0 0
    %772 = vmatpush.bf16.msra.mxu0 0
    %773 = vmatpush.bf16.msra.mxu0 %v760
    %774 = vmatpush.bf16.msra.mxu0 %v687
    %775 = vmatpush.bf16.msra.mxu0 %v683
    %776 = vmatpush.bf16.msra.mxu0 %v679
    %777 = vmatpush.bf16.msra.mxu0 %v675
    %778 = vmatpush.bf16.msra.mxu0 %v671
    %779 = vmatmul.bf16.gmra.mxu0 %v717
    %v780 = vpop.f32.mrf.mxu0
    %v781 = vadd.f32 %v527, %v780
    %v782 = vpop.f32.mrf.mxu0
    %v783 = vadd.f32 %v527, %v782
    %784 = vmatmul.bf16.gmra.mxu0 %v720
    %v785 = vpop.f32.mrf.mxu0
    %v786 = vadd.f32 %v527, %v785
    %v787 = vpop.f32.mrf.mxu0
    %v788 = vadd.f32 %v527, %v787
    %789 = vmatmul.bf16.gmra.mxu0 %v723
    %v790 = vpop.f32.mrf.mxu0
    %v791 = vadd.f32 %v527, %v790
    %v792 = vpop.f32.mrf.mxu0
    %v793 = vadd.f32 %v527, %v792
    %794 = vmatmul.bf16.gmra.mxu0 %v726
    %v795 = vpop.f32.mrf.mxu0
    %v796 = vadd.f32 %v527, %v795
    %v797 = vpop.f32.mrf.mxu0
    %v798 = vadd.f32 %v527, %v797
    %799 = vmatmul.bf16.gmra.mxu0 %v729
    %v800 = vpop.f32.mrf.mxu0
    %v801 = vadd.f32 %v527, %v800
    %v802 = vpop.f32.mrf.mxu0
    %v803 = vadd.f32 %v527, %v802
    %804 = vmatmul.bf16.gmra.mxu0 %v732
    %v805 = vpop.f32.mrf.mxu0
    %v806 = vadd.f32 %v527, %v805
    %v807 = vpop.f32.mrf.mxu0
    %v808 = vadd.f32 %v527, %v807
    %809 = vmatmul.bf16.gmra.mxu0 %v735
    %v810 = vpop.f32.mrf.mxu0
    %v811 = vadd.f32 %v527, %v810
    %v812 = vpop.f32.mrf.mxu0
    %v813 = vadd.f32 %v527, %v812
    %814 = vmatmul.bf16.gmra.mxu0 %v738
    %v815 = vpop.f32.mrf.mxu0
    %v816 = vadd.f32 %v527, %v815
    %v817 = vpop.f32.mrf.mxu0
    %v818 = vadd.f32 %v527, %v817
    %819 = vmatmul.bf16.gmra.mxu0 %v741
    %v820 = vpop.f32.mrf.mxu0
    %v821 = vadd.f32 %v527, %v820
    %v822 = vpop.f32.mrf.mxu0
    %v823 = vadd.f32 %v527, %v822
    %824 = vmatmul.bf16.gmra.mxu0 %v744
    %v825 = vpop.f32.mrf.mxu0
    %v826 = vadd.f32 %v527, %v825
    %v827 = vpop.f32.mrf.mxu0
    %v828 = vadd.f32 %v527, %v827
    %829 = vmatmul.bf16.gmra.mxu0 %v747
    %v830 = vpop.f32.mrf.mxu0
    %v831 = vadd.f32 %v527, %v830
    %v832 = vpop.f32.mrf.mxu0
    %v833 = vadd.f32 %v527, %v832
    %834 = vmatmul.bf16.gmra.mxu0 %v750
    %v835 = vpop.f32.mrf.mxu0
    %v836 = vadd.f32 %v527, %v835
    %v837 = vpop.f32.mrf.mxu0
    %v838 = vadd.f32 %v527, %v837
    %839 = vmatmul.bf16.gmra.mxu0 %v753
    %v840 = vpop.f32.mrf.mxu0
    %v841 = vadd.f32 %v527, %v840
    %v842 = vpop.f32.mrf.mxu0
    %v843 = vadd.f32 %v527, %v842
    %844 = vmatmul.bf16.gmra.mxu0 %v756
    %v845 = vpop.f32.mrf.mxu0
    %v846 = vadd.f32 %v527, %v845
    %v847 = vpop.f32.mrf.mxu0
    %v848 = vadd.f32 %v527, %v847
    %849 = vdwg.mxu0
    %850 = vmatpush.bf16.msra.mxu0 0
    %851 = vmatpush.bf16.msra.mxu0 0
    %852 = vmatpush.bf16.msra.mxu0 %v763
    %853 = vmatpush.bf16.msra.mxu0 %v688
    %854 = vmatpush.bf16.msra.mxu0 %v684
    %855 = vmatpush.bf16.msra.mxu0 %v680
    %856 = vmatpush.bf16.msra.mxu0 %v676
    %857 = vmatpush.bf16.msra.mxu0 %v672
    %858 = vmatmul.bf16.gmra.mxu0 %v717
    %v859 = vpop.f32.mrf.mxu0
    %v860 = vadd.f32 %v528, %v859
    %v861 = vpop.f32.mrf.mxu0
    %v862 = vadd.f32 %v528, %v861
    %863 = vmatmul.bf16.gmra.mxu0 %v720
    %v864 = vpop.f32.mrf.mxu0
    %v865 = vadd.f32 %v528, %v864
    %v866 = vpop.f32.mrf.mxu0
    %v867 = vadd.f32 %v528, %v866
    %868 = vmatmul.bf16.gmra.mxu0 %v723
    %v869 = vpop.f32.mrf.mxu0
    %v870 = vadd.f32 %v528, %v869
    %v871 = vpop.f32.mrf.mxu0
    %v872 = vadd.f32 %v528, %v871
    %873 = vmatmul.bf16.gmra.mxu0 %v726
    %v874 = vpop.f32.mrf.mxu0
    %v875 = vadd.f32 %v528, %v874
    %v876 = vpop.f32.mrf.mxu0
    %v877 = vadd.f32 %v528, %v876
    %878 = vmatmul.bf16.gmra.mxu0 %v729
    %v879 = vpop.f32.mrf.mxu0
    %v880 = vadd.f32 %v528, %v879
    %v881 = vpop.f32.mrf.mxu0
    %v882 = vadd.f32 %v528, %v881
    %883 = vmatmul.bf16.gmra.mxu0 %v732
    %v884 = vpop.f32.mrf.mxu0
    %v885 = vadd.f32 %v528, %v884
    %v886 = vpop.f32.mrf.mxu0
    %v887 = vadd.f32 %v528, %v886
    %888 = vmatmul.bf16.gmra.mxu0 %v735
    %v889 = vpop.f32.mrf.mxu0
    %v890 = vadd.f32 %v528, %v889
    %v891 = vpop.f32.mrf.mxu0
    %v892 = vadd.f32 %v528, %v891
    %893 = vmatmul.bf16.gmra.mxu0 %v738
    %v894 = vpop.f32.mrf.mxu0
    %v895 = vadd.f32 %v528, %v894
    %v896 = vpop.f32.mrf.mxu0
    %v897 = vadd.f32 %v528, %v896
    %898 = vmatmul.bf16.gmra.mxu0 %v741
    %v899 = vpop.f32.mrf.mxu0
    %v900 = vadd.f32 %v528, %v899
    %v901 = vpop.f32.mrf.mxu0
    %v902 = vadd.f32 %v528, %v901
    %903 = vmatmul.bf16.gmra.mxu0 %v744
    %v904 = vpop.f32.mrf.mxu0
    %v905 = vadd.f32 %v528, %v904
    %v906 = vpop.f32.mrf.mxu0
    %v907 = vadd.f32 %v528, %v906
    %908 = vmatmul.bf16.gmra.mxu0 %v747
    %v909 = vpop.f32.mrf.mxu0
    %v910 = vadd.f32 %v528, %v909
    %v911 = vpop.f32.mrf.mxu0
    %v912 = vadd.f32 %v528, %v911
    %913 = vmatmul.bf16.gmra.mxu0 %v750
    %v914 = vpop.f32.mrf.mxu0
    %v915 = vadd.f32 %v528, %v914
    %v916 = vpop.f32.mrf.mxu0
    %v917 = vadd.f32 %v528, %v916
    %918 = vmatmul.bf16.gmra.mxu0 %v753
    %v919 = vpop.f32.mrf.mxu0
    %v920 = vadd.f32 %v528, %v919
    %v921 = vpop.f32.mrf.mxu0
    %v922 = vadd.f32 %v528, %v921
    %923 = vmatmul.bf16.gmra.mxu0 %v756
    %v924 = vpop.f32.mrf.mxu0
    %v925 = vadd.f32 %v528, %v924
    %v926 = vpop.f32.mrf.mxu0
    %v927 = vadd.f32 %v528, %v926
    %928 = vdwg.mxu0
    %929 = vmatpush.bf16.msra.mxu0 0
    %930 = vmatpush.bf16.msra.mxu0 0
    %931 = vmatpush.bf16.msra.mxu0 %v766
    %932 = vmatpush.bf16.msra.mxu0 %v689
    %933 = vmatpush.bf16.msra.mxu0 %v685
    %934 = vmatpush.bf16.msra.mxu0 %v681
    %935 = vmatpush.bf16.msra.mxu0 %v677
    %936 = vmatpush.bf16.msra.mxu0 %v673
    %937 = vmatmul.bf16.gmra.mxu0 %v717
    %v938 = vpop.f32.mrf.mxu0
    %v939 = vadd.f32 %v529, %v938
    %v940 = vpop.f32.mrf.mxu0
    %v941 = vadd.f32 %v529, %v940
    %942 = vmatmul.bf16.gmra.mxu0 %v720
    %v943 = vpop.f32.mrf.mxu0
    %v944 = vadd.f32 %v529, %v943
    %v945 = vpop.f32.mrf.mxu0
    %v946 = vadd.f32 %v529, %v945
    %947 = vmatmul.bf16.gmra.mxu0 %v723
    %v948 = vpop.f32.mrf.mxu0
    %v949 = vadd.f32 %v529, %v948
    %v950 = vpop.f32.mrf.mxu0
    %v951 = vadd.f32 %v529, %v950
    %952 = vmatmul.bf16.gmra.mxu0 %v726
    %v953 = vpop.f32.mrf.mxu0
    %v954 = vadd.f32 %v529, %v953
    %v955 = vpop.f32.mrf.mxu0
    %v956 = vadd.f32 %v529, %v955
    %957 = vmatmul.bf16.gmra.mxu0 %v729
    %v958 = vpop.f32.mrf.mxu0
    %v959 = vadd.f32 %v529, %v958
    %v960 = vpop.f32.mrf.mxu0
    %v961 = vadd.f32 %v529, %v960
    %962 = vmatmul.bf16.gmra.mxu0 %v732
    %v963 = vpop.f32.mrf.mxu0
    %v964 = vadd.f32 %v529, %v963
    %v965 = vpop.f32.mrf.mxu0
    %v966 = vadd.f32 %v529, %v965
    %967 = vmatmul.bf16.gmra.mxu0 %v735
    %v968 = vpop.f32.mrf.mxu0
    %v969 = vadd.f32 %v529, %v968
    %v970 = vpop.f32.mrf.mxu0
    %v971 = vadd.f32 %v529, %v970
    %972 = vmatmul.bf16.gmra.mxu0 %v738
    %v973 = vpop.f32.mrf.mxu0
    %v974 = vadd.f32 %v529, %v973
    %v975 = vpop.f32.mrf.mxu0
    %v976 = vadd.f32 %v529, %v975
    %977 = vmatmul.bf16.gmra.mxu0 %v741
    %v978 = vpop.f32.mrf.mxu0
    %v979 = vadd.f32 %v529, %v978
    %v980 = vpop.f32.mrf.mxu0
    %v981 = vadd.f32 %v529, %v980
    %982 = vmatmul.bf16.gmra.mxu0 %v744
    %v983 = vpop.f32.mrf.mxu0
    %v984 = vadd.f32 %v529, %v983
    %v985 = vpop.f32.mrf.mxu0
    %v986 = vadd.f32 %v529, %v985
    %987 = vmatmul.bf16.gmra.mxu0 %v747
    %v988 = vpop.f32.mrf.mxu0
    %v989 = vadd.f32 %v529, %v988
    %v990 = vpop.f32.mrf.mxu0
    %v991 = vadd.f32 %v529, %v990
    %992 = vmatmul.bf16.gmra.mxu0 %v750
    %v993 = vpop.f32.mrf.mxu0
    %v994 = vadd.f32 %v529, %v993
    %v995 = vpop.f32.mrf.mxu0
    %v996 = vadd.f32 %v529, %v995
    %997 = vmatmul.bf16.gmra.mxu0 %v753
    %v998 = vpop.f32.mrf.mxu0
    %v999 = vadd.f32 %v529, %v998
    %v1000 = vpop.f32.mrf.mxu0
    %v1001 = vadd.f32 %v529, %v1000
    %1002 = vmatmul.bf16.gmra.mxu0 %v756
    %v1003 = vpop.f32.mrf.mxu0
    %v1004 = vadd.f32 %v529, %v1003
    %v1005 = vpop.f32.mrf.mxu0
    %v1006 = vadd.f32 %v529, %v1005
    %1007 = vdwg.mxu0
    %1008 = vmatpush.bf16.msra.mxu0 0
    %1009 = vmatpush.bf16.msra.mxu0 0
    %1010 = vmatpush.bf16.msra.mxu0 %v769
    %1011 = vmatpush.bf16.msra.mxu0 %v690
    %1012 = vmatpush.bf16.msra.mxu0 %v686
    %1013 = vmatpush.bf16.msra.mxu0 %v682
    %1014 = vmatpush.bf16.msra.mxu0 %v678
    %1015 = vmatpush.bf16.msra.mxu0 %v674
    %1016 = vmatmul.bf16.gmra.mxu0 %v717
    %v1017 = vpop.f32.mrf.mxu0
    %v1018 = vadd.f32 %v530, %v1017
    %v1019 = vpop.f32.mrf.mxu0
    %v1020 = vadd.f32 %v530, %v1019
    %1021 = vmatmul.bf16.gmra.mxu0 %v720
    %v1022 = vpop.f32.mrf.mxu0
    %v1023 = vadd.f32 %v530, %v1022
    %v1024 = vpop.f32.mrf.mxu0
    %v1025 = vadd.f32 %v530, %v1024
    %1026 = vmatmul.bf16.gmra.mxu0 %v723
    %v1027 = vpop.f32.mrf.mxu0
    %v1028 = vadd.f32 %v530, %v1027
    %v1029 = vpop.f32.mrf.mxu0
    %v1030 = vadd.f32 %v530, %v1029
    %1031 = vmatmul.bf16.gmra.mxu0 %v726
    %v1032 = vpop.f32.mrf.mxu0
    %v1033 = vadd.f32 %v530, %v1032
    %v1034 = vpop.f32.mrf.mxu0
    %v1035 = vadd.f32 %v530, %v1034
    %1036 = vmatmul.bf16.gmra.mxu0 %v729
    %v1037 = vpop.f32.mrf.mxu0
    %v1038 = vadd.f32 %v530, %v1037
    %v1039 = vpop.f32.mrf.mxu0
    %v1040 = vadd.f32 %v530, %v1039
    %1041 = vmatmul.bf16.gmra.mxu0 %v732
    %v1042 = vpop.f32.mrf.mxu0
    %v1043 = vadd.f32 %v530, %v1042
    %v1044 = vpop.f32.mrf.mxu0
    %v1045 = vadd.f32 %v530, %v1044
    %1046 = vmatmul.bf16.gmra.mxu0 %v735
    %v1047 = vpop.f32.mrf.mxu0
    %v1048 = vadd.f32 %v530, %v1047
    %v1049 = vpop.f32.mrf.mxu0
    %v1050 = vadd.f32 %v530, %v1049
    %1051 = vmatmul.bf16.gmra.mxu0 %v738
    %v1052 = vpop.f32.mrf.mxu0
    %v1053 = vadd.f32 %v530, %v1052
    %v1054 = vpop.f32.mrf.mxu0
    %v1055 = vadd.f32 %v530, %v1054
    %1056 = vmatmul.bf16.gmra.mxu0 %v741
    %v1057 = vpop.f32.mrf.mxu0
    %v1058 = vadd.f32 %v530, %v1057
    %v1059 = vpop.f32.mrf.mxu0
    %v1060 = vadd.f32 %v530, %v1059
    %1061 = vmatmul.bf16.gmra.mxu0 %v744
    %v1062 = vpop.f32.mrf.mxu0
    %v1063 = vadd.f32 %v530, %v1062
    %v1064 = vpop.f32.mrf.mxu0
    %v1065 = vadd.f32 %v530, %v1064
    %1066 = vmatmul.bf16.gmra.mxu0 %v747
    %v1067 = vpop.f32.mrf.mxu0
    %v1068 = vadd.f32 %v530, %v1067
    %v1069 = vpop.f32.mrf.mxu0
    %v1070 = vadd.f32 %v530, %v1069
    %1071 = vmatmul.bf16.gmra.mxu0 %v750
    %v1072 = vpop.f32.mrf.mxu0
    %v1073 = vadd.f32 %v530, %v1072
    %v1074 = vpop.f32.mrf.mxu0
    %v1075 = vadd.f32 %v530, %v1074
    %1076 = vmatmul.bf16.gmra.mxu0 %v753
    %v1077 = vpop.f32.mrf.mxu0
    %v1078 = vadd.f32 %v530, %v1077
    %v1079 = vpop.f32.mrf.mxu0
    %v1080 = vadd.f32 %v530, %v1079
    %1081 = vmatmul.bf16.gmra.mxu0 %v756
    %v1082 = vpop.f32.mrf.mxu0
    %v1083 = vadd.f32 %v530, %v1082
    %v1084 = vpop.f32.mrf.mxu0
    %v1085 = vadd.f32 %v530, %v1084
    %1086 = vdwg.mxu0
    %v1087 = vmax.f32 %v781, 0.0
    %v1088 = vmax.f32 %v860, 0.0
    %v1089 = vmax.f32 %v939, 0.0
    %v1090 = vmax.f32 %v1018, 0.0
    %v1091 = vmax.f32 %v783, 0.0
    %v1092 = vmax.f32 %v862, 0.0
    %v1093 = vmax.f32 %v941, 0.0
    %v1094 = vmax.f32 %v1020, 0.0
    %v1095 = vmax.f32 %v786, 0.0
    %v1096 = vmax.f32 %v865, 0.0
    %v1097 = vmax.f32 %v944, 0.0
    %v1098 = vmax.f32 %v1023, 0.0
    %v1099 = vmax.f32 %v788, 0.0
    %v1100 = vmax.f32 %v867, 0.0
    %v1101 = vmax.f32 %v946, 0.0
    %v1102 = vmax.f32 %v1025, 0.0
    %v1103 = vmax.f32 %v791, 0.0
    %v1104 = vmax.f32 %v870, 0.0
    %v1105 = vmax.f32 %v949, 0.0
    %v1106 = vmax.f32 %v1028, 0.0
    %v1107 = vmax.f32 %v793, 0.0
    %v1108 = vmax.f32 %v872, 0.0
    %v1109 = vmax.f32 %v951, 0.0
    %v1110 = vmax.f32 %v1030, 0.0
    %v1111 = vmax.f32 %v796, 0.0
    %v1112 = vmax.f32 %v875, 0.0
    %v1113 = vmax.f32 %v954, 0.0
    %v1114 = vmax.f32 %v1033, 0.0
    %v1115 = vmax.f32 %v798, 0.0
    %v1116 = vmax.f32 %v877, 0.0
    %v1117 = vmax.f32 %v956, 0.0
    %v1118 = vmax.f32 %v1035, 0.0
    %v1119 = vmax.f32 %v801, 0.0
    %v1120 = vmax.f32 %v880, 0.0
    %v1121 = vmax.f32 %v959, 0.0
    %v1122 = vmax.f32 %v1038, 0.0
    %v1123 = vmax.f32 %v803, 0.0
    %v1124 = vmax.f32 %v882, 0.0
    %v1125 = vmax.f32 %v961, 0.0
    %v1126 = vmax.f32 %v1040, 0.0
    %v1127 = vmax.f32 %v806, 0.0
    %v1128 = vmax.f32 %v885, 0.0
    %v1129 = vmax.f32 %v964, 0.0
    %v1130 = vmax.f32 %v1043, 0.0
    %v1131 = vmax.f32 %v808, 0.0
    %v1132 = vmax.f32 %v887, 0.0
    %v1133 = vmax.f32 %v966, 0.0
    %v1134 = vmax.f32 %v1045, 0.0
    %v1135 = vmax.f32 %v811, 0.0
    %v1136 = vmax.f32 %v890, 0.0
    %v1137 = vmax.f32 %v969, 0.0
    %v1138 = vmax.f32 %v1048, 0.0
    %v1139 = vmax.f32 %v813, 0.0
    %v1140 = vmax.f32 %v892, 0.0
    %v1141 = vmax.f32 %v971, 0.0
    %v1142 = vmax.f32 %v1050, 0.0
    %v1143 = vmax.f32 %v816, 0.0
    %v1144 = vmax.f32 %v895, 0.0
    %v1145 = vmax.f32 %v974, 0.0
    %v1146 = vmax.f32 %v1053, 0.0
    %v1147 = vmax.f32 %v818, 0.0
    %v1148 = vmax.f32 %v897, 0.0
    %v1149 = vmax.f32 %v976, 0.0
    %v1150 = vmax.f32 %v1055, 0.0
    %v1151 = vmax.f32 %v821, 0.0
    %v1152 = vmax.f32 %v900, 0.0
    %v1153 = vmax.f32 %v979, 0.0
    %v1154 = vmax.f32 %v1058, 0.0
    %v1155 = vmax.f32 %v823, 0.0
    %v1156 = vmax.f32 %v902, 0.0
    %v1157 = vmax.f32 %v981, 0.0
    %v1158 = vmax.f32 %v1060, 0.0
    %v1159 = vmax.f32 %v826, 0.0
    %v1160 = vmax.f32 %v905, 0.0
    %v1161 = vmax.f32 %v984, 0.0
    %v1162 = vmax.f32 %v1063, 0.0
    %v1163 = vmax.f32 %v828, 0.0
    %v1164 = vmax.f32 %v907, 0.0
    %v1165 = vmax.f32 %v986, 0.0
    %v1166 = vmax.f32 %v1065, 0.0
    %v1167 = vmax.f32 %v831, 0.0
    %v1168 = vmax.f32 %v910, 0.0
    %v1169 = vmax.f32 %v989, 0.0
    %v1170 = vmax.f32 %v1068, 0.0
    %v1171 = vmax.f32 %v833, 0.0
    %v1172 = vmax.f32 %v912, 0.0
    %v1173 = vmax.f32 %v991, 0.0
    %v1174 = vmax.f32 %v1070, 0.0
    %v1175 = vmax.f32 %v836, 0.0
    %v1176 = vmax.f32 %v915, 0.0
    %v1177 = vmax.f32 %v994, 0.0
    %v1178 = vmax.f32 %v1073, 0.0
    %v1179 = vmax.f32 %v838, 0.0
    %v1180 = vmax.f32 %v917, 0.0
    %v1181 = vmax.f32 %v996, 0.0
    %v1182 = vmax.f32 %v1075, 0.0
    %v1183 = vmax.f32 %v841, 0.0
    %v1184 = vmax.f32 %v920, 0.0
    %v1185 = vmax.f32 %v999, 0.0
    %v1186 = vmax.f32 %v1078, 0.0
    %v1187 = vmax.f32 %v843, 0.0
    %v1188 = vmax.f32 %v922, 0.0
    %v1189 = vmax.f32 %v1001, 0.0
    %v1190 = vmax.f32 %v1080, 0.0
    %v1191 = vmax.f32 %v846, 0.0
    %v1192 = vmax.f32 %v925, 0.0
    %v1193 = vmax.f32 %v1004, 0.0
    %v1194 = vmax.f32 %v1083, 0.0
    %v1195 = vmax.f32 %v848, 0.0
    %v1196 = vmax.f32 %v927, 0.0
    %v1197 = vmax.f32 %v1006, 0.0
    %v1198 = vmax.f32 %v1085, 0.0
    %v1199 = vpack.c.bf16 %v1088, %v1087
    %v1200 = vpack.c.bf16 %v1090, %v1089
    %v1201 = vpack.c.bf16 %v1092, %v1091
    %v1202 = vpack.c.bf16 %v1094, %v1093
    %v1203 = vpack.c.bf16 %v1096, %v1095
    %v1204 = vpack.c.bf16 %v1098, %v1097
    %v1205 = vpack.c.bf16 %v1100, %v1099
    %v1206 = vpack.c.bf16 %v1102, %v1101
    %v1207 = vpack.c.bf16 %v1104, %v1103
    %v1208 = vpack.c.bf16 %v1106, %v1105
    %v1209 = vpack.c.bf16 %v1108, %v1107
    %v1210 = vpack.c.bf16 %v1110, %v1109
    %v1211 = vpack.c.bf16 %v1112, %v1111
    %v1212 = vpack.c.bf16 %v1114, %v1113
    %v1213 = vpack.c.bf16 %v1116, %v1115
    %v1214 = vpack.c.bf16 %v1118, %v1117
    %v1215 = vpack.c.bf16 %v1120, %v1119
    %v1216 = vpack.c.bf16 %v1122, %v1121
    %v1217 = vpack.c.bf16 %v1124, %v1123
    %v1218 = vpack.c.bf16 %v1126, %v1125
    %v1219 = vpack.c.bf16 %v1128, %v1127
    %v1220 = vpack.c.bf16 %v1130, %v1129
    %v1221 = vpack.c.bf16 %v1132, %v1131
    %v1222 = vpack.c.bf16 %v1134, %v1133
    %v1223 = vpack.c.bf16 %v1136, %v1135
    %v1224 = vpack.c.bf16 %v1138, %v1137
    %v1225 = vpack.c.bf16 %v1140, %v1139
    %v1226 = vpack.c.bf16 %v1142, %v1141
    %v1227 = vpack.c.bf16 %v1144, %v1143
    %v1228 = vpack.c.bf16 %v1146, %v1145
    %v1229 = vpack.c.bf16 %v1148, %v1147
    %v1230 = vpack.c.bf16 %v1150, %v1149
    %v1231 = vpack.c.bf16 %v1152, %v1151
    %v1232 = vpack.c.bf16 %v1154, %v1153
    %v1233 = vpack.c.bf16 %v1156, %v1155
    %v1234 = vpack.c.bf16 %v1158, %v1157
    %v1235 = vpack.c.bf16 %v1160, %v1159
    %v1236 = vpack.c.bf16 %v1162, %v1161
    %v1237 = vpack.c.bf16 %v1164, %v1163
    %v1238 = vpack.c.bf16 %v1166, %v1165
    %v1239 = vpack.c.bf16 %v1168, %v1167
    %v1240 = vpack.c.bf16 %v1170, %v1169
    %v1241 = vpack.c.bf16 %v1172, %v1171
    %v1242 = vpack.c.bf16 %v1174, %v1173
    %v1243 = vpack.c.bf16 %v1176, %v1175
    %v1244 = vpack.c.bf16 %v1178, %v1177
    %v1245 = vpack.c.bf16 %v1180, %v1179
    %v1246 = vpack.c.bf16 %v1182, %v1181
    %v1247 = vpack.c.bf16 %v1184, %v1183
    %v1248 = vpack.c.bf16 %v1186, %v1185
    %v1249 = vpack.c.bf16 %v1188, %v1187
    %v1250 = vpack.c.bf16 %v1190, %v1189
    %v1251 = vpack.c.bf16 %v1192, %v1191
    %v1252 = vpack.c.bf16 %v1194, %v1193
    %v1253 = vpack.c.bf16 %v1196, %v1195
    %v1254 = vpack.c.bf16 %v1198, %v1197
    %v1311 = vunpack.c.l.b16 %v1199
    %v1312 = vunpack.c.h.b16 %v1199
    %v1313 = vunpack.c.l.b16 %v1200
    %v1314 = vunpack.c.h.b16 %v1200
    %v1315 = vunpack.c.l.b16 %v1201
    %v1316 = vunpack.c.h.b16 %v1201
    %v1317 = vunpack.c.l.b16 %v1202
    %v1318 = vunpack.c.h.b16 %v1202
    %v1319 = vunpack.c.l.b16 %v1203
    %v1320 = vunpack.c.h.b16 %v1203
    %v1321 = vunpack.c.l.b16 %v1204
    %v1322 = vunpack.c.h.b16 %v1204
    %v1323 = vunpack.c.l.b16 %v1205
    %v1324 = vunpack.c.h.b16 %v1205
    %v1325 = vunpack.c.l.b16 %v1206
    %v1326 = vunpack.c.h.b16 %v1206
    %v1327 = vunpack.c.l.b16 %v1207
    %v1328 = vunpack.c.h.b16 %v1207
    %v1329 = vunpack.c.l.b16 %v1208
    %v1330 = vunpack.c.h.b16 %v1208
    %v1331 = vunpack.c.l.b16 %v1209
    %v1332 = vunpack.c.h.b16 %v1209
    %v1333 = vunpack.c.l.b16 %v1210
    %v1334 = vunpack.c.h.b16 %v1210
    %v1335 = vunpack.c.l.b16 %v1211
    %v1336 = vunpack.c.h.b16 %v1211
    %v1337 = vunpack.c.l.b16 %v1212
    %v1338 = vunpack.c.h.b16 %v1212
    %v1339 = vunpack.c.l.b16 %v1213
    %v1340 = vunpack.c.h.b16 %v1213
    %v1341 = vunpack.c.l.b16 %v1214
    %v1342 = vunpack.c.h.b16 %v1214
    %v1343 = vunpack.c.l.b16 %v1215
    %v1344 = vunpack.c.h.b16 %v1215
    %v1345 = vunpack.c.l.b16 %v1216
    %v1346 = vunpack.c.h.b16 %v1216
    %v1347 = vunpack.c.l.b16 %v1217
    %v1348 = vunpack.c.h.b16 %v1217
    %v1349 = vunpack.c.l.b16 %v1218
    %v1350 = vunpack.c.h.b16 %v1218
    %v1351 = vunpack.c.l.b16 %v1219
    %v1352 = vunpack.c.h.b16 %v1219
    %v1353 = vunpack.c.l.b16 %v1220
    %v1354 = vunpack.c.h.b16 %v1220
    %v1355 = vunpack.c.l.b16 %v1221
    %v1356 = vunpack.c.h.b16 %v1221
    %v1357 = vunpack.c.l.b16 %v1222
    %v1358 = vunpack.c.h.b16 %v1222
    %v1359 = vunpack.c.l.b16 %v1223
    %v1360 = vunpack.c.h.b16 %v1223
    %v1361 = vunpack.c.l.b16 %v1224
    %v1362 = vunpack.c.h.b16 %v1224
    %v1363 = vunpack.c.l.b16 %v1225
    %v1364 = vunpack.c.h.b16 %v1225
    %v1365 = vunpack.c.l.b16 %v1226
    %v1366 = vunpack.c.h.b16 %v1226
    %v1367 = vunpack.c.l.b16 %v1227
    %v1368 = vunpack.c.h.b16 %v1227
    %v1369 = vunpack.c.l.b16 %v1228
    %v1370 = vunpack.c.h.b16 %v1228
    %v1371 = vunpack.c.l.b16 %v1229
    %v1372 = vunpack.c.h.b16 %v1229
    %v1373 = vunpack.c.l.b16 %v1230
    %v1374 = vunpack.c.h.b16 %v1230
    %v1375 = vunpack.c.l.b16 %v1231
    %v1376 = vunpack.c.h.b16 %v1231
    %v1377 = vunpack.c.l.b16 %v1232
    %v1378 = vunpack.c.h.b16 %v1232
    %v1379 = vunpack.c.l.b16 %v1233
    %v1380 = vunpack.c.h.b16 %v1233
    %v1381 = vunpack.c.l.b16 %v1234
    %v1382 = vunpack.c.h.b16 %v1234
    %v1383 = vunpack.c.l.b16 %v1235
    %v1384 = vunpack.c.h.b16 %v1235
    %v1385 = vunpack.c.l.b16 %v1236
    %v1386 = vunpack.c.h.b16 %v1236
    %v1387 = vunpack.c.l.b16 %v1237
    %v1388 = vunpack.c.h.b16 %v1237
    %v1389 = vunpack.c.l.b16 %v1238
    %v1390 = vunpack.c.h.b16 %v1238
    %v1391 = vunpack.c.l.b16 %v1239
    %v1392 = vunpack.c.h.b16 %v1239
    %v1393 = vunpack.c.l.b16 %v1240
    %v1394 = vunpack.c.h.b16 %v1240
    %v1395 = vunpack.c.l.b16 %v1241
    %v1396 = vunpack.c.h.b16 %v1241
    %v1397 = vunpack.c.l.b16 %v1242
    %v1398 = vunpack.c.h.b16 %v1242
    %v1399 = vunpack.c.l.b16 %v1243
    %v1400 = vunpack.c.h.b16 %v1243
    %v1401 = vunpack.c.l.b16 %v1244
    %v1402 = vunpack.c.h.b16 %v1244
    %v1403 = vunpack.c.l.b16 %v1245
    %v1404 = vunpack.c.h.b16 %v1245
    %v1405 = vunpack.c.l.b16 %v1246
    %v1406 = vunpack.c.h.b16 %v1246
    %v1407 = vunpack.c.l.b16 %v1247
    %v1408 = vunpack.c.h.b16 %v1247
    %v1409 = vunpack.c.l.b16 %v1248
    %v1410 = vunpack.c.h.b16 %v1248
    %v1411 = vunpack.c.l.b16 %v1249
    %v1412 = vunpack.c.h.b16 %v1249
    %v1413 = vunpack.c.l.b16 %v1250
    %v1414 = vunpack.c.h.b16 %v1250
    %v1415 = vunpack.c.l.b16 %v1251
    %v1416 = vunpack.c.h.b16 %v1251
    %v1417 = vunpack.c.l.b16 %v1252
    %v1418 = vunpack.c.h.b16 %v1252
    %v1419 = vunpack.c.l.b16 %v1253
    %v1420 = vunpack.c.h.b16 %v1253
    %v1421 = vunpack.c.l.b16 %v1254
    %v1422 = vunpack.c.h.b16 %v1254
    %v1423 = vpack.c.b16 %v1315, %v1311
    %v1424 = vpack.c.b16 %v1316, %v1312
    %v1425 = vpack.c.b16 %v1317, %v1313
    %v1426 = vpack.c.b16 %v1318, %v1314
    %v1427 = vpack.c.b16 %v1323, %v1319
    %v1428 = vpack.c.b16 %v1324, %v1320
    %v1429 = vpack.c.b16 %v1325, %v1321
    %v1430 = vpack.c.b16 %v1326, %v1322
    %v1431 = vpack.c.b16 %v1331, %v1327
    %v1432 = vpack.c.b16 %v1332, %v1328
    %v1433 = vpack.c.b16 %v1333, %v1329
    %v1434 = vpack.c.b16 %v1334, %v1330
    %v1435 = vpack.c.b16 %v1339, %v1335
    %v1436 = vpack.c.b16 %v1340, %v1336
    %v1437 = vpack.c.b16 %v1341, %v1337
    %v1438 = vpack.c.b16 %v1342, %v1338
    %v1439 = vpack.c.b16 %v1347, %v1343
    %v1440 = vpack.c.b16 %v1348, %v1344
    %v1441 = vpack.c.b16 %v1349, %v1345
    %v1442 = vpack.c.b16 %v1350, %v1346
    %v1443 = vpack.c.b16 %v1355, %v1351
    %v1444 = vpack.c.b16 %v1356, %v1352
    %v1445 = vpack.c.b16 %v1357, %v1353
    %v1446 = vpack.c.b16 %v1358, %v1354
    %v1447 = vpack.c.b16 %v1363, %v1359
    %v1448 = vpack.c.b16 %v1364, %v1360
    %v1449 = vpack.c.b16 %v1365, %v1361
    %v1450 = vpack.c.b16 %v1366, %v1362
    %v1451 = vpack.c.b16 %v1371, %v1367
    %v1452 = vpack.c.b16 %v1372, %v1368
    %v1453 = vpack.c.b16 %v1373, %v1369
    %v1454 = vpack.c.b16 %v1374, %v1370
    %v1455 = vpack.c.b16 %v1379, %v1375
    %v1456 = vpack.c.b16 %v1380, %v1376
    %v1457 = vpack.c.b16 %v1381, %v1377
    %v1458 = vpack.c.b16 %v1382, %v1378
    %v1459 = vpack.c.b16 %v1387, %v1383
    %v1460 = vpack.c.b16 %v1388, %v1384
    %v1461 = vpack.c.b16 %v1389, %v1385
    %v1462 = vpack.c.b16 %v1390, %v1386
    %v1463 = vpack.c.b16 %v1395, %v1391
    %v1464 = vpack.c.b16 %v1396, %v1392
    %v1465 = vpack.c.b16 %v1397, %v1393
    %v1466 = vpack.c.b16 %v1398, %v1394
    %v1467 = vpack.c.b16 %v1403, %v1399
    %v1468 = vpack.c.b16 %v1404, %v1400
    %v1469 = vpack.c.b16 %v1405, %v1401
    %v1470 = vpack.c.b16 %v1406, %v1402
    %v1471 = vpack.c.b16 %v1411, %v1407
    %v1472 = vpack.c.b16 %v1412, %v1408
    %v1473 = vpack.c.b16 %v1413, %v1409
    %v1474 = vpack.c.b16 %v1414, %v1410
    %v1475 = vpack.c.b16 %v1419, %v1415
    %v1476 = vpack.c.b16 %v1420, %v1416
    %v1477 = vpack.c.b16 %v1421, %v1417
    %v1478 = vpack.c.b16 %v1422, %v1418
    %1479 = vrot.lane.b32.xlu0 %v1423, 112
    %v1480 = vpop.permute.xlu0 %1479
    %1481 = vrot.lane.b32.xlu0 %v1424, 112
    %v1482 = vpop.permute.xlu0 %1481
    %1483 = vrot.lane.b32.xlu0 %v1425, 112
    %v1484 = vpop.permute.xlu0 %1483
    %1485 = vrot.lane.b32.xlu0 %v1426, 112
    %v1486 = vpop.permute.xlu0 %1485
    %1487 = vrot.lane.b32.xlu0 %v1427, 112
    %v1488 = vpop.permute.xlu0 %1487
    %1489 = vrot.lane.b32.xlu0 %v1428, 112
    %v1490 = vpop.permute.xlu0 %1489
    %1491 = vrot.lane.b32.xlu0 %v1429, 112
    %v1492 = vpop.permute.xlu0 %1491
    %1493 = vrot.lane.b32.xlu0 %v1430, 112
    %v1494 = vpop.permute.xlu0 %1493
    %1495 = vrot.lane.b32.xlu0 %v1431, 112
    %v1496 = vpop.permute.xlu0 %1495
    %1497 = vrot.lane.b32.xlu0 %v1432, 112
    %v1498 = vpop.permute.xlu0 %1497
    %1499 = vrot.lane.b32.xlu0 %v1433, 112
    %v1500 = vpop.permute.xlu0 %1499
    %1501 = vrot.lane.b32.xlu0 %v1434, 112
    %v1502 = vpop.permute.xlu0 %1501
    %1503 = vrot.lane.b32.xlu0 %v1435, 112
    %v1504 = vpop.permute.xlu0 %1503
    %1505 = vrot.lane.b32.xlu0 %v1436, 112
    %v1506 = vpop.permute.xlu0 %1505
    %1507 = vrot.lane.b32.xlu0 %v1437, 112
    %v1508 = vpop.permute.xlu0 %1507
    %1509 = vrot.lane.b32.xlu0 %v1438, 112
    %v1510 = vpop.permute.xlu0 %1509
    %1511 = vrot.lane.b32.xlu0 %v1439, 112
    %v1512 = vpop.permute.xlu0 %1511
    %1513 = vrot.lane.b32.xlu0 %v1440, 112
    %v1514 = vpop.permute.xlu0 %1513
    %1515 = vrot.lane.b32.xlu0 %v1441, 112
    %v1516 = vpop.permute.xlu0 %1515
    %1517 = vrot.lane.b32.xlu0 %v1442, 112
    %v1518 = vpop.permute.xlu0 %1517
    %1519 = vrot.lane.b32.xlu0 %v1443, 112
    %v1520 = vpop.permute.xlu0 %1519
    %1521 = vrot.lane.b32.xlu0 %v1444, 112
    %v1522 = vpop.permute.xlu0 %1521
    %1523 = vrot.lane.b32.xlu0 %v1445, 112
    %v1524 = vpop.permute.xlu0 %1523
    %1525 = vrot.lane.b32.xlu0 %v1446, 112
    %v1526 = vpop.permute.xlu0 %1525
    %1527 = vrot.lane.b32.xlu0 %v1447, 112
    %v1528 = vpop.permute.xlu0 %1527
    %1529 = vrot.lane.b32.xlu0 %v1448, 112
    %v1530 = vpop.permute.xlu0 %1529
    %1531 = vrot.lane.b32.xlu0 %v1449, 112
    %v1532 = vpop.permute.xlu0 %1531
    %1533 = vrot.lane.b32.xlu0 %v1450, 112
    %v1534 = vpop.permute.xlu0 %1533
    %1535 = vrot.lane.b32.xlu0 %v1451, 112
    %v1536 = vpop.permute.xlu0 %1535
    %1537 = vrot.lane.b32.xlu0 %v1452, 112
    %v1538 = vpop.permute.xlu0 %1537
    %1539 = vrot.lane.b32.xlu0 %v1453, 112
    %v1540 = vpop.permute.xlu0 %1539
    %1541 = vrot.lane.b32.xlu0 %v1454, 112
    %v1542 = vpop.permute.xlu0 %1541
    %1543 = vrot.lane.b32.xlu0 %v1455, 112
    %v1544 = vpop.permute.xlu0 %1543
    %1545 = vrot.lane.b32.xlu0 %v1456, 112
    %v1546 = vpop.permute.xlu0 %1545
    %1547 = vrot.lane.b32.xlu0 %v1457, 112
    %v1548 = vpop.permute.xlu0 %1547
    %1549 = vrot.lane.b32.xlu0 %v1458, 112
    %v1550 = vpop.permute.xlu0 %1549
    %1551 = vrot.lane.b32.xlu0 %v1459, 112
    %v1552 = vpop.permute.xlu0 %1551
    %1553 = vrot.lane.b32.xlu0 %v1460, 112
    %v1554 = vpop.permute.xlu0 %1553
    %1555 = vrot.lane.b32.xlu0 %v1461, 112
    %v1556 = vpop.permute.xlu0 %1555
    %1557 = vrot.lane.b32.xlu0 %v1462, 112
    %v1558 = vpop.permute.xlu0 %1557
    %1559 = vrot.lane.b32.xlu0 %v1463, 112
    %v1560 = vpop.permute.xlu0 %1559
    %1561 = vrot.lane.b32.xlu0 %v1464, 112
    %v1562 = vpop.permute.xlu0 %1561
    %1563 = vrot.lane.b32.xlu0 %v1465, 112
    %v1564 = vpop.permute.xlu0 %1563
    %1565 = vrot.lane.b32.xlu0 %v1466, 112
    %v1566 = vpop.permute.xlu0 %1565
    %1567 = vrot.lane.b32.xlu0 %v1467, 112
    %v1568 = vpop.permute.xlu0 %1567
    %1569 = vrot.lane.b32.xlu0 %v1468, 112
    %v1570 = vpop.permute.xlu0 %1569
    %1571 = vrot.lane.b32.xlu0 %v1469, 112
    %v1572 = vpop.permute.xlu0 %1571
    %1573 = vrot.lane.b32.xlu0 %v1470, 112
    %v1574 = vpop.permute.xlu0 %1573
    %1575 = vrot.lane.b32.xlu0 %v1471, 112
    %v1576 = vpop.permute.xlu0 %1575
    %1577 = vrot.lane.b32.xlu0 %v1472, 112
    %v1578 = vpop.permute.xlu0 %1577
    %1579 = vrot.lane.b32.xlu0 %v1473, 112
    %v1580 = vpop.permute.xlu0 %1579
    %1581 = vrot.lane.b32.xlu0 %v1474, 112
    %v1582 = vpop.permute.xlu0 %1581
    %1583 = vrot.lane.b32.xlu0 %v1475, 112
    %v1584 = vpop.permute.xlu0 %1583
    %1585 = vrot.lane.b32.xlu0 %v1476, 112
    %v1586 = vpop.permute.xlu0 %1585
    %1587 = vrot.lane.b32.xlu0 %v1477, 112
    %v1588 = vpop.permute.xlu0 %1587
    %1589 = vrot.lane.b32.xlu0 %v1478, 112
    %v1590 = vpop.permute.xlu0 %1589
    %vm1591 = vcmask 916480
    %v1592 = vsel %vm1591, %v1480, %v1482
    %v1593 = vsel %vm1591, %v1482, %v1484
    %v1594 = vsel %vm1591, %v1484, %v1486
    %v1595 = vsel %vm1591, %v1488, %v1490
    %v1596 = vsel %vm1591, %v1490, %v1492
    %v1597 = vsel %vm1591, %v1492, %v1494
    %v1598 = vsel %vm1591, %v1496, %v1498
    %v1599 = vsel %vm1591, %v1498, %v1500
    %v1600 = vsel %vm1591, %v1500, %v1502
    %v1601 = vsel %vm1591, %v1504, %v1506
    %v1602 = vsel %vm1591, %v1506, %v1508
    %v1603 = vsel %vm1591, %v1508, %v1510
    %v1604 = vsel %vm1591, %v1512, %v1514
    %v1605 = vsel %vm1591, %v1514, %v1516
    %v1606 = vsel %vm1591, %v1516, %v1518
    %v1607 = vsel %vm1591, %v1520, %v1522
    %v1608 = vsel %vm1591, %v1522, %v1524
    %v1609 = vsel %vm1591, %v1524, %v1526
    %v1610 = vsel %vm1591, %v1528, %v1530
    %v1611 = vsel %vm1591, %v1530, %v1532
    %v1612 = vsel %vm1591, %v1532, %v1534
    %v1613 = vsel %vm1591, %v1536, %v1538
    %v1614 = vsel %vm1591, %v1538, %v1540
    %v1615 = vsel %vm1591, %v1540, %v1542
    %v1616 = vsel %vm1591, %v1544, %v1546
    %v1617 = vsel %vm1591, %v1546, %v1548
    %v1618 = vsel %vm1591, %v1548, %v1550
    %v1619 = vsel %vm1591, %v1552, %v1554
    %v1620 = vsel %vm1591, %v1554, %v1556
    %v1621 = vsel %vm1591, %v1556, %v1558
    %v1622 = vsel %vm1591, %v1560, %v1562
    %v1623 = vsel %vm1591, %v1562, %v1564
    %v1624 = vsel %vm1591, %v1564, %v1566
    %v1625 = vsel %vm1591, %v1568, %v1570
    %v1626 = vsel %vm1591, %v1570, %v1572
    %v1627 = vsel %vm1591, %v1572, %v1574
    %v1628 = vsel %vm1591, %v1576, %v1578
    %v1629 = vsel %vm1591, %v1578, %v1580
    %v1630 = vsel %vm1591, %v1580, %v1582
    %v1631 = vsel %vm1591, %v1584, %v1586
    %v1632 = vsel %vm1591, %v1586, %v1588
    %v1633 = vsel %vm1591, %v1588, %v1590
    %vm1676 = vcmask 916480
    %v1678 = vsel %vm1676, %v1486, 0
    %v1681 = vsel %vm1676, %v1494, 0
    %v1684 = vsel %vm1676, %v1502, 0
    %v1687 = vsel %vm1676, %v1510, 0
    %v1690 = vsel %vm1676, %v1518, 0
    %v1693 = vsel %vm1676, %v1526, 0
    %v1696 = vsel %vm1676, %v1534, 0
    %v1699 = vsel %vm1676, %v1542, 0
    %v1702 = vsel %vm1676, %v1550, 0
    %v1705 = vsel %vm1676, %v1558, 0
    %v1708 = vsel %vm1676, %v1566, 0
    %v1711 = vsel %vm1676, %v1574, 0
    %v1714 = vsel %vm1676, %v1582, 0
    %v1717 = vsel %vm1676, %v1590, 0
    %v1719 = vunpack.c.l.bf16 %v1199
    %v1720 = vunpack.c.h.bf16 %v1199
    %v1721 = vunpack.c.l.bf16 %v1200
    %v1722 = vunpack.c.h.bf16 %v1200
    %v1723 = vunpack.c.l.bf16 %v1201
    %v1724 = vunpack.c.h.bf16 %v1201
    %v1725 = vunpack.c.l.bf16 %v1202
    %v1726 = vunpack.c.h.bf16 %v1202
    %v1727 = vunpack.c.l.bf16 %v1203
    %v1728 = vunpack.c.h.bf16 %v1203
    %v1729 = vunpack.c.l.bf16 %v1204
    %v1730 = vunpack.c.h.bf16 %v1204
    %v1731 = vunpack.c.l.bf16 %v1205
    %v1732 = vunpack.c.h.bf16 %v1205
    %v1733 = vunpack.c.l.bf16 %v1206
    %v1734 = vunpack.c.h.bf16 %v1206
    %v1735 = vunpack.c.l.bf16 %v1207
    %v1736 = vunpack.c.h.bf16 %v1207
    %v1737 = vunpack.c.l.bf16 %v1208
    %v1738 = vunpack.c.h.bf16 %v1208
    %v1739 = vunpack.c.l.bf16 %v1209
    %v1740 = vunpack.c.h.bf16 %v1209
    %v1741 = vunpack.c.l.bf16 %v1210
    %v1742 = vunpack.c.h.bf16 %v1210
    %v1743 = vunpack.c.l.bf16 %v1211
    %v1744 = vunpack.c.h.bf16 %v1211
    %v1745 = vunpack.c.l.bf16 %v1212
    %v1746 = vunpack.c.h.bf16 %v1212
    %v1747 = vunpack.c.l.bf16 %v1213
    %v1748 = vunpack.c.h.bf16 %v1213
    %v1749 = vunpack.c.l.bf16 %v1214
    %v1750 = vunpack.c.h.bf16 %v1214
    %v1751 = vunpack.c.l.bf16 %v1215
    %v1752 = vunpack.c.h.bf16 %v1215
    %v1753 = vunpack.c.l.bf16 %v1216
    %v1754 = vunpack.c.h.bf16 %v1216
    %v1755 = vunpack.c.l.bf16 %v1217
    %v1756 = vunpack.c.h.bf16 %v1217
    %v1757 = vunpack.c.l.bf16 %v1218
    %v1758 = vunpack.c.h.bf16 %v1218
    %v1759 = vunpack.c.l.bf16 %v1219
    %v1760 = vunpack.c.h.bf16 %v1219
    %v1761 = vunpack.c.l.bf16 %v1220
    %v1762 = vunpack.c.h.bf16 %v1220
    %v1763 = vunpack.c.l.bf16 %v1221
    %v1764 = vunpack.c.h.bf16 %v1221
    %v1765 = vunpack.c.l.bf16 %v1222
    %v1766 = vunpack.c.h.bf16 %v1222
    %v1767 = vunpack.c.l.bf16 %v1223
    %v1768 = vunpack.c.h.bf16 %v1223
    %v1769 = vunpack.c.l.bf16 %v1224
    %v1770 = vunpack.c.h.bf16 %v1224
    %v1771 = vunpack.c.l.bf16 %v1225
    %v1772 = vunpack.c.h.bf16 %v1225
    %v1773 = vunpack.c.l.bf16 %v1226
    %v1774 = vunpack.c.h.bf16 %v1226
    %v1775 = vunpack.c.l.bf16 %v1227
    %v1776 = vunpack.c.h.bf16 %v1227
    %v1777 = vunpack.c.l.bf16 %v1228
    %v1778 = vunpack.c.h.bf16 %v1228
    %v1779 = vunpack.c.l.bf16 %v1229
    %v1780 = vunpack.c.h.bf16 %v1229
    %v1781 = vunpack.c.l.bf16 %v1230
    %v1782 = vunpack.c.h.bf16 %v1230
    %v1783 = vunpack.c.l.bf16 %v1231
    %v1784 = vunpack.c.h.bf16 %v1231
    %v1785 = vunpack.c.l.bf16 %v1232
    %v1786 = vunpack.c.h.bf16 %v1232
    %v1787 = vunpack.c.l.bf16 %v1233
    %v1788 = vunpack.c.h.bf16 %v1233
    %v1789 = vunpack.c.l.bf16 %v1234
    %v1790 = vunpack.c.h.bf16 %v1234
    %v1791 = vunpack.c.l.bf16 %v1235
    %v1792 = vunpack.c.h.bf16 %v1235
    %v1793 = vunpack.c.l.bf16 %v1236
    %v1794 = vunpack.c.h.bf16 %v1236
    %v1795 = vunpack.c.l.bf16 %v1237
    %v1796 = vunpack.c.h.bf16 %v1237
    %v1797 = vunpack.c.l.bf16 %v1238
    %v1798 = vunpack.c.h.bf16 %v1238
    %v1799 = vunpack.c.l.bf16 %v1239
    %v1800 = vunpack.c.h.bf16 %v1239
    %v1801 = vunpack.c.l.bf16 %v1240
    %v1802 = vunpack.c.h.bf16 %v1240
    %v1803 = vunpack.c.l.bf16 %v1241
    %v1804 = vunpack.c.h.bf16 %v1241
    %v1805 = vunpack.c.l.bf16 %v1242
    %v1806 = vunpack.c.h.bf16 %v1242
    %v1807 = vunpack.c.l.bf16 %v1243
    %v1808 = vunpack.c.h.bf16 %v1243
    %v1809 = vunpack.c.l.bf16 %v1244
    %v1810 = vunpack.c.h.bf16 %v1244
    %v1811 = vunpack.c.l.bf16 %v1245
    %v1812 = vunpack.c.h.bf16 %v1245
    %v1813 = vunpack.c.l.bf16 %v1246
    %v1814 = vunpack.c.h.bf16 %v1246
    %v1815 = vunpack.c.l.bf16 %v1247
    %v1816 = vunpack.c.h.bf16 %v1247
    %v1817 = vunpack.c.l.bf16 %v1248
    %v1818 = vunpack.c.h.bf16 %v1248
    %v1819 = vunpack.c.l.bf16 %v1249
    %v1820 = vunpack.c.h.bf16 %v1249
    %v1821 = vunpack.c.l.bf16 %v1250
    %v1822 = vunpack.c.h.bf16 %v1250
    %v1823 = vunpack.c.l.bf16 %v1251
    %v1824 = vunpack.c.h.bf16 %v1251
    %v1825 = vunpack.c.l.bf16 %v1252
    %v1826 = vunpack.c.h.bf16 %v1252
    %v1827 = vunpack.c.l.bf16 %v1253
    %v1828 = vunpack.c.h.bf16 %v1253
    %v1829 = vunpack.c.l.bf16 %v1254
    %v1830 = vunpack.c.h.bf16 %v1254
    %v1831 = vunpack.c.l.bf16 %v1592
    %v1832 = vunpack.c.l.bf16 %v1593
    %v1833 = vunpack.c.l.bf16 %v1594
    %v1834 = vunpack.c.l.bf16 %v1678
    %v1835 = vunpack.c.h.bf16 %v1592
    %v1836 = vunpack.c.h.bf16 %v1593
    %v1837 = vunpack.c.h.bf16 %v1594
    %v1838 = vunpack.c.h.bf16 %v1678
    %v1839 = vunpack.c.l.bf16 %v1595
    %v1840 = vunpack.c.l.bf16 %v1596
    %v1841 = vunpack.c.l.bf16 %v1597
    %v1842 = vunpack.c.l.bf16 %v1681
    %v1843 = vunpack.c.h.bf16 %v1595
    %v1844 = vunpack.c.h.bf16 %v1596
    %v1845 = vunpack.c.h.bf16 %v1597
    %v1846 = vunpack.c.h.bf16 %v1681
    %v1847 = vunpack.c.l.bf16 %v1598
    %v1848 = vunpack.c.l.bf16 %v1599
    %v1849 = vunpack.c.l.bf16 %v1600
    %v1850 = vunpack.c.l.bf16 %v1684
    %v1851 = vunpack.c.h.bf16 %v1598
    %v1852 = vunpack.c.h.bf16 %v1599
    %v1853 = vunpack.c.h.bf16 %v1600
    %v1854 = vunpack.c.h.bf16 %v1684
    %v1855 = vunpack.c.l.bf16 %v1601
    %v1856 = vunpack.c.l.bf16 %v1602
    %v1857 = vunpack.c.l.bf16 %v1603
    %v1858 = vunpack.c.l.bf16 %v1687
    %v1859 = vunpack.c.h.bf16 %v1601
    %v1860 = vunpack.c.h.bf16 %v1602
    %v1861 = vunpack.c.h.bf16 %v1603
    %v1862 = vunpack.c.h.bf16 %v1687
    %v1863 = vunpack.c.l.bf16 %v1604
    %v1864 = vunpack.c.l.bf16 %v1605
    %v1865 = vunpack.c.l.bf16 %v1606
    %v1866 = vunpack.c.l.bf16 %v1690
    %v1867 = vunpack.c.h.bf16 %v1604
    %v1868 = vunpack.c.h.bf16 %v1605
    %v1869 = vunpack.c.h.bf16 %v1606
    %v1870 = vunpack.c.h.bf16 %v1690
    %v1871 = vunpack.c.l.bf16 %v1607
    %v1872 = vunpack.c.l.bf16 %v1608
    %v1873 = vunpack.c.l.bf16 %v1609
    %v1874 = vunpack.c.l.bf16 %v1693
    %v1875 = vunpack.c.h.bf16 %v1607
    %v1876 = vunpack.c.h.bf16 %v1608
    %v1877 = vunpack.c.h.bf16 %v1609
    %v1878 = vunpack.c.h.bf16 %v1693
    %v1879 = vunpack.c.l.bf16 %v1610
    %v1880 = vunpack.c.l.bf16 %v1611
    %v1881 = vunpack.c.l.bf16 %v1612
    %v1882 = vunpack.c.l.bf16 %v1696
    %v1883 = vunpack.c.h.bf16 %v1610
    %v1884 = vunpack.c.h.bf16 %v1611
    %v1885 = vunpack.c.h.bf16 %v1612
    %v1886 = vunpack.c.h.bf16 %v1696
    %v1887 = vunpack.c.l.bf16 %v1613
    %v1888 = vunpack.c.l.bf16 %v1614
    %v1889 = vunpack.c.l.bf16 %v1615
    %v1890 = vunpack.c.l.bf16 %v1699
    %v1891 = vunpack.c.h.bf16 %v1613
    %v1892 = vunpack.c.h.bf16 %v1614
    %v1893 = vunpack.c.h.bf16 %v1615
    %v1894 = vunpack.c.h.bf16 %v1699
    %v1895 = vunpack.c.l.bf16 %v1616
    %v1896 = vunpack.c.l.bf16 %v1617
    %v1897 = vunpack.c.l.bf16 %v1618
    %v1898 = vunpack.c.l.bf16 %v1702
    %v1899 = vunpack.c.h.bf16 %v1616
    %v1900 = vunpack.c.h.bf16 %v1617
    %v1901 = vunpack.c.h.bf16 %v1618
    %v1902 = vunpack.c.h.bf16 %v1702
    %v1903 = vunpack.c.l.bf16 %v1619
    %v1904 = vunpack.c.l.bf16 %v1620
    %v1905 = vunpack.c.l.bf16 %v1621
    %v1906 = vunpack.c.l.bf16 %v1705
    %v1907 = vunpack.c.h.bf16 %v1619
    %v1908 = vunpack.c.h.bf16 %v1620
    %v1909 = vunpack.c.h.bf16 %v1621
    %v1910 = vunpack.c.h.bf16 %v1705
    %v1911 = vunpack.c.l.bf16 %v1622
    %v1912 = vunpack.c.l.bf16 %v1623
    %v1913 = vunpack.c.l.bf16 %v1624
    %v1914 = vunpack.c.l.bf16 %v1708
    %v1915 = vunpack.c.h.bf16 %v1622
    %v1916 = vunpack.c.h.bf16 %v1623
    %v1917 = vunpack.c.h.bf16 %v1624
    %v1918 = vunpack.c.h.bf16 %v1708
    %v1919 = vunpack.c.l.bf16 %v1625
    %v1920 = vunpack.c.l.bf16 %v1626
    %v1921 = vunpack.c.l.bf16 %v1627
    %v1922 = vunpack.c.l.bf16 %v1711
    %v1923 = vunpack.c.h.bf16 %v1625
    %v1924 = vunpack.c.h.bf16 %v1626
    %v1925 = vunpack.c.h.bf16 %v1627
    %v1926 = vunpack.c.h.bf16 %v1711
    %v1927 = vunpack.c.l.bf16 %v1628
    %v1928 = vunpack.c.l.bf16 %v1629
    %v1929 = vunpack.c.l.bf16 %v1630
    %v1930 = vunpack.c.l.bf16 %v1714
    %v1931 = vunpack.c.h.bf16 %v1628
    %v1932 = vunpack.c.h.bf16 %v1629
    %v1933 = vunpack.c.h.bf16 %v1630
    %v1934 = vunpack.c.h.bf16 %v1714
    %v1935 = vunpack.c.l.bf16 %v1631
    %v1936 = vunpack.c.l.bf16 %v1632
    %v1937 = vunpack.c.l.bf16 %v1633
    %v1938 = vunpack.c.l.bf16 %v1717
    %v1939 = vunpack.c.h.bf16 %v1631
    %v1940 = vunpack.c.h.bf16 %v1632
    %v1941 = vunpack.c.h.bf16 %v1633
    %v1942 = vunpack.c.h.bf16 %v1717
    %v1943 = vmax.f32 %v1719, %v1831
    %v1944 = vmax.f32 %v1720, %v1832
    %v1945 = vmax.f32 %v1721, %v1833
    %v1946 = vmax.f32 %v1722, %v1834
    %v1947 = vmax.f32 %v1723, %v1835
    %v1948 = vmax.f32 %v1724, %v1836
    %v1949 = vmax.f32 %v1725, %v1837
    %v1950 = vmax.f32 %v1726, %v1838
    %v1951 = vmax.f32 %v1727, %v1839
    %v1952 = vmax.f32 %v1728, %v1840
    %v1953 = vmax.f32 %v1729, %v1841
    %v1954 = vmax.f32 %v1730, %v1842
    %v1955 = vmax.f32 %v1731, %v1843
    %v1956 = vmax.f32 %v1732, %v1844
    %v1957 = vmax.f32 %v1733, %v1845
    %v1958 = vmax.f32 %v1734, %v1846
    %v1959 = vmax.f32 %v1735, %v1847
    %v1960 = vmax.f32 %v1736, %v1848
    %v1961 = vmax.f32 %v1737, %v1849
    %v1962 = vmax.f32 %v1738, %v1850
    %v1963 = vmax.f32 %v1739, %v1851
    %v1964 = vmax.f32 %v1740, %v1852
    %v1965 = vmax.f32 %v1741, %v1853
    %v1966 = vmax.f32 %v1742, %v1854
    %v1967 = vmax.f32 %v1743, %v1855
    %v1968 = vmax.f32 %v1744, %v1856
    %v1969 = vmax.f32 %v1745, %v1857
    %v1970 = vmax.f32 %v1746, %v1858
    %v1971 = vmax.f32 %v1747, %v1859
    %v1972 = vmax.f32 %v1748, %v1860
    %v1973 = vmax.f32 %v1749, %v1861
    %v1974 = vmax.f32 %v1750, %v1862
    %v1975 = vmax.f32 %v1751, %v1863
    %v1976 = vmax.f32 %v1752, %v1864
    %v1977 = vmax.f32 %v1753, %v1865
    %v1978 = vmax.f32 %v1754, %v1866
    %v1979 = vmax.f32 %v1755, %v1867
    %v1980 = vmax.f32 %v1756, %v1868
    %v1981 = vmax.f32 %v1757, %v1869
    %v1982 = vmax.f32 %v1758, %v1870
    %v1983 = vmax.f32 %v1759, %v1871
    %v1984 = vmax.f32 %v1760, %v1872
    %v1985 = vmax.f32 %v1761, %v1873
    %v1986 = vmax.f32 %v1762, %v1874
    %v1987 = vmax.f32 %v1763, %v1875
    %v1988 = vmax.f32 %v1764, %v1876
    %v1989 = vmax.f32 %v1765, %v1877
    %v1990 = vmax.f32 %v1766, %v1878
    %v1991 = vmax.f32 %v1767, %v1879
    %v1992 = vmax.f32 %v1768, %v1880
    %v1993 = vmax.f32 %v1769, %v1881
    %v1994 = vmax.f32 %v1770, %v1882
    %v1995 = vmax.f32 %v1771, %v1883
    %v1996 = vmax.f32 %v1772, %v1884
    %v1997 = vmax.f32 %v1773, %v1885
    %v1998 = vmax.f32 %v1774, %v1886
    %v1999 = vmax.f32 %v1775, %v1887
    %v2000 = vmax.f32 %v1776, %v1888
    %v2001 = vmax.f32 %v1777, %v1889
    %v2002 = vmax.f32 %v1778, %v1890
    %v2003 = vmax.f32 %v1779, %v1891
    %v2004 = vmax.f32 %v1780, %v1892
    %v2005 = vmax.f32 %v1781, %v1893
    %v2006 = vmax.f32 %v1782, %v1894
    %v2007 = vmax.f32 %v1783, %v1895
    %v2008 = vmax.f32 %v1784, %v1896
    %v2009 = vmax.f32 %v1785, %v1897
    %v2010 = vmax.f32 %v1786, %v1898
    %v2011 = vmax.f32 %v1787, %v1899
    %v2012 = vmax.f32 %v1788, %v1900
    %v2013 = vmax.f32 %v1789, %v1901
    %v2014 = vmax.f32 %v1790, %v1902
    %v2015 = vmax.f32 %v1791, %v1903
    %v2016 = vmax.f32 %v1792, %v1904
    %v2017 = vmax.f32 %v1793, %v1905
    %v2018 = vmax.f32 %v1794, %v1906
    %v2019 = vmax.f32 %v1795, %v1907
    %v2020 = vmax.f32 %v1796, %v1908
    %v2021 = vmax.f32 %v1797, %v1909
    %v2022 = vmax.f32 %v1798, %v1910
    %v2023 = vmax.f32 %v1799, %v1911
    %v2024 = vmax.f32 %v1800, %v1912
    %v2025 = vmax.f32 %v1801, %v1913
    %v2026 = vmax.f32 %v1802, %v1914
    %v2027 = vmax.f32 %v1803, %v1915
    %v2028 = vmax.f32 %v1804, %v1916
    %v2029 = vmax.f32 %v1805, %v1917
    %v2030 = vmax.f32 %v1806, %v1918
    %v2031 = vmax.f32 %v1807, %v1919
    %v2032 = vmax.f32 %v1808, %v1920
    %v2033 = vmax.f32 %v1809, %v1921
    %v2034 = vmax.f32 %v1810, %v1922
    %v2035 = vmax.f32 %v1811, %v1923
    %v2036 = vmax.f32 %v1812, %v1924
    %v2037 = vmax.f32 %v1813, %v1925
    %v2038 = vmax.f32 %v1814, %v1926
    %v2039 = vmax.f32 %v1815, %v1927
    %v2040 = vmax.f32 %v1816, %v1928
    %v2041 = vmax.f32 %v1817, %v1929
    %v2042 = vmax.f32 %v1818, %v1930
    %v2043 = vmax.f32 %v1819, %v1931
    %v2044 = vmax.f32 %v1820, %v1932
    %v2045 = vmax.f32 %v1821, %v1933
    %v2046 = vmax.f32 %v1822, %v1934
    %v2047 = vmax.f32 %v1823, %v1935
    %v2048 = vmax.f32 %v1824, %v1936
    %v2049 = vmax.f32 %v1825, %v1937
    %v2050 = vmax.f32 %v1826, %v1938
    %v2051 = vmax.f32 %v1827, %v1939
    %v2052 = vmax.f32 %v1828, %v1940
    %v2053 = vmax.f32 %v1829, %v1941
    %v2054 = vmax.f32 %v1830, %v1942
    %v2055 = vpack.c.bf16 %v1944, %v1943
    %v2056 = vpack.c.bf16 %v1946, %v1945
    %v2057 = vpack.c.bf16 %v1948, %v1947
    %v2058 = vpack.c.bf16 %v1950, %v1949
    %v2059 = vpack.c.bf16 %v1952, %v1951
    %v2060 = vpack.c.bf16 %v1954, %v1953
    %v2061 = vpack.c.bf16 %v1956, %v1955
    %v2062 = vpack.c.bf16 %v1958, %v1957
    %v2063 = vpack.c.bf16 %v1960, %v1959
    %v2064 = vpack.c.bf16 %v1962, %v1961
    %v2065 = vpack.c.bf16 %v1964, %v1963
    %v2066 = vpack.c.bf16 %v1966, %v1965
    %v2067 = vpack.c.bf16 %v1968, %v1967
    %v2068 = vpack.c.bf16 %v1970, %v1969
    %v2069 = vpack.c.bf16 %v1972, %v1971
    %v2070 = vpack.c.bf16 %v1974, %v1973
    %v2071 = vpack.c.bf16 %v1976, %v1975
    %v2072 = vpack.c.bf16 %v1978, %v1977
    %v2073 = vpack.c.bf16 %v1980, %v1979
    %v2074 = vpack.c.bf16 %v1982, %v1981
    %v2075 = vpack.c.bf16 %v1984, %v1983
    %v2076 = vpack.c.bf16 %v1986, %v1985
    %v2077 = vpack.c.bf16 %v1988, %v1987
    %v2078 = vpack.c.bf16 %v1990, %v1989
    %v2079 = vpack.c.bf16 %v1992, %v1991
    %v2080 = vpack.c.bf16 %v1994, %v1993
    %v2081 = vpack.c.bf16 %v1996, %v1995
    %v2082 = vpack.c.bf16 %v1998, %v1997
    %v2083 = vpack.c.bf16 %v2000, %v1999
    %v2084 = vpack.c.bf16 %v2002, %v2001
    %v2085 = vpack.c.bf16 %v2004, %v2003
    %v2086 = vpack.c.bf16 %v2006, %v2005
    %v2087 = vpack.c.bf16 %v2008, %v2007
    %v2088 = vpack.c.bf16 %v2010, %v2009
    %v2089 = vpack.c.bf16 %v2012, %v2011
    %v2090 = vpack.c.bf16 %v2014, %v2013
    %v2091 = vpack.c.bf16 %v2016, %v2015
    %v2092 = vpack.c.bf16 %v2018, %v2017
    %v2093 = vpack.c.bf16 %v2020, %v2019
    %v2094 = vpack.c.bf16 %v2022, %v2021
    %v2095 = vpack.c.bf16 %v2024, %v2023
    %v2096 = vpack.c.bf16 %v2026, %v2025
    %v2097 = vpack.c.bf16 %v2028, %v2027
    %v2098 = vpack.c.bf16 %v2030, %v2029
    %v2099 = vpack.c.bf16 %v2032, %v2031
    %v2100 = vpack.c.bf16 %v2034, %v2033
    %v2101 = vpack.c.bf16 %v2036, %v2035
    %v2102 = vpack.c.bf16 %v2038, %v2037
    %v2103 = vpack.c.bf16 %v2040, %v2039
    %v2104 = vpack.c.bf16 %v2042, %v2041
    %v2105 = vpack.c.bf16 %v2044, %v2043
    %v2106 = vpack.c.bf16 %v2046, %v2045
    %v2107 = vpack.c.bf16 %v2048, %v2047
    %v2108 = vpack.c.bf16 %v2050, %v2049
    %v2109 = vpack.c.bf16 %v2052, %v2051
    %v2110 = vpack.c.bf16 %v2054, %v2053
    %v2111 = vunpack.c.l.bf16 %v2055
    %v2112 = vunpack.c.h.bf16 %v2055
    %v2113 = vunpack.c.l.bf16 %v2056
    %v2114 = vunpack.c.h.bf16 %v2056
    %v2115 = vunpack.c.l.bf16 %v2059
    %v2116 = vunpack.c.h.bf16 %v2059
    %v2117 = vunpack.c.l.bf16 %v2060
    %v2118 = vunpack.c.h.bf16 %v2060
    %v2119 = vunpack.c.l.bf16 %v2063
    %v2120 = vunpack.c.h.bf16 %v2063
    %v2121 = vunpack.c.l.bf16 %v2064
    %v2122 = vunpack.c.h.bf16 %v2064
    %v2123 = vunpack.c.l.bf16 %v2067
    %v2124 = vunpack.c.h.bf16 %v2067
    %v2125 = vunpack.c.l.bf16 %v2068
    %v2126 = vunpack.c.h.bf16 %v2068
    %v2127 = vunpack.c.l.bf16 %v2071
    %v2128 = vunpack.c.h.bf16 %v2071
    %v2129 = vunpack.c.l.bf16 %v2072
    %v2130 = vunpack.c.h.bf16 %v2072
    %v2131 = vunpack.c.l.bf16 %v2075
    %v2132 = vunpack.c.h.bf16 %v2075
    %v2133 = vunpack.c.l.bf16 %v2076
    %v2134 = vunpack.c.h.bf16 %v2076
    %v2135 = vunpack.c.l.bf16 %v2079
    %v2136 = vunpack.c.h.bf16 %v2079
    %v2137 = vunpack.c.l.bf16 %v2080
    %v2138 = vunpack.c.h.bf16 %v2080
    %v2139 = vunpack.c.l.bf16 %v2083
    %v2140 = vunpack.c.h.bf16 %v2083
    %v2141 = vunpack.c.l.bf16 %v2084
    %v2142 = vunpack.c.h.bf16 %v2084
    %v2143 = vunpack.c.l.bf16 %v2087
    %v2144 = vunpack.c.h.bf16 %v2087
    %v2145 = vunpack.c.l.bf16 %v2088
    %v2146 = vunpack.c.h.bf16 %v2088
    %v2147 = vunpack.c.l.bf16 %v2091
    %v2148 = vunpack.c.h.bf16 %v2091
    %v2149 = vunpack.c.l.bf16 %v2092
    %v2150 = vunpack.c.h.bf16 %v2092
    %v2151 = vunpack.c.l.bf16 %v2095
    %v2152 = vunpack.c.h.bf16 %v2095
    %v2153 = vunpack.c.l.bf16 %v2096
    %v2154 = vunpack.c.h.bf16 %v2096
    %v2155 = vunpack.c.l.bf16 %v2099
    %v2156 = vunpack.c.h.bf16 %v2099
    %v2157 = vunpack.c.l.bf16 %v2100
    %v2158 = vunpack.c.h.bf16 %v2100
    %v2159 = vunpack.c.l.bf16 %v2103
    %v2160 = vunpack.c.h.bf16 %v2103
    %v2161 = vunpack.c.l.bf16 %v2104
    %v2162 = vunpack.c.h.bf16 %v2104
    %v2163 = vunpack.c.l.bf16 %v2107
    %v2164 = vunpack.c.h.bf16 %v2107
    %v2165 = vunpack.c.l.bf16 %v2108
    %v2166 = vunpack.c.h.bf16 %v2108
    %v2167 = vunpack.c.l.bf16 %v2057
    %v2168 = vunpack.c.h.bf16 %v2057
    %v2169 = vunpack.c.l.bf16 %v2058
    %v2170 = vunpack.c.h.bf16 %v2058
    %v2171 = vunpack.c.l.bf16 %v2061
    %v2172 = vunpack.c.h.bf16 %v2061
    %v2173 = vunpack.c.l.bf16 %v2062
    %v2174 = vunpack.c.h.bf16 %v2062
    %v2175 = vunpack.c.l.bf16 %v2065
    %v2176 = vunpack.c.h.bf16 %v2065
    %v2177 = vunpack.c.l.bf16 %v2066
    %v2178 = vunpack.c.h.bf16 %v2066
    %v2179 = vunpack.c.l.bf16 %v2069
    %v2180 = vunpack.c.h.bf16 %v2069
    %v2181 = vunpack.c.l.bf16 %v2070
    %v2182 = vunpack.c.h.bf16 %v2070
    %v2183 = vunpack.c.l.bf16 %v2073
    %v2184 = vunpack.c.h.bf16 %v2073
    %v2185 = vunpack.c.l.bf16 %v2074
    %v2186 = vunpack.c.h.bf16 %v2074
    %v2187 = vunpack.c.l.bf16 %v2077
    %v2188 = vunpack.c.h.bf16 %v2077
    %v2189 = vunpack.c.l.bf16 %v2078
    %v2190 = vunpack.c.h.bf16 %v2078
    %v2191 = vunpack.c.l.bf16 %v2081
    %v2192 = vunpack.c.h.bf16 %v2081
    %v2193 = vunpack.c.l.bf16 %v2082
    %v2194 = vunpack.c.h.bf16 %v2082
    %v2195 = vunpack.c.l.bf16 %v2085
    %v2196 = vunpack.c.h.bf16 %v2085
    %v2197 = vunpack.c.l.bf16 %v2086
    %v2198 = vunpack.c.h.bf16 %v2086
    %v2199 = vunpack.c.l.bf16 %v2089
    %v2200 = vunpack.c.h.bf16 %v2089
    %v2201 = vunpack.c.l.bf16 %v2090
    %v2202 = vunpack.c.h.bf16 %v2090
    %v2203 = vunpack.c.l.bf16 %v2093
    %v2204 = vunpack.c.h.bf16 %v2093
    %v2205 = vunpack.c.l.bf16 %v2094
    %v2206 = vunpack.c.h.bf16 %v2094
    %v2207 = vunpack.c.l.bf16 %v2097
    %v2208 = vunpack.c.h.bf16 %v2097
    %v2209 = vunpack.c.l.bf16 %v2098
    %v2210 = vunpack.c.h.bf16 %v2098
    %v2211 = vunpack.c.l.bf16 %v2101
    %v2212 = vunpack.c.h.bf16 %v2101
    %v2213 = vunpack.c.l.bf16 %v2102
    %v2214 = vunpack.c.h.bf16 %v2102
    %v2215 = vunpack.c.l.bf16 %v2105
    %v2216 = vunpack.c.h.bf16 %v2105
    %v2217 = vunpack.c.l.bf16 %v2106
    %v2218 = vunpack.c.h.bf16 %v2106
    %v2219 = vunpack.c.l.bf16 %v2109
    %v2220 = vunpack.c.h.bf16 %v2109
    %v2221 = vunpack.c.l.bf16 %v2110
    %v2222 = vunpack.c.h.bf16 %v2110
    %v2223 = vmax.f32 %v2111, %v2167
    %v2224 = vmax.f32 %v2112, %v2168
    %v2225 = vmax.f32 %v2113, %v2169
    %v2226 = vmax.f32 %v2114, %v2170
    %v2227 = vmax.f32 %v2115, %v2171
    %v2228 = vmax.f32 %v2116, %v2172
    %v2229 = vmax.f32 %v2117, %v2173
    %v2230 = vmax.f32 %v2118, %v2174
    %v2231 = vmax.f32 %v2119, %v2175
    %v2232 = vmax.f32 %v2120, %v2176
    %v2233 = vmax.f32 %v2121, %v2177
    %v2234 = vmax.f32 %v2122, %v2178
    %v2235 = vmax.f32 %v2123, %v2179
    %v2236 = vmax.f32 %v2124, %v2180
    %v2237 = vmax.f32 %v2125, %v2181
    %v2238 = vmax.f32 %v2126, %v2182
    %v2239 = vmax.f32 %v2127, %v2183
    %v2240 = vmax.f32 %v2128, %v2184
    %v2241 = vmax.f32 %v2129, %v2185
    %v2242 = vmax.f32 %v2130, %v2186
    %v2243 = vmax.f32 %v2131, %v2187
    %v2244 = vmax.f32 %v2132, %v2188
    %v2245 = vmax.f32 %v2133, %v2189
    %v2246 = vmax.f32 %v2134, %v2190
    %v2247 = vmax.f32 %v2135, %v2191
    %v2248 = vmax.f32 %v2136, %v2192
    %v2249 = vmax.f32 %v2137, %v2193
    %v2250 = vmax.f32 %v2138, %v2194
    %v2251 = vmax.f32 %v2139, %v2195
    %v2252 = vmax.f32 %v2140, %v2196
    %v2253 = vmax.f32 %v2141, %v2197
    %v2254 = vmax.f32 %v2142, %v2198
    %v2255 = vmax.f32 %v2143, %v2199
    %v2256 = vmax.f32 %v2144, %v2200
    %v2257 = vmax.f32 %v2145, %v2201
    %v2258 = vmax.f32 %v2146, %v2202
    %v2259 = vmax.f32 %v2147, %v2203
    %v2260 = vmax.f32 %v2148, %v2204
    %v2261 = vmax.f32 %v2149, %v2205
    %v2262 = vmax.f32 %v2150, %v2206
    %v2263 = vmax.f32 %v2151, %v2207
    %v2264 = vmax.f32 %v2152, %v2208
    %v2265 = vmax.f32 %v2153, %v2209
    %v2266 = vmax.f32 %v2154, %v2210
    %v2267 = vmax.f32 %v2155, %v2211
    %v2268 = vmax.f32 %v2156, %v2212
    %v2269 = vmax.f32 %v2157, %v2213
    %v2270 = vmax.f32 %v2158, %v2214
    %v2271 = vmax.f32 %v2159, %v2215
    %v2272 = vmax.f32 %v2160, %v2216
    %v2273 = vmax.f32 %v2161, %v2217
    %v2274 = vmax.f32 %v2162, %v2218
    %v2275 = vmax.f32 %v2163, %v2219
    %v2276 = vmax.f32 %v2164, %v2220
    %v2277 = vmax.f32 %v2165, %v2221
    %v2278 = vmax.f32 %v2166, %v2222
    %v2279 = vpack.c.bf16 %v2224, %v2223
    %v2280 = vpack.c.bf16 %v2226, %v2225
    %v2281 = vpack.c.bf16 %v2228, %v2227
    %v2282 = vpack.c.bf16 %v2230, %v2229
    %v2283 = vpack.c.bf16 %v2232, %v2231
    %v2284 = vpack.c.bf16 %v2234, %v2233
    %v2285 = vpack.c.bf16 %v2236, %v2235
    %v2286 = vpack.c.bf16 %v2238, %v2237
    %v2287 = vpack.c.bf16 %v2240, %v2239
    %v2288 = vpack.c.bf16 %v2242, %v2241
    %v2289 = vpack.c.bf16 %v2244, %v2243
    %v2290 = vpack.c.bf16 %v2246, %v2245
    %v2291 = vpack.c.bf16 %v2248, %v2247
    %v2292 = vpack.c.bf16 %v2250, %v2249
    %v2293 = vpack.c.bf16 %v2252, %v2251
    %v2294 = vpack.c.bf16 %v2254, %v2253
    %v2295 = vpack.c.bf16 %v2256, %v2255
    %v2296 = vpack.c.bf16 %v2258, %v2257
    %v2297 = vpack.c.bf16 %v2260, %v2259
    %v2298 = vpack.c.bf16 %v2262, %v2261
    %v2299 = vpack.c.bf16 %v2264, %v2263
    %v2300 = vpack.c.bf16 %v2266, %v2265
    %v2301 = vpack.c.bf16 %v2268, %v2267
    %v2302 = vpack.c.bf16 %v2270, %v2269
    %v2303 = vpack.c.bf16 %v2272, %v2271
    %v2304 = vpack.c.bf16 %v2274, %v2273
    %v2305 = vpack.c.bf16 %v2276, %v2275
    %v2306 = vpack.c.bf16 %v2278, %v2277
    %v2333 = vunpack.c.l.b16 %v2279
    %v2334 = vunpack.c.h.b16 %v2279
    %v2335 = vunpack.c.l.b16 %v2280
    %v2336 = vunpack.c.h.b16 %v2280
    %v2337 = vunpack.c.l.b16 %v2281
    %v2338 = vunpack.c.h.b16 %v2281
    %v2339 = vunpack.c.l.b16 %v2282
    %v2340 = vunpack.c.h.b16 %v2282
    %v2341 = vunpack.c.l.b16 %v2283
    %v2342 = vunpack.c.h.b16 %v2283
    %v2343 = vunpack.c.l.b16 %v2284
    %v2344 = vunpack.c.h.b16 %v2284
    %v2345 = vunpack.c.l.b16 %v2285
    %v2346 = vunpack.c.h.b16 %v2285
    %v2347 = vunpack.c.l.b16 %v2286
    %v2348 = vunpack.c.h.b16 %v2286
    %v2349 = vunpack.c.l.b16 %v2287
    %v2350 = vunpack.c.h.b16 %v2287
    %v2351 = vunpack.c.l.b16 %v2288
    %v2352 = vunpack.c.h.b16 %v2288
    %v2353 = vunpack.c.l.b16 %v2289
    %v2354 = vunpack.c.h.b16 %v2289
    %v2355 = vunpack.c.l.b16 %v2290
    %v2356 = vunpack.c.h.b16 %v2290
    %v2357 = vunpack.c.l.b16 %v2291
    %v2358 = vunpack.c.h.b16 %v2291
    %v2359 = vunpack.c.l.b16 %v2292
    %v2360 = vunpack.c.h.b16 %v2292
    %v2361 = vunpack.c.l.b16 %v2293
    %v2362 = vunpack.c.h.b16 %v2293
    %v2363 = vunpack.c.l.b16 %v2294
    %v2364 = vunpack.c.h.b16 %v2294
    %v2365 = vunpack.c.l.b16 %v2295
    %v2366 = vunpack.c.h.b16 %v2295
    %v2367 = vunpack.c.l.b16 %v2296
    %v2368 = vunpack.c.h.b16 %v2296
    %v2369 = vunpack.c.l.b16 %v2297
    %v2370 = vunpack.c.h.b16 %v2297
    %v2371 = vunpack.c.l.b16 %v2298
    %v2372 = vunpack.c.h.b16 %v2298
    %v2373 = vunpack.c.l.b16 %v2299
    %v2374 = vunpack.c.h.b16 %v2299
    %v2375 = vunpack.c.l.b16 %v2300
    %v2376 = vunpack.c.h.b16 %v2300
    %v2377 = vunpack.c.l.b16 %v2301
    %v2378 = vunpack.c.h.b16 %v2301
    %v2379 = vunpack.c.l.b16 %v2302
    %v2380 = vunpack.c.h.b16 %v2302
    %v2381 = vunpack.c.l.b16 %v2303
    %v2382 = vunpack.c.h.b16 %v2303
    %v2383 = vunpack.c.l.b16 %v2304
    %v2384 = vunpack.c.h.b16 %v2304
    %v2387 = vunpack.c.l.b16 %v2305
    %v2388 = vunpack.c.h.b16 %v2305
    %v2389 = vunpack.c.l.b16 %v2306
    %v2390 = vunpack.c.h.b16 %v2306
    %v2391 = vunpack.c.h.b16 0
    %v2392 = vld [vmem:[#allocation6] sm:$0xff]
    %v2393 = vld [vmem:[#allocation6 + $0x8] sm:$0xff]
    %v2394 = vld [vmem:[#allocation6 + $0x10] sm:$0xff]
    %v2395 = vld [vmem:[#allocation6 + $0x18] sm:$0xff]
    %v2396 = vld [vmem:[#allocation6 + $0x20] sm:$0xff]
    %v2397 = vld [vmem:[#allocation6 + $0x28] sm:$0xff]
    %v2398 = vld [vmem:[#allocation6 + $0x30] sm:$0xff]
    %v2399 = vld [vmem:[#allocation6 + $0x38] sm:$0xff]
    %v2400 = vld [vmem:[#allocation6 + $0x40] sm:$0xff]
    %v2401 = vld [vmem:[#allocation6 + $0x48] sm:$0xff]
    %v2402 = vld [vmem:[#allocation6 + $0x50] sm:$0xff]
    %v2403 = vld [vmem:[#allocation6 + $0x58] sm:$0xff]
    %v2404 = vld [vmem:[#allocation6 + $0x60] sm:$0xff]
    %v2405 = vld [vmem:[#allocation6 + $0x68] sm:$0xff]
    %v2406 = vld [vmem:[#allocation6 + $0x70] sm:$0xff]
    %v2407 = vld [vmem:[#allocation6 + $0x78] sm:$0xff]
    %v2408 = vld [vmem:[#allocation6 + $0x80] sm:$0xff]
    %v2409 = vld [vmem:[#allocation6 + $0x88] sm:$0xff]
    %v2410 = vld [vmem:[#allocation6 + $0x90] sm:$0xff]
    %v2411 = vld [vmem:[#allocation6 + $0x98] sm:$0xff]
    %v2412 = vld [vmem:[#allocation6 + $0xa0] sm:$0xff]
    %v2413 = vld [vmem:[#allocation6 + $0xa8] sm:$0xff]
    %v2414 = vld [vmem:[#allocation6 + $0xb0] sm:$0xff]
    %v2415 = vld [vmem:[#allocation6 + $0xb8] sm:$0xff]
    %v2416 = vld [vmem:[#allocation6 + $0xc0] sm:$0xff]
    %v2417 = vld [vmem:[#allocation6 + $0xc8] sm:$0xff]
    %v2418 = vld [vmem:[#allocation6 + $0xd0] sm:$0xff]
    %v2419 = vld [vmem:[#allocation6 + $0xd8] sm:$0xff]
    %v2420 = vld [vmem:[#allocation6 + $0xe0] sm:$0xff]
    %v2421 = vld [vmem:[#allocation6 + $0xe8] sm:$0xff]
    %v2422 = vld [vmem:[#allocation6 + $0xf0] sm:$0xff]
    %v2423 = vld [vmem:[#allocation6 + $0xf8] sm:$0xff]
    %v2424 = vld [vmem:[#allocation6 + $0x100] sm:$0xff]
    %v2425 = vld [vmem:[#allocation6 + $0x108] sm:$0xff]
    %v2426 = vld [vmem:[#allocation6 + $0x110] sm:$0xff]
    %v2427 = vld [vmem:[#allocation6 + $0x118] sm:$0xff]
    %v2428 = vld [vmem:[#allocation6 + $0x120] sm:$0xff]
    %v2429 = vld [vmem:[#allocation6 + $0x128] sm:$0xff]
    %v2430 = vld [vmem:[#allocation6 + $0x130] sm:$0xff]
    %v2431 = vld [vmem:[#allocation6 + $0x138] sm:$0xff]
    %v2432 = vld [vmem:[#allocation6 + $0x140] sm:$0xff]
    %v2433 = vld [vmem:[#allocation6 + $0x148] sm:$0xff]
    %v2434 = vld [vmem:[#allocation6 + $0x150] sm:$0xff]
    %v2435 = vld [vmem:[#allocation6 + $0x158] sm:$0xff]
    %v2436 = vld [vmem:[#allocation6 + $0x160] sm:$0xff]
    %v2437 = vld [vmem:[#allocation6 + $0x168] sm:$0xff]
    %v2438 = vld [vmem:[#allocation6 + $0x170] sm:$0xff]
    %v2439 = vld [vmem:[#allocation6 + $0x178] sm:$0xff]
    %v2440 = vld [vmem:[#allocation6 + $0x180] sm:$0xff]
    %v2441 = vld [vmem:[#allocation6 + $0x188] sm:$0xff]
    %v2442 = vld [vmem:[#allocation6 + $0x190] sm:$0xff]
    %v2443 = vld [vmem:[#allocation6 + $0x198] sm:$0xff]
    %v2444 = vld [vmem:[#allocation6 + $0x1a0] sm:$0xff]
    %v2445 = vld [vmem:[#allocation6 + $0x1a8] sm:$0xff]
    %v2446 = vld [vmem:[#allocation6 + $0x1b0] sm:$0xff]
    %v2447 = vld [vmem:[#allocation6 + $0x1b8] sm:$0xff]
    %v2448 = vld [vmem:[#allocation6 + $0x1c0] sm:$0xff]
    %v2449 = vld [vmem:[#allocation6 + $0x1c8] sm:$0xff]
    %v2450 = vld [vmem:[#allocation6 + $0x1d0] sm:$0xff]
    %v2451 = vld [vmem:[#allocation6 + $0x1d8] sm:$0xff]
    %v2452 = vld [vmem:[#allocation6 + $0x1e0] sm:$0xff]
    %v2453 = vld [vmem:[#allocation6 + $0x1e8] sm:$0xff]
    %v2454 = vld [vmem:[#allocation6 + $0x1f0] sm:$0xff]
    %v2455 = vld [vmem:[#allocation6 + $0x1f8] sm:$0xff]
    %v2456 = vld [vmem:[#allocation6 + $0x200] sm:$0xff]
    %v2457 = vld [vmem:[#allocation6 + $0x208] sm:$0xff]
    %v2458 = vld [vmem:[#allocation6 + $0x210] sm:$0xff]
    %v2459 = vld [vmem:[#allocation6 + $0x218] sm:$0xff]
    %v2460 = vld [vmem:[#allocation6 + $0x220] sm:$0xff]
    %v2461 = vld [vmem:[#allocation6 + $0x228] sm:$0xff]
    %v2462 = vld [vmem:[#allocation6 + $0x230] sm:$0xff]
    %v2463 = vld [vmem:[#allocation6 + $0x238] sm:$0xff]
    %v2464 = vld [vmem:[#allocation6 + $0x240] sm:$0xff]
    %v2465 = vld [vmem:[#allocation6 + $0x248] sm:$0xff]
    %v2466 = vld [vmem:[#allocation6 + $0x250] sm:$0xff]
    %v2467 = vld [vmem:[#allocation6 + $0x258] sm:$0xff]
    %v2468 = vld [vmem:[#allocation6 + $0x260] sm:$0xff]
    %v2469 = vld [vmem:[#allocation6 + $0x268] sm:$0xff]
    %v2470 = vld [vmem:[#allocation6 + $0x270] sm:$0xff]
    %v2471 = vld [vmem:[#allocation6 + $0x278] sm:$0xff]
    %v2472 = vld [vmem:[#allocation6 + $0x280] sm:$0xff]
    %v2473 = vld [vmem:[#allocation6 + $0x288] sm:$0xff]
    %v2474 = vld [vmem:[#allocation6 + $0x290] sm:$0xff]
    %v2475 = vld [vmem:[#allocation6 + $0x298] sm:$0xff]
    %v2476 = vld [vmem:[#allocation6 + $0x2a0] sm:$0xff]
    %v2477 = vld [vmem:[#allocation6 + $0x2a8] sm:$0xff]
    %v2478 = vld [vmem:[#allocation6 + $0x2b0] sm:$0xff]
    %v2479 = vld [vmem:[#allocation6 + $0x2b8] sm:$0xff]
    %v2480 = vld [vmem:[#allocation6 + $0x2c0] sm:$0xff]
    %v2481 = vld [vmem:[#allocation6 + $0x2c8] sm:$0xff]
    %v2482 = vld [vmem:[#allocation6 + $0x2d0] sm:$0xff]
    %v2483 = vld [vmem:[#allocation6 + $0x2d8] sm:$0xff]
    %v2484 = vld [vmem:[#allocation6 + $0x2e0] sm:$0xff]
    %v2485 = vld [vmem:[#allocation6 + $0x2e8] sm:$0xff]
    %v2486 = vld [vmem:[#allocation6 + $0x2f0] sm:$0xff]
    %v2487 = vld [vmem:[#allocation6 + $0x2f8] sm:$0xff]
    %v2488 = vld [vmem:[#allocation6 + $0x300] sm:$0xff]
    %v2489 = vld [vmem:[#allocation6 + $0x308] sm:$0xff]
    %v2490 = vld [vmem:[#allocation6 + $0x310] sm:$0xff]
    %v2491 = vld [vmem:[#allocation6 + $0x318] sm:$0xff]
    %v2492 = vld [vmem:[#allocation6 + $0x320] sm:$0xff]
    %v2493 = vld [vmem:[#allocation6 + $0x328] sm:$0xff]
    %v2494 = vld [vmem:[#allocation6 + $0x330] sm:$0xff]
    %v2495 = vld [vmem:[#allocation6 + $0x338] sm:$0xff]
    %v2496 = vld [vmem:[#allocation6 + $0x340] sm:$0xff]
    %v2497 = vld [vmem:[#allocation6 + $0x348] sm:$0xff]
    %v2498 = vld [vmem:[#allocation6 + $0x350] sm:$0xff]
    %v2499 = vld [vmem:[#allocation6 + $0x358] sm:$0xff]
    %v2500 = vld [vmem:[#allocation6 + $0x360] sm:$0xff]
    %v2501 = vld [vmem:[#allocation6 + $0x368] sm:$0xff]
    %v2502 = vld [vmem:[#allocation6 + $0x370] sm:$0xff]
    %v2503 = vld [vmem:[#allocation6 + $0x378] sm:$0xff]
    %v2504 = vld [vmem:[#allocation6 + $0x380] sm:$0xff]
    %v2505 = vld [vmem:[#allocation6 + $0x388] sm:$0xff]
    %v2506 = vld [vmem:[#allocation6 + $0x390] sm:$0xff]
    %v2507 = vld [vmem:[#allocation6 + $0x398] sm:$0xff]
    %v2508 = vld [vmem:[#allocation6 + $0x3a0] sm:$0xff]
    %v2509 = vld [vmem:[#allocation6 + $0x3a8] sm:$0xff]
    %v2510 = vld [vmem:[#allocation6 + $0x3b0] sm:$0xff]
    %v2511 = vld [vmem:[#allocation6 + $0x3b8] sm:$0xff]
    %v2512 = vld [vmem:[#allocation6 + $0x3c0] sm:$0xff]
    %v2513 = vld [vmem:[#allocation6 + $0x3c8] sm:$0xff]
    %v2514 = vld [vmem:[#allocation6 + $0x3d0] sm:$0xff]
    %v2515 = vld [vmem:[#allocation6 + $0x3d8] sm:$0xff]
    %v2516 = vld [vmem:[#allocation6 + $0x3e0] sm:$0xff]
    %v2517 = vld [vmem:[#allocation6 + $0x3e8] sm:$0xff]
    %v2518 = vld [vmem:[#allocation6 + $0x3f0] sm:$0xff]
    %v2519 = vld [vmem:[#allocation6 + $0x3f8] sm:$0xff]
    %v2520 = vld [vmem:[#allocation6 + $0x400] sm:$0xff]
    %v2521 = vld [vmem:[#allocation6 + $0x408] sm:$0xff]
    %v2522 = vld [vmem:[#allocation6 + $0x410] sm:$0xff]
    %v2523 = vld [vmem:[#allocation6 + $0x418] sm:$0xff]
    %v2524 = vld [vmem:[#allocation6 + $0x420] sm:$0xff]
    %v2525 = vld [vmem:[#allocation6 + $0x428] sm:$0xff]
    %v2526 = vld [vmem:[#allocation6 + $0x430] sm:$0xff]
    %v2527 = vld [vmem:[#allocation6 + $0x438] sm:$0xff]
    %v2528 = vld [vmem:[#allocation6 + $0x440] sm:$0xff]
    %v2529 = vld [vmem:[#allocation6 + $0x448] sm:$0xff]
    %v2530 = vld [vmem:[#allocation6 + $0x450] sm:$0xff]
    %v2531 = vld [vmem:[#allocation6 + $0x458] sm:$0xff]
    %v2532 = vld [vmem:[#allocation6 + $0x460] sm:$0xff]
    %v2533 = vld [vmem:[#allocation6 + $0x468] sm:$0xff]
    %v2534 = vld [vmem:[#allocation6 + $0x470] sm:$0xff]
    %v2535 = vld [vmem:[#allocation6 + $0x478] sm:$0xff]
    %v2536 = vld [vmem:[#allocation6 + $0x480] sm:$0xff]
    %v2537 = vld [vmem:[#allocation6 + $0x488] sm:$0xff]
    %v2538 = vld [vmem:[#allocation6 + $0x490] sm:$0xff]
    %v2539 = vld [vmem:[#allocation6 + $0x498] sm:$0xff]
    %v2540 = vld [vmem:[#allocation6 + $0x4a0] sm:$0xff]
    %v2541 = vld [vmem:[#allocation6 + $0x4a8] sm:$0xff]
    %v2542 = vld [vmem:[#allocation6 + $0x4b0] sm:$0xff]
    %v2543 = vld [vmem:[#allocation6 + $0x4b8] sm:$0xff]
    %v2544 = vld [vmem:[#allocation6 + $0x4c0] sm:$0xff]
    %v2545 = vld [vmem:[#allocation6 + $0x4c8] sm:$0xff]
    %v2546 = vld [vmem:[#allocation6 + $0x4d0] sm:$0xff]
    %v2547 = vld [vmem:[#allocation6 + $0x4d8] sm:$0xff]
    %v2548 = vld [vmem:[#allocation6 + $0x4e0] sm:$0xff]
    %v2549 = vld [vmem:[#allocation6 + $0x4e8] sm:$0xff]
    %v2550 = vld [vmem:[#allocation6 + $0x4f0] sm:$0xff]
    %v2551 = vld [vmem:[#allocation6 + $0x4f8] sm:$0xff]
    %v2552 = vld [vmem:[#allocation6 + $0x500] sm:$0xff]
    %v2553 = vld [vmem:[#allocation6 + $0x508] sm:$0xff]
    %v2554 = vld [vmem:[#allocation6 + $0x510] sm:$0xff]
    %v2555 = vld [vmem:[#allocation6 + $0x518] sm:$0xff]
    %v2556 = vld [vmem:[#allocation6 + $0x520] sm:$0xff]
    %v2557 = vld [vmem:[#allocation6 + $0x528] sm:$0xff]
    %v2558 = vld [vmem:[#allocation6 + $0x530] sm:$0xff]
    %v2559 = vld [vmem:[#allocation6 + $0x538] sm:$0xff]
    %v2560 = vld [vmem:[#allocation6 + $0x540] sm:$0xff]
    %v2561 = vld [vmem:[#allocation6 + $0x548] sm:$0xff]
    %v2562 = vld [vmem:[#allocation6 + $0x550] sm:$0xff]
    %v2563 = vld [vmem:[#allocation6 + $0x558] sm:$0xff]
    %v2564 = vld [vmem:[#allocation6 + $0x560] sm:$0xff]
    %v2565 = vld [vmem:[#allocation6 + $0x568] sm:$0xff]
    %v2566 = vld [vmem:[#allocation6 + $0x570] sm:$0xff]
    %v2567 = vld [vmem:[#allocation6 + $0x578] sm:$0xff]
    %v2568 = vld [vmem:[#allocation6 + $0x580] sm:$0xff]
    %v2569 = vld [vmem:[#allocation6 + $0x588] sm:$0xff]
    %v2570 = vld [vmem:[#allocation6 + $0x590] sm:$0xff]
    %v2571 = vld [vmem:[#allocation6 + $0x598] sm:$0xff]
    %v2572 = vld [vmem:[#allocation6 + $0x5a0] sm:$0xff]
    %v2573 = vld [vmem:[#allocation6 + $0x5a8] sm:$0xff]
    %v2574 = vld [vmem:[#allocation6 + $0x5b0] sm:$0xff]
    %v2575 = vld [vmem:[#allocation6 + $0x5b8] sm:$0xff]
    %v2576 = vld [vmem:[#allocation6 + $0x5c0] sm:$0xff]
    %v2577 = vld [vmem:[#allocation6 + $0x5c8] sm:$0xff]
    %v2578 = vld [vmem:[#allocation6 + $0x5d0] sm:$0xff]
    %v2579 = vld [vmem:[#allocation6 + $0x5d8] sm:$0xff]
    %v2580 = vld [vmem:[#allocation6 + $0x5e0] sm:$0xff]
    %v2581 = vld [vmem:[#allocation6 + $0x5e8] sm:$0xff]
    %v2582 = vld [vmem:[#allocation6 + $0x5f0] sm:$0xff]
    %v2583 = vld [vmem:[#allocation6 + $0x5f8] sm:$0xff]
    %v2584 = vld [vmem:[#allocation6 + $0x600] sm:$0xff]
    %v2585 = vld [vmem:[#allocation6 + $0x608] sm:$0xff]
    %v2586 = vld [vmem:[#allocation6 + $0x610] sm:$0xff]
    %v2587 = vld [vmem:[#allocation6 + $0x618] sm:$0xff]
    %v2588 = vld [vmem:[#allocation6 + $0x620] sm:$0xff]
    %v2589 = vld [vmem:[#allocation6 + $0x628] sm:$0xff]
    %v2590 = vld [vmem:[#allocation6 + $0x630] sm:$0xff]
    %v2591 = vld [vmem:[#allocation6 + $0x638] sm:$0xff]
    %v2592 = vld [vmem:[#allocation6 + $0x640] sm:$0xff]
    %v2593 = vld [vmem:[#allocation6 + $0x648] sm:$0xff]
    %v2594 = vld [vmem:[#allocation6 + $0x650] sm:$0xff]
    %v2595 = vld [vmem:[#allocation6 + $0x658] sm:$0xff]
    %v2596 = vld [vmem:[#allocation6 + $0x660] sm:$0xff]
    %v2597 = vld [vmem:[#allocation6 + $0x668] sm:$0xff]
    %v2598 = vld [vmem:[#allocation6 + $0x670] sm:$0xff]
    %v2599 = vld [vmem:[#allocation6 + $0x678] sm:$0xff]
    %v2600 = vld [vmem:[#allocation6 + $0x680] sm:$0xff]
    %v2601 = vld [vmem:[#allocation6 + $0x688] sm:$0xff]
    %v2602 = vld [vmem:[#allocation6 + $0x690] sm:$0xff]
    %v2603 = vld [vmem:[#allocation6 + $0x698] sm:$0xff]
    %v2604 = vld [vmem:[#allocation6 + $0x6a0] sm:$0xff]
    %v2605 = vld [vmem:[#allocation6 + $0x6a8] sm:$0xff]
    %v2606 = vld [vmem:[#allocation6 + $0x6b0] sm:$0xff]
    %v2607 = vld [vmem:[#allocation6 + $0x6b8] sm:$0xff]
    %v2608 = vld [vmem:[#allocation6 + $0x6c0] sm:$0xff]
    %v2609 = vld [vmem:[#allocation6 + $0x6c8] sm:$0xff]
    %v2610 = vld [vmem:[#allocation6 + $0x6d0] sm:$0xff]
    %v2611 = vld [vmem:[#allocation6 + $0x6d8] sm:$0xff]
    %v2612 = vld [vmem:[#allocation6 + $0x6e0] sm:$0xff]
    %v2613 = vld [vmem:[#allocation6 + $0x6e8] sm:$0xff]
    %v2614 = vld [vmem:[#allocation6 + $0x6f0] sm:$0xff]
    %v2615 = vld [vmem:[#allocation6 + $0x6f8] sm:$0xff]
    %v2616 = vld [vmem:[#allocation6 + $0x700] sm:$0xff]
    %v2617 = vld [vmem:[#allocation6 + $0x708] sm:$0xff]
    %v2618 = vld [vmem:[#allocation6 + $0x710] sm:$0xff]
    %v2619 = vld [vmem:[#allocation6 + $0x718] sm:$0xff]
    %v2620 = vld [vmem:[#allocation6 + $0x720] sm:$0xff]
    %v2621 = vld [vmem:[#allocation6 + $0x728] sm:$0xff]
    %v2622 = vld [vmem:[#allocation6 + $0x730] sm:$0xff]
    %v2623 = vld [vmem:[#allocation6 + $0x738] sm:$0xff]
    %v2624 = vld [vmem:[#allocation6 + $0x740] sm:$0xff]
    %v2625 = vld [vmem:[#allocation6 + $0x748] sm:$0xff]
    %v2626 = vld [vmem:[#allocation6 + $0x750] sm:$0xff]
    %v2627 = vld [vmem:[#allocation6 + $0x758] sm:$0xff]
    %v2628 = vld [vmem:[#allocation6 + $0x760] sm:$0xff]
    %v2629 = vld [vmem:[#allocation6 + $0x768] sm:$0xff]
    %v2630 = vld [vmem:[#allocation6 + $0x770] sm:$0xff]
    %v2631 = vld [vmem:[#allocation6 + $0x778] sm:$0xff]
    %v2632 = vld [vmem:[#allocation6 + $0x780] sm:$0xff]
    %v2633 = vld [vmem:[#allocation6 + $0x788] sm:$0xff]
    %v2634 = vld [vmem:[#allocation6 + $0x790] sm:$0xff]
    %v2635 = vld [vmem:[#allocation6 + $0x798] sm:$0xff]
    %v2636 = vld [vmem:[#allocation6 + $0x7a0] sm:$0xff]
    %v2637 = vld [vmem:[#allocation6 + $0x7a8] sm:$0xff]
    %v2638 = vld [vmem:[#allocation6 + $0x7b0] sm:$0xff]
    %v2639 = vld [vmem:[#allocation6 + $0x7b8] sm:$0xff]
    %v2640 = vld [vmem:[#allocation6 + $0x7c0] sm:$0xff]
    %v2641 = vld [vmem:[#allocation6 + $0x7c8] sm:$0xff]
    %v2642 = vld [vmem:[#allocation6 + $0x7d0] sm:$0xff]
    %v2643 = vld [vmem:[#allocation6 + $0x7d8] sm:$0xff]
    %v2644 = vld [vmem:[#allocation6 + $0x7e0] sm:$0xff]
    %v2645 = vld [vmem:[#allocation6 + $0x7e8] sm:$0xff]
    %v2646 = vld [vmem:[#allocation6 + $0x7f0] sm:$0xff]
    %v2647 = vld [vmem:[#allocation6 + $0x7f8] sm:$0xff]
    %v2648 = vld [vmem:[#allocation6 + $0x800] sm:$0xff]
    %v2649 = vld [vmem:[#allocation6 + $0x808] sm:$0xff]
    %v2650 = vld [vmem:[#allocation6 + $0x810] sm:$0xff]
    %v2651 = vld [vmem:[#allocation6 + $0x818] sm:$0xff]
    %v2652 = vld [vmem:[#allocation6 + $0x820] sm:$0xff]
    %v2653 = vld [vmem:[#allocation6 + $0x828] sm:$0xff]
    %v2654 = vld [vmem:[#allocation6 + $0x830] sm:$0xff]
    %v2655 = vld [vmem:[#allocation6 + $0x838] sm:$0xff]
    %v2656 = vld [vmem:[#allocation6 + $0x840] sm:$0xff]
    %v2657 = vld [vmem:[#allocation6 + $0x848] sm:$0xff]
    %v2658 = vld [vmem:[#allocation6 + $0x850] sm:$0xff]
    %v2659 = vld [vmem:[#allocation6 + $0x858] sm:$0xff]
    %v2660 = vld [vmem:[#allocation6 + $0x860] sm:$0xff]
    %v2661 = vld [vmem:[#allocation6 + $0x868] sm:$0xff]
    %v2662 = vld [vmem:[#allocation6 + $0x870] sm:$0xff]
    %v2663 = vld [vmem:[#allocation6 + $0x878] sm:$0xff]
    %v2664 = vld [vmem:[#allocation6 + $0x880] sm:$0xff]
    %v2665 = vld [vmem:[#allocation6 + $0x888] sm:$0xff]
    %v2666 = vld [vmem:[#allocation6 + $0x890] sm:$0xff]
    %v2667 = vld [vmem:[#allocation6 + $0x898] sm:$0xff]
    %v2668 = vld [vmem:[#allocation6 + $0x8a0] sm:$0xff]
    %v2669 = vld [vmem:[#allocation6 + $0x8a8] sm:$0xff]
    %v2670 = vld [vmem:[#allocation6 + $0x8b0] sm:$0xff]
    %v2671 = vld [vmem:[#allocation6 + $0x8b8] sm:$0xff]
    %v2672 = vld [vmem:[#allocation6 + $0x8c0] sm:$0xff]
    %v2673 = vld [vmem:[#allocation6 + $0x8c8] sm:$0xff]
    %v2674 = vld [vmem:[#allocation6 + $0x8d0] sm:$0xff]
    %v2675 = vld [vmem:[#allocation6 + $0x8d8] sm:$0xff]
    %v2676 = vld [vmem:[#allocation6 + $0x8e0] sm:$0xff]
    %v2677 = vld [vmem:[#allocation6 + $0x8e8] sm:$0xff]
    %v2678 = vld [vmem:[#allocation6 + $0x8f0] sm:$0xff]
    %v2679 = vld [vmem:[#allocation6 + $0x8f8] sm:$0xff]
    %v2680 = vld [vmem:[#allocation6 + $0x900] sm:$0xff]
    %v2681 = vld [vmem:[#allocation6 + $0x908] sm:$0xff]
    %v2682 = vld [vmem:[#allocation6 + $0x910] sm:$0xff]
    %v2683 = vld [vmem:[#allocation6 + $0x918] sm:$0xff]
    %v2684 = vld [vmem:[#allocation6 + $0x920] sm:$0xff]
    %v2685 = vld [vmem:[#allocation6 + $0x928] sm:$0xff]
    %v2686 = vld [vmem:[#allocation6 + $0x930] sm:$0xff]
    %v2687 = vld [vmem:[#allocation6 + $0x938] sm:$0xff]
    %v2688 = vld [vmem:[#allocation6 + $0x940] sm:$0xff]
    %v2689 = vld [vmem:[#allocation6 + $0x948] sm:$0xff]
    %v2690 = vld [vmem:[#allocation6 + $0x950] sm:$0xff]
    %v2691 = vld [vmem:[#allocation6 + $0x958] sm:$0xff]
    %v2692 = vld [vmem:[#allocation6 + $0x960] sm:$0xff]
    %v2693 = vld [vmem:[#allocation6 + $0x968] sm:$0xff]
    %v2694 = vld [vmem:[#allocation6 + $0x970] sm:$0xff]
    %v2695 = vld [vmem:[#allocation6 + $0x978] sm:$0xff]
    %v2696 = vld [vmem:[#allocation6 + $0x980] sm:$0xff]
    %v2697 = vld [vmem:[#allocation6 + $0x988] sm:$0xff]
    %v2698 = vld [vmem:[#allocation6 + $0x990] sm:$0xff]
    %v2699 = vld [vmem:[#allocation6 + $0x998] sm:$0xff]
    %v2700 = vld [vmem:[#allocation6 + $0x9a0] sm:$0xff]
    %v2701 = vld [vmem:[#allocation6 + $0x9a8] sm:$0xff]
    %v2702 = vld [vmem:[#allocation6 + $0x9b0] sm:$0xff]
    %v2703 = vld [vmem:[#allocation6 + $0x9b8] sm:$0xff]
    %v2704 = vld [vmem:[#allocation6 + $0x9c0] sm:$0xff]
    %v2705 = vld [vmem:[#allocation6 + $0x9c8] sm:$0xff]
    %v2706 = vld [vmem:[#allocation6 + $0x9d0] sm:$0xff]
    %v2707 = vld [vmem:[#allocation6 + $0x9d8] sm:$0xff]
    %v2708 = vld [vmem:[#allocation6 + $0x9e0] sm:$0xff]
    %v2709 = vld [vmem:[#allocation6 + $0x9e8] sm:$0xff]
    %v2710 = vld [vmem:[#allocation6 + $0x9f0] sm:$0xff]
    %v2711 = vld [vmem:[#allocation6 + $0x9f8] sm:$0xff]
    %v2712 = vld [vmem:[#allocation6 + $0xa00] sm:$0xff]
    %v2713 = vld [vmem:[#allocation6 + $0xa08] sm:$0xff]
    %v2714 = vld [vmem:[#allocation6 + $0xa10] sm:$0xff]
    %v2715 = vld [vmem:[#allocation6 + $0xa18] sm:$0xff]
    %v2716 = vld [vmem:[#allocation6 + $0xa20] sm:$0xff]
    %v2717 = vld [vmem:[#allocation6 + $0xa28] sm:$0xff]
    %v2718 = vld [vmem:[#allocation6 + $0xa30] sm:$0xff]
    %v2719 = vld [vmem:[#allocation6 + $0xa38] sm:$0xff]
    %v2720 = vld [vmem:[#allocation6 + $0xa40] sm:$0xff]
    %v2721 = vld [vmem:[#allocation6 + $0xa48] sm:$0xff]
    %v2722 = vld [vmem:[#allocation6 + $0xa50] sm:$0xff]
    %v2723 = vld [vmem:[#allocation6 + $0xa58] sm:$0xff]
    %v2724 = vld [vmem:[#allocation6 + $0xa60] sm:$0xff]
    %v2725 = vld [vmem:[#allocation6 + $0xa68] sm:$0xff]
    %v2726 = vld [vmem:[#allocation6 + $0xa70] sm:$0xff]
    %v2727 = vld [vmem:[#allocation6 + $0xa78] sm:$0xff]
    %v2728 = vld [vmem:[#allocation6 + $0xa80] sm:$0xff]
    %v2729 = vld [vmem:[#allocation6 + $0xa88] sm:$0xff]
    %v2730 = vld [vmem:[#allocation6 + $0xa90] sm:$0xff]
    %v2731 = vld [vmem:[#allocation6 + $0xa98] sm:$0xff]
    %v2732 = vld [vmem:[#allocation6 + $0xaa0] sm:$0xff]
    %v2733 = vld [vmem:[#allocation6 + $0xaa8] sm:$0xff]
    %v2734 = vld [vmem:[#allocation6 + $0xab0] sm:$0xff]
    %v2735 = vld [vmem:[#allocation6 + $0xab8] sm:$0xff]
    %v2736 = vld [vmem:[#allocation6 + $0xac0] sm:$0xff]
    %v2737 = vld [vmem:[#allocation6 + $0xac8] sm:$0xff]
    %v2738 = vld [vmem:[#allocation6 + $0xad0] sm:$0xff]
    %v2739 = vld [vmem:[#allocation6 + $0xad8] sm:$0xff]
    %v2740 = vld [vmem:[#allocation6 + $0xae0] sm:$0xff]
    %v2741 = vld [vmem:[#allocation6 + $0xae8] sm:$0xff]
    %v2742 = vld [vmem:[#allocation6 + $0xaf0] sm:$0xff]
    %v2743 = vld [vmem:[#allocation6 + $0xaf8] sm:$0xff]
    %v2744 = vld [vmem:[#allocation6 + $0xb00] sm:$0xff]
    %v2745 = vld [vmem:[#allocation6 + $0xb08] sm:$0xff]
    %v2746 = vld [vmem:[#allocation6 + $0xb10] sm:$0xff]
    %v2747 = vld [vmem:[#allocation6 + $0xb18] sm:$0xff]
    %v2748 = vld [vmem:[#allocation6 + $0xb20] sm:$0xff]
    %v2749 = vld [vmem:[#allocation6 + $0xb28] sm:$0xff]
    %v2750 = vld [vmem:[#allocation6 + $0xb30] sm:$0xff]
    %v2751 = vld [vmem:[#allocation6 + $0xb38] sm:$0xff]
    %v2752 = vld [vmem:[#allocation6 + $0xb40] sm:$0xff]
    %v2753 = vld [vmem:[#allocation6 + $0xb48] sm:$0xff]
    %v2754 = vld [vmem:[#allocation6 + $0xb50] sm:$0xff]
    %v2755 = vld [vmem:[#allocation6 + $0xb58] sm:$0xff]
    %v2756 = vld [vmem:[#allocation6 + $0xb60] sm:$0xff]
    %v2757 = vld [vmem:[#allocation6 + $0xb68] sm:$0xff]
    %v2758 = vld [vmem:[#allocation6 + $0xb70] sm:$0xff]
    %v2759 = vld [vmem:[#allocation6 + $0xb78] sm:$0xff]
    %v2760 = vld [vmem:[#allocation6 + $0xb80] sm:$0xff]
    %v2761 = vld [vmem:[#allocation6 + $0xb88] sm:$0xff]
    %v2762 = vld [vmem:[#allocation6 + $0xb90] sm:$0xff]
    %v2763 = vld [vmem:[#allocation6 + $0xb98] sm:$0xff]
    %v2764 = vld [vmem:[#allocation6 + $0xba0] sm:$0xff]
    %v2765 = vld [vmem:[#allocation6 + $0xba8] sm:$0xff]
    %v2766 = vld [vmem:[#allocation6 + $0xbb0] sm:$0xff]
    %v2767 = vld [vmem:[#allocation6 + $0xbb8] sm:$0xff]
    %v2768 = vld [vmem:[#allocation6 + $0xbc0] sm:$0xff]
    %v2769 = vld [vmem:[#allocation6 + $0xbc8] sm:$0xff]
    %v2770 = vld [vmem:[#allocation6 + $0xbd0] sm:$0xff]
    %v2771 = vld [vmem:[#allocation6 + $0xbd8] sm:$0xff]
    %v2772 = vld [vmem:[#allocation6 + $0xbe0] sm:$0xff]
    %v2773 = vld [vmem:[#allocation6 + $0xbe8] sm:$0xff]
    %v2774 = vld [vmem:[#allocation6 + $0xbf0] sm:$0xff]
    %v2775 = vld [vmem:[#allocation6 + $0xbf8] sm:$0xff]
    %v2776 = vld [vmem:[#allocation7] sm:$0xf]
    %v2778 = vperm.slane %v2776, 0
    %v2779 = vperm.slane %v2776, 1
    %v2780 = vperm.slane %v2776, 2
    %v2781 = vperm.slane %v2776, 3
    %v2786 = vpack.c.b16 %v2333, %v303
    %v2787 = vpack.c.b16 %v2334, %v303
    %v2788 = vpack.c.b16 %v2335, %v303
    %v2789 = vpack.c.b16 %v2336, %v303
    %v2790 = vpack.c.b16 %v2337, %v2333
    %v2791 = vpack.c.b16 %v2338, %v2334
    %v2792 = vpack.c.b16 %v2339, %v2335
    %v2793 = vpack.c.b16 %v2340, %v2336
    %v2794 = vpack.c.b16 %v2341, %v2337
    %v2795 = vpack.c.b16 %v2342, %v2338
    %v2796 = vpack.c.b16 %v2343, %v2339
    %v2797 = vpack.c.b16 %v2344, %v2340
    %v2798 = vpack.c.b16 %v2345, %v2341
    %v2799 = vpack.c.b16 %v2346, %v2342
    %v2800 = vpack.c.b16 %v2347, %v2343
    %v2801 = vpack.c.b16 %v2348, %v2344
    %v2802 = vpack.c.b16 %v2349, %v2345
    %v2803 = vpack.c.b16 %v2350, %v2346
    %v2804 = vpack.c.b16 %v2351, %v2347
    %v2805 = vpack.c.b16 %v2352, %v2348
    %v2806 = vpack.c.b16 %v2353, %v2349
    %v2807 = vpack.c.b16 %v2354, %v2350
    %v2808 = vpack.c.b16 %v2355, %v2351
    %v2809 = vpack.c.b16 %v2356, %v2352
    %v2810 = vpack.c.b16 %v2357, %v2353
    %v2811 = vpack.c.b16 %v2358, %v2354
    %v2812 = vpack.c.b16 %v2359, %v2355
    %v2813 = vpack.c.b16 %v2360, %v2356
    %v2814 = vpack.c.b16 %v2361, %v2357
    %v2815 = vpack.c.b16 %v2362, %v2358
    %v2816 = vpack.c.b16 %v2363, %v2359
    %v2817 = vpack.c.b16 %v2364, %v2360
    %v2818 = vpack.c.b16 %v2365, %v2361
    %v2819 = vpack.c.b16 %v2366, %v2362
    %v2820 = vpack.c.b16 %v2367, %v2363
    %v2821 = vpack.c.b16 %v2368, %v2364
    %v2822 = vpack.c.b16 %v2369, %v2365
    %v2823 = vpack.c.b16 %v2370, %v2366
    %v2824 = vpack.c.b16 %v2371, %v2367
    %v2825 = vpack.c.b16 %v2372, %v2368
    %v2826 = vpack.c.b16 %v2373, %v2369
    %v2827 = vpack.c.b16 %v2374, %v2370
    %v2828 = vpack.c.b16 %v2375, %v2371
    %v2829 = vpack.c.b16 %v2376, %v2372
    %v2830 = vpack.c.b16 %v2377, %v2373
    %v2831 = vpack.c.b16 %v2378, %v2374
    %v2832 = vpack.c.b16 %v2379, %v2375
    %v2833 = vpack.c.b16 %v2380, %v2376
    %v2834 = vpack.c.b16 %v2381, %v2377
    %v2835 = vpack.c.b16 %v2382, %v2378
    %v2836 = vpack.c.b16 %v2383, %v2379
    %v2837 = vpack.c.b16 %v2384, %v2380
    %v2838 = vpack.c.b16 %v2387, %v2381
    %v2839 = vpack.c.b16 %v2388, %v2382
    %v2840 = vpack.c.b16 %v2389, %v2383
    %v2841 = vpack.c.b16 %v2390, %v2384
    %v2842 = vpack.c.b16 %v303, %v2387
    %v2843 = vpack.c.b16 %v2391, %v2388
    %v2844 = vpack.c.b16 %v303, %v2389
    %v2845 = vpack.c.b16 %v2391, %v2390
    %v3290 = vunpack.c.l.b16 %v2392
    %v3291 = vunpack.c.h.b16 %v2392
    %v3292 = vunpack.c.l.b16 %v2393
    %v3293 = vunpack.c.h.b16 %v2393
    %v3294 = vunpack.c.l.b16 %v2394
    %v3295 = vunpack.c.h.b16 %v2394
    %v3296 = vunpack.c.l.b16 %v2395
    %v3297 = vunpack.c.h.b16 %v2395
    %v3298 = vunpack.c.l.b16 %v2396
    %v3299 = vunpack.c.h.b16 %v2396
    %v3300 = vunpack.c.l.b16 %v2397
    %v3301 = vunpack.c.h.b16 %v2397
    %v3302 = vunpack.c.l.b16 %v2398
    %v3303 = vunpack.c.h.b16 %v2398
    %v3304 = vunpack.c.l.b16 %v2399
    %v3305 = vunpack.c.h.b16 %v2399
    %v3306 = vunpack.c.l.b16 %v2400
    %v3307 = vunpack.c.h.b16 %v2400
    %v3308 = vunpack.c.l.b16 %v2401
    %v3309 = vunpack.c.h.b16 %v2401
    %v3310 = vunpack.c.l.b16 %v2402
    %v3311 = vunpack.c.h.b16 %v2402
    %v3312 = vunpack.c.l.b16 %v2403
    %v3313 = vunpack.c.h.b16 %v2403
    %v3314 = vunpack.c.l.b16 %v2404
    %v3315 = vunpack.c.h.b16 %v2404
    %v3316 = vunpack.c.l.b16 %v2405
    %v3317 = vunpack.c.h.b16 %v2405
    %v3318 = vunpack.c.l.b16 %v2406
    %v3319 = vunpack.c.h.b16 %v2406
    %v3320 = vunpack.c.l.b16 %v2407
    %v3321 = vunpack.c.h.b16 %v2407
    %v3322 = vunpack.c.l.b16 %v2408
    %v3323 = vunpack.c.h.b16 %v2408
    %v3324 = vunpack.c.l.b16 %v2409
    %v3325 = vunpack.c.h.b16 %v2409
    %v3326 = vunpack.c.l.b16 %v2410
    %v3327 = vunpack.c.h.b16 %v2410
    %v3328 = vunpack.c.l.b16 %v2411
    %v3329 = vunpack.c.h.b16 %v2411
    %v3330 = vunpack.c.l.b16 %v2412
    %v3331 = vunpack.c.h.b16 %v2412
    %v3332 = vunpack.c.l.b16 %v2413
    %v3333 = vunpack.c.h.b16 %v2413
    %v3334 = vunpack.c.l.b16 %v2414
    %v3335 = vunpack.c.h.b16 %v2414
    %v3336 = vunpack.c.l.b16 %v2415
    %v3337 = vunpack.c.h.b16 %v2415
    %v3338 = vunpack.c.l.b16 %v2416
    %v3339 = vunpack.c.h.b16 %v2416
    %v3340 = vunpack.c.l.b16 %v2417
    %v3341 = vunpack.c.h.b16 %v2417
    %v3342 = vunpack.c.l.b16 %v2418
    %v3343 = vunpack.c.h.b16 %v2418
    %v3344 = vunpack.c.l.b16 %v2419
    %v3345 = vunpack.c.h.b16 %v2419
    %v3346 = vunpack.c.l.b16 %v2420
    %v3347 = vunpack.c.h.b16 %v2420
    %v3348 = vunpack.c.l.b16 %v2421
    %v3349 = vunpack.c.h.b16 %v2421
    %v3350 = vunpack.c.l.b16 %v2422
    %v3351 = vunpack.c.h.b16 %v2422
    %v3352 = vunpack.c.l.b16 %v2423
    %v3353 = vunpack.c.h.b16 %v2423
    %v3354 = vunpack.c.l.b16 %v2424
    %v3355 = vunpack.c.h.b16 %v2424
    %v3356 = vunpack.c.l.b16 %v2425
    %v3357 = vunpack.c.h.b16 %v2425
    %v3358 = vunpack.c.l.b16 %v2426
    %v3359 = vunpack.c.h.b16 %v2426
    %v3360 = vunpack.c.l.b16 %v2427
    %v3361 = vunpack.c.h.b16 %v2427
    %v3362 = vunpack.c.l.b16 %v2428
    %v3363 = vunpack.c.h.b16 %v2428
    %v3364 = vunpack.c.l.b16 %v2429
    %v3365 = vunpack.c.h.b16 %v2429
    %v3366 = vunpack.c.l.b16 %v2430
    %v3367 = vunpack.c.h.b16 %v2430
    %v3368 = vunpack.c.l.b16 %v2431
    %v3369 = vunpack.c.h.b16 %v2431
    %v3370 = vunpack.c.l.b16 %v2432
    %v3371 = vunpack.c.h.b16 %v2432
    %v3372 = vunpack.c.l.b16 %v2433
    %v3373 = vunpack.c.h.b16 %v2433
    %v3374 = vunpack.c.l.b16 %v2434
    %v3375 = vunpack.c.h.b16 %v2434
    %v3376 = vunpack.c.l.b16 %v2435
    %v3377 = vunpack.c.h.b16 %v2435
    %v3378 = vunpack.c.l.b16 %v2436
    %v3379 = vunpack.c.h.b16 %v2436
    %v3380 = vunpack.c.l.b16 %v2437
    %v3381 = vunpack.c.h.b16 %v2437
    %v3382 = vunpack.c.l.b16 %v2438
    %v3383 = vunpack.c.h.b16 %v2438
    %v3384 = vunpack.c.l.b16 %v2439
    %v3385 = vunpack.c.h.b16 %v2439
    %v3386 = vunpack.c.l.b16 %v2440
    %v3387 = vunpack.c.h.b16 %v2440
    %v3388 = vunpack.c.l.b16 %v2441
    %v3389 = vunpack.c.h.b16 %v2441
    %v3390 = vunpack.c.l.b16 %v2442
    %v3391 = vunpack.c.h.b16 %v2442
    %v3392 = vunpack.c.l.b16 %v2443
    %v3393 = vunpack.c.h.b16 %v2443
    %v3394 = vunpack.c.l.b16 %v2444
    %v3395 = vunpack.c.h.b16 %v2444
    %v3396 = vunpack.c.l.b16 %v2445
    %v3397 = vunpack.c.h.b16 %v2445
    %v3398 = vunpack.c.l.b16 %v2446
    %v3399 = vunpack.c.h.b16 %v2446
    %v3400 = vunpack.c.l.b16 %v2447
    %v3401 = vunpack.c.h.b16 %v2447
    %v3402 = vunpack.c.l.b16 %v2448
    %v3403 = vunpack.c.h.b16 %v2448
    %v3404 = vunpack.c.l.b16 %v2449
    %v3405 = vunpack.c.h.b16 %v2449
    %v3406 = vunpack.c.l.b16 %v2450
    %v3407 = vunpack.c.h.b16 %v2450
    %v3408 = vunpack.c.l.b16 %v2451
    %v3409 = vunpack.c.h.b16 %v2451
    %v3410 = vunpack.c.l.b16 %v2452
    %v3411 = vunpack.c.h.b16 %v2452
    %v3412 = vunpack.c.l.b16 %v2453
    %v3413 = vunpack.c.h.b16 %v2453
    %v3414 = vunpack.c.l.b16 %v2454
    %v3415 = vunpack.c.h.b16 %v2454
    %v3416 = vunpack.c.l.b16 %v2455
    %v3417 = vunpack.c.h.b16 %v2455
    %v3418 = vunpack.c.l.b16 %v2456
    %v3419 = vunpack.c.h.b16 %v2456
    %v3420 = vunpack.c.l.b16 %v2457
    %v3421 = vunpack.c.h.b16 %v2457
    %v3422 = vunpack.c.l.b16 %v2458
    %v3423 = vunpack.c.h.b16 %v2458
    %v3424 = vunpack.c.l.b16 %v2459
    %v3425 = vunpack.c.h.b16 %v2459
    %v3426 = vunpack.c.l.b16 %v2460
    %v3427 = vunpack.c.h.b16 %v2460
    %v3428 = vunpack.c.l.b16 %v2461
    %v3429 = vunpack.c.h.b16 %v2461
    %v3430 = vunpack.c.l.b16 %v2462
    %v3431 = vunpack.c.h.b16 %v2462
    %v3432 = vunpack.c.l.b16 %v2463
    %v3433 = vunpack.c.h.b16 %v2463
    %v3434 = vunpack.c.l.b16 %v2464
    %v3435 = vunpack.c.h.b16 %v2464
    %v3436 = vunpack.c.l.b16 %v2465
    %v3437 = vunpack.c.h.b16 %v2465
    %v3438 = vunpack.c.l.b16 %v2466
    %v3439 = vunpack.c.h.b16 %v2466
    %v3440 = vunpack.c.l.b16 %v2467
    %v3441 = vunpack.c.h.b16 %v2467
    %v3442 = vunpack.c.l.b16 %v2468
    %v3443 = vunpack.c.h.b16 %v2468
    %v3444 = vunpack.c.l.b16 %v2469
    %v3445 = vunpack.c.h.b16 %v2469
    %v3446 = vunpack.c.l.b16 %v2470
    %v3447 = vunpack.c.h.b16 %v2470
    %v3448 = vunpack.c.l.b16 %v2471
    %v3449 = vunpack.c.h.b16 %v2471
    %v3450 = vunpack.c.l.b16 %v2472
    %v3451 = vunpack.c.h.b16 %v2472
    %v3452 = vunpack.c.l.b16 %v2473
    %v3453 = vunpack.c.h.b16 %v2473
    %v3454 = vunpack.c.l.b16 %v2474
    %v3455 = vunpack.c.h.b16 %v2474
    %v3456 = vunpack.c.l.b16 %v2475
    %v3457 = vunpack.c.h.b16 %v2475
    %v3458 = vunpack.c.l.b16 %v2476
    %v3459 = vunpack.c.h.b16 %v2476
    %v3460 = vunpack.c.l.b16 %v2477
    %v3461 = vunpack.c.h.b16 %v2477
    %v3462 = vunpack.c.l.b16 %v2478
    %v3463 = vunpack.c.h.b16 %v2478
    %v3464 = vunpack.c.l.b16 %v2479
    %v3465 = vunpack.c.h.b16 %v2479
    %v3466 = vunpack.c.l.b16 %v2480
    %v3467 = vunpack.c.h.b16 %v2480
    %v3468 = vunpack.c.l.b16 %v2481
    %v3469 = vunpack.c.h.b16 %v2481
    %v3470 = vunpack.c.l.b16 %v2482
    %v3471 = vunpack.c.h.b16 %v2482
    %v3472 = vunpack.c.l.b16 %v2483
    %v3473 = vunpack.c.h.b16 %v2483
    %v3474 = vunpack.c.l.b16 %v2484
    %v3475 = vunpack.c.h.b16 %v2484
    %v3476 = vunpack.c.l.b16 %v2485
    %v3477 = vunpack.c.h.b16 %v2485
    %v3478 = vunpack.c.l.b16 %v2486
    %v3479 = vunpack.c.h.b16 %v2486
    %v3480 = vunpack.c.l.b16 %v2487
    %v3481 = vunpack.c.h.b16 %v2487
    %v3482 = vunpack.c.l.b16 %v2488
    %v3483 = vunpack.c.h.b16 %v2488
    %v3484 = vunpack.c.l.b16 %v2489
    %v3485 = vunpack.c.h.b16 %v2489
    %v3486 = vunpack.c.l.b16 %v2490
    %v3487 = vunpack.c.h.b16 %v2490
    %v3488 = vunpack.c.l.b16 %v2491
    %v3489 = vunpack.c.h.b16 %v2491
    %v3490 = vunpack.c.l.b16 %v2492
    %v3491 = vunpack.c.h.b16 %v2492
    %v3492 = vunpack.c.l.b16 %v2493
    %v3493 = vunpack.c.h.b16 %v2493
    %v3494 = vunpack.c.l.b16 %v2494
    %v3495 = vunpack.c.h.b16 %v2494
    %v3496 = vunpack.c.l.b16 %v2495
    %v3497 = vunpack.c.h.b16 %v2495
    %v3498 = vunpack.c.l.b16 %v2496
    %v3499 = vunpack.c.h.b16 %v2496
    %v3500 = vunpack.c.l.b16 %v2497
    %v3501 = vunpack.c.h.b16 %v2497
    %v3502 = vunpack.c.l.b16 %v2498
    %v3503 = vunpack.c.h.b16 %v2498
    %v3504 = vunpack.c.l.b16 %v2499
    %v3505 = vunpack.c.h.b16 %v2499
    %v3506 = vunpack.c.l.b16 %v2500
    %v3507 = vunpack.c.h.b16 %v2500
    %v3508 = vunpack.c.l.b16 %v2501
    %v3509 = vunpack.c.h.b16 %v2501
    %v3510 = vunpack.c.l.b16 %v2502
    %v3511 = vunpack.c.h.b16 %v2502
    %v3512 = vunpack.c.l.b16 %v2503
    %v3513 = vunpack.c.h.b16 %v2503
    %v3514 = vunpack.c.l.b16 %v2504
    %v3515 = vunpack.c.h.b16 %v2504
    %v3516 = vunpack.c.l.b16 %v2505
    %v3517 = vunpack.c.h.b16 %v2505
    %v3518 = vunpack.c.l.b16 %v2506
    %v3519 = vunpack.c.h.b16 %v2506
    %v3520 = vunpack.c.l.b16 %v2507
    %v3521 = vunpack.c.h.b16 %v2507
    %v3522 = vunpack.c.l.b16 %v2508
    %v3523 = vunpack.c.h.b16 %v2508
    %v3524 = vunpack.c.l.b16 %v2509
    %v3525 = vunpack.c.h.b16 %v2509
    %v3526 = vunpack.c.l.b16 %v2510
    %v3527 = vunpack.c.h.b16 %v2510
    %v3528 = vunpack.c.l.b16 %v2511
    %v3529 = vunpack.c.h.b16 %v2511
    %v3530 = vunpack.c.l.b16 %v2512
    %v3531 = vunpack.c.h.b16 %v2512
    %v3532 = vunpack.c.l.b16 %v2513
    %v3533 = vunpack.c.h.b16 %v2513
    %v3534 = vunpack.c.l.b16 %v2514
    %v3535 = vunpack.c.h.b16 %v2514
    %v3536 = vunpack.c.l.b16 %v2515
    %v3537 = vunpack.c.h.b16 %v2515
    %v3538 = vunpack.c.l.b16 %v2516
    %v3539 = vunpack.c.h.b16 %v2516
    %v3540 = vunpack.c.l.b16 %v2517
    %v3541 = vunpack.c.h.b16 %v2517
    %v3542 = vunpack.c.l.b16 %v2518
    %v3543 = vunpack.c.h.b16 %v2518
    %v3544 = vunpack.c.l.b16 %v2519
    %v3545 = vunpack.c.h.b16 %v2519
    %v3546 = vunpack.c.l.b16 %v2520
    %v3547 = vunpack.c.h.b16 %v2520
    %v3548 = vunpack.c.l.b16 %v2521
    %v3549 = vunpack.c.h.b16 %v2521
    %v3550 = vunpack.c.l.b16 %v2522
    %v3551 = vunpack.c.h.b16 %v2522
    %v3552 = vunpack.c.l.b16 %v2523
    %v3553 = vunpack.c.h.b16 %v2523
    %v3554 = vunpack.c.l.b16 %v2524
    %v3555 = vunpack.c.h.b16 %v2524
    %v3556 = vunpack.c.l.b16 %v2525
    %v3557 = vunpack.c.h.b16 %v2525
    %v3558 = vunpack.c.l.b16 %v2526
    %v3559 = vunpack.c.h.b16 %v2526
    %v3560 = vunpack.c.l.b16 %v2527
    %v3561 = vunpack.c.h.b16 %v2527
    %v3562 = vunpack.c.l.b16 %v2528
    %v3563 = vunpack.c.h.b16 %v2528
    %v3564 = vunpack.c.l.b16 %v2529
    %v3565 = vunpack.c.h.b16 %v2529
    %v3566 = vunpack.c.l.b16 %v2530
    %v3567 = vunpack.c.h.b16 %v2530
    %v3568 = vunpack.c.l.b16 %v2531
    %v3569 = vunpack.c.h.b16 %v2531
    %v3570 = vunpack.c.l.b16 %v2532
    %v3571 = vunpack.c.h.b16 %v2532
    %v3572 = vunpack.c.l.b16 %v2533
    %v3573 = vunpack.c.h.b16 %v2533
    %v3574 = vunpack.c.l.b16 %v2534
    %v3575 = vunpack.c.h.b16 %v2534
    %v3576 = vunpack.c.l.b16 %v2535
    %v3577 = vunpack.c.h.b16 %v2535
    %v3578 = vunpack.c.l.b16 %v2536
    %v3579 = vunpack.c.h.b16 %v2536
    %v3580 = vunpack.c.l.b16 %v2537
    %v3581 = vunpack.c.h.b16 %v2537
    %v3582 = vunpack.c.l.b16 %v2538
    %v3583 = vunpack.c.h.b16 %v2538
    %v3584 = vunpack.c.l.b16 %v2539
    %v3585 = vunpack.c.h.b16 %v2539
    %v3586 = vunpack.c.l.b16 %v2540
    %v3587 = vunpack.c.h.b16 %v2540
    %v3588 = vunpack.c.l.b16 %v2541
    %v3589 = vunpack.c.h.b16 %v2541
    %v3590 = vunpack.c.l.b16 %v2542
    %v3591 = vunpack.c.h.b16 %v2542
    %v3592 = vunpack.c.l.b16 %v2543
    %v3593 = vunpack.c.h.b16 %v2543
    %v3594 = vunpack.c.l.b16 %v2544
    %v3595 = vunpack.c.h.b16 %v2544
    %v3596 = vunpack.c.l.b16 %v2545
    %v3597 = vunpack.c.h.b16 %v2545
    %v3598 = vunpack.c.l.b16 %v2546
    %v3599 = vunpack.c.h.b16 %v2546
    %v3600 = vunpack.c.l.b16 %v2547
    %v3601 = vunpack.c.h.b16 %v2547
    %v3602 = vunpack.c.l.b16 %v2548
    %v3603 = vunpack.c.h.b16 %v2548
    %v3604 = vunpack.c.l.b16 %v2549
    %v3605 = vunpack.c.h.b16 %v2549
    %v3606 = vunpack.c.l.b16 %v2550
    %v3607 = vunpack.c.h.b16 %v2550
    %v3608 = vunpack.c.l.b16 %v2551
    %v3609 = vunpack.c.h.b16 %v2551
    %v3610 = vunpack.c.l.b16 %v2552
    %v3611 = vunpack.c.h.b16 %v2552
    %v3612 = vunpack.c.l.b16 %v2553
    %v3613 = vunpack.c.h.b16 %v2553
    %v3614 = vunpack.c.l.b16 %v2554
    %v3615 = vunpack.c.h.b16 %v2554
    %v3616 = vunpack.c.l.b16 %v2555
    %v3617 = vunpack.c.h.b16 %v2555
    %v3618 = vunpack.c.l.b16 %v2556
    %v3619 = vunpack.c.h.b16 %v2556
    %v3620 = vunpack.c.l.b16 %v2557
    %v3621 = vunpack.c.h.b16 %v2557
    %v3622 = vunpack.c.l.b16 %v2558
    %v3623 = vunpack.c.h.b16 %v2558
    %v3624 = vunpack.c.l.b16 %v2559
    %v3625 = vunpack.c.h.b16 %v2559
    %v3626 = vunpack.c.l.b16 %v2560
    %v3627 = vunpack.c.h.b16 %v2560
    %v3628 = vunpack.c.l.b16 %v2561
    %v3629 = vunpack.c.h.b16 %v2561
    %v3630 = vunpack.c.l.b16 %v2562
    %v3631 = vunpack.c.h.b16 %v2562
    %v3632 = vunpack.c.l.b16 %v2563
    %v3633 = vunpack.c.h.b16 %v2563
    %v3634 = vunpack.c.l.b16 %v2564
    %v3635 = vunpack.c.h.b16 %v2564
    %v3636 = vunpack.c.l.b16 %v2565
    %v3637 = vunpack.c.h.b16 %v2565
    %v3638 = vunpack.c.l.b16 %v2566
    %v3639 = vunpack.c.h.b16 %v2566
    %v3640 = vunpack.c.l.b16 %v2567
    %v3641 = vunpack.c.h.b16 %v2567
    %v3642 = vunpack.c.l.b16 %v2568
    %v3643 = vunpack.c.h.b16 %v2568
    %v3644 = vunpack.c.l.b16 %v2569
    %v3645 = vunpack.c.h.b16 %v2569
    %v3646 = vunpack.c.l.b16 %v2570
    %v3647 = vunpack.c.h.b16 %v2570
    %v3648 = vunpack.c.l.b16 %v2571
    %v3649 = vunpack.c.h.b16 %v2571
    %v3650 = vunpack.c.l.b16 %v2572
    %v3651 = vunpack.c.h.b16 %v2572
    %v3652 = vunpack.c.l.b16 %v2573
    %v3653 = vunpack.c.h.b16 %v2573
    %v3654 = vunpack.c.l.b16 %v2574
    %v3655 = vunpack.c.h.b16 %v2574
    %v3656 = vunpack.c.l.b16 %v2575
    %v3657 = vunpack.c.h.b16 %v2575
    %v3658 = vunpack.c.l.b16 %v2576
    %v3659 = vunpack.c.h.b16 %v2576
    %v3660 = vunpack.c.l.b16 %v2577
    %v3661 = vunpack.c.h.b16 %v2577
    %v3662 = vunpack.c.l.b16 %v2578
    %v3663 = vunpack.c.h.b16 %v2578
    %v3664 = vunpack.c.l.b16 %v2579
    %v3665 = vunpack.c.h.b16 %v2579
    %v3666 = vunpack.c.l.b16 %v2580
    %v3667 = vunpack.c.h.b16 %v2580
    %v3668 = vunpack.c.l.b16 %v2581
    %v3669 = vunpack.c.h.b16 %v2581
    %v3670 = vunpack.c.l.b16 %v2582
    %v3671 = vunpack.c.h.b16 %v2582
    %v3672 = vunpack.c.l.b16 %v2583
    %v3673 = vunpack.c.h.b16 %v2583
    %v3674 = vunpack.c.l.b16 %v2584
    %v3675 = vunpack.c.h.b16 %v2584
    %v3676 = vunpack.c.l.b16 %v2585
    %v3677 = vunpack.c.h.b16 %v2585
    %v3678 = vunpack.c.l.b16 %v2586
    %v3679 = vunpack.c.h.b16 %v2586
    %v3680 = vunpack.c.l.b16 %v2587
    %v3681 = vunpack.c.h.b16 %v2587
    %v3682 = vunpack.c.l.b16 %v2588
    %v3683 = vunpack.c.h.b16 %v2588
    %v3684 = vunpack.c.l.b16 %v2589
    %v3685 = vunpack.c.h.b16 %v2589
    %v3686 = vunpack.c.l.b16 %v2590
    %v3687 = vunpack.c.h.b16 %v2590
    %v3688 = vunpack.c.l.b16 %v2591
    %v3689 = vunpack.c.h.b16 %v2591
    %v3690 = vunpack.c.l.b16 %v2592
    %v3691 = vunpack.c.h.b16 %v2592
    %v3692 = vunpack.c.l.b16 %v2593
    %v3693 = vunpack.c.h.b16 %v2593
    %v3694 = vunpack.c.l.b16 %v2594
    %v3695 = vunpack.c.h.b16 %v2594
    %v3696 = vunpack.c.l.b16 %v2595
    %v3697 = vunpack.c.h.b16 %v2595
    %v3698 = vunpack.c.l.b16 %v2596
    %v3699 = vunpack.c.h.b16 %v2596
    %v3700 = vunpack.c.l.b16 %v2597
    %v3701 = vunpack.c.h.b16 %v2597
    %v3702 = vunpack.c.l.b16 %v2598
    %v3703 = vunpack.c.h.b16 %v2598
    %v3704 = vunpack.c.l.b16 %v2599
    %v3705 = vunpack.c.h.b16 %v2599
    %v3706 = vunpack.c.l.b16 %v2600
    %v3707 = vunpack.c.h.b16 %v2600
    %v3708 = vunpack.c.l.b16 %v2601
    %v3709 = vunpack.c.h.b16 %v2601
    %v3710 = vunpack.c.l.b16 %v2602
    %v3711 = vunpack.c.h.b16 %v2602
    %v3712 = vunpack.c.l.b16 %v2603
    %v3713 = vunpack.c.h.b16 %v2603
    %v3714 = vunpack.c.l.b16 %v2604
    %v3715 = vunpack.c.h.b16 %v2604
    %v3716 = vunpack.c.l.b16 %v2605
    %v3717 = vunpack.c.h.b16 %v2605
    %v3718 = vunpack.c.l.b16 %v2606
    %v3719 = vunpack.c.h.b16 %v2606
    %v3720 = vunpack.c.l.b16 %v2607
    %v3721 = vunpack.c.h.b16 %v2607
    %v3722 = vunpack.c.l.b16 %v2608
    %v3723 = vunpack.c.h.b16 %v2608
    %v3724 = vunpack.c.l.b16 %v2609
    %v3725 = vunpack.c.h.b16 %v2609
    %v3726 = vunpack.c.l.b16 %v2610
    %v3727 = vunpack.c.h.b16 %v2610
    %v3728 = vunpack.c.l.b16 %v2611
    %v3729 = vunpack.c.h.b16 %v2611
    %v3730 = vunpack.c.l.b16 %v2612
    %v3731 = vunpack.c.h.b16 %v2612
    %v3732 = vunpack.c.l.b16 %v2613
    %v3733 = vunpack.c.h.b16 %v2613
    %v3734 = vunpack.c.l.b16 %v2614
    %v3735 = vunpack.c.h.b16 %v2614
    %v3736 = vunpack.c.l.b16 %v2615
    %v3737 = vunpack.c.h.b16 %v2615
    %v3738 = vunpack.c.l.b16 %v2616
    %v3739 = vunpack.c.h.b16 %v2616
    %v3740 = vunpack.c.l.b16 %v2617
    %v3741 = vunpack.c.h.b16 %v2617
    %v3742 = vunpack.c.l.b16 %v2618
    %v3743 = vunpack.c.h.b16 %v2618
    %v3744 = vunpack.c.l.b16 %v2619
    %v3745 = vunpack.c.h.b16 %v2619
    %v3746 = vunpack.c.l.b16 %v2620
    %v3747 = vunpack.c.h.b16 %v2620
    %v3748 = vunpack.c.l.b16 %v2621
    %v3749 = vunpack.c.h.b16 %v2621
    %v3750 = vunpack.c.l.b16 %v2622
    %v3751 = vunpack.c.h.b16 %v2622
    %v3752 = vunpack.c.l.b16 %v2623
    %v3753 = vunpack.c.h.b16 %v2623
    %v3754 = vunpack.c.l.b16 %v2624
    %v3755 = vunpack.c.h.b16 %v2624
    %v3756 = vunpack.c.l.b16 %v2625
    %v3757 = vunpack.c.h.b16 %v2625
    %v3758 = vunpack.c.l.b16 %v2626
    %v3759 = vunpack.c.h.b16 %v2626
    %v3760 = vunpack.c.l.b16 %v2627
    %v3761 = vunpack.c.h.b16 %v2627
    %v3762 = vunpack.c.l.b16 %v2628
    %v3763 = vunpack.c.h.b16 %v2628
    %v3764 = vunpack.c.l.b16 %v2629
    %v3765 = vunpack.c.h.b16 %v2629
    %v3766 = vunpack.c.l.b16 %v2630
    %v3767 = vunpack.c.h.b16 %v2630
    %v3768 = vunpack.c.l.b16 %v2631
    %v3769 = vunpack.c.h.b16 %v2631
    %v3770 = vunpack.c.l.b16 %v2632
    %v3771 = vunpack.c.h.b16 %v2632
    %v3772 = vunpack.c.l.b16 %v2633
    %v3773 = vunpack.c.h.b16 %v2633
    %v3774 = vunpack.c.l.b16 %v2634
    %v3775 = vunpack.c.h.b16 %v2634
    %v3776 = vunpack.c.l.b16 %v2635
    %v3777 = vunpack.c.h.b16 %v2635
    %v3778 = vunpack.c.l.b16 %v2636
    %v3779 = vunpack.c.h.b16 %v2636
    %v3780 = vunpack.c.l.b16 %v2637
    %v3781 = vunpack.c.h.b16 %v2637
    %v3782 = vunpack.c.l.b16 %v2638
    %v3783 = vunpack.c.h.b16 %v2638
    %v3784 = vunpack.c.l.b16 %v2639
    %v3785 = vunpack.c.h.b16 %v2639
    %v3786 = vunpack.c.l.b16 %v2640
    %v3787 = vunpack.c.h.b16 %v2640
    %v3788 = vunpack.c.l.b16 %v2641
    %v3789 = vunpack.c.h.b16 %v2641
    %v3790 = vunpack.c.l.b16 %v2642
    %v3791 = vunpack.c.h.b16 %v2642
    %v3792 = vunpack.c.l.b16 %v2643
    %v3793 = vunpack.c.h.b16 %v2643
    %v3794 = vunpack.c.l.b16 %v2644
    %v3795 = vunpack.c.h.b16 %v2644
    %v3796 = vunpack.c.l.b16 %v2645
    %v3797 = vunpack.c.h.b16 %v2645
    %v3798 = vunpack.c.l.b16 %v2646
    %v3799 = vunpack.c.h.b16 %v2646
    %v3800 = vunpack.c.l.b16 %v2647
    %v3801 = vunpack.c.h.b16 %v2647
    %v3802 = vunpack.c.l.b16 %v2648
    %v3803 = vunpack.c.h.b16 %v2648
    %v3804 = vunpack.c.l.b16 %v2649
    %v3805 = vunpack.c.h.b16 %v2649
    %v3806 = vunpack.c.l.b16 %v2650
    %v3807 = vunpack.c.h.b16 %v2650
    %v3808 = vunpack.c.l.b16 %v2651
    %v3809 = vunpack.c.h.b16 %v2651
    %v3810 = vunpack.c.l.b16 %v2652
    %v3811 = vunpack.c.h.b16 %v2652
    %v3812 = vunpack.c.l.b16 %v2653
    %v3813 = vunpack.c.h.b16 %v2653
    %v3814 = vunpack.c.l.b16 %v2654
    %v3815 = vunpack.c.h.b16 %v2654
    %v3816 = vunpack.c.l.b16 %v2655
    %v3817 = vunpack.c.h.b16 %v2655
    %v3818 = vunpack.c.l.b16 %v2656
    %v3819 = vunpack.c.h.b16 %v2656
    %v3820 = vunpack.c.l.b16 %v2657
    %v3821 = vunpack.c.h.b16 %v2657
    %v3822 = vunpack.c.l.b16 %v2658
    %v3823 = vunpack.c.h.b16 %v2658
    %v3824 = vunpack.c.l.b16 %v2659
    %v3825 = vunpack.c.h.b16 %v2659
    %v3826 = vunpack.c.l.b16 %v2660
    %v3827 = vunpack.c.h.b16 %v2660
    %v3828 = vunpack.c.l.b16 %v2661
    %v3829 = vunpack.c.h.b16 %v2661
    %v3830 = vunpack.c.l.b16 %v2662
    %v3831 = vunpack.c.h.b16 %v2662
    %v3832 = vunpack.c.l.b16 %v2663
    %v3833 = vunpack.c.h.b16 %v2663
    %v3834 = vunpack.c.l.b16 %v2664
    %v3835 = vunpack.c.h.b16 %v2664
    %v3836 = vunpack.c.l.b16 %v2665
    %v3837 = vunpack.c.h.b16 %v2665
    %v3838 = vunpack.c.l.b16 %v2666
    %v3839 = vunpack.c.h.b16 %v2666
    %v3840 = vunpack.c.l.b16 %v2667
    %v3841 = vunpack.c.h.b16 %v2667
    %v3842 = vunpack.c.l.b16 %v2668
    %v3843 = vunpack.c.h.b16 %v2668
    %v3844 = vunpack.c.l.b16 %v2669
    %v3845 = vunpack.c.h.b16 %v2669
    %v3846 = vunpack.c.l.b16 %v2670
    %v3847 = vunpack.c.h.b16 %v2670
    %v3848 = vunpack.c.l.b16 %v2671
    %v3849 = vunpack.c.h.b16 %v2671
    %v3850 = vunpack.c.l.b16 %v2672
    %v3851 = vunpack.c.h.b16 %v2672
    %v3852 = vunpack.c.l.b16 %v2673
    %v3853 = vunpack.c.h.b16 %v2673
    %v3854 = vunpack.c.l.b16 %v2674
    %v3855 = vunpack.c.h.b16 %v2674
    %v3856 = vunpack.c.l.b16 %v2675
    %v3857 = vunpack.c.h.b16 %v2675
    %v3858 = vunpack.c.l.b16 %v2676
    %v3859 = vunpack.c.h.b16 %v2676
    %v3860 = vunpack.c.l.b16 %v2677
    %v3861 = vunpack.c.h.b16 %v2677
    %v3862 = vunpack.c.l.b16 %v2678
    %v3863 = vunpack.c.h.b16 %v2678
    %v3864 = vunpack.c.l.b16 %v2679
    %v3865 = vunpack.c.h.b16 %v2679
    %v3866 = vunpack.c.l.b16 %v2680
    %v3867 = vunpack.c.h.b16 %v2680
    %v3868 = vunpack.c.l.b16 %v2681
    %v3869 = vunpack.c.h.b16 %v2681
    %v3870 = vunpack.c.l.b16 %v2682
    %v3871 = vunpack.c.h.b16 %v2682
    %v3872 = vunpack.c.l.b16 %v2683
    %v3873 = vunpack.c.h.b16 %v2683
    %v3874 = vunpack.c.l.b16 %v2684
    %v3875 = vunpack.c.h.b16 %v2684
    %v3876 = vunpack.c.l.b16 %v2685
    %v3877 = vunpack.c.h.b16 %v2685
    %v3878 = vunpack.c.l.b16 %v2686
    %v3879 = vunpack.c.h.b16 %v2686
    %v3880 = vunpack.c.l.b16 %v2687
    %v3881 = vunpack.c.h.b16 %v2687
    %v3882 = vunpack.c.l.b16 %v2688
    %v3883 = vunpack.c.h.b16 %v2688
    %v3884 = vunpack.c.l.b16 %v2689
    %v3885 = vunpack.c.h.b16 %v2689
    %v3886 = vunpack.c.l.b16 %v2690
    %v3887 = vunpack.c.h.b16 %v2690
    %v3888 = vunpack.c.l.b16 %v2691
    %v3889 = vunpack.c.h.b16 %v2691
    %v3890 = vunpack.c.l.b16 %v2692
    %v3891 = vunpack.c.h.b16 %v2692
    %v3892 = vunpack.c.l.b16 %v2693
    %v3893 = vunpack.c.h.b16 %v2693
    %v3894 = vunpack.c.l.b16 %v2694
    %v3895 = vunpack.c.h.b16 %v2694
    %v3896 = vunpack.c.l.b16 %v2695
    %v3897 = vunpack.c.h.b16 %v2695
    %v3898 = vunpack.c.l.b16 %v2696
    %v3899 = vunpack.c.h.b16 %v2696
    %v3900 = vunpack.c.l.b16 %v2697
    %v3901 = vunpack.c.h.b16 %v2697
    %v3902 = vunpack.c.l.b16 %v2698
    %v3903 = vunpack.c.h.b16 %v2698
    %v3904 = vunpack.c.l.b16 %v2699
    %v3905 = vunpack.c.h.b16 %v2699
    %v3906 = vunpack.c.l.b16 %v2700
    %v3907 = vunpack.c.h.b16 %v2700
    %v3908 = vunpack.c.l.b16 %v2701
    %v3909 = vunpack.c.h.b16 %v2701
    %v3910 = vunpack.c.l.b16 %v2702
    %v3911 = vunpack.c.h.b16 %v2702
    %v3912 = vunpack.c.l.b16 %v2703
    %v3913 = vunpack.c.h.b16 %v2703
    %v3914 = vunpack.c.l.b16 %v2704
    %v3915 = vunpack.c.h.b16 %v2704
    %v3916 = vunpack.c.l.b16 %v2705
    %v3917 = vunpack.c.h.b16 %v2705
    %v3918 = vunpack.c.l.b16 %v2706
    %v3919 = vunpack.c.h.b16 %v2706
    %v3920 = vunpack.c.l.b16 %v2707
    %v3921 = vunpack.c.h.b16 %v2707
    %v3922 = vunpack.c.l.b16 %v2708
    %v3923 = vunpack.c.h.b16 %v2708
    %v3924 = vunpack.c.l.b16 %v2709
    %v3925 = vunpack.c.h.b16 %v2709
    %v3926 = vunpack.c.l.b16 %v2710
    %v3927 = vunpack.c.h.b16 %v2710
    %v3928 = vunpack.c.l.b16 %v2711
    %v3929 = vunpack.c.h.b16 %v2711
    %v3930 = vunpack.c.l.b16 %v2712
    %v3931 = vunpack.c.h.b16 %v2712
    %v3932 = vunpack.c.l.b16 %v2713
    %v3933 = vunpack.c.h.b16 %v2713
    %v3934 = vunpack.c.l.b16 %v2714
    %v3935 = vunpack.c.h.b16 %v2714
    %v3936 = vunpack.c.l.b16 %v2715
    %v3937 = vunpack.c.h.b16 %v2715
    %v3938 = vunpack.c.l.b16 %v2716
    %v3939 = vunpack.c.h.b16 %v2716
    %v3940 = vunpack.c.l.b16 %v2717
    %v3941 = vunpack.c.h.b16 %v2717
    %v3942 = vunpack.c.l.b16 %v2718
    %v3943 = vunpack.c.h.b16 %v2718
    %v3944 = vunpack.c.l.b16 %v2719
    %v3945 = vunpack.c.h.b16 %v2719
    %v3946 = vunpack.c.l.b16 %v2720
    %v3947 = vunpack.c.h.b16 %v2720
    %v3948 = vunpack.c.l.b16 %v2721
    %v3949 = vunpack.c.h.b16 %v2721
    %v3950 = vunpack.c.l.b16 %v2722
    %v3951 = vunpack.c.h.b16 %v2722
    %v3952 = vunpack.c.l.b16 %v2723
    %v3953 = vunpack.c.h.b16 %v2723
    %v3954 = vunpack.c.l.b16 %v2724
    %v3955 = vunpack.c.h.b16 %v2724
    %v3956 = vunpack.c.l.b16 %v2725
    %v3957 = vunpack.c.h.b16 %v2725
    %v3958 = vunpack.c.l.b16 %v2726
    %v3959 = vunpack.c.h.b16 %v2726
    %v3960 = vunpack.c.l.b16 %v2727
    %v3961 = vunpack.c.h.b16 %v2727
    %v3962 = vunpack.c.l.b16 %v2728
    %v3963 = vunpack.c.h.b16 %v2728
    %v3964 = vunpack.c.l.b16 %v2729
    %v3965 = vunpack.c.h.b16 %v2729
    %v3966 = vunpack.c.l.b16 %v2730
    %v3967 = vunpack.c.h.b16 %v2730
    %v3968 = vunpack.c.l.b16 %v2731
    %v3969 = vunpack.c.h.b16 %v2731
    %v3970 = vunpack.c.l.b16 %v2732
    %v3971 = vunpack.c.h.b16 %v2732
    %v3972 = vunpack.c.l.b16 %v2733
    %v3973 = vunpack.c.h.b16 %v2733
    %v3974 = vunpack.c.l.b16 %v2734
    %v3975 = vunpack.c.h.b16 %v2734
    %v3976 = vunpack.c.l.b16 %v2735
    %v3977 = vunpack.c.h.b16 %v2735
    %v3978 = vunpack.c.l.b16 %v2736
    %v3979 = vunpack.c.h.b16 %v2736
    %v3980 = vunpack.c.l.b16 %v2737
    %v3981 = vunpack.c.h.b16 %v2737
    %v3982 = vunpack.c.l.b16 %v2738
    %v3983 = vunpack.c.h.b16 %v2738
    %v3984 = vunpack.c.l.b16 %v2739
    %v3985 = vunpack.c.h.b16 %v2739
    %v3986 = vunpack.c.l.b16 %v2740
    %v3987 = vunpack.c.h.b16 %v2740
    %v3988 = vunpack.c.l.b16 %v2741
    %v3989 = vunpack.c.h.b16 %v2741
    %v3990 = vunpack.c.l.b16 %v2742
    %v3991 = vunpack.c.h.b16 %v2742
    %v3992 = vunpack.c.l.b16 %v2743
    %v3993 = vunpack.c.h.b16 %v2743
    %v3994 = vunpack.c.l.b16 %v2744
    %v3995 = vunpack.c.h.b16 %v2744
    %v3996 = vunpack.c.l.b16 %v2745
    %v3997 = vunpack.c.h.b16 %v2745
    %v3998 = vunpack.c.l.b16 %v2746
    %v3999 = vunpack.c.h.b16 %v2746
    %v4000 = vunpack.c.l.b16 %v2747
    %v4001 = vunpack.c.h.b16 %v2747
    %v4002 = vunpack.c.l.b16 %v2748
    %v4003 = vunpack.c.h.b16 %v2748
    %v4004 = vunpack.c.l.b16 %v2749
    %v4005 = vunpack.c.h.b16 %v2749
    %v4006 = vunpack.c.l.b16 %v2750
    %v4007 = vunpack.c.h.b16 %v2750
    %v4008 = vunpack.c.l.b16 %v2751
    %v4009 = vunpack.c.h.b16 %v2751
    %v4010 = vunpack.c.l.b16 %v2752
    %v4011 = vunpack.c.h.b16 %v2752
    %v4012 = vunpack.c.l.b16 %v2753
    %v4013 = vunpack.c.h.b16 %v2753
    %v4014 = vunpack.c.l.b16 %v2754
    %v4015 = vunpack.c.h.b16 %v2754
    %v4016 = vunpack.c.l.b16 %v2755
    %v4017 = vunpack.c.h.b16 %v2755
    %v4018 = vunpack.c.l.b16 %v2756
    %v4019 = vunpack.c.h.b16 %v2756
    %v4020 = vunpack.c.l.b16 %v2757
    %v4021 = vunpack.c.h.b16 %v2757
    %v4022 = vunpack.c.l.b16 %v2758
    %v4023 = vunpack.c.h.b16 %v2758
    %v4024 = vunpack.c.l.b16 %v2759
    %v4025 = vunpack.c.h.b16 %v2759
    %v4026 = vunpack.c.l.b16 %v2760
    %v4027 = vunpack.c.h.b16 %v2760
    %v4028 = vunpack.c.l.b16 %v2761
    %v4029 = vunpack.c.h.b16 %v2761
    %v4030 = vunpack.c.l.b16 %v2762
    %v4031 = vunpack.c.h.b16 %v2762
    %v4032 = vunpack.c.l.b16 %v2763
    %v4033 = vunpack.c.h.b16 %v2763
    %v4034 = vunpack.c.l.b16 %v2764
    %v4035 = vunpack.c.h.b16 %v2764
    %v4036 = vunpack.c.l.b16 %v2765
    %v4037 = vunpack.c.h.b16 %v2765
    %v4038 = vunpack.c.l.b16 %v2766
    %v4039 = vunpack.c.h.b16 %v2766
    %v4040 = vunpack.c.l.b16 %v2767
    %v4041 = vunpack.c.h.b16 %v2767
    %v4042 = vunpack.c.l.b16 %v2768
    %v4043 = vunpack.c.h.b16 %v2768
    %v4044 = vunpack.c.l.b16 %v2769
    %v4045 = vunpack.c.h.b16 %v2769
    %v4046 = vunpack.c.l.b16 %v2770
    %v4047 = vunpack.c.h.b16 %v2770
    %v4048 = vunpack.c.l.b16 %v2771
    %v4049 = vunpack.c.h.b16 %v2771
    %v4050 = vunpack.c.l.b16 %v2772
    %v4051 = vunpack.c.h.b16 %v2772
    %v4052 = vunpack.c.l.b16 %v2773
    %v4053 = vunpack.c.h.b16 %v2773
    %v4054 = vunpack.c.l.b16 %v2774
    %v4055 = vunpack.c.h.b16 %v2774
    %v4056 = vunpack.c.l.b16 %v2775
    %v4057 = vunpack.c.h.b16 %v2775
    %v4058 = vpack.c.b16 %v3294, %v3290
    %v4059 = vpack.c.b16 %v3295, %v3291
    %v4060 = vpack.c.b16 %v3296, %v3292
    %v4061 = vpack.c.b16 %v3297, %v3293
    %v4062 = vpack.c.b16 %v3302, %v3298
    %v4063 = vpack.c.b16 %v3303, %v3299
    %v4064 = vpack.c.b16 %v3304, %v3300
    %v4065 = vpack.c.b16 %v3305, %v3301
    %v4066 = vpack.c.b16 %v3310, %v3306
    %v4067 = vpack.c.b16 %v3311, %v3307
    %v4068 = vpack.c.b16 %v3312, %v3308
    %v4069 = vpack.c.b16 %v3313, %v3309
    %v4070 = vpack.c.b16 %v3318, %v3314
    %v4071 = vpack.c.b16 %v3319, %v3315
    %v4072 = vpack.c.b16 %v3320, %v3316
    %v4073 = vpack.c.b16 %v3321, %v3317
    %v4074 = vpack.c.b16 %v3326, %v3322
    %v4075 = vpack.c.b16 %v3327, %v3323
    %v4076 = vpack.c.b16 %v3328, %v3324
    %v4077 = vpack.c.b16 %v3329, %v3325
    %v4078 = vpack.c.b16 %v3334, %v3330
    %v4079 = vpack.c.b16 %v3335, %v3331
    %v4080 = vpack.c.b16 %v3336, %v3332
    %v4081 = vpack.c.b16 %v3337, %v3333
    %v4082 = vpack.c.b16 %v3342, %v3338
    %v4083 = vpack.c.b16 %v3343, %v3339
    %v4084 = vpack.c.b16 %v3344, %v3340
    %v4085 = vpack.c.b16 %v3345, %v3341
    %v4086 = vpack.c.b16 %v3350, %v3346
    %v4087 = vpack.c.b16 %v3351, %v3347
    %v4088 = vpack.c.b16 %v3352, %v3348
    %v4089 = vpack.c.b16 %v3353, %v3349
    %v4090 = vpack.c.b16 %v3358, %v3354
    %v4091 = vpack.c.b16 %v3359, %v3355
    %v4092 = vpack.c.b16 %v3360, %v3356
    %v4093 = vpack.c.b16 %v3361, %v3357
    %v4094 = vpack.c.b16 %v3366, %v3362
    %v4095 = vpack.c.b16 %v3367, %v3363
    %v4096 = vpack.c.b16 %v3368, %v3364
    %v4097 = vpack.c.b16 %v3369, %v3365
    %v4098 = vpack.c.b16 %v3374, %v3370
    %v4099 = vpack.c.b16 %v3375, %v3371
    %v4100 = vpack.c.b16 %v3376, %v3372
    %v4101 = vpack.c.b16 %v3377, %v3373
    %v4102 = vpack.c.b16 %v3382, %v3378
    %v4103 = vpack.c.b16 %v3383, %v3379
    %v4104 = vpack.c.b16 %v3384, %v3380
    %v4105 = vpack.c.b16 %v3385, %v3381
    %v4106 = vpack.c.b16 %v3390, %v3386
    %v4107 = vpack.c.b16 %v3391, %v3387
    %v4108 = vpack.c.b16 %v3392, %v3388
    %v4109 = vpack.c.b16 %v3393, %v3389
    %v4110 = vpack.c.b16 %v3398, %v3394
    %v4111 = vpack.c.b16 %v3399, %v3395
    %v4112 = vpack.c.b16 %v3400, %v3396
    %v4113 = vpack.c.b16 %v3401, %v3397
    %v4114 = vpack.c.b16 %v3406, %v3402
    %v4115 = vpack.c.b16 %v3407, %v3403
    %v4116 = vpack.c.b16 %v3408, %v3404
    %v4117 = vpack.c.b16 %v3409, %v3405
    %v4118 = vpack.c.b16 %v3414, %v3410
    %v4119 = vpack.c.b16 %v3415, %v3411
    %v4120 = vpack.c.b16 %v3416, %v3412
    %v4121 = vpack.c.b16 %v3417, %v3413
    %v4122 = vpack.c.b16 %v3422, %v3418
    %v4123 = vpack.c.b16 %v3423, %v3419
    %v4124 = vpack.c.b16 %v3424, %v3420
    %v4125 = vpack.c.b16 %v3425, %v3421
    %v4126 = vpack.c.b16 %v3430, %v3426
    %v4127 = vpack.c.b16 %v3431, %v3427
    %v4128 = vpack.c.b16 %v3432, %v3428
    %v4129 = vpack.c.b16 %v3433, %v3429
    %v4130 = vpack.c.b16 %v3438, %v3434
    %v4131 = vpack.c.b16 %v3439, %v3435
    %v4132 = vpack.c.b16 %v3440, %v3436
    %v4133 = vpack.c.b16 %v3441, %v3437
    %v4134 = vpack.c.b16 %v3446, %v3442
    %v4135 = vpack.c.b16 %v3447, %v3443
    %v4136 = vpack.c.b16 %v3448, %v3444
    %v4137 = vpack.c.b16 %v3449, %v3445
    %v4138 = vpack.c.b16 %v3454, %v3450
    %v4139 = vpack.c.b16 %v3455, %v3451
    %v4140 = vpack.c.b16 %v3456, %v3452
    %v4141 = vpack.c.b16 %v3457, %v3453
    %v4142 = vpack.c.b16 %v3462, %v3458
    %v4143 = vpack.c.b16 %v3463, %v3459
    %v4144 = vpack.c.b16 %v3464, %v3460
    %v4145 = vpack.c.b16 %v3465, %v3461
    %v4146 = vpack.c.b16 %v3470, %v3466
    %v4147 = vpack.c.b16 %v3471, %v3467
    %v4148 = vpack.c.b16 %v3472, %v3468
    %v4149 = vpack.c.b16 %v3473, %v3469
    %v4150 = vpack.c.b16 %v3478, %v3474
    %v4151 = vpack.c.b16 %v3479, %v3475
    %v4152 = vpack.c.b16 %v3480, %v3476
    %v4153 = vpack.c.b16 %v3481, %v3477
    %v4154 = vpack.c.b16 %v3486, %v3482
    %v4155 = vpack.c.b16 %v3487, %v3483
    %v4156 = vpack.c.b16 %v3488, %v3484
    %v4157 = vpack.c.b16 %v3489, %v3485
    %v4158 = vpack.c.b16 %v3494, %v3490
    %v4159 = vpack.c.b16 %v3495, %v3491
    %v4160 = vpack.c.b16 %v3496, %v3492
    %v4161 = vpack.c.b16 %v3497, %v3493
    %v4162 = vpack.c.b16 %v3502, %v3498
    %v4163 = vpack.c.b16 %v3503, %v3499
    %v4164 = vpack.c.b16 %v3504, %v3500
    %v4165 = vpack.c.b16 %v3505, %v3501
    %v4166 = vpack.c.b16 %v3510, %v3506
    %v4167 = vpack.c.b16 %v3511, %v3507
    %v4168 = vpack.c.b16 %v3512, %v3508
    %v4169 = vpack.c.b16 %v3513, %v3509
    %v4170 = vpack.c.b16 %v3518, %v3514
    %v4171 = vpack.c.b16 %v3519, %v3515
    %v4172 = vpack.c.b16 %v3520, %v3516
    %v4173 = vpack.c.b16 %v3521, %v3517
    %v4174 = vpack.c.b16 %v3526, %v3522
    %v4175 = vpack.c.b16 %v3527, %v3523
    %v4176 = vpack.c.b16 %v3528, %v3524
    %v4177 = vpack.c.b16 %v3529, %v3525
    %v4178 = vpack.c.b16 %v3534, %v3530
    %v4179 = vpack.c.b16 %v3535, %v3531
    %v4180 = vpack.c.b16 %v3536, %v3532
    %v4181 = vpack.c.b16 %v3537, %v3533
    %v4182 = vpack.c.b16 %v3542, %v3538
    %v4183 = vpack.c.b16 %v3543, %v3539
    %v4184 = vpack.c.b16 %v3544, %v3540
    %v4185 = vpack.c.b16 %v3545, %v3541
    %v4186 = vpack.c.b16 %v3550, %v3546
    %v4187 = vpack.c.b16 %v3551, %v3547
    %v4188 = vpack.c.b16 %v3552, %v3548
    %v4189 = vpack.c.b16 %v3553, %v3549
    %v4190 = vpack.c.b16 %v3558, %v3554
    %v4191 = vpack.c.b16 %v3559, %v3555
    %v4192 = vpack.c.b16 %v3560, %v3556
    %v4193 = vpack.c.b16 %v3561, %v3557
    %v4194 = vpack.c.b16 %v3566, %v3562
    %v4195 = vpack.c.b16 %v3567, %v3563
    %v4196 = vpack.c.b16 %v3568, %v3564
    %v4197 = vpack.c.b16 %v3569, %v3565
    %v4198 = vpack.c.b16 %v3574, %v3570
    %v4199 = vpack.c.b16 %v3575, %v3571
    %v4200 = vpack.c.b16 %v3576, %v3572
    %v4201 = vpack.c.b16 %v3577, %v3573
    %v4202 = vpack.c.b16 %v3582, %v3578
    %v4203 = vpack.c.b16 %v3583, %v3579
    %v4204 = vpack.c.b16 %v3584, %v3580
    %v4205 = vpack.c.b16 %v3585, %v3581
    %v4206 = vpack.c.b16 %v3590, %v3586
    %v4207 = vpack.c.b16 %v3591, %v3587
    %v4208 = vpack.c.b16 %v3592, %v3588
    %v4209 = vpack.c.b16 %v3593, %v3589
    %v4210 = vpack.c.b16 %v3598, %v3594
    %v4211 = vpack.c.b16 %v3599, %v3595
    %v4212 = vpack.c.b16 %v3600, %v3596
    %v4213 = vpack.c.b16 %v3601, %v3597
    %v4214 = vpack.c.b16 %v3606, %v3602
    %v4215 = vpack.c.b16 %v3607, %v3603
    %v4216 = vpack.c.b16 %v3608, %v3604
    %v4217 = vpack.c.b16 %v3609, %v3605
    %v4218 = vpack.c.b16 %v3614, %v3610
    %v4219 = vpack.c.b16 %v3615, %v3611
    %v4220 = vpack.c.b16 %v3616, %v3612
    %v4221 = vpack.c.b16 %v3617, %v3613
    %v4222 = vpack.c.b16 %v3622, %v3618
    %v4223 = vpack.c.b16 %v3623, %v3619
    %v4224 = vpack.c.b16 %v3624, %v3620
    %v4225 = vpack.c.b16 %v3625, %v3621
    %v4226 = vpack.c.b16 %v3630, %v3626
    %v4227 = vpack.c.b16 %v3631, %v3627
    %v4228 = vpack.c.b16 %v3632, %v3628
    %v4229 = vpack.c.b16 %v3633, %v3629
    %v4230 = vpack.c.b16 %v3638, %v3634
    %v4231 = vpack.c.b16 %v3639, %v3635
    %v4232 = vpack.c.b16 %v3640, %v3636
    %v4233 = vpack.c.b16 %v3641, %v3637
    %v4234 = vpack.c.b16 %v3646, %v3642
    %v4235 = vpack.c.b16 %v3647, %v3643
    %v4236 = vpack.c.b16 %v3648, %v3644
    %v4237 = vpack.c.b16 %v3649, %v3645
    %v4238 = vpack.c.b16 %v3654, %v3650
    %v4239 = vpack.c.b16 %v3655, %v3651
    %v4240 = vpack.c.b16 %v3656, %v3652
    %v4241 = vpack.c.b16 %v3657, %v3653
    %v4242 = vpack.c.b16 %v3662, %v3658
    %v4243 = vpack.c.b16 %v3663, %v3659
    %v4244 = vpack.c.b16 %v3664, %v3660
    %v4245 = vpack.c.b16 %v3665, %v3661
    %v4246 = vpack.c.b16 %v3670, %v3666
    %v4247 = vpack.c.b16 %v3671, %v3667
    %v4248 = vpack.c.b16 %v3672, %v3668
    %v4249 = vpack.c.b16 %v3673, %v3669
    %v4250 = vpack.c.b16 %v3678, %v3674
    %v4251 = vpack.c.b16 %v3679, %v3675
    %v4252 = vpack.c.b16 %v3680, %v3676
    %v4253 = vpack.c.b16 %v3681, %v3677
    %v4254 = vpack.c.b16 %v3686, %v3682
    %v4255 = vpack.c.b16 %v3687, %v3683
    %v4256 = vpack.c.b16 %v3688, %v3684
    %v4257 = vpack.c.b16 %v3689, %v3685
    %v4258 = vpack.c.b16 %v3694, %v3690
    %v4259 = vpack.c.b16 %v3695, %v3691
    %v4260 = vpack.c.b16 %v3696, %v3692
    %v4261 = vpack.c.b16 %v3697, %v3693
    %v4262 = vpack.c.b16 %v3702, %v3698
    %v4263 = vpack.c.b16 %v3703, %v3699
    %v4264 = vpack.c.b16 %v3704, %v3700
    %v4265 = vpack.c.b16 %v3705, %v3701
    %v4266 = vpack.c.b16 %v3710, %v3706
    %v4267 = vpack.c.b16 %v3711, %v3707
    %v4268 = vpack.c.b16 %v3712, %v3708
    %v4269 = vpack.c.b16 %v3713, %v3709
    %v4270 = vpack.c.b16 %v3718, %v3714
    %v4271 = vpack.c.b16 %v3719, %v3715
    %v4272 = vpack.c.b16 %v3720, %v3716
    %v4273 = vpack.c.b16 %v3721, %v3717
    %v4274 = vpack.c.b16 %v3726, %v3722
    %v4275 = vpack.c.b16 %v3727, %v3723
    %v4276 = vpack.c.b16 %v3728, %v3724
    %v4277 = vpack.c.b16 %v3729, %v3725
    %v4278 = vpack.c.b16 %v3734, %v3730
    %v4279 = vpack.c.b16 %v3735, %v3731
    %v4280 = vpack.c.b16 %v3736, %v3732
    %v4281 = vpack.c.b16 %v3737, %v3733
    %v4282 = vpack.c.b16 %v3742, %v3738
    %v4283 = vpack.c.b16 %v3743, %v3739
    %v4284 = vpack.c.b16 %v3744, %v3740
    %v4285 = vpack.c.b16 %v3745, %v3741
    %v4286 = vpack.c.b16 %v3750, %v3746
    %v4287 = vpack.c.b16 %v3751, %v3747
    %v4288 = vpack.c.b16 %v3752, %v3748
    %v4289 = vpack.c.b16 %v3753, %v3749
    %v4290 = vpack.c.b16 %v3758, %v3754
    %v4291 = vpack.c.b16 %v3759, %v3755
    %v4292 = vpack.c.b16 %v3760, %v3756
    %v4293 = vpack.c.b16 %v3761, %v3757
    %v4294 = vpack.c.b16 %v3766, %v3762
    %v4295 = vpack.c.b16 %v3767, %v3763
    %v4296 = vpack.c.b16 %v3768, %v3764
    %v4297 = vpack.c.b16 %v3769, %v3765
    %v4298 = vpack.c.b16 %v3774, %v3770
    %v4299 = vpack.c.b16 %v3775, %v3771
    %v4300 = vpack.c.b16 %v3776, %v3772
    %v4301 = vpack.c.b16 %v3777, %v3773
    %v4302 = vpack.c.b16 %v3782, %v3778
    %v4303 = vpack.c.b16 %v3783, %v3779
    %v4304 = vpack.c.b16 %v3784, %v3780
    %v4305 = vpack.c.b16 %v3785, %v3781
    %v4306 = vpack.c.b16 %v3790, %v3786
    %v4307 = vpack.c.b16 %v3791, %v3787
    %v4308 = vpack.c.b16 %v3792, %v3788
    %v4309 = vpack.c.b16 %v3793, %v3789
    %v4310 = vpack.c.b16 %v3798, %v3794
    %v4311 = vpack.c.b16 %v3799, %v3795
    %v4312 = vpack.c.b16 %v3800, %v3796
    %v4313 = vpack.c.b16 %v3801, %v3797
    %v4314 = vpack.c.b16 %v3806, %v3802
    %v4315 = vpack.c.b16 %v3807, %v3803
    %v4316 = vpack.c.b16 %v3808, %v3804
    %v4317 = vpack.c.b16 %v3809, %v3805
    %v4318 = vpack.c.b16 %v3814, %v3810
    %v4319 = vpack.c.b16 %v3815, %v3811
    %v4320 = vpack.c.b16 %v3816, %v3812
    %v4321 = vpack.c.b16 %v3817, %v3813
    %v4322 = vpack.c.b16 %v3822, %v3818
    %v4323 = vpack.c.b16 %v3823, %v3819
    %v4324 = vpack.c.b16 %v3824, %v3820
    %v4325 = vpack.c.b16 %v3825, %v3821
    %v4326 = vpack.c.b16 %v3830, %v3826
    %v4327 = vpack.c.b16 %v3831, %v3827
    %v4328 = vpack.c.b16 %v3832, %v3828
    %v4329 = vpack.c.b16 %v3833, %v3829
    %v4330 = vpack.c.b16 %v3838, %v3834
    %v4331 = vpack.c.b16 %v3839, %v3835
    %v4332 = vpack.c.b16 %v3840, %v3836
    %v4333 = vpack.c.b16 %v3841, %v3837
    %v4334 = vpack.c.b16 %v3846, %v3842
    %v4335 = vpack.c.b16 %v3847, %v3843
    %v4336 = vpack.c.b16 %v3848, %v3844
    %v4337 = vpack.c.b16 %v3849, %v3845
    %v4338 = vpack.c.b16 %v3854, %v3850
    %v4339 = vpack.c.b16 %v3855, %v3851
    %v4340 = vpack.c.b16 %v3856, %v3852
    %v4341 = vpack.c.b16 %v3857, %v3853
    %v4342 = vpack.c.b16 %v3862, %v3858
    %v4343 = vpack.c.b16 %v3863, %v3859
    %v4344 = vpack.c.b16 %v3864, %v3860
    %v4345 = vpack.c.b16 %v3865, %v3861
    %v4346 = vpack.c.b16 %v3870, %v3866
    %v4347 = vpack.c.b16 %v3871, %v3867
    %v4348 = vpack.c.b16 %v3872, %v3868
    %v4349 = vpack.c.b16 %v3873, %v3869
    %v4350 = vpack.c.b16 %v3878, %v3874
    %v4351 = vpack.c.b16 %v3879, %v3875
    %v4352 = vpack.c.b16 %v3880, %v3876
    %v4353 = vpack.c.b16 %v3881, %v3877
    %v4354 = vpack.c.b16 %v3886, %v3882
    %v4355 = vpack.c.b16 %v3887, %v3883
    %v4356 = vpack.c.b16 %v3888, %v3884
    %v4357 = vpack.c.b16 %v3889, %v3885
    %v4358 = vpack.c.b16 %v3894, %v3890
    %v4359 = vpack.c.b16 %v3895, %v3891
    %v4360 = vpack.c.b16 %v3896, %v3892
    %v4361 = vpack.c.b16 %v3897, %v3893
    %v4362 = vpack.c.b16 %v3902, %v3898
    %v4363 = vpack.c.b16 %v3903, %v3899
    %v4364 = vpack.c.b16 %v3904, %v3900
    %v4365 = vpack.c.b16 %v3905, %v3901
    %v4366 = vpack.c.b16 %v3910, %v3906
    %v4367 = vpack.c.b16 %v3911, %v3907
    %v4368 = vpack.c.b16 %v3912, %v3908
    %v4369 = vpack.c.b16 %v3913, %v3909
    %v4370 = vpack.c.b16 %v3918, %v3914
    %v4371 = vpack.c.b16 %v3919, %v3915
    %v4372 = vpack.c.b16 %v3920, %v3916
    %v4373 = vpack.c.b16 %v3921, %v3917
    %v4374 = vpack.c.b16 %v3926, %v3922
    %v4375 = vpack.c.b16 %v3927, %v3923
    %v4376 = vpack.c.b16 %v3928, %v3924
    %v4377 = vpack.c.b16 %v3929, %v3925
    %v4378 = vpack.c.b16 %v3934, %v3930
    %v4379 = vpack.c.b16 %v3935, %v3931
    %v4380 = vpack.c.b16 %v3936, %v3932
    %v4381 = vpack.c.b16 %v3937, %v3933
    %v4382 = vpack.c.b16 %v3942, %v3938
    %v4383 = vpack.c.b16 %v3943, %v3939
    %v4384 = vpack.c.b16 %v3944, %v3940
    %v4385 = vpack.c.b16 %v3945, %v3941
    %v4386 = vpack.c.b16 %v3950, %v3946
    %v4387 = vpack.c.b16 %v3951, %v3947
    %v4388 = vpack.c.b16 %v3952, %v3948
    %v4389 = vpack.c.b16 %v3953, %v3949
    %v4390 = vpack.c.b16 %v3958, %v3954
    %v4391 = vpack.c.b16 %v3959, %v3955
    %v4392 = vpack.c.b16 %v3960, %v3956
    %v4393 = vpack.c.b16 %v3961, %v3957
    %v4394 = vpack.c.b16 %v3966, %v3962
    %v4395 = vpack.c.b16 %v3967, %v3963
    %v4396 = vpack.c.b16 %v3968, %v3964
    %v4397 = vpack.c.b16 %v3969, %v3965
    %v4398 = vpack.c.b16 %v3974, %v3970
    %v4399 = vpack.c.b16 %v3975, %v3971
    %v4400 = vpack.c.b16 %v3976, %v3972
    %v4401 = vpack.c.b16 %v3977, %v3973
    %v4402 = vpack.c.b16 %v3982, %v3978
    %v4403 = vpack.c.b16 %v3983, %v3979
    %v4404 = vpack.c.b16 %v3984, %v3980
    %v4405 = vpack.c.b16 %v3985, %v3981
    %v4406 = vpack.c.b16 %v3990, %v3986
    %v4407 = vpack.c.b16 %v3991, %v3987
    %v4408 = vpack.c.b16 %v3992, %v3988
    %v4409 = vpack.c.b16 %v3993, %v3989
    %v4410 = vpack.c.b16 %v3998, %v3994
    %v4411 = vpack.c.b16 %v3999, %v3995
    %v4412 = vpack.c.b16 %v4000, %v3996
    %v4413 = vpack.c.b16 %v4001, %v3997
    %v4414 = vpack.c.b16 %v4006, %v4002
    %v4415 = vpack.c.b16 %v4007, %v4003
    %v4416 = vpack.c.b16 %v4008, %v4004
    %v4417 = vpack.c.b16 %v4009, %v4005
    %v4418 = vpack.c.b16 %v4014, %v4010
    %v4419 = vpack.c.b16 %v4015, %v4011
    %v4420 = vpack.c.b16 %v4016, %v4012
    %v4421 = vpack.c.b16 %v4017, %v4013
    %v4422 = vpack.c.b16 %v4022, %v4018
    %v4423 = vpack.c.b16 %v4023, %v4019
    %v4424 = vpack.c.b16 %v4024, %v4020
    %v4425 = vpack.c.b16 %v4025, %v4021
    %v4426 = vpack.c.b16 %v4030, %v4026
    %v4427 = vpack.c.b16 %v4031, %v4027
    %v4428 = vpack.c.b16 %v4032, %v4028
    %v4429 = vpack.c.b16 %v4033, %v4029
    %v4430 = vpack.c.b16 %v4038, %v4034
    %v4431 = vpack.c.b16 %v4039, %v4035
    %v4432 = vpack.c.b16 %v4040, %v4036
    %v4433 = vpack.c.b16 %v4041, %v4037
    %v4434 = vpack.c.b16 %v4046, %v4042
    %v4435 = vpack.c.b16 %v4047, %v4043
    %v4436 = vpack.c.b16 %v4048, %v4044
    %v4437 = vpack.c.b16 %v4049, %v4045
    %v4438 = vpack.c.b16 %v4054, %v4050
    %v4439 = vpack.c.b16 %v4055, %v4051
    %v4440 = vpack.c.b16 %v4056, %v4052
    %v4441 = vpack.c.b16 %v4057, %v4053
    %4826 = vmatpush.bf16.msra.mxu0 %v4086
    %4827 = vmatpush.bf16.msra.mxu0 %v4082
    %4828 = vmatpush.bf16.msra.mxu0 %v4078
    %4829 = vmatpush.bf16.msra.mxu0 %v4074
    %4830 = vmatpush.bf16.msra.mxu0 %v4070
    %4831 = vmatpush.bf16.msra.mxu0 %v4066
    %4832 = vmatpush.bf16.msra.mxu0 %v4062
    %4833 = vmatpush.bf16.msra.mxu0 %v4058
    %4834 = vmatmul.bf16.gmra.mxu0 %v2786
    %v4835 = vpop.f32.mrf.mxu0
    %v4836 = vadd.f32 %v2778, %v4835
    %v4837 = vpop.f32.mrf.mxu0
    %v4838 = vadd.f32 %v2778, %v4837
    %4839 = vmatmul.bf16.gmra.mxu0 %v2794
    %v4840 = vpop.f32.mrf.mxu0
    %v4841 = vadd.f32 %v2778, %v4840
    %v4842 = vpop.f32.mrf.mxu0
    %v4843 = vadd.f32 %v2778, %v4842
    %4844 = vmatmul.bf16.gmra.mxu0 %v2802
    %v4845 = vpop.f32.mrf.mxu0
    %v4846 = vadd.f32 %v2778, %v4845
    %v4847 = vpop.f32.mrf.mxu0
    %v4848 = vadd.f32 %v2778, %v4847
    %4849 = vmatmul.bf16.gmra.mxu0 %v2810
    %v4850 = vpop.f32.mrf.mxu0
    %v4851 = vadd.f32 %v2778, %v4850
    %v4852 = vpop.f32.mrf.mxu0
    %v4853 = vadd.f32 %v2778, %v4852
    %4854 = vmatmul.bf16.gmra.mxu0 %v2818
    %v4855 = vpop.f32.mrf.mxu0
    %v4856 = vadd.f32 %v2778, %v4855
    %v4857 = vpop.f32.mrf.mxu0
    %v4858 = vadd.f32 %v2778, %v4857
    %4859 = vmatmul.bf16.gmra.mxu0 %v2826
    %v4860 = vpop.f32.mrf.mxu0
    %v4861 = vadd.f32 %v2778, %v4860
    %v4862 = vpop.f32.mrf.mxu0
    %v4863 = vadd.f32 %v2778, %v4862
    %4864 = vmatmul.bf16.gmra.mxu0 %v2834
    %v4865 = vpop.f32.mrf.mxu0
    %v4866 = vadd.f32 %v2778, %v4865
    %v4867 = vpop.f32.mrf.mxu0
    %v4868 = vadd.f32 %v2778, %v4867
    %4869 = vdwg.mxu0
    %4870 = vmatpush.bf16.msra.mxu0 %v4118
    %4871 = vmatpush.bf16.msra.mxu0 %v4114
    %4872 = vmatpush.bf16.msra.mxu0 %v4110
    %4873 = vmatpush.bf16.msra.mxu0 %v4106
    %4874 = vmatpush.bf16.msra.mxu0 %v4102
    %4875 = vmatpush.bf16.msra.mxu0 %v4098
    %4876 = vmatpush.bf16.msra.mxu0 %v4094
    %4877 = vmatpush.bf16.msra.mxu0 %v4090
    %4878 = vmatmul.bf16.gmra.mxu0 %v2787
    %v4879 = vpop.f32.mrf.mxu0
    %v4880 = vadd.f32 %v4836, %v4879
    %v4881 = vpop.f32.mrf.mxu0
    %v4882 = vadd.f32 %v4838, %v4881
    %4883 = vmatmul.bf16.gmra.mxu0 %v2795
    %v4884 = vpop.f32.mrf.mxu0
    %v4885 = vadd.f32 %v4841, %v4884
    %v4886 = vpop.f32.mrf.mxu0
    %v4887 = vadd.f32 %v4843, %v4886
    %4888 = vmatmul.bf16.gmra.mxu0 %v2803
    %v4889 = vpop.f32.mrf.mxu0
    %v4890 = vadd.f32 %v4846, %v4889
    %v4891 = vpop.f32.mrf.mxu0
    %v4892 = vadd.f32 %v4848, %v4891
    %4893 = vmatmul.bf16.gmra.mxu0 %v2811
    %v4894 = vpop.f32.mrf.mxu0
    %v4895 = vadd.f32 %v4851, %v4894
    %v4896 = vpop.f32.mrf.mxu0
    %v4897 = vadd.f32 %v4853, %v4896
    %4898 = vmatmul.bf16.gmra.mxu0 %v2819
    %v4899 = vpop.f32.mrf.mxu0
    %v4900 = vadd.f32 %v4856, %v4899
    %v4901 = vpop.f32.mrf.mxu0
    %v4902 = vadd.f32 %v4858, %v4901
    %4903 = vmatmul.bf16.gmra.mxu0 %v2827
    %v4904 = vpop.f32.mrf.mxu0
    %v4905 = vadd.f32 %v4861, %v4904
    %v4906 = vpop.f32.mrf.mxu0
    %v4907 = vadd.f32 %v4863, %v4906
    %4908 = vmatmul.bf16.gmra.mxu0 %v2835
    %v4909 = vpop.f32.mrf.mxu0
    %v4910 = vadd.f32 %v4866, %v4909
    %v4911 = vpop.f32.mrf.mxu0
    %v4912 = vadd.f32 %v4868, %v4911
    %4913 = vdwg.mxu0
    %4914 = vmatpush.bf16.msra.mxu0 %v4150
    %4915 = vmatpush.bf16.msra.mxu0 %v4146
    %4916 = vmatpush.bf16.msra.mxu0 %v4142
    %4917 = vmatpush.bf16.msra.mxu0 %v4138
    %4918 = vmatpush.bf16.msra.mxu0 %v4134
    %4919 = vmatpush.bf16.msra.mxu0 %v4130
    %4920 = vmatpush.bf16.msra.mxu0 %v4126
    %4921 = vmatpush.bf16.msra.mxu0 %v4122
    %4922 = vmatmul.bf16.gmra.mxu0 %v2788
    %v4923 = vpop.f32.mrf.mxu0
    %v4924 = vadd.f32 %v4880, %v4923
    %v4925 = vpop.f32.mrf.mxu0
    %v4926 = vadd.f32 %v4882, %v4925
    %4927 = vmatmul.bf16.gmra.mxu0 %v2796
    %v4928 = vpop.f32.mrf.mxu0
    %v4929 = vadd.f32 %v4885, %v4928
    %v4930 = vpop.f32.mrf.mxu0
    %v4931 = vadd.f32 %v4887, %v4930
    %4932 = vmatmul.bf16.gmra.mxu0 %v2804
    %v4933 = vpop.f32.mrf.mxu0
    %v4934 = vadd.f32 %v4890, %v4933
    %v4935 = vpop.f32.mrf.mxu0
    %v4936 = vadd.f32 %v4892, %v4935
    %4937 = vmatmul.bf16.gmra.mxu0 %v2812
    %v4938 = vpop.f32.mrf.mxu0
    %v4939 = vadd.f32 %v4895, %v4938
    %v4940 = vpop.f32.mrf.mxu0
    %v4941 = vadd.f32 %v4897, %v4940
    %4942 = vmatmul.bf16.gmra.mxu0 %v2820
    %v4943 = vpop.f32.mrf.mxu0
    %v4944 = vadd.f32 %v4900, %v4943
    %v4945 = vpop.f32.mrf.mxu0
    %v4946 = vadd.f32 %v4902, %v4945
    %4947 = vmatmul.bf16.gmra.mxu0 %v2828
    %v4948 = vpop.f32.mrf.mxu0
    %v4949 = vadd.f32 %v4905, %v4948
    %v4950 = vpop.f32.mrf.mxu0
    %v4951 = vadd.f32 %v4907, %v4950
    %4952 = vmatmul.bf16.gmra.mxu0 %v2836
    %v4953 = vpop.f32.mrf.mxu0
    %v4954 = vadd.f32 %v4910, %v4953
    %v4955 = vpop.f32.mrf.mxu0
    %v4956 = vadd.f32 %v4912, %v4955
    %4957 = vdwg.mxu0
    %4958 = vmatpush.bf16.msra.mxu0 %v4182
    %4959 = vmatpush.bf16.msra.mxu0 %v4178
    %4960 = vmatpush.bf16.msra.mxu0 %v4174
    %4961 = vmatpush.bf16.msra.mxu0 %v4170
    %4962 = vmatpush.bf16.msra.mxu0 %v4166
    %4963 = vmatpush.bf16.msra.mxu0 %v4162
    %4964 = vmatpush.bf16.msra.mxu0 %v4158
    %4965 = vmatpush.bf16.msra.mxu0 %v4154
    %4966 = vmatmul.bf16.gmra.mxu0 %v2789
    %v4967 = vpop.f32.mrf.mxu0
    %v4968 = vadd.f32 %v4924, %v4967
    %v4969 = vpop.f32.mrf.mxu0
    %v4970 = vadd.f32 %v4926, %v4969
    %4971 = vmatmul.bf16.gmra.mxu0 %v2797
    %v4972 = vpop.f32.mrf.mxu0
    %v4973 = vadd.f32 %v4929, %v4972
    %v4974 = vpop.f32.mrf.mxu0
    %v4975 = vadd.f32 %v4931, %v4974
    %4976 = vmatmul.bf16.gmra.mxu0 %v2805
    %v4977 = vpop.f32.mrf.mxu0
    %v4978 = vadd.f32 %v4934, %v4977
    %v4979 = vpop.f32.mrf.mxu0
    %v4980 = vadd.f32 %v4936, %v4979
    %4981 = vmatmul.bf16.gmra.mxu0 %v2813
    %v4982 = vpop.f32.mrf.mxu0
    %v4983 = vadd.f32 %v4939, %v4982
    %v4984 = vpop.f32.mrf.mxu0
    %v4985 = vadd.f32 %v4941, %v4984
    %4986 = vmatmul.bf16.gmra.mxu0 %v2821
    %v4987 = vpop.f32.mrf.mxu0
    %v4988 = vadd.f32 %v4944, %v4987
    %v4989 = vpop.f32.mrf.mxu0
    %v4990 = vadd.f32 %v4946, %v4989
    %4991 = vmatmul.bf16.gmra.mxu0 %v2829
    %v4992 = vpop.f32.mrf.mxu0
    %v4993 = vadd.f32 %v4949, %v4992
    %v4994 = vpop.f32.mrf.mxu0
    %v4995 = vadd.f32 %v4951, %v4994
    %4996 = vmatmul.bf16.gmra.mxu0 %v2837
    %v4997 = vpop.f32.mrf.mxu0
    %v4998 = vadd.f32 %v4954, %v4997
    %v4999 = vpop.f32.mrf.mxu0
    %v5000 = vadd.f32 %v4956, %v4999
    %5001 = vdwg.mxu0
    %5002 = vmatpush.bf16.msra.mxu0 %v4214
    %5003 = vmatpush.bf16.msra.mxu0 %v4210
    %5004 = vmatpush.bf16.msra.mxu0 %v4206
    %5005 = vmatpush.bf16.msra.mxu0 %v4202
    %5006 = vmatpush.bf16.msra.mxu0 %v4198
    %5007 = vmatpush.bf16.msra.mxu0 %v4194
    %5008 = vmatpush.bf16.msra.mxu0 %v4190
    %5009 = vmatpush.bf16.msra.mxu0 %v4186
    %5010 = vmatmul.bf16.gmra.mxu0 %v2790
    %v5011 = vpop.f32.mrf.mxu0
    %v5012 = vadd.f32 %v4968, %v5011
    %v5013 = vpop.f32.mrf.mxu0
    %v5014 = vadd.f32 %v4970, %v5013
    %5015 = vmatmul.bf16.gmra.mxu0 %v2798
    %v5016 = vpop.f32.mrf.mxu0
    %v5017 = vadd.f32 %v4973, %v5016
    %v5018 = vpop.f32.mrf.mxu0
    %v5019 = vadd.f32 %v4975, %v5018
    %5020 = vmatmul.bf16.gmra.mxu0 %v2806
    %v5021 = vpop.f32.mrf.mxu0
    %v5022 = vadd.f32 %v4978, %v5021
    %v5023 = vpop.f32.mrf.mxu0
    %v5024 = vadd.f32 %v4980, %v5023
    %5025 = vmatmul.bf16.gmra.mxu0 %v2814
    %v5026 = vpop.f32.mrf.mxu0
    %v5027 = vadd.f32 %v4983, %v5026
    %v5028 = vpop.f32.mrf.mxu0
    %v5029 = vadd.f32 %v4985, %v5028
    %5030 = vmatmul.bf16.gmra.mxu0 %v2822
    %v5031 = vpop.f32.mrf.mxu0
    %v5032 = vadd.f32 %v4988, %v5031
    %v5033 = vpop.f32.mrf.mxu0
    %v5034 = vadd.f32 %v4990, %v5033
    %5035 = vmatmul.bf16.gmra.mxu0 %v2830
    %v5036 = vpop.f32.mrf.mxu0
    %v5037 = vadd.f32 %v4993, %v5036
    %v5038 = vpop.f32.mrf.mxu0
    %v5039 = vadd.f32 %v4995, %v5038
    %5040 = vmatmul.bf16.gmra.mxu0 %v2838
    %v5041 = vpop.f32.mrf.mxu0
    %v5042 = vadd.f32 %v4998, %v5041
    %v5043 = vpop.f32.mrf.mxu0
    %v5044 = vadd.f32 %v5000, %v5043
    %5045 = vdwg.mxu0
    %5046 = vmatpush.bf16.msra.mxu0 %v4246
    %5047 = vmatpush.bf16.msra.mxu0 %v4242
    %5048 = vmatpush.bf16.msra.mxu0 %v4238
    %5049 = vmatpush.bf16.msra.mxu0 %v4234
    %5050 = vmatpush.bf16.msra.mxu0 %v4230
    %5051 = vmatpush.bf16.msra.mxu0 %v4226
    %5052 = vmatpush.bf16.msra.mxu0 %v4222
    %5053 = vmatpush.bf16.msra.mxu0 %v4218
    %5054 = vmatmul.bf16.gmra.mxu0 %v2791
    %v5055 = vpop.f32.mrf.mxu0
    %v5056 = vadd.f32 %v5012, %v5055
    %v5057 = vpop.f32.mrf.mxu0
    %v5058 = vadd.f32 %v5014, %v5057
    %5059 = vmatmul.bf16.gmra.mxu0 %v2799
    %v5060 = vpop.f32.mrf.mxu0
    %v5061 = vadd.f32 %v5017, %v5060
    %v5062 = vpop.f32.mrf.mxu0
    %v5063 = vadd.f32 %v5019, %v5062
    %5064 = vmatmul.bf16.gmra.mxu0 %v2807
    %v5065 = vpop.f32.mrf.mxu0
    %v5066 = vadd.f32 %v5022, %v5065
    %v5067 = vpop.f32.mrf.mxu0
    %v5068 = vadd.f32 %v5024, %v5067
    %5069 = vmatmul.bf16.gmra.mxu0 %v2815
    %v5070 = vpop.f32.mrf.mxu0
    %v5071 = vadd.f32 %v5027, %v5070
    %v5072 = vpop.f32.mrf.mxu0
    %v5073 = vadd.f32 %v5029, %v5072
    %5074 = vmatmul.bf16.gmra.mxu0 %v2823
    %v5075 = vpop.f32.mrf.mxu0
    %v5076 = vadd.f32 %v5032, %v5075
    %v5077 = vpop.f32.mrf.mxu0
    %v5078 = vadd.f32 %v5034, %v5077
    %5079 = vmatmul.bf16.gmra.mxu0 %v2831
    %v5080 = vpop.f32.mrf.mxu0
    %v5081 = vadd.f32 %v5037, %v5080
    %v5082 = vpop.f32.mrf.mxu0
    %v5083 = vadd.f32 %v5039, %v5082
    %5084 = vmatmul.bf16.gmra.mxu0 %v2839
    %v5085 = vpop.f32.mrf.mxu0
    %v5086 = vadd.f32 %v5042, %v5085
    %v5087 = vpop.f32.mrf.mxu0
    %v5088 = vadd.f32 %v5044, %v5087
    %5089 = vdwg.mxu0
    %5090 = vmatpush.bf16.msra.mxu0 %v4278
    %5091 = vmatpush.bf16.msra.mxu0 %v4274
    %5092 = vmatpush.bf16.msra.mxu0 %v4270
    %5093 = vmatpush.bf16.msra.mxu0 %v4266
    %5094 = vmatpush.bf16.msra.mxu0 %v4262
    %5095 = vmatpush.bf16.msra.mxu0 %v4258
    %5096 = vmatpush.bf16.msra.mxu0 %v4254
    %5097 = vmatpush.bf16.msra.mxu0 %v4250
    %5098 = vmatmul.bf16.gmra.mxu0 %v2792
    %v5099 = vpop.f32.mrf.mxu0
    %v5100 = vadd.f32 %v5056, %v5099
    %v5101 = vpop.f32.mrf.mxu0
    %v5102 = vadd.f32 %v5058, %v5101
    %5103 = vmatmul.bf16.gmra.mxu0 %v2800
    %v5104 = vpop.f32.mrf.mxu0
    %v5105 = vadd.f32 %v5061, %v5104
    %v5106 = vpop.f32.mrf.mxu0
    %v5107 = vadd.f32 %v5063, %v5106
    %5108 = vmatmul.bf16.gmra.mxu0 %v2808
    %v5109 = vpop.f32.mrf.mxu0
    %v5110 = vadd.f32 %v5066, %v5109
    %v5111 = vpop.f32.mrf.mxu0
    %v5112 = vadd.f32 %v5068, %v5111
    %5113 = vmatmul.bf16.gmra.mxu0 %v2816
    %v5114 = vpop.f32.mrf.mxu0
    %v5115 = vadd.f32 %v5071, %v5114
    %v5116 = vpop.f32.mrf.mxu0
    %v5117 = vadd.f32 %v5073, %v5116
    %5118 = vmatmul.bf16.gmra.mxu0 %v2824
    %v5119 = vpop.f32.mrf.mxu0
    %v5120 = vadd.f32 %v5076, %v5119
    %v5121 = vpop.f32.mrf.mxu0
    %v5122 = vadd.f32 %v5078, %v5121
    %5123 = vmatmul.bf16.gmra.mxu0 %v2832
    %v5124 = vpop.f32.mrf.mxu0
    %v5125 = vadd.f32 %v5081, %v5124
    %v5126 = vpop.f32.mrf.mxu0
    %v5127 = vadd.f32 %v5083, %v5126
    %5128 = vmatmul.bf16.gmra.mxu0 %v2840
    %v5129 = vpop.f32.mrf.mxu0
    %v5130 = vadd.f32 %v5086, %v5129
    %v5131 = vpop.f32.mrf.mxu0
    %v5132 = vadd.f32 %v5088, %v5131
    %5133 = vdwg.mxu0
    %5134 = vmatpush.bf16.msra.mxu0 %v4310
    %5135 = vmatpush.bf16.msra.mxu0 %v4306
    %5136 = vmatpush.bf16.msra.mxu0 %v4302
    %5137 = vmatpush.bf16.msra.mxu0 %v4298
    %5138 = vmatpush.bf16.msra.mxu0 %v4294
    %5139 = vmatpush.bf16.msra.mxu0 %v4290
    %5140 = vmatpush.bf16.msra.mxu0 %v4286
    %5141 = vmatpush.bf16.msra.mxu0 %v4282
    %5142 = vmatmul.bf16.gmra.mxu0 %v2793
    %v5143 = vpop.f32.mrf.mxu0
    %v5144 = vadd.f32 %v5100, %v5143
    %v5145 = vpop.f32.mrf.mxu0
    %v5146 = vadd.f32 %v5102, %v5145
    %5147 = vmatmul.bf16.gmra.mxu0 %v2801
    %v5148 = vpop.f32.mrf.mxu0
    %v5149 = vadd.f32 %v5105, %v5148
    %v5150 = vpop.f32.mrf.mxu0
    %v5151 = vadd.f32 %v5107, %v5150
    %5152 = vmatmul.bf16.gmra.mxu0 %v2809
    %v5153 = vpop.f32.mrf.mxu0
    %v5154 = vadd.f32 %v5110, %v5153
    %v5155 = vpop.f32.mrf.mxu0
    %v5156 = vadd.f32 %v5112, %v5155
    %5157 = vmatmul.bf16.gmra.mxu0 %v2817
    %v5158 = vpop.f32.mrf.mxu0
    %v5159 = vadd.f32 %v5115, %v5158
    %v5160 = vpop.f32.mrf.mxu0
    %v5161 = vadd.f32 %v5117, %v5160
    %5162 = vmatmul.bf16.gmra.mxu0 %v2825
    %v5163 = vpop.f32.mrf.mxu0
    %v5164 = vadd.f32 %v5120, %v5163
    %v5165 = vpop.f32.mrf.mxu0
    %v5166 = vadd.f32 %v5122, %v5165
    %5167 = vmatmul.bf16.gmra.mxu0 %v2833
    %v5168 = vpop.f32.mrf.mxu0
    %v5169 = vadd.f32 %v5125, %v5168
    %v5170 = vpop.f32.mrf.mxu0
    %v5171 = vadd.f32 %v5127, %v5170
    %5172 = vmatmul.bf16.gmra.mxu0 %v2841
    %v5173 = vpop.f32.mrf.mxu0
    %v5174 = vadd.f32 %v5130, %v5173
    %v5175 = vpop.f32.mrf.mxu0
    %v5176 = vadd.f32 %v5132, %v5175
    %5177 = vdwg.mxu0
    %5178 = vmatpush.bf16.msra.mxu0 %v4342
    %5179 = vmatpush.bf16.msra.mxu0 %v4338
    %5180 = vmatpush.bf16.msra.mxu0 %v4334
    %5181 = vmatpush.bf16.msra.mxu0 %v4330
    %5182 = vmatpush.bf16.msra.mxu0 %v4326
    %5183 = vmatpush.bf16.msra.mxu0 %v4322
    %5184 = vmatpush.bf16.msra.mxu0 %v4318
    %5185 = vmatpush.bf16.msra.mxu0 %v4314
    %5186 = vmatmul.bf16.gmra.mxu0 %v2794
    %v5187 = vpop.f32.mrf.mxu0
    %v5188 = vadd.f32 %v5144, %v5187
    %v5189 = vpop.f32.mrf.mxu0
    %v5190 = vadd.f32 %v5146, %v5189
    %5191 = vmatmul.bf16.gmra.mxu0 %v2802
    %v5192 = vpop.f32.mrf.mxu0
    %v5193 = vadd.f32 %v5149, %v5192
    %v5194 = vpop.f32.mrf.mxu0
    %v5195 = vadd.f32 %v5151, %v5194
    %5196 = vmatmul.bf16.gmra.mxu0 %v2810
    %v5197 = vpop.f32.mrf.mxu0
    %v5198 = vadd.f32 %v5154, %v5197
    %v5199 = vpop.f32.mrf.mxu0
    %v5200 = vadd.f32 %v5156, %v5199
    %5201 = vmatmul.bf16.gmra.mxu0 %v2818
    %v5202 = vpop.f32.mrf.mxu0
    %v5203 = vadd.f32 %v5159, %v5202
    %v5204 = vpop.f32.mrf.mxu0
    %v5205 = vadd.f32 %v5161, %v5204
    %5206 = vmatmul.bf16.gmra.mxu0 %v2826
    %v5207 = vpop.f32.mrf.mxu0
    %v5208 = vadd.f32 %v5164, %v5207
    %v5209 = vpop.f32.mrf.mxu0
    %v5210 = vadd.f32 %v5166, %v5209
    %5211 = vmatmul.bf16.gmra.mxu0 %v2834
    %v5212 = vpop.f32.mrf.mxu0
    %v5213 = vadd.f32 %v5169, %v5212
    %v5214 = vpop.f32.mrf.mxu0
    %v5215 = vadd.f32 %v5171, %v5214
    %5216 = vmatmul.bf16.gmra.mxu0 %v2842
    %v5217 = vpop.f32.mrf.mxu0
    %v5218 = vadd.f32 %v5174, %v5217
    %v5219 = vpop.f32.mrf.mxu0
    %v5220 = vadd.f32 %v5176, %v5219
    %5221 = vdwg.mxu0
    %5222 = vmatpush.bf16.msra.mxu0 %v4374
    %5223 = vmatpush.bf16.msra.mxu0 %v4370
    %5224 = vmatpush.bf16.msra.mxu0 %v4366
    %5225 = vmatpush.bf16.msra.mxu0 %v4362
    %5226 = vmatpush.bf16.msra.mxu0 %v4358
    %5227 = vmatpush.bf16.msra.mxu0 %v4354
    %5228 = vmatpush.bf16.msra.mxu0 %v4350
    %5229 = vmatpush.bf16.msra.mxu0 %v4346
    %5230 = vmatmul.bf16.gmra.mxu0 %v2795
    %v5231 = vpop.f32.mrf.mxu0
    %v5232 = vadd.f32 %v5188, %v5231
    %v5233 = vpop.f32.mrf.mxu0
    %v5234 = vadd.f32 %v5190, %v5233
    %5235 = vmatmul.bf16.gmra.mxu0 %v2803
    %v5236 = vpop.f32.mrf.mxu0
    %v5237 = vadd.f32 %v5193, %v5236
    %v5238 = vpop.f32.mrf.mxu0
    %v5239 = vadd.f32 %v5195, %v5238
    %5240 = vmatmul.bf16.gmra.mxu0 %v2811
    %v5241 = vpop.f32.mrf.mxu0
    %v5242 = vadd.f32 %v5198, %v5241
    %v5243 = vpop.f32.mrf.mxu0
    %v5244 = vadd.f32 %v5200, %v5243
    %5245 = vmatmul.bf16.gmra.mxu0 %v2819
    %v5246 = vpop.f32.mrf.mxu0
    %v5247 = vadd.f32 %v5203, %v5246
    %v5248 = vpop.f32.mrf.mxu0
    %v5249 = vadd.f32 %v5205, %v5248
    %5250 = vmatmul.bf16.gmra.mxu0 %v2827
    %v5251 = vpop.f32.mrf.mxu0
    %v5252 = vadd.f32 %v5208, %v5251
    %v5253 = vpop.f32.mrf.mxu0
    %v5254 = vadd.f32 %v5210, %v5253
    %5255 = vmatmul.bf16.gmra.mxu0 %v2835
    %v5256 = vpop.f32.mrf.mxu0
    %v5257 = vadd.f32 %v5213, %v5256
    %v5258 = vpop.f32.mrf.mxu0
    %v5259 = vadd.f32 %v5215, %v5258
    %5260 = vmatmul.bf16.gmra.mxu0 %v2843
    %v5261 = vpop.f32.mrf.mxu0
    %v5262 = vadd.f32 %v5218, %v5261
    %v5263 = vpop.f32.mrf.mxu0
    %v5264 = vadd.f32 %v5220, %v5263
    %5265 = vdwg.mxu0
    %5266 = vmatpush.bf16.msra.mxu0 %v4406
    %5267 = vmatpush.bf16.msra.mxu0 %v4402
    %5268 = vmatpush.bf16.msra.mxu0 %v4398
    %5269 = vmatpush.bf16.msra.mxu0 %v4394
    %5270 = vmatpush.bf16.msra.mxu0 %v4390
    %5271 = vmatpush.bf16.msra.mxu0 %v4386
    %5272 = vmatpush.bf16.msra.mxu0 %v4382
    %5273 = vmatpush.bf16.msra.mxu0 %v4378
    %5274 = vmatmul.bf16.gmra.mxu0 %v2796
    %v5275 = vpop.f32.mrf.mxu0
    %v5276 = vadd.f32 %v5232, %v5275
    %v5277 = vpop.f32.mrf.mxu0
    %v5278 = vadd.f32 %v5234, %v5277
    %5279 = vmatmul.bf16.gmra.mxu0 %v2804
    %v5280 = vpop.f32.mrf.mxu0
    %v5281 = vadd.f32 %v5237, %v5280
    %v5282 = vpop.f32.mrf.mxu0
    %v5283 = vadd.f32 %v5239, %v5282
    %5284 = vmatmul.bf16.gmra.mxu0 %v2812
    %v5285 = vpop.f32.mrf.mxu0
    %v5286 = vadd.f32 %v5242, %v5285
    %v5287 = vpop.f32.mrf.mxu0
    %v5288 = vadd.f32 %v5244, %v5287
    %5289 = vmatmul.bf16.gmra.mxu0 %v2820
    %v5290 = vpop.f32.mrf.mxu0
    %v5291 = vadd.f32 %v5247, %v5290
    %v5292 = vpop.f32.mrf.mxu0
    %v5293 = vadd.f32 %v5249, %v5292
    %5294 = vmatmul.bf16.gmra.mxu0 %v2828
    %v5295 = vpop.f32.mrf.mxu0
    %v5296 = vadd.f32 %v5252, %v5295
    %v5297 = vpop.f32.mrf.mxu0
    %v5298 = vadd.f32 %v5254, %v5297
    %5299 = vmatmul.bf16.gmra.mxu0 %v2836
    %v5300 = vpop.f32.mrf.mxu0
    %v5301 = vadd.f32 %v5257, %v5300
    %v5302 = vpop.f32.mrf.mxu0
    %v5303 = vadd.f32 %v5259, %v5302
    %5304 = vmatmul.bf16.gmra.mxu0 %v2844
    %v5305 = vpop.f32.mrf.mxu0
    %v5306 = vadd.f32 %v5262, %v5305
    %v5307 = vpop.f32.mrf.mxu0
    %v5308 = vadd.f32 %v5264, %v5307
    %5309 = vdwg.mxu0
    %5310 = vmatpush.bf16.msra.mxu0 %v4438
    %5311 = vmatpush.bf16.msra.mxu0 %v4434
    %5312 = vmatpush.bf16.msra.mxu0 %v4430
    %5313 = vmatpush.bf16.msra.mxu0 %v4426
    %5314 = vmatpush.bf16.msra.mxu0 %v4422
    %5315 = vmatpush.bf16.msra.mxu0 %v4418
    %5316 = vmatpush.bf16.msra.mxu0 %v4414
    %5317 = vmatpush.bf16.msra.mxu0 %v4410
    %5318 = vmatmul.bf16.gmra.mxu0 %v2797
    %v5319 = vpop.f32.mrf.mxu0
    %v5320 = vadd.f32 %v5276, %v5319
    %v5321 = vpop.f32.mrf.mxu0
    %v5322 = vadd.f32 %v5278, %v5321
    %5323 = vmatmul.bf16.gmra.mxu0 %v2805
    %v5324 = vpop.f32.mrf.mxu0
    %v5325 = vadd.f32 %v5281, %v5324
    %v5326 = vpop.f32.mrf.mxu0
    %v5327 = vadd.f32 %v5283, %v5326
    %5328 = vmatmul.bf16.gmra.mxu0 %v2813
    %v5329 = vpop.f32.mrf.mxu0
    %v5330 = vadd.f32 %v5286, %v5329
    %v5331 = vpop.f32.mrf.mxu0
    %v5332 = vadd.f32 %v5288, %v5331
    %5333 = vmatmul.bf16.gmra.mxu0 %v2821
    %v5334 = vpop.f32.mrf.mxu0
    %v5335 = vadd.f32 %v5291, %v5334
    %v5336 = vpop.f32.mrf.mxu0
    %v5337 = vadd.f32 %v5293, %v5336
    %5338 = vmatmul.bf16.gmra.mxu0 %v2829
    %v5339 = vpop.f32.mrf.mxu0
    %v5340 = vadd.f32 %v5296, %v5339
    %v5341 = vpop.f32.mrf.mxu0
    %v5342 = vadd.f32 %v5298, %v5341
    %5343 = vmatmul.bf16.gmra.mxu0 %v2837
    %v5344 = vpop.f32.mrf.mxu0
    %v5345 = vadd.f32 %v5301, %v5344
    %v5346 = vpop.f32.mrf.mxu0
    %v5347 = vadd.f32 %v5303, %v5346
    %5348 = vmatmul.bf16.gmra.mxu0 %v2845
    %v5349 = vpop.f32.mrf.mxu0
    %v5350 = vadd.f32 %v5306, %v5349
    %v5351 = vpop.f32.mrf.mxu0
    %v5352 = vadd.f32 %v5308, %v5351
    %5353 = vdwg.mxu0
    %5354 = vmatpush.bf16.msra.mxu0 %v4087
    %5355 = vmatpush.bf16.msra.mxu0 %v4083
    %5356 = vmatpush.bf16.msra.mxu0 %v4079
    %5357 = vmatpush.bf16.msra.mxu0 %v4075
    %5358 = vmatpush.bf16.msra.mxu0 %v4071
    %5359 = vmatpush.bf16.msra.mxu0 %v4067
    %5360 = vmatpush.bf16.msra.mxu0 %v4063
    %5361 = vmatpush.bf16.msra.mxu0 %v4059
    %5362 = vmatmul.bf16.gmra.mxu0 %v2786
    %v5363 = vpop.f32.mrf.mxu0
    %v5364 = vadd.f32 %v2779, %v5363
    %v5365 = vpop.f32.mrf.mxu0
    %v5366 = vadd.f32 %v2779, %v5365
    %5367 = vmatmul.bf16.gmra.mxu0 %v2794
    %v5368 = vpop.f32.mrf.mxu0
    %v5369 = vadd.f32 %v2779, %v5368
    %v5370 = vpop.f32.mrf.mxu0
    %v5371 = vadd.f32 %v2779, %v5370
    %5372 = vmatmul.bf16.gmra.mxu0 %v2802
    %v5373 = vpop.f32.mrf.mxu0
    %v5374 = vadd.f32 %v2779, %v5373
    %v5375 = vpop.f32.mrf.mxu0
    %v5376 = vadd.f32 %v2779, %v5375
    %5377 = vmatmul.bf16.gmra.mxu0 %v2810
    %v5378 = vpop.f32.mrf.mxu0
    %v5379 = vadd.f32 %v2779, %v5378
    %v5380 = vpop.f32.mrf.mxu0
    %v5381 = vadd.f32 %v2779, %v5380
    %5382 = vmatmul.bf16.gmra.mxu0 %v2818
    %v5383 = vpop.f32.mrf.mxu0
    %v5384 = vadd.f32 %v2779, %v5383
    %v5385 = vpop.f32.mrf.mxu0
    %v5386 = vadd.f32 %v2779, %v5385
    %5387 = vmatmul.bf16.gmra.mxu0 %v2826
    %v5388 = vpop.f32.mrf.mxu0
    %v5389 = vadd.f32 %v2779, %v5388
    %v5390 = vpop.f32.mrf.mxu0
    %v5391 = vadd.f32 %v2779, %v5390
    %5392 = vmatmul.bf16.gmra.mxu0 %v2834
    %v5393 = vpop.f32.mrf.mxu0
    %v5394 = vadd.f32 %v2779, %v5393
    %v5395 = vpop.f32.mrf.mxu0
    %v5396 = vadd.f32 %v2779, %v5395
    %5397 = vdwg.mxu0
    %5398 = vmatpush.bf16.msra.mxu0 %v4119
    %5399 = vmatpush.bf16.msra.mxu0 %v4115
    %5400 = vmatpush.bf16.msra.mxu0 %v4111
    %5401 = vmatpush.bf16.msra.mxu0 %v4107
    %5402 = vmatpush.bf16.msra.mxu0 %v4103
    %5403 = vmatpush.bf16.msra.mxu0 %v4099
    %5404 = vmatpush.bf16.msra.mxu0 %v4095
    %5405 = vmatpush.bf16.msra.mxu0 %v4091
    %5406 = vmatmul.bf16.gmra.mxu0 %v2787
    %v5407 = vpop.f32.mrf.mxu0
    %v5408 = vadd.f32 %v5364, %v5407
    %v5409 = vpop.f32.mrf.mxu0
    %v5410 = vadd.f32 %v5366, %v5409
    %5411 = vmatmul.bf16.gmra.mxu0 %v2795
    %v5412 = vpop.f32.mrf.mxu0
    %v5413 = vadd.f32 %v5369, %v5412
    %v5414 = vpop.f32.mrf.mxu0
    %v5415 = vadd.f32 %v5371, %v5414
    %5416 = vmatmul.bf16.gmra.mxu0 %v2803
    %v5417 = vpop.f32.mrf.mxu0
    %v5418 = vadd.f32 %v5374, %v5417
    %v5419 = vpop.f32.mrf.mxu0
    %v5420 = vadd.f32 %v5376, %v5419
    %5421 = vmatmul.bf16.gmra.mxu0 %v2811
    %v5422 = vpop.f32.mrf.mxu0
    %v5423 = vadd.f32 %v5379, %v5422
    %v5424 = vpop.f32.mrf.mxu0
    %v5425 = vadd.f32 %v5381, %v5424
    %5426 = vmatmul.bf16.gmra.mxu0 %v2819
    %v5427 = vpop.f32.mrf.mxu0
    %v5428 = vadd.f32 %v5384, %v5427
    %v5429 = vpop.f32.mrf.mxu0
    %v5430 = vadd.f32 %v5386, %v5429
    %5431 = vmatmul.bf16.gmra.mxu0 %v2827
    %v5432 = vpop.f32.mrf.mxu0
    %v5433 = vadd.f32 %v5389, %v5432
    %v5434 = vpop.f32.mrf.mxu0
    %v5435 = vadd.f32 %v5391, %v5434
    %5436 = vmatmul.bf16.gmra.mxu0 %v2835
    %v5437 = vpop.f32.mrf.mxu0
    %v5438 = vadd.f32 %v5394, %v5437
    %v5439 = vpop.f32.mrf.mxu0
    %v5440 = vadd.f32 %v5396, %v5439
    %5441 = vdwg.mxu0
    %5442 = vmatpush.bf16.msra.mxu0 %v4151
    %5443 = vmatpush.bf16.msra.mxu0 %v4147
    %5444 = vmatpush.bf16.msra.mxu0 %v4143
    %5445 = vmatpush.bf16.msra.mxu0 %v4139
    %5446 = vmatpush.bf16.msra.mxu0 %v4135
    %5447 = vmatpush.bf16.msra.mxu0 %v4131
    %5448 = vmatpush.bf16.msra.mxu0 %v4127
    %5449 = vmatpush.bf16.msra.mxu0 %v4123
    %5450 = vmatmul.bf16.gmra.mxu0 %v2788
    %v5451 = vpop.f32.mrf.mxu0
    %v5452 = vadd.f32 %v5408, %v5451
    %v5453 = vpop.f32.mrf.mxu0
    %v5454 = vadd.f32 %v5410, %v5453
    %5455 = vmatmul.bf16.gmra.mxu0 %v2796
    %v5456 = vpop.f32.mrf.mxu0
    %v5457 = vadd.f32 %v5413, %v5456
    %v5458 = vpop.f32.mrf.mxu0
    %v5459 = vadd.f32 %v5415, %v5458
    %5460 = vmatmul.bf16.gmra.mxu0 %v2804
    %v5461 = vpop.f32.mrf.mxu0
    %v5462 = vadd.f32 %v5418, %v5461
    %v5463 = vpop.f32.mrf.mxu0
    %v5464 = vadd.f32 %v5420, %v5463
    %5465 = vmatmul.bf16.gmra.mxu0 %v2812
    %v5466 = vpop.f32.mrf.mxu0
    %v5467 = vadd.f32 %v5423, %v5466
    %v5468 = vpop.f32.mrf.mxu0
    %v5469 = vadd.f32 %v5425, %v5468
    %5470 = vmatmul.bf16.gmra.mxu0 %v2820
    %v5471 = vpop.f32.mrf.mxu0
    %v5472 = vadd.f32 %v5428, %v5471
    %v5473 = vpop.f32.mrf.mxu0
    %v5474 = vadd.f32 %v5430, %v5473
    %5475 = vmatmul.bf16.gmra.mxu0 %v2828
    %v5476 = vpop.f32.mrf.mxu0
    %v5477 = vadd.f32 %v5433, %v5476
    %v5478 = vpop.f32.mrf.mxu0
    %v5479 = vadd.f32 %v5435, %v5478
    %5480 = vmatmul.bf16.gmra.mxu0 %v2836
    %v5481 = vpop.f32.mrf.mxu0
    %v5482 = vadd.f32 %v5438, %v5481
    %v5483 = vpop.f32.mrf.mxu0
    %v5484 = vadd.f32 %v5440, %v5483
    %5485 = vdwg.mxu0
    %5486 = vmatpush.bf16.msra.mxu0 %v4183
    %5487 = vmatpush.bf16.msra.mxu0 %v4179
    %5488 = vmatpush.bf16.msra.mxu0 %v4175
    %5489 = vmatpush.bf16.msra.mxu0 %v4171
    %5490 = vmatpush.bf16.msra.mxu0 %v4167
    %5491 = vmatpush.bf16.msra.mxu0 %v4163
    %5492 = vmatpush.bf16.msra.mxu0 %v4159
    %5493 = vmatpush.bf16.msra.mxu0 %v4155
    %5494 = vmatmul.bf16.gmra.mxu0 %v2789
    %v5495 = vpop.f32.mrf.mxu0
    %v5496 = vadd.f32 %v5452, %v5495
    %v5497 = vpop.f32.mrf.mxu0
    %v5498 = vadd.f32 %v5454, %v5497
    %5499 = vmatmul.bf16.gmra.mxu0 %v2797
    %v5500 = vpop.f32.mrf.mxu0
    %v5501 = vadd.f32 %v5457, %v5500
    %v5502 = vpop.f32.mrf.mxu0
    %v5503 = vadd.f32 %v5459, %v5502
    %5504 = vmatmul.bf16.gmra.mxu0 %v2805
    %v5505 = vpop.f32.mrf.mxu0
    %v5506 = vadd.f32 %v5462, %v5505
    %v5507 = vpop.f32.mrf.mxu0
    %v5508 = vadd.f32 %v5464, %v5507
    %5509 = vmatmul.bf16.gmra.mxu0 %v2813
    %v5510 = vpop.f32.mrf.mxu0
    %v5511 = vadd.f32 %v5467, %v5510
    %v5512 = vpop.f32.mrf.mxu0
    %v5513 = vadd.f32 %v5469, %v5512
    %5514 = vmatmul.bf16.gmra.mxu0 %v2821
    %v5515 = vpop.f32.mrf.mxu0
    %v5516 = vadd.f32 %v5472, %v5515
    %v5517 = vpop.f32.mrf.mxu0
    %v5518 = vadd.f32 %v5474, %v5517
    %5519 = vmatmul.bf16.gmra.mxu0 %v2829
    %v5520 = vpop.f32.mrf.mxu0
    %v5521 = vadd.f32 %v5477, %v5520
    %v5522 = vpop.f32.mrf.mxu0
    %v5523 = vadd.f32 %v5479, %v5522
    %5524 = vmatmul.bf16.gmra.mxu0 %v2837
    %v5525 = vpop.f32.mrf.mxu0
    %v5526 = vadd.f32 %v5482, %v5525
    %v5527 = vpop.f32.mrf.mxu0
    %v5528 = vadd.f32 %v5484, %v5527
    %5529 = vdwg.mxu0
    %5530 = vmatpush.bf16.msra.mxu0 %v4215
    %5531 = vmatpush.bf16.msra.mxu0 %v4211
    %5532 = vmatpush.bf16.msra.mxu0 %v4207
    %5533 = vmatpush.bf16.msra.mxu0 %v4203
    %5534 = vmatpush.bf16.msra.mxu0 %v4199
    %5535 = vmatpush.bf16.msra.mxu0 %v4195
    %5536 = vmatpush.bf16.msra.mxu0 %v4191
    %5537 = vmatpush.bf16.msra.mxu0 %v4187
    %5538 = vmatmul.bf16.gmra.mxu0 %v2790
    %v5539 = vpop.f32.mrf.mxu0
    %v5540 = vadd.f32 %v5496, %v5539
    %v5541 = vpop.f32.mrf.mxu0
    %v5542 = vadd.f32 %v5498, %v5541
    %5543 = vmatmul.bf16.gmra.mxu0 %v2798
    %v5544 = vpop.f32.mrf.mxu0
    %v5545 = vadd.f32 %v5501, %v5544
    %v5546 = vpop.f32.mrf.mxu0
    %v5547 = vadd.f32 %v5503, %v5546
    %5548 = vmatmul.bf16.gmra.mxu0 %v2806
    %v5549 = vpop.f32.mrf.mxu0
    %v5550 = vadd.f32 %v5506, %v5549
    %v5551 = vpop.f32.mrf.mxu0
    %v5552 = vadd.f32 %v5508, %v5551
    %5553 = vmatmul.bf16.gmra.mxu0 %v2814
    %v5554 = vpop.f32.mrf.mxu0
    %v5555 = vadd.f32 %v5511, %v5554
    %v5556 = vpop.f32.mrf.mxu0
    %v5557 = vadd.f32 %v5513, %v5556
    %5558 = vmatmul.bf16.gmra.mxu0 %v2822
    %v5559 = vpop.f32.mrf.mxu0
    %v5560 = vadd.f32 %v5516, %v5559
    %v5561 = vpop.f32.mrf.mxu0
    %v5562 = vadd.f32 %v5518, %v5561
    %5563 = vmatmul.bf16.gmra.mxu0 %v2830
    %v5564 = vpop.f32.mrf.mxu0
    %v5565 = vadd.f32 %v5521, %v5564
    %v5566 = vpop.f32.mrf.mxu0
    %v5567 = vadd.f32 %v5523, %v5566
    %5568 = vmatmul.bf16.gmra.mxu0 %v2838
    %v5569 = vpop.f32.mrf.mxu0
    %v5570 = vadd.f32 %v5526, %v5569
    %v5571 = vpop.f32.mrf.mxu0
    %v5572 = vadd.f32 %v5528, %v5571
    %5573 = vdwg.mxu0
    %5574 = vmatpush.bf16.msra.mxu0 %v4247
    %5575 = vmatpush.bf16.msra.mxu0 %v4243
    %5576 = vmatpush.bf16.msra.mxu0 %v4239
    %5577 = vmatpush.bf16.msra.mxu0 %v4235
    %5578 = vmatpush.bf16.msra.mxu0 %v4231
    %5579 = vmatpush.bf16.msra.mxu0 %v4227
    %5580 = vmatpush.bf16.msra.mxu0 %v4223
    %5581 = vmatpush.bf16.msra.mxu0 %v4219
    %5582 = vmatmul.bf16.gmra.mxu0 %v2791
    %v5583 = vpop.f32.mrf.mxu0
    %v5584 = vadd.f32 %v5540, %v5583
    %v5585 = vpop.f32.mrf.mxu0
    %v5586 = vadd.f32 %v5542, %v5585
    %5587 = vmatmul.bf16.gmra.mxu0 %v2799
    %v5588 = vpop.f32.mrf.mxu0
    %v5589 = vadd.f32 %v5545, %v5588
    %v5590 = vpop.f32.mrf.mxu0
    %v5591 = vadd.f32 %v5547, %v5590
    %5592 = vmatmul.bf16.gmra.mxu0 %v2807
    %v5593 = vpop.f32.mrf.mxu0
    %v5594 = vadd.f32 %v5550, %v5593
    %v5595 = vpop.f32.mrf.mxu0
    %v5596 = vadd.f32 %v5552, %v5595
    %5597 = vmatmul.bf16.gmra.mxu0 %v2815
    %v5598 = vpop.f32.mrf.mxu0
    %v5599 = vadd.f32 %v5555, %v5598
    %v5600 = vpop.f32.mrf.mxu0
    %v5601 = vadd.f32 %v5557, %v5600
    %5602 = vmatmul.bf16.gmra.mxu0 %v2823
    %v5603 = vpop.f32.mrf.mxu0
    %v5604 = vadd.f32 %v5560, %v5603
    %v5605 = vpop.f32.mrf.mxu0
    %v5606 = vadd.f32 %v5562, %v5605
    %5607 = vmatmul.bf16.gmra.mxu0 %v2831
    %v5608 = vpop.f32.mrf.mxu0
    %v5609 = vadd.f32 %v5565, %v5608
    %v5610 = vpop.f32.mrf.mxu0
    %v5611 = vadd.f32 %v5567, %v5610
    %5612 = vmatmul.bf16.gmra.mxu0 %v2839
    %v5613 = vpop.f32.mrf.mxu0
    %v5614 = vadd.f32 %v5570, %v5613
    %v5615 = vpop.f32.mrf.mxu0
    %v5616 = vadd.f32 %v5572, %v5615
    %5617 = vdwg.mxu0
    %5618 = vmatpush.bf16.msra.mxu0 %v4279
    %5619 = vmatpush.bf16.msra.mxu0 %v4275
    %5620 = vmatpush.bf16.msra.mxu0 %v4271
    %5621 = vmatpush.bf16.msra.mxu0 %v4267
    %5622 = vmatpush.bf16.msra.mxu0 %v4263
    %5623 = vmatpush.bf16.msra.mxu0 %v4259
    %5624 = vmatpush.bf16.msra.mxu0 %v4255
    %5625 = vmatpush.bf16.msra.mxu0 %v4251
    %5626 = vmatmul.bf16.gmra.mxu0 %v2792
    %v5627 = vpop.f32.mrf.mxu0
    %v5628 = vadd.f32 %v5584, %v5627
    %v5629 = vpop.f32.mrf.mxu0
    %v5630 = vadd.f32 %v5586, %v5629
    %5631 = vmatmul.bf16.gmra.mxu0 %v2800
    %v5632 = vpop.f32.mrf.mxu0
    %v5633 = vadd.f32 %v5589, %v5632
    %v5634 = vpop.f32.mrf.mxu0
    %v5635 = vadd.f32 %v5591, %v5634
    %5636 = vmatmul.bf16.gmra.mxu0 %v2808
    %v5637 = vpop.f32.mrf.mxu0
    %v5638 = vadd.f32 %v5594, %v5637
    %v5639 = vpop.f32.mrf.mxu0
    %v5640 = vadd.f32 %v5596, %v5639
    %5641 = vmatmul.bf16.gmra.mxu0 %v2816
    %v5642 = vpop.f32.mrf.mxu0
    %v5643 = vadd.f32 %v5599, %v5642
    %v5644 = vpop.f32.mrf.mxu0
    %v5645 = vadd.f32 %v5601, %v5644
    %5646 = vmatmul.bf16.gmra.mxu0 %v2824
    %v5647 = vpop.f32.mrf.mxu0
    %v5648 = vadd.f32 %v5604, %v5647
    %v5649 = vpop.f32.mrf.mxu0
    %v5650 = vadd.f32 %v5606, %v5649
    %5651 = vmatmul.bf16.gmra.mxu0 %v2832
    %v5652 = vpop.f32.mrf.mxu0
    %v5653 = vadd.f32 %v5609, %v5652
    %v5654 = vpop.f32.mrf.mxu0
    %v5655 = vadd.f32 %v5611, %v5654
    %5656 = vmatmul.bf16.gmra.mxu0 %v2840
    %v5657 = vpop.f32.mrf.mxu0
    %v5658 = vadd.f32 %v5614, %v5657
    %v5659 = vpop.f32.mrf.mxu0
    %v5660 = vadd.f32 %v5616, %v5659
    %5661 = vdwg.mxu0
    %5662 = vmatpush.bf16.msra.mxu0 %v4311
    %5663 = vmatpush.bf16.msra.mxu0 %v4307
    %5664 = vmatpush.bf16.msra.mxu0 %v4303
    %5665 = vmatpush.bf16.msra.mxu0 %v4299
    %5666 = vmatpush.bf16.msra.mxu0 %v4295
    %5667 = vmatpush.bf16.msra.mxu0 %v4291
    %5668 = vmatpush.bf16.msra.mxu0 %v4287
    %5669 = vmatpush.bf16.msra.mxu0 %v4283
    %5670 = vmatmul.bf16.gmra.mxu0 %v2793
    %v5671 = vpop.f32.mrf.mxu0
    %v5672 = vadd.f32 %v5628, %v5671
    %v5673 = vpop.f32.mrf.mxu0
    %v5674 = vadd.f32 %v5630, %v5673
    %5675 = vmatmul.bf16.gmra.mxu0 %v2801
    %v5676 = vpop.f32.mrf.mxu0
    %v5677 = vadd.f32 %v5633, %v5676
    %v5678 = vpop.f32.mrf.mxu0
    %v5679 = vadd.f32 %v5635, %v5678
    %5680 = vmatmul.bf16.gmra.mxu0 %v2809
    %v5681 = vpop.f32.mrf.mxu0
    %v5682 = vadd.f32 %v5638, %v5681
    %v5683 = vpop.f32.mrf.mxu0
    %v5684 = vadd.f32 %v5640, %v5683
    %5685 = vmatmul.bf16.gmra.mxu0 %v2817
    %v5686 = vpop.f32.mrf.mxu0
    %v5687 = vadd.f32 %v5643, %v5686
    %v5688 = vpop.f32.mrf.mxu0
    %v5689 = vadd.f32 %v5645, %v5688
    %5690 = vmatmul.bf16.gmra.mxu0 %v2825
    %v5691 = vpop.f32.mrf.mxu0
    %v5692 = vadd.f32 %v5648, %v5691
    %v5693 = vpop.f32.mrf.mxu0
    %v5694 = vadd.f32 %v5650, %v5693
    %5695 = vmatmul.bf16.gmra.mxu0 %v2833
    %v5696 = vpop.f32.mrf.mxu0
    %v5697 = vadd.f32 %v5653, %v5696
    %v5698 = vpop.f32.mrf.mxu0
    %v5699 = vadd.f32 %v5655, %v5698
    %5700 = vmatmul.bf16.gmra.mxu0 %v2841
    %v5701 = vpop.f32.mrf.mxu0
    %v5702 = vadd.f32 %v5658, %v5701
    %v5703 = vpop.f32.mrf.mxu0
    %v5704 = vadd.f32 %v5660, %v5703
    %5705 = vdwg.mxu0
    %5706 = vmatpush.bf16.msra.mxu0 %v4343
    %5707 = vmatpush.bf16.msra.mxu0 %v4339
    %5708 = vmatpush.bf16.msra.mxu0 %v4335
    %5709 = vmatpush.bf16.msra.mxu0 %v4331
    %5710 = vmatpush.bf16.msra.mxu0 %v4327
    %5711 = vmatpush.bf16.msra.mxu0 %v4323
    %5712 = vmatpush.bf16.msra.mxu0 %v4319
    %5713 = vmatpush.bf16.msra.mxu0 %v4315
    %5714 = vmatmul.bf16.gmra.mxu0 %v2794
    %v5715 = vpop.f32.mrf.mxu0
    %v5716 = vadd.f32 %v5672, %v5715
    %v5717 = vpop.f32.mrf.mxu0
    %v5718 = vadd.f32 %v5674, %v5717
    %5719 = vmatmul.bf16.gmra.mxu0 %v2802
    %v5720 = vpop.f32.mrf.mxu0
    %v5721 = vadd.f32 %v5677, %v5720
    %v5722 = vpop.f32.mrf.mxu0
    %v5723 = vadd.f32 %v5679, %v5722
    %5724 = vmatmul.bf16.gmra.mxu0 %v2810
    %v5725 = vpop.f32.mrf.mxu0
    %v5726 = vadd.f32 %v5682, %v5725
    %v5727 = vpop.f32.mrf.mxu0
    %v5728 = vadd.f32 %v5684, %v5727
    %5729 = vmatmul.bf16.gmra.mxu0 %v2818
    %v5730 = vpop.f32.mrf.mxu0
    %v5731 = vadd.f32 %v5687, %v5730
    %v5732 = vpop.f32.mrf.mxu0
    %v5733 = vadd.f32 %v5689, %v5732
    %5734 = vmatmul.bf16.gmra.mxu0 %v2826
    %v5735 = vpop.f32.mrf.mxu0
    %v5736 = vadd.f32 %v5692, %v5735
    %v5737 = vpop.f32.mrf.mxu0
    %v5738 = vadd.f32 %v5694, %v5737
    %5739 = vmatmul.bf16.gmra.mxu0 %v2834
    %v5740 = vpop.f32.mrf.mxu0
    %v5741 = vadd.f32 %v5697, %v5740
    %v5742 = vpop.f32.mrf.mxu0
    %v5743 = vadd.f32 %v5699, %v5742
    %5744 = vmatmul.bf16.gmra.mxu0 %v2842
    %v5745 = vpop.f32.mrf.mxu0
    %v5746 = vadd.f32 %v5702, %v5745
    %v5747 = vpop.f32.mrf.mxu0
    %v5748 = vadd.f32 %v5704, %v5747
    %5749 = vdwg.mxu0
    %5750 = vmatpush.bf16.msra.mxu0 %v4375
    %5751 = vmatpush.bf16.msra.mxu0 %v4371
    %5752 = vmatpush.bf16.msra.mxu0 %v4367
    %5753 = vmatpush.bf16.msra.mxu0 %v4363
    %5754 = vmatpush.bf16.msra.mxu0 %v4359
    %5755 = vmatpush.bf16.msra.mxu0 %v4355
    %5756 = vmatpush.bf16.msra.mxu0 %v4351
    %5757 = vmatpush.bf16.msra.mxu0 %v4347
    %5758 = vmatmul.bf16.gmra.mxu0 %v2795
    %v5759 = vpop.f32.mrf.mxu0
    %v5760 = vadd.f32 %v5716, %v5759
    %v5761 = vpop.f32.mrf.mxu0
    %v5762 = vadd.f32 %v5718, %v5761
    %5763 = vmatmul.bf16.gmra.mxu0 %v2803
    %v5764 = vpop.f32.mrf.mxu0
    %v5765 = vadd.f32 %v5721, %v5764
    %v5766 = vpop.f32.mrf.mxu0
    %v5767 = vadd.f32 %v5723, %v5766
    %5768 = vmatmul.bf16.gmra.mxu0 %v2811
    %v5769 = vpop.f32.mrf.mxu0
    %v5770 = vadd.f32 %v5726, %v5769
    %v5771 = vpop.f32.mrf.mxu0
    %v5772 = vadd.f32 %v5728, %v5771
    %5773 = vmatmul.bf16.gmra.mxu0 %v2819
    %v5774 = vpop.f32.mrf.mxu0
    %v5775 = vadd.f32 %v5731, %v5774
    %v5776 = vpop.f32.mrf.mxu0
    %v5777 = vadd.f32 %v5733, %v5776
    %5778 = vmatmul.bf16.gmra.mxu0 %v2827
    %v5779 = vpop.f32.mrf.mxu0
    %v5780 = vadd.f32 %v5736, %v5779
    %v5781 = vpop.f32.mrf.mxu0
    %v5782 = vadd.f32 %v5738, %v5781
    %5783 = vmatmul.bf16.gmra.mxu0 %v2835
    %v5784 = vpop.f32.mrf.mxu0
    %v5785 = vadd.f32 %v5741, %v5784
    %v5786 = vpop.f32.mrf.mxu0
    %v5787 = vadd.f32 %v5743, %v5786
    %5788 = vmatmul.bf16.gmra.mxu0 %v2843
    %v5789 = vpop.f32.mrf.mxu0
    %v5790 = vadd.f32 %v5746, %v5789
    %v5791 = vpop.f32.mrf.mxu0
    %v5792 = vadd.f32 %v5748, %v5791
    %5793 = vdwg.mxu0
    %5794 = vmatpush.bf16.msra.mxu0 %v4407
    %5795 = vmatpush.bf16.msra.mxu0 %v4403
    %5796 = vmatpush.bf16.msra.mxu0 %v4399
    %5797 = vmatpush.bf16.msra.mxu0 %v4395
    %5798 = vmatpush.bf16.msra.mxu0 %v4391
    %5799 = vmatpush.bf16.msra.mxu0 %v4387
    %5800 = vmatpush.bf16.msra.mxu0 %v4383
    %5801 = vmatpush.bf16.msra.mxu0 %v4379
    %5802 = vmatmul.bf16.gmra.mxu0 %v2796
    %v5803 = vpop.f32.mrf.mxu0
    %v5804 = vadd.f32 %v5760, %v5803
    %v5805 = vpop.f32.mrf.mxu0
    %v5806 = vadd.f32 %v5762, %v5805
    %5807 = vmatmul.bf16.gmra.mxu0 %v2804
    %v5808 = vpop.f32.mrf.mxu0
    %v5809 = vadd.f32 %v5765, %v5808
    %v5810 = vpop.f32.mrf.mxu0
    %v5811 = vadd.f32 %v5767, %v5810
    %5812 = vmatmul.bf16.gmra.mxu0 %v2812
    %v5813 = vpop.f32.mrf.mxu0
    %v5814 = vadd.f32 %v5770, %v5813
    %v5815 = vpop.f32.mrf.mxu0
    %v5816 = vadd.f32 %v5772, %v5815
    %5817 = vmatmul.bf16.gmra.mxu0 %v2820
    %v5818 = vpop.f32.mrf.mxu0
    %v5819 = vadd.f32 %v5775, %v5818
    %v5820 = vpop.f32.mrf.mxu0
    %v5821 = vadd.f32 %v5777, %v5820
    %5822 = vmatmul.bf16.gmra.mxu0 %v2828
    %v5823 = vpop.f32.mrf.mxu0
    %v5824 = vadd.f32 %v5780, %v5823
    %v5825 = vpop.f32.mrf.mxu0
    %v5826 = vadd.f32 %v5782, %v5825
    %5827 = vmatmul.bf16.gmra.mxu0 %v2836
    %v5828 = vpop.f32.mrf.mxu0
    %v5829 = vadd.f32 %v5785, %v5828
    %v5830 = vpop.f32.mrf.mxu0
    %v5831 = vadd.f32 %v5787, %v5830
    %5832 = vmatmul.bf16.gmra.mxu0 %v2844
    %v5833 = vpop.f32.mrf.mxu0
    %v5834 = vadd.f32 %v5790, %v5833
    %v5835 = vpop.f32.mrf.mxu0
    %v5836 = vadd.f32 %v5792, %v5835
    %5837 = vdwg.mxu0
    %5838 = vmatpush.bf16.msra.mxu0 %v4439
    %5839 = vmatpush.bf16.msra.mxu0 %v4435
    %5840 = vmatpush.bf16.msra.mxu0 %v4431
    %5841 = vmatpush.bf16.msra.mxu0 %v4427
    %5842 = vmatpush.bf16.msra.mxu0 %v4423
    %5843 = vmatpush.bf16.msra.mxu0 %v4419
    %5844 = vmatpush.bf16.msra.mxu0 %v4415
    %5845 = vmatpush.bf16.msra.mxu0 %v4411
    %5846 = vmatmul.bf16.gmra.mxu0 %v2797
    %v5847 = vpop.f32.mrf.mxu0
    %v5848 = vadd.f32 %v5804, %v5847
    %v5849 = vpop.f32.mrf.mxu0
    %v5850 = vadd.f32 %v5806, %v5849
    %5851 = vmatmul.bf16.gmra.mxu0 %v2805
    %v5852 = vpop.f32.mrf.mxu0
    %v5853 = vadd.f32 %v5809, %v5852
    %v5854 = vpop.f32.mrf.mxu0
    %v5855 = vadd.f32 %v5811, %v5854
    %5856 = vmatmul.bf16.gmra.mxu0 %v2813
    %v5857 = vpop.f32.mrf.mxu0
    %v5858 = vadd.f32 %v5814, %v5857
    %v5859 = vpop.f32.mrf.mxu0
    %v5860 = vadd.f32 %v5816, %v5859
    %5861 = vmatmul.bf16.gmra.mxu0 %v2821
    %v5862 = vpop.f32.mrf.mxu0
    %v5863 = vadd.f32 %v5819, %v5862
    %v5864 = vpop.f32.mrf.mxu0
    %v5865 = vadd.f32 %v5821, %v5864
    %5866 = vmatmul.bf16.gmra.mxu0 %v2829
    %v5867 = vpop.f32.mrf.mxu0
    %v5868 = vadd.f32 %v5824, %v5867
    %v5869 = vpop.f32.mrf.mxu0
    %v5870 = vadd.f32 %v5826, %v5869
    %5871 = vmatmul.bf16.gmra.mxu0 %v2837
    %v5872 = vpop.f32.mrf.mxu0
    %v5873 = vadd.f32 %v5829, %v5872
    %v5874 = vpop.f32.mrf.mxu0
    %v5875 = vadd.f32 %v5831, %v5874
    %5876 = vmatmul.bf16.gmra.mxu0 %v2845
    %v5877 = vpop.f32.mrf.mxu0
    %v5878 = vadd.f32 %v5834, %v5877
    %v5879 = vpop.f32.mrf.mxu0
    %v5880 = vadd.f32 %v5836, %v5879
    %5881 = vdwg.mxu0
    %5882 = vmatpush.bf16.msra.mxu0 %v4088
    %5883 = vmatpush.bf16.msra.mxu0 %v4084
    %5884 = vmatpush.bf16.msra.mxu0 %v4080
    %5885 = vmatpush.bf16.msra.mxu0 %v4076
    %5886 = vmatpush.bf16.msra.mxu0 %v4072
    %5887 = vmatpush.bf16.msra.mxu0 %v4068
    %5888 = vmatpush.bf16.msra.mxu0 %v4064
    %5889 = vmatpush.bf16.msra.mxu0 %v4060
    %5890 = vmatmul.bf16.gmra.mxu0 %v2786
    %v5891 = vpop.f32.mrf.mxu0
    %v5892 = vadd.f32 %v2780, %v5891
    %v5893 = vpop.f32.mrf.mxu0
    %v5894 = vadd.f32 %v2780, %v5893
    %5895 = vmatmul.bf16.gmra.mxu0 %v2794
    %v5896 = vpop.f32.mrf.mxu0
    %v5897 = vadd.f32 %v2780, %v5896
    %v5898 = vpop.f32.mrf.mxu0
    %v5899 = vadd.f32 %v2780, %v5898
    %5900 = vmatmul.bf16.gmra.mxu0 %v2802
    %v5901 = vpop.f32.mrf.mxu0
    %v5902 = vadd.f32 %v2780, %v5901
    %v5903 = vpop.f32.mrf.mxu0
    %v5904 = vadd.f32 %v2780, %v5903
    %5905 = vmatmul.bf16.gmra.mxu0 %v2810
    %v5906 = vpop.f32.mrf.mxu0
    %v5907 = vadd.f32 %v2780, %v5906
    %v5908 = vpop.f32.mrf.mxu0
    %v5909 = vadd.f32 %v2780, %v5908
    %5910 = vmatmul.bf16.gmra.mxu0 %v2818
    %v5911 = vpop.f32.mrf.mxu0
    %v5912 = vadd.f32 %v2780, %v5911
    %v5913 = vpop.f32.mrf.mxu0
    %v5914 = vadd.f32 %v2780, %v5913
    %5915 = vmatmul.bf16.gmra.mxu0 %v2826
    %v5916 = vpop.f32.mrf.mxu0
    %v5917 = vadd.f32 %v2780, %v5916
    %v5918 = vpop.f32.mrf.mxu0
    %v5919 = vadd.f32 %v2780, %v5918
    %5920 = vmatmul.bf16.gmra.mxu0 %v2834
    %v5921 = vpop.f32.mrf.mxu0
    %v5922 = vadd.f32 %v2780, %v5921
    %v5923 = vpop.f32.mrf.mxu0
    %v5924 = vadd.f32 %v2780, %v5923
    %5925 = vdwg.mxu0
    %5926 = vmatpush.bf16.msra.mxu0 %v4120
    %5927 = vmatpush.bf16.msra.mxu0 %v4116
    %5928 = vmatpush.bf16.msra.mxu0 %v4112
    %5929 = vmatpush.bf16.msra.mxu0 %v4108
    %5930 = vmatpush.bf16.msra.mxu0 %v4104
    %5931 = vmatpush.bf16.msra.mxu0 %v4100
    %5932 = vmatpush.bf16.msra.mxu0 %v4096
    %5933 = vmatpush.bf16.msra.mxu0 %v4092
    %5934 = vmatmul.bf16.gmra.mxu0 %v2787
    %v5935 = vpop.f32.mrf.mxu0
    %v5936 = vadd.f32 %v5892, %v5935
    %v5937 = vpop.f32.mrf.mxu0
    %v5938 = vadd.f32 %v5894, %v5937
    %5939 = vmatmul.bf16.gmra.mxu0 %v2795
    %v5940 = vpop.f32.mrf.mxu0
    %v5941 = vadd.f32 %v5897, %v5940
    %v5942 = vpop.f32.mrf.mxu0
    %v5943 = vadd.f32 %v5899, %v5942
    %5944 = vmatmul.bf16.gmra.mxu0 %v2803
    %v5945 = vpop.f32.mrf.mxu0
    %v5946 = vadd.f32 %v5902, %v5945
    %v5947 = vpop.f32.mrf.mxu0
    %v5948 = vadd.f32 %v5904, %v5947
    %5949 = vmatmul.bf16.gmra.mxu0 %v2811
    %v5950 = vpop.f32.mrf.mxu0
    %v5951 = vadd.f32 %v5907, %v5950
    %v5952 = vpop.f32.mrf.mxu0
    %v5953 = vadd.f32 %v5909, %v5952
    %5954 = vmatmul.bf16.gmra.mxu0 %v2819
    %v5955 = vpop.f32.mrf.mxu0
    %v5956 = vadd.f32 %v5912, %v5955
    %v5957 = vpop.f32.mrf.mxu0
    %v5958 = vadd.f32 %v5914, %v5957
    %5959 = vmatmul.bf16.gmra.mxu0 %v2827
    %v5960 = vpop.f32.mrf.mxu0
    %v5961 = vadd.f32 %v5917, %v5960
    %v5962 = vpop.f32.mrf.mxu0
    %v5963 = vadd.f32 %v5919, %v5962
    %5964 = vmatmul.bf16.gmra.mxu0 %v2835
    %v5965 = vpop.f32.mrf.mxu0
    %v5966 = vadd.f32 %v5922, %v5965
    %v5967 = vpop.f32.mrf.mxu0
    %v5968 = vadd.f32 %v5924, %v5967
    %5969 = vdwg.mxu0
    %5970 = vmatpush.bf16.msra.mxu0 %v4152
    %5971 = vmatpush.bf16.msra.mxu0 %v4148
    %5972 = vmatpush.bf16.msra.mxu0 %v4144
    %5973 = vmatpush.bf16.msra.mxu0 %v4140
    %5974 = vmatpush.bf16.msra.mxu0 %v4136
    %5975 = vmatpush.bf16.msra.mxu0 %v4132
    %5976 = vmatpush.bf16.msra.mxu0 %v4128
    %5977 = vmatpush.bf16.msra.mxu0 %v4124
    %5978 = vmatmul.bf16.gmra.mxu0 %v2788
    %v5979 = vpop.f32.mrf.mxu0
    %v5980 = vadd.f32 %v5936, %v5979
    %v5981 = vpop.f32.mrf.mxu0
    %v5982 = vadd.f32 %v5938, %v5981
    %5983 = vmatmul.bf16.gmra.mxu0 %v2796
    %v5984 = vpop.f32.mrf.mxu0
    %v5985 = vadd.f32 %v5941, %v5984
    %v5986 = vpop.f32.mrf.mxu0
    %v5987 = vadd.f32 %v5943, %v5986
    %5988 = vmatmul.bf16.gmra.mxu0 %v2804
    %v5989 = vpop.f32.mrf.mxu0
    %v5990 = vadd.f32 %v5946, %v5989
    %v5991 = vpop.f32.mrf.mxu0
    %v5992 = vadd.f32 %v5948, %v5991
    %5993 = vmatmul.bf16.gmra.mxu0 %v2812
    %v5994 = vpop.f32.mrf.mxu0
    %v5995 = vadd.f32 %v5951, %v5994
    %v5996 = vpop.f32.mrf.mxu0
    %v5997 = vadd.f32 %v5953, %v5996
    %5998 = vmatmul.bf16.gmra.mxu0 %v2820
    %v5999 = vpop.f32.mrf.mxu0
    %v6000 = vadd.f32 %v5956, %v5999
    %v6001 = vpop.f32.mrf.mxu0
    %v6002 = vadd.f32 %v5958, %v6001
    %6003 = vmatmul.bf16.gmra.mxu0 %v2828
    %v6004 = vpop.f32.mrf.mxu0
    %v6005 = vadd.f32 %v5961, %v6004
    %v6006 = vpop.f32.mrf.mxu0
    %v6007 = vadd.f32 %v5963, %v6006
    %6008 = vmatmul.bf16.gmra.mxu0 %v2836
    %v6009 = vpop.f32.mrf.mxu0
    %v6010 = vadd.f32 %v5966, %v6009
    %v6011 = vpop.f32.mrf.mxu0
    %v6012 = vadd.f32 %v5968, %v6011
    %6013 = vdwg.mxu0
    %6014 = vmatpush.bf16.msra.mxu0 %v4184
    %6015 = vmatpush.bf16.msra.mxu0 %v4180
    %6016 = vmatpush.bf16.msra.mxu0 %v4176
    %6017 = vmatpush.bf16.msra.mxu0 %v4172
    %6018 = vmatpush.bf16.msra.mxu0 %v4168
    %6019 = vmatpush.bf16.msra.mxu0 %v4164
    %6020 = vmatpush.bf16.msra.mxu0 %v4160
    %6021 = vmatpush.bf16.msra.mxu0 %v4156
    %6022 = vmatmul.bf16.gmra.mxu0 %v2789
    %v6023 = vpop.f32.mrf.mxu0
    %v6024 = vadd.f32 %v5980, %v6023
    %v6025 = vpop.f32.mrf.mxu0
    %v6026 = vadd.f32 %v5982, %v6025
    %6027 = vmatmul.bf16.gmra.mxu0 %v2797
    %v6028 = vpop.f32.mrf.mxu0
    %v6029 = vadd.f32 %v5985, %v6028
    %v6030 = vpop.f32.mrf.mxu0
    %v6031 = vadd.f32 %v5987, %v6030
    %6032 = vmatmul.bf16.gmra.mxu0 %v2805
    %v6033 = vpop.f32.mrf.mxu0
    %v6034 = vadd.f32 %v5990, %v6033
    %v6035 = vpop.f32.mrf.mxu0
    %v6036 = vadd.f32 %v5992, %v6035
    %6037 = vmatmul.bf16.gmra.mxu0 %v2813
    %v6038 = vpop.f32.mrf.mxu0
    %v6039 = vadd.f32 %v5995, %v6038
    %v6040 = vpop.f32.mrf.mxu0
    %v6041 = vadd.f32 %v5997, %v6040
    %6042 = vmatmul.bf16.gmra.mxu0 %v2821
    %v6043 = vpop.f32.mrf.mxu0
    %v6044 = vadd.f32 %v6000, %v6043
    %v6045 = vpop.f32.mrf.mxu0
    %v6046 = vadd.f32 %v6002, %v6045
    %6047 = vmatmul.bf16.gmra.mxu0 %v2829
    %v6048 = vpop.f32.mrf.mxu0
    %v6049 = vadd.f32 %v6005, %v6048
    %v6050 = vpop.f32.mrf.mxu0
    %v6051 = vadd.f32 %v6007, %v6050
    %6052 = vmatmul.bf16.gmra.mxu0 %v2837
    %v6053 = vpop.f32.mrf.mxu0
    %v6054 = vadd.f32 %v6010, %v6053
    %v6055 = vpop.f32.mrf.mxu0
    %v6056 = vadd.f32 %v6012, %v6055
    %6057 = vdwg.mxu0
    %6058 = vmatpush.bf16.msra.mxu0 %v4216
    %6059 = vmatpush.bf16.msra.mxu0 %v4212
    %6060 = vmatpush.bf16.msra.mxu0 %v4208
    %6061 = vmatpush.bf16.msra.mxu0 %v4204
    %6062 = vmatpush.bf16.msra.mxu0 %v4200
    %6063 = vmatpush.bf16.msra.mxu0 %v4196
    %6064 = vmatpush.bf16.msra.mxu0 %v4192
    %6065 = vmatpush.bf16.msra.mxu0 %v4188
    %6066 = vmatmul.bf16.gmra.mxu0 %v2790
    %v6067 = vpop.f32.mrf.mxu0
    %v6068 = vadd.f32 %v6024, %v6067
    %v6069 = vpop.f32.mrf.mxu0
    %v6070 = vadd.f32 %v6026, %v6069
    %6071 = vmatmul.bf16.gmra.mxu0 %v2798
    %v6072 = vpop.f32.mrf.mxu0
    %v6073 = vadd.f32 %v6029, %v6072
    %v6074 = vpop.f32.mrf.mxu0
    %v6075 = vadd.f32 %v6031, %v6074
    %6076 = vmatmul.bf16.gmra.mxu0 %v2806
    %v6077 = vpop.f32.mrf.mxu0
    %v6078 = vadd.f32 %v6034, %v6077
    %v6079 = vpop.f32.mrf.mxu0
    %v6080 = vadd.f32 %v6036, %v6079
    %6081 = vmatmul.bf16.gmra.mxu0 %v2814
    %v6082 = vpop.f32.mrf.mxu0
    %v6083 = vadd.f32 %v6039, %v6082
    %v6084 = vpop.f32.mrf.mxu0
    %v6085 = vadd.f32 %v6041, %v6084
    %6086 = vmatmul.bf16.gmra.mxu0 %v2822
    %v6087 = vpop.f32.mrf.mxu0
    %v6088 = vadd.f32 %v6044, %v6087
    %v6089 = vpop.f32.mrf.mxu0
    %v6090 = vadd.f32 %v6046, %v6089
    %6091 = vmatmul.bf16.gmra.mxu0 %v2830
    %v6092 = vpop.f32.mrf.mxu0
    %v6093 = vadd.f32 %v6049, %v6092
    %v6094 = vpop.f32.mrf.mxu0
    %v6095 = vadd.f32 %v6051, %v6094
    %6096 = vmatmul.bf16.gmra.mxu0 %v2838
    %v6097 = vpop.f32.mrf.mxu0
    %v6098 = vadd.f32 %v6054, %v6097
    %v6099 = vpop.f32.mrf.mxu0
    %v6100 = vadd.f32 %v6056, %v6099
    %6101 = vdwg.mxu0
    %6102 = vmatpush.bf16.msra.mxu0 %v4248
    %6103 = vmatpush.bf16.msra.mxu0 %v4244
    %6104 = vmatpush.bf16.msra.mxu0 %v4240
    %6105 = vmatpush.bf16.msra.mxu0 %v4236
    %6106 = vmatpush.bf16.msra.mxu0 %v4232
    %6107 = vmatpush.bf16.msra.mxu0 %v4228
    %6108 = vmatpush.bf16.msra.mxu0 %v4224
    %6109 = vmatpush.bf16.msra.mxu0 %v4220
    %6110 = vmatmul.bf16.gmra.mxu0 %v2791
    %v6111 = vpop.f32.mrf.mxu0
    %v6112 = vadd.f32 %v6068, %v6111
    %v6113 = vpop.f32.mrf.mxu0
    %v6114 = vadd.f32 %v6070, %v6113
    %6115 = vmatmul.bf16.gmra.mxu0 %v2799
    %v6116 = vpop.f32.mrf.mxu0
    %v6117 = vadd.f32 %v6073, %v6116
    %v6118 = vpop.f32.mrf.mxu0
    %v6119 = vadd.f32 %v6075, %v6118
    %6120 = vmatmul.bf16.gmra.mxu0 %v2807
    %v6121 = vpop.f32.mrf.mxu0
    %v6122 = vadd.f32 %v6078, %v6121
    %v6123 = vpop.f32.mrf.mxu0
    %v6124 = vadd.f32 %v6080, %v6123
    %6125 = vmatmul.bf16.gmra.mxu0 %v2815
    %v6126 = vpop.f32.mrf.mxu0
    %v6127 = vadd.f32 %v6083, %v6126
    %v6128 = vpop.f32.mrf.mxu0
    %v6129 = vadd.f32 %v6085, %v6128
    %6130 = vmatmul.bf16.gmra.mxu0 %v2823
    %v6131 = vpop.f32.mrf.mxu0
    %v6132 = vadd.f32 %v6088, %v6131
    %v6133 = vpop.f32.mrf.mxu0
    %v6134 = vadd.f32 %v6090, %v6133
    %6135 = vmatmul.bf16.gmra.mxu0 %v2831
    %v6136 = vpop.f32.mrf.mxu0
    %v6137 = vadd.f32 %v6093, %v6136
    %v6138 = vpop.f32.mrf.mxu0
    %v6139 = vadd.f32 %v6095, %v6138
    %6140 = vmatmul.bf16.gmra.mxu0 %v2839
    %v6141 = vpop.f32.mrf.mxu0
    %v6142 = vadd.f32 %v6098, %v6141
    %v6143 = vpop.f32.mrf.mxu0
    %v6144 = vadd.f32 %v6100, %v6143
    %6145 = vdwg.mxu0
    %6146 = vmatpush.bf16.msra.mxu0 %v4280
    %6147 = vmatpush.bf16.msra.mxu0 %v4276
    %6148 = vmatpush.bf16.msra.mxu0 %v4272
    %6149 = vmatpush.bf16.msra.mxu0 %v4268
    %6150 = vmatpush.bf16.msra.mxu0 %v4264
    %6151 = vmatpush.bf16.msra.mxu0 %v4260
    %6152 = vmatpush.bf16.msra.mxu0 %v4256
    %6153 = vmatpush.bf16.msra.mxu0 %v4252
    %6154 = vmatmul.bf16.gmra.mxu0 %v2792
    %v6155 = vpop.f32.mrf.mxu0
    %v6156 = vadd.f32 %v6112, %v6155
    %v6157 = vpop.f32.mrf.mxu0
    %v6158 = vadd.f32 %v6114, %v6157
    %6159 = vmatmul.bf16.gmra.mxu0 %v2800
    %v6160 = vpop.f32.mrf.mxu0
    %v6161 = vadd.f32 %v6117, %v6160
    %v6162 = vpop.f32.mrf.mxu0
    %v6163 = vadd.f32 %v6119, %v6162
    %6164 = vmatmul.bf16.gmra.mxu0 %v2808
    %v6165 = vpop.f32.mrf.mxu0
    %v6166 = vadd.f32 %v6122, %v6165
    %v6167 = vpop.f32.mrf.mxu0
    %v6168 = vadd.f32 %v6124, %v6167
    %6169 = vmatmul.bf16.gmra.mxu0 %v2816
    %v6170 = vpop.f32.mrf.mxu0
    %v6171 = vadd.f32 %v6127, %v6170
    %v6172 = vpop.f32.mrf.mxu0
    %v6173 = vadd.f32 %v6129, %v6172
    %6174 = vmatmul.bf16.gmra.mxu0 %v2824
    %v6175 = vpop.f32.mrf.mxu0
    %v6176 = vadd.f32 %v6132, %v6175
    %v6177 = vpop.f32.mrf.mxu0
    %v6178 = vadd.f32 %v6134, %v6177
    %6179 = vmatmul.bf16.gmra.mxu0 %v2832
    %v6180 = vpop.f32.mrf.mxu0
    %v6181 = vadd.f32 %v6137, %v6180
    %v6182 = vpop.f32.mrf.mxu0
    %v6183 = vadd.f32 %v6139, %v6182
    %6184 = vmatmul.bf16.gmra.mxu0 %v2840
    %v6185 = vpop.f32.mrf.mxu0
    %v6186 = vadd.f32 %v6142, %v6185
    %v6187 = vpop.f32.mrf.mxu0
    %v6188 = vadd.f32 %v6144, %v6187
    %6189 = vdwg.mxu0
    %6190 = vmatpush.bf16.msra.mxu0 %v4312
    %6191 = vmatpush.bf16.msra.mxu0 %v4308
    %6192 = vmatpush.bf16.msra.mxu0 %v4304
    %6193 = vmatpush.bf16.msra.mxu0 %v4300
    %6194 = vmatpush.bf16.msra.mxu0 %v4296
    %6195 = vmatpush.bf16.msra.mxu0 %v4292
    %6196 = vmatpush.bf16.msra.mxu0 %v4288
    %6197 = vmatpush.bf16.msra.mxu0 %v4284
    %6198 = vmatmul.bf16.gmra.mxu0 %v2793
    %v6199 = vpop.f32.mrf.mxu0
    %v6200 = vadd.f32 %v6156, %v6199
    %v6201 = vpop.f32.mrf.mxu0
    %v6202 = vadd.f32 %v6158, %v6201
    %6203 = vmatmul.bf16.gmra.mxu0 %v2801
    %v6204 = vpop.f32.mrf.mxu0
    %v6205 = vadd.f32 %v6161, %v6204
    %v6206 = vpop.f32.mrf.mxu0
    %v6207 = vadd.f32 %v6163, %v6206
    %6208 = vmatmul.bf16.gmra.mxu0 %v2809
    %v6209 = vpop.f32.mrf.mxu0
    %v6210 = vadd.f32 %v6166, %v6209
    %v6211 = vpop.f32.mrf.mxu0
    %v6212 = vadd.f32 %v6168, %v6211
    %6213 = vmatmul.bf16.gmra.mxu0 %v2817
    %v6214 = vpop.f32.mrf.mxu0
    %v6215 = vadd.f32 %v6171, %v6214
    %v6216 = vpop.f32.mrf.mxu0
    %v6217 = vadd.f32 %v6173, %v6216
    %6218 = vmatmul.bf16.gmra.mxu0 %v2825
    %v6219 = vpop.f32.mrf.mxu0
    %v6220 = vadd.f32 %v6176, %v6219
    %v6221 = vpop.f32.mrf.mxu0
    %v6222 = vadd.f32 %v6178, %v6221
    %6223 = vmatmul.bf16.gmra.mxu0 %v2833
    %v6224 = vpop.f32.mrf.mxu0
    %v6225 = vadd.f32 %v6181, %v6224
    %v6226 = vpop.f32.mrf.mxu0
    %v6227 = vadd.f32 %v6183, %v6226
    %6228 = vmatmul.bf16.gmra.mxu0 %v2841
    %v6229 = vpop.f32.mrf.mxu0
    %v6230 = vadd.f32 %v6186, %v6229
    %v6231 = vpop.f32.mrf.mxu0
    %v6232 = vadd.f32 %v6188, %v6231
    %6233 = vdwg.mxu0
    %6234 = vmatpush.bf16.msra.mxu0 %v4344
    %6235 = vmatpush.bf16.msra.mxu0 %v4340
    %6236 = vmatpush.bf16.msra.mxu0 %v4336
    %6237 = vmatpush.bf16.msra.mxu0 %v4332
    %6238 = vmatpush.bf16.msra.mxu0 %v4328
    %6239 = vmatpush.bf16.msra.mxu0 %v4324
    %6240 = vmatpush.bf16.msra.mxu0 %v4320
    %6241 = vmatpush.bf16.msra.mxu0 %v4316
    %6242 = vmatmul.bf16.gmra.mxu0 %v2794
    %v6243 = vpop.f32.mrf.mxu0
    %v6244 = vadd.f32 %v6200, %v6243
    %v6245 = vpop.f32.mrf.mxu0
    %v6246 = vadd.f32 %v6202, %v6245
    %6247 = vmatmul.bf16.gmra.mxu0 %v2802
    %v6248 = vpop.f32.mrf.mxu0
    %v6249 = vadd.f32 %v6205, %v6248
    %v6250 = vpop.f32.mrf.mxu0
    %v6251 = vadd.f32 %v6207, %v6250
    %6252 = vmatmul.bf16.gmra.mxu0 %v2810
    %v6253 = vpop.f32.mrf.mxu0
    %v6254 = vadd.f32 %v6210, %v6253
    %v6255 = vpop.f32.mrf.mxu0
    %v6256 = vadd.f32 %v6212, %v6255
    %6257 = vmatmul.bf16.gmra.mxu0 %v2818
    %v6258 = vpop.f32.mrf.mxu0
    %v6259 = vadd.f32 %v6215, %v6258
    %v6260 = vpop.f32.mrf.mxu0
    %v6261 = vadd.f32 %v6217, %v6260
    %6262 = vmatmul.bf16.gmra.mxu0 %v2826
    %v6263 = vpop.f32.mrf.mxu0
    %v6264 = vadd.f32 %v6220, %v6263
    %v6265 = vpop.f32.mrf.mxu0
    %v6266 = vadd.f32 %v6222, %v6265
    %6267 = vmatmul.bf16.gmra.mxu0 %v2834
    %v6268 = vpop.f32.mrf.mxu0
    %v6269 = vadd.f32 %v6225, %v6268
    %v6270 = vpop.f32.mrf.mxu0
    %v6271 = vadd.f32 %v6227, %v6270
    %6272 = vmatmul.bf16.gmra.mxu0 %v2842
    %v6273 = vpop.f32.mrf.mxu0
    %v6274 = vadd.f32 %v6230, %v6273
    %v6275 = vpop.f32.mrf.mxu0
    %v6276 = vadd.f32 %v6232, %v6275
    %6277 = vdwg.mxu0
    %6278 = vmatpush.bf16.msra.mxu0 %v4376
    %6279 = vmatpush.bf16.msra.mxu0 %v4372
    %6280 = vmatpush.bf16.msra.mxu0 %v4368
    %6281 = vmatpush.bf16.msra.mxu0 %v4364
    %6282 = vmatpush.bf16.msra.mxu0 %v4360
    %6283 = vmatpush.bf16.msra.mxu0 %v4356
    %6284 = vmatpush.bf16.msra.mxu0 %v4352
    %6285 = vmatpush.bf16.msra.mxu0 %v4348
    %6286 = vmatmul.bf16.gmra.mxu0 %v2795
    %v6287 = vpop.f32.mrf.mxu0
    %v6288 = vadd.f32 %v6244, %v6287
    %v6289 = vpop.f32.mrf.mxu0
    %v6290 = vadd.f32 %v6246, %v6289
    %6291 = vmatmul.bf16.gmra.mxu0 %v2803
    %v6292 = vpop.f32.mrf.mxu0
    %v6293 = vadd.f32 %v6249, %v6292
    %v6294 = vpop.f32.mrf.mxu0
    %v6295 = vadd.f32 %v6251, %v6294
    %6296 = vmatmul.bf16.gmra.mxu0 %v2811
    %v6297 = vpop.f32.mrf.mxu0
    %v6298 = vadd.f32 %v6254, %v6297
    %v6299 = vpop.f32.mrf.mxu0
    %v6300 = vadd.f32 %v6256, %v6299
    %6301 = vmatmul.bf16.gmra.mxu0 %v2819
    %v6302 = vpop.f32.mrf.mxu0
    %v6303 = vadd.f32 %v6259, %v6302
    %v6304 = vpop.f32.mrf.mxu0
    %v6305 = vadd.f32 %v6261, %v6304
    %6306 = vmatmul.bf16.gmra.mxu0 %v2827
    %v6307 = vpop.f32.mrf.mxu0
    %v6308 = vadd.f32 %v6264, %v6307
    %v6309 = vpop.f32.mrf.mxu0
    %v6310 = vadd.f32 %v6266, %v6309
    %6311 = vmatmul.bf16.gmra.mxu0 %v2835
    %v6312 = vpop.f32.mrf.mxu0
    %v6313 = vadd.f32 %v6269, %v6312
    %v6314 = vpop.f32.mrf.mxu0
    %v6315 = vadd.f32 %v6271, %v6314
    %6316 = vmatmul.bf16.gmra.mxu0 %v2843
    %v6317 = vpop.f32.mrf.mxu0
    %v6318 = vadd.f32 %v6274, %v6317
    %v6319 = vpop.f32.mrf.mxu0
    %v6320 = vadd.f32 %v6276, %v6319
    %6321 = vdwg.mxu0
    %6322 = vmatpush.bf16.msra.mxu0 %v4408
    %6323 = vmatpush.bf16.msra.mxu0 %v4404
    %6324 = vmatpush.bf16.msra.mxu0 %v4400
    %6325 = vmatpush.bf16.msra.mxu0 %v4396
    %6326 = vmatpush.bf16.msra.mxu0 %v4392
    %6327 = vmatpush.bf16.msra.mxu0 %v4388
    %6328 = vmatpush.bf16.msra.mxu0 %v4384
    %6329 = vmatpush.bf16.msra.mxu0 %v4380
    %6330 = vmatmul.bf16.gmra.mxu0 %v2796
    %v6331 = vpop.f32.mrf.mxu0
    %v6332 = vadd.f32 %v6288, %v6331
    %v6333 = vpop.f32.mrf.mxu0
    %v6334 = vadd.f32 %v6290, %v6333
    %6335 = vmatmul.bf16.gmra.mxu0 %v2804
    %v6336 = vpop.f32.mrf.mxu0
    %v6337 = vadd.f32 %v6293, %v6336
    %v6338 = vpop.f32.mrf.mxu0
    %v6339 = vadd.f32 %v6295, %v6338
    %6340 = vmatmul.bf16.gmra.mxu0 %v2812
    %v6341 = vpop.f32.mrf.mxu0
    %v6342 = vadd.f32 %v6298, %v6341
    %v6343 = vpop.f32.mrf.mxu0
    %v6344 = vadd.f32 %v6300, %v6343
    %6345 = vmatmul.bf16.gmra.mxu0 %v2820
    %v6346 = vpop.f32.mrf.mxu0
    %v6347 = vadd.f32 %v6303, %v6346
    %v6348 = vpop.f32.mrf.mxu0
    %v6349 = vadd.f32 %v6305, %v6348
    %6350 = vmatmul.bf16.gmra.mxu0 %v2828
    %v6351 = vpop.f32.mrf.mxu0
    %v6352 = vadd.f32 %v6308, %v6351
    %v6353 = vpop.f32.mrf.mxu0
    %v6354 = vadd.f32 %v6310, %v6353
    %6355 = vmatmul.bf16.gmra.mxu0 %v2836
    %v6356 = vpop.f32.mrf.mxu0
    %v6357 = vadd.f32 %v6313, %v6356
    %v6358 = vpop.f32.mrf.mxu0
    %v6359 = vadd.f32 %v6315, %v6358
    %6360 = vmatmul.bf16.gmra.mxu0 %v2844
    %v6361 = vpop.f32.mrf.mxu0
    %v6362 = vadd.f32 %v6318, %v6361
    %v6363 = vpop.f32.mrf.mxu0
    %v6364 = vadd.f32 %v6320, %v6363
    %6365 = vdwg.mxu0
    %6366 = vmatpush.bf16.msra.mxu0 %v4440
    %6367 = vmatpush.bf16.msra.mxu0 %v4436
    %6368 = vmatpush.bf16.msra.mxu0 %v4432
    %6369 = vmatpush.bf16.msra.mxu0 %v4428
    %6370 = vmatpush.bf16.msra.mxu0 %v4424
    %6371 = vmatpush.bf16.msra.mxu0 %v4420
    %6372 = vmatpush.bf16.msra.mxu0 %v4416
    %6373 = vmatpush.bf16.msra.mxu0 %v4412
    %6374 = vmatmul.bf16.gmra.mxu0 %v2797
    %v6375 = vpop.f32.mrf.mxu0
    %v6376 = vadd.f32 %v6332, %v6375
    %v6377 = vpop.f32.mrf.mxu0
    %v6378 = vadd.f32 %v6334, %v6377
    %6379 = vmatmul.bf16.gmra.mxu0 %v2805
    %v6380 = vpop.f32.mrf.mxu0
    %v6381 = vadd.f32 %v6337, %v6380
    %v6382 = vpop.f32.mrf.mxu0
    %v6383 = vadd.f32 %v6339, %v6382
    %6384 = vmatmul.bf16.gmra.mxu0 %v2813
    %v6385 = vpop.f32.mrf.mxu0
    %v6386 = vadd.f32 %v6342, %v6385
    %v6387 = vpop.f32.mrf.mxu0
    %v6388 = vadd.f32 %v6344, %v6387
    %6389 = vmatmul.bf16.gmra.mxu0 %v2821
    %v6390 = vpop.f32.mrf.mxu0
    %v6391 = vadd.f32 %v6347, %v6390
    %v6392 = vpop.f32.mrf.mxu0
    %v6393 = vadd.f32 %v6349, %v6392
    %6394 = vmatmul.bf16.gmra.mxu0 %v2829
    %v6395 = vpop.f32.mrf.mxu0
    %v6396 = vadd.f32 %v6352, %v6395
    %v6397 = vpop.f32.mrf.mxu0
    %v6398 = vadd.f32 %v6354, %v6397
    %6399 = vmatmul.bf16.gmra.mxu0 %v2837
    %v6400 = vpop.f32.mrf.mxu0
    %v6401 = vadd.f32 %v6357, %v6400
    %v6402 = vpop.f32.mrf.mxu0
    %v6403 = vadd.f32 %v6359, %v6402
    %6404 = vmatmul.bf16.gmra.mxu0 %v2845
    %v6405 = vpop.f32.mrf.mxu0
    %v6406 = vadd.f32 %v6362, %v6405
    %v6407 = vpop.f32.mrf.mxu0
    %v6408 = vadd.f32 %v6364, %v6407
    %6409 = vdwg.mxu0
    %6410 = vmatpush.bf16.msra.mxu0 %v4089
    %6411 = vmatpush.bf16.msra.mxu0 %v4085
    %6412 = vmatpush.bf16.msra.mxu0 %v4081
    %6413 = vmatpush.bf16.msra.mxu0 %v4077
    %6414 = vmatpush.bf16.msra.mxu0 %v4073
    %6415 = vmatpush.bf16.msra.mxu0 %v4069
    %6416 = vmatpush.bf16.msra.mxu0 %v4065
    %6417 = vmatpush.bf16.msra.mxu0 %v4061
    %6418 = vmatmul.bf16.gmra.mxu0 %v2786
    %v6419 = vpop.f32.mrf.mxu0
    %v6420 = vadd.f32 %v2781, %v6419
    %v6421 = vpop.f32.mrf.mxu0
    %v6422 = vadd.f32 %v2781, %v6421
    %6423 = vmatmul.bf16.gmra.mxu0 %v2794
    %v6424 = vpop.f32.mrf.mxu0
    %v6425 = vadd.f32 %v2781, %v6424
    %v6426 = vpop.f32.mrf.mxu0
    %v6427 = vadd.f32 %v2781, %v6426
    %6428 = vmatmul.bf16.gmra.mxu0 %v2802
    %v6429 = vpop.f32.mrf.mxu0
    %v6430 = vadd.f32 %v2781, %v6429
    %v6431 = vpop.f32.mrf.mxu0
    %v6432 = vadd.f32 %v2781, %v6431
    %6433 = vmatmul.bf16.gmra.mxu0 %v2810
    %v6434 = vpop.f32.mrf.mxu0
    %v6435 = vadd.f32 %v2781, %v6434
    %v6436 = vpop.f32.mrf.mxu0
    %v6437 = vadd.f32 %v2781, %v6436
    %6438 = vmatmul.bf16.gmra.mxu0 %v2818
    %v6439 = vpop.f32.mrf.mxu0
    %v6440 = vadd.f32 %v2781, %v6439
    %v6441 = vpop.f32.mrf.mxu0
    %v6442 = vadd.f32 %v2781, %v6441
    %6443 = vmatmul.bf16.gmra.mxu0 %v2826
    %v6444 = vpop.f32.mrf.mxu0
    %v6445 = vadd.f32 %v2781, %v6444
    %v6446 = vpop.f32.mrf.mxu0
    %v6447 = vadd.f32 %v2781, %v6446
    %6448 = vmatmul.bf16.gmra.mxu0 %v2834
    %v6449 = vpop.f32.mrf.mxu0
    %v6450 = vadd.f32 %v2781, %v6449
    %v6451 = vpop.f32.mrf.mxu0
    %v6452 = vadd.f32 %v2781, %v6451
    %6453 = vdwg.mxu0
    %6454 = vmatpush.bf16.msra.mxu0 %v4121
    %6455 = vmatpush.bf16.msra.mxu0 %v4117
    %6456 = vmatpush.bf16.msra.mxu0 %v4113
    %6457 = vmatpush.bf16.msra.mxu0 %v4109
    %6458 = vmatpush.bf16.msra.mxu0 %v4105
    %6459 = vmatpush.bf16.msra.mxu0 %v4101
    %6460 = vmatpush.bf16.msra.mxu0 %v4097
    %6461 = vmatpush.bf16.msra.mxu0 %v4093
    %6462 = vmatmul.bf16.gmra.mxu0 %v2787
    %v6463 = vpop.f32.mrf.mxu0
    %v6464 = vadd.f32 %v6420, %v6463
    %v6465 = vpop.f32.mrf.mxu0
    %v6466 = vadd.f32 %v6422, %v6465
    %6467 = vmatmul.bf16.gmra.mxu0 %v2795
    %v6468 = vpop.f32.mrf.mxu0
    %v6469 = vadd.f32 %v6425, %v6468
    %v6470 = vpop.f32.mrf.mxu0
    %v6471 = vadd.f32 %v6427, %v6470
    %6472 = vmatmul.bf16.gmra.mxu0 %v2803
    %v6473 = vpop.f32.mrf.mxu0
    %v6474 = vadd.f32 %v6430, %v6473
    %v6475 = vpop.f32.mrf.mxu0
    %v6476 = vadd.f32 %v6432, %v6475
    %6477 = vmatmul.bf16.gmra.mxu0 %v2811
    %v6478 = vpop.f32.mrf.mxu0
    %v6479 = vadd.f32 %v6435, %v6478
    %v6480 = vpop.f32.mrf.mxu0
    %v6481 = vadd.f32 %v6437, %v6480
    %6482 = vmatmul.bf16.gmra.mxu0 %v2819
    %v6483 = vpop.f32.mrf.mxu0
    %v6484 = vadd.f32 %v6440, %v6483
    %v6485 = vpop.f32.mrf.mxu0
    %v6486 = vadd.f32 %v6442, %v6485
    %6487 = vmatmul.bf16.gmra.mxu0 %v2827
    %v6488 = vpop.f32.mrf.mxu0
    %v6489 = vadd.f32 %v6445, %v6488
    %v6490 = vpop.f32.mrf.mxu0
    %v6491 = vadd.f32 %v6447, %v6490
    %6492 = vmatmul.bf16.gmra.mxu0 %v2835
    %v6493 = vpop.f32.mrf.mxu0
    %v6494 = vadd.f32 %v6450, %v6493
    %v6495 = vpop.f32.mrf.mxu0
    %v6496 = vadd.f32 %v6452, %v6495
    %6497 = vdwg.mxu0
    %6498 = vmatpush.bf16.msra.mxu0 %v4153
    %6499 = vmatpush.bf16.msra.mxu0 %v4149
    %6500 = vmatpush.bf16.msra.mxu0 %v4145
    %6501 = vmatpush.bf16.msra.mxu0 %v4141
    %6502 = vmatpush.bf16.msra.mxu0 %v4137
    %6503 = vmatpush.bf16.msra.mxu0 %v4133
    %6504 = vmatpush.bf16.msra.mxu0 %v4129
    %6505 = vmatpush.bf16.msra.mxu0 %v4125
    %6506 = vmatmul.bf16.gmra.mxu0 %v2788
    %v6507 = vpop.f32.mrf.mxu0
    %v6508 = vadd.f32 %v6464, %v6507
    %v6509 = vpop.f32.mrf.mxu0
    %v6510 = vadd.f32 %v6466, %v6509
    %6511 = vmatmul.bf16.gmra.mxu0 %v2796
    %v6512 = vpop.f32.mrf.mxu0
    %v6513 = vadd.f32 %v6469, %v6512
    %v6514 = vpop.f32.mrf.mxu0
    %v6515 = vadd.f32 %v6471, %v6514
    %6516 = vmatmul.bf16.gmra.mxu0 %v2804
    %v6517 = vpop.f32.mrf.mxu0
    %v6518 = vadd.f32 %v6474, %v6517
    %v6519 = vpop.f32.mrf.mxu0
    %v6520 = vadd.f32 %v6476, %v6519
    %6521 = vmatmul.bf16.gmra.mxu0 %v2812
    %v6522 = vpop.f32.mrf.mxu0
    %v6523 = vadd.f32 %v6479, %v6522
    %v6524 = vpop.f32.mrf.mxu0
    %v6525 = vadd.f32 %v6481, %v6524
    %6526 = vmatmul.bf16.gmra.mxu0 %v2820
    %v6527 = vpop.f32.mrf.mxu0
    %v6528 = vadd.f32 %v6484, %v6527
    %v6529 = vpop.f32.mrf.mxu0
    %v6530 = vadd.f32 %v6486, %v6529
    %6531 = vmatmul.bf16.gmra.mxu0 %v2828
    %v6532 = vpop.f32.mrf.mxu0
    %v6533 = vadd.f32 %v6489, %v6532
    %v6534 = vpop.f32.mrf.mxu0
    %v6535 = vadd.f32 %v6491, %v6534
    %6536 = vmatmul.bf16.gmra.mxu0 %v2836
    %v6537 = vpop.f32.mrf.mxu0
    %v6538 = vadd.f32 %v6494, %v6537
    %v6539 = vpop.f32.mrf.mxu0
    %v6540 = vadd.f32 %v6496, %v6539
    %6541 = vdwg.mxu0
    %6542 = vmatpush.bf16.msra.mxu0 %v4185
    %6543 = vmatpush.bf16.msra.mxu0 %v4181
    %6544 = vmatpush.bf16.msra.mxu0 %v4177
    %6545 = vmatpush.bf16.msra.mxu0 %v4173
    %6546 = vmatpush.bf16.msra.mxu0 %v4169
    %6547 = vmatpush.bf16.msra.mxu0 %v4165
    %6548 = vmatpush.bf16.msra.mxu0 %v4161
    %6549 = vmatpush.bf16.msra.mxu0 %v4157
    %6550 = vmatmul.bf16.gmra.mxu0 %v2789
    %v6551 = vpop.f32.mrf.mxu0
    %v6552 = vadd.f32 %v6508, %v6551
    %v6553 = vpop.f32.mrf.mxu0
    %v6554 = vadd.f32 %v6510, %v6553
    %6555 = vmatmul.bf16.gmra.mxu0 %v2797
    %v6556 = vpop.f32.mrf.mxu0
    %v6557 = vadd.f32 %v6513, %v6556
    %v6558 = vpop.f32.mrf.mxu0
    %v6559 = vadd.f32 %v6515, %v6558
    %6560 = vmatmul.bf16.gmra.mxu0 %v2805
    %v6561 = vpop.f32.mrf.mxu0
    %v6562 = vadd.f32 %v6518, %v6561
    %v6563 = vpop.f32.mrf.mxu0
    %v6564 = vadd.f32 %v6520, %v6563
    %6565 = vmatmul.bf16.gmra.mxu0 %v2813
    %v6566 = vpop.f32.mrf.mxu0
    %v6567 = vadd.f32 %v6523, %v6566
    %v6568 = vpop.f32.mrf.mxu0
    %v6569 = vadd.f32 %v6525, %v6568
    %6570 = vmatmul.bf16.gmra.mxu0 %v2821
    %v6571 = vpop.f32.mrf.mxu0
    %v6572 = vadd.f32 %v6528, %v6571
    %v6573 = vpop.f32.mrf.mxu0
    %v6574 = vadd.f32 %v6530, %v6573
    %6575 = vmatmul.bf16.gmra.mxu0 %v2829
    %v6576 = vpop.f32.mrf.mxu0
    %v6577 = vadd.f32 %v6533, %v6576
    %v6578 = vpop.f32.mrf.mxu0
    %v6579 = vadd.f32 %v6535, %v6578
    %6580 = vmatmul.bf16.gmra.mxu0 %v2837
    %v6581 = vpop.f32.mrf.mxu0
    %v6582 = vadd.f32 %v6538, %v6581
    %v6583 = vpop.f32.mrf.mxu0
    %v6584 = vadd.f32 %v6540, %v6583
    %6585 = vdwg.mxu0
    %6586 = vmatpush.bf16.msra.mxu0 %v4217
    %6587 = vmatpush.bf16.msra.mxu0 %v4213
    %6588 = vmatpush.bf16.msra.mxu0 %v4209
    %6589 = vmatpush.bf16.msra.mxu0 %v4205
    %6590 = vmatpush.bf16.msra.mxu0 %v4201
    %6591 = vmatpush.bf16.msra.mxu0 %v4197
    %6592 = vmatpush.bf16.msra.mxu0 %v4193
    %6593 = vmatpush.bf16.msra.mxu0 %v4189
    %6594 = vmatmul.bf16.gmra.mxu0 %v2790
    %v6595 = vpop.f32.mrf.mxu0
    %v6596 = vadd.f32 %v6552, %v6595
    %v6597 = vpop.f32.mrf.mxu0
    %v6598 = vadd.f32 %v6554, %v6597
    %6599 = vmatmul.bf16.gmra.mxu0 %v2798
    %v6600 = vpop.f32.mrf.mxu0
    %v6601 = vadd.f32 %v6557, %v6600
    %v6602 = vpop.f32.mrf.mxu0
    %v6603 = vadd.f32 %v6559, %v6602
    %6604 = vmatmul.bf16.gmra.mxu0 %v2806
    %v6605 = vpop.f32.mrf.mxu0
    %v6606 = vadd.f32 %v6562, %v6605
    %v6607 = vpop.f32.mrf.mxu0
    %v6608 = vadd.f32 %v6564, %v6607
    %6609 = vmatmul.bf16.gmra.mxu0 %v2814
    %v6610 = vpop.f32.mrf.mxu0
    %v6611 = vadd.f32 %v6567, %v6610
    %v6612 = vpop.f32.mrf.mxu0
    %v6613 = vadd.f32 %v6569, %v6612
    %6614 = vmatmul.bf16.gmra.mxu0 %v2822
    %v6615 = vpop.f32.mrf.mxu0
    %v6616 = vadd.f32 %v6572, %v6615
    %v6617 = vpop.f32.mrf.mxu0
    %v6618 = vadd.f32 %v6574, %v6617
    %6619 = vmatmul.bf16.gmra.mxu0 %v2830
    %v6620 = vpop.f32.mrf.mxu0
    %v6621 = vadd.f32 %v6577, %v6620
    %v6622 = vpop.f32.mrf.mxu0
    %v6623 = vadd.f32 %v6579, %v6622
    %6624 = vmatmul.bf16.gmra.mxu0 %v2838
    %v6625 = vpop.f32.mrf.mxu0
    %v6626 = vadd.f32 %v6582, %v6625
    %v6627 = vpop.f32.mrf.mxu0
    %v6628 = vadd.f32 %v6584, %v6627
    %6629 = vdwg.mxu0
    %6630 = vmatpush.bf16.msra.mxu0 %v4249
    %6631 = vmatpush.bf16.msra.mxu0 %v4245
    %6632 = vmatpush.bf16.msra.mxu0 %v4241
    %6633 = vmatpush.bf16.msra.mxu0 %v4237
    %6634 = vmatpush.bf16.msra.mxu0 %v4233
    %6635 = vmatpush.bf16.msra.mxu0 %v4229
    %6636 = vmatpush.bf16.msra.mxu0 %v4225
    %6637 = vmatpush.bf16.msra.mxu0 %v4221
    %6638 = vmatmul.bf16.gmra.mxu0 %v2791
    %v6639 = vpop.f32.mrf.mxu0
    %v6640 = vadd.f32 %v6596, %v6639
    %v6641 = vpop.f32.mrf.mxu0
    %v6642 = vadd.f32 %v6598, %v6641
    %6643 = vmatmul.bf16.gmra.mxu0 %v2799
    %v6644 = vpop.f32.mrf.mxu0
    %v6645 = vadd.f32 %v6601, %v6644
    %v6646 = vpop.f32.mrf.mxu0
    %v6647 = vadd.f32 %v6603, %v6646
    %6648 = vmatmul.bf16.gmra.mxu0 %v2807
    %v6649 = vpop.f32.mrf.mxu0
    %v6650 = vadd.f32 %v6606, %v6649
    %v6651 = vpop.f32.mrf.mxu0
    %v6652 = vadd.f32 %v6608, %v6651
    %6653 = vmatmul.bf16.gmra.mxu0 %v2815
    %v6654 = vpop.f32.mrf.mxu0
    %v6655 = vadd.f32 %v6611, %v6654
    %v6656 = vpop.f32.mrf.mxu0
    %v6657 = vadd.f32 %v6613, %v6656
    %6658 = vmatmul.bf16.gmra.mxu0 %v2823
    %v6659 = vpop.f32.mrf.mxu0
    %v6660 = vadd.f32 %v6616, %v6659
    %v6661 = vpop.f32.mrf.mxu0
    %v6662 = vadd.f32 %v6618, %v6661
    %6663 = vmatmul.bf16.gmra.mxu0 %v2831
    %v6664 = vpop.f32.mrf.mxu0
    %v6665 = vadd.f32 %v6621, %v6664
    %v6666 = vpop.f32.mrf.mxu0
    %v6667 = vadd.f32 %v6623, %v6666
    %6668 = vmatmul.bf16.gmra.mxu0 %v2839
    %v6669 = vpop.f32.mrf.mxu0
    %v6670 = vadd.f32 %v6626, %v6669
    %v6671 = vpop.f32.mrf.mxu0
    %v6672 = vadd.f32 %v6628, %v6671
    %6673 = vdwg.mxu0
    %6674 = vmatpush.bf16.msra.mxu0 %v4281
    %6675 = vmatpush.bf16.msra.mxu0 %v4277
    %6676 = vmatpush.bf16.msra.mxu0 %v4273
    %6677 = vmatpush.bf16.msra.mxu0 %v4269
    %6678 = vmatpush.bf16.msra.mxu0 %v4265
    %6679 = vmatpush.bf16.msra.mxu0 %v4261
    %6680 = vmatpush.bf16.msra.mxu0 %v4257
    %6681 = vmatpush.bf16.msra.mxu0 %v4253
    %6682 = vmatmul.bf16.gmra.mxu0 %v2792
    %v6683 = vpop.f32.mrf.mxu0
    %v6684 = vadd.f32 %v6640, %v6683
    %v6685 = vpop.f32.mrf.mxu0
    %v6686 = vadd.f32 %v6642, %v6685
    %6687 = vmatmul.bf16.gmra.mxu0 %v2800
    %v6688 = vpop.f32.mrf.mxu0
    %v6689 = vadd.f32 %v6645, %v6688
    %v6690 = vpop.f32.mrf.mxu0
    %v6691 = vadd.f32 %v6647, %v6690
    %6692 = vmatmul.bf16.gmra.mxu0 %v2808
    %v6693 = vpop.f32.mrf.mxu0
    %v6694 = vadd.f32 %v6650, %v6693
    %v6695 = vpop.f32.mrf.mxu0
    %v6696 = vadd.f32 %v6652, %v6695
    %6697 = vmatmul.bf16.gmra.mxu0 %v2816
    %v6698 = vpop.f32.mrf.mxu0
    %v6699 = vadd.f32 %v6655, %v6698
    %v6700 = vpop.f32.mrf.mxu0
    %v6701 = vadd.f32 %v6657, %v6700
    %6702 = vmatmul.bf16.gmra.mxu0 %v2824
    %v6703 = vpop.f32.mrf.mxu0
    %v6704 = vadd.f32 %v6660, %v6703
    %v6705 = vpop.f32.mrf.mxu0
    %v6706 = vadd.f32 %v6662, %v6705
    %6707 = vmatmul.bf16.gmra.mxu0 %v2832
    %v6708 = vpop.f32.mrf.mxu0
    %v6709 = vadd.f32 %v6665, %v6708
    %v6710 = vpop.f32.mrf.mxu0
    %v6711 = vadd.f32 %v6667, %v6710
    %6712 = vmatmul.bf16.gmra.mxu0 %v2840
    %v6713 = vpop.f32.mrf.mxu0
    %v6714 = vadd.f32 %v6670, %v6713
    %v6715 = vpop.f32.mrf.mxu0
    %v6716 = vadd.f32 %v6672, %v6715
    %6717 = vdwg.mxu0
    %6718 = vmatpush.bf16.msra.mxu0 %v4313
    %6719 = vmatpush.bf16.msra.mxu0 %v4309
    %6720 = vmatpush.bf16.msra.mxu0 %v4305
    %6721 = vmatpush.bf16.msra.mxu0 %v4301
    %6722 = vmatpush.bf16.msra.mxu0 %v4297
    %6723 = vmatpush.bf16.msra.mxu0 %v4293
    %6724 = vmatpush.bf16.msra.mxu0 %v4289
    %6725 = vmatpush.bf16.msra.mxu0 %v4285
    %6726 = vmatmul.bf16.gmra.mxu0 %v2793
    %v6727 = vpop.f32.mrf.mxu0
    %v6728 = vadd.f32 %v6684, %v6727
    %v6729 = vpop.f32.mrf.mxu0
    %v6730 = vadd.f32 %v6686, %v6729
    %6731 = vmatmul.bf16.gmra.mxu0 %v2801
    %v6732 = vpop.f32.mrf.mxu0
    %v6733 = vadd.f32 %v6689, %v6732
    %v6734 = vpop.f32.mrf.mxu0
    %v6735 = vadd.f32 %v6691, %v6734
    %6736 = vmatmul.bf16.gmra.mxu0 %v2809
    %v6737 = vpop.f32.mrf.mxu0
    %v6738 = vadd.f32 %v6694, %v6737
    %v6739 = vpop.f32.mrf.mxu0
    %v6740 = vadd.f32 %v6696, %v6739
    %6741 = vmatmul.bf16.gmra.mxu0 %v2817
    %v6742 = vpop.f32.mrf.mxu0
    %v6743 = vadd.f32 %v6699, %v6742
    %v6744 = vpop.f32.mrf.mxu0
    %v6745 = vadd.f32 %v6701, %v6744
    %6746 = vmatmul.bf16.gmra.mxu0 %v2825
    %v6747 = vpop.f32.mrf.mxu0
    %v6748 = vadd.f32 %v6704, %v6747
    %v6749 = vpop.f32.mrf.mxu0
    %v6750 = vadd.f32 %v6706, %v6749
    %6751 = vmatmul.bf16.gmra.mxu0 %v2833
    %v6752 = vpop.f32.mrf.mxu0
    %v6753 = vadd.f32 %v6709, %v6752
    %v6754 = vpop.f32.mrf.mxu0
    %v6755 = vadd.f32 %v6711, %v6754
    %6756 = vmatmul.bf16.gmra.mxu0 %v2841
    %v6757 = vpop.f32.mrf.mxu0
    %v6758 = vadd.f32 %v6714, %v6757
    %v6759 = vpop.f32.mrf.mxu0
    %v6760 = vadd.f32 %v6716, %v6759
    %6761 = vdwg.mxu0
    %6762 = vmatpush.bf16.msra.mxu0 %v4345
    %6763 = vmatpush.bf16.msra.mxu0 %v4341
    %6764 = vmatpush.bf16.msra.mxu0 %v4337
    %6765 = vmatpush.bf16.msra.mxu0 %v4333
    %6766 = vmatpush.bf16.msra.mxu0 %v4329
    %6767 = vmatpush.bf16.msra.mxu0 %v4325
    %6768 = vmatpush.bf16.msra.mxu0 %v4321
    %6769 = vmatpush.bf16.msra.mxu0 %v4317
    %6770 = vmatmul.bf16.gmra.mxu0 %v2794
    %v6771 = vpop.f32.mrf.mxu0
    %v6772 = vadd.f32 %v6728, %v6771
    %v6773 = vpop.f32.mrf.mxu0
    %v6774 = vadd.f32 %v6730, %v6773
    %6775 = vmatmul.bf16.gmra.mxu0 %v2802
    %v6776 = vpop.f32.mrf.mxu0
    %v6777 = vadd.f32 %v6733, %v6776
    %v6778 = vpop.f32.mrf.mxu0
    %v6779 = vadd.f32 %v6735, %v6778
    %6780 = vmatmul.bf16.gmra.mxu0 %v2810
    %v6781 = vpop.f32.mrf.mxu0
    %v6782 = vadd.f32 %v6738, %v6781
    %v6783 = vpop.f32.mrf.mxu0
    %v6784 = vadd.f32 %v6740, %v6783
    %6785 = vmatmul.bf16.gmra.mxu0 %v2818
    %v6786 = vpop.f32.mrf.mxu0
    %v6787 = vadd.f32 %v6743, %v6786
    %v6788 = vpop.f32.mrf.mxu0
    %v6789 = vadd.f32 %v6745, %v6788
    %6790 = vmatmul.bf16.gmra.mxu0 %v2826
    %v6791 = vpop.f32.mrf.mxu0
    %v6792 = vadd.f32 %v6748, %v6791
    %v6793 = vpop.f32.mrf.mxu0
    %v6794 = vadd.f32 %v6750, %v6793
    %6795 = vmatmul.bf16.gmra.mxu0 %v2834
    %v6796 = vpop.f32.mrf.mxu0
    %v6797 = vadd.f32 %v6753, %v6796
    %v6798 = vpop.f32.mrf.mxu0
    %v6799 = vadd.f32 %v6755, %v6798
    %6800 = vmatmul.bf16.gmra.mxu0 %v2842
    %v6801 = vpop.f32.mrf.mxu0
    %v6802 = vadd.f32 %v6758, %v6801
    %v6803 = vpop.f32.mrf.mxu0
    %v6804 = vadd.f32 %v6760, %v6803
    %6805 = vdwg.mxu0
    %6806 = vmatpush.bf16.msra.mxu0 %v4377
    %6807 = vmatpush.bf16.msra.mxu0 %v4373
    %6808 = vmatpush.bf16.msra.mxu0 %v4369
    %6809 = vmatpush.bf16.msra.mxu0 %v4365
    %6810 = vmatpush.bf16.msra.mxu0 %v4361
    %6811 = vmatpush.bf16.msra.mxu0 %v4357
    %6812 = vmatpush.bf16.msra.mxu0 %v4353
    %6813 = vmatpush.bf16.msra.mxu0 %v4349
    %6814 = vmatmul.bf16.gmra.mxu0 %v2795
    %v6815 = vpop.f32.mrf.mxu0
    %v6816 = vadd.f32 %v6772, %v6815
    %v6817 = vpop.f32.mrf.mxu0
    %v6818 = vadd.f32 %v6774, %v6817
    %6819 = vmatmul.bf16.gmra.mxu0 %v2803
    %v6820 = vpop.f32.mrf.mxu0
    %v6821 = vadd.f32 %v6777, %v6820
    %v6822 = vpop.f32.mrf.mxu0
    %v6823 = vadd.f32 %v6779, %v6822
    %6824 = vmatmul.bf16.gmra.mxu0 %v2811
    %v6825 = vpop.f32.mrf.mxu0
    %v6826 = vadd.f32 %v6782, %v6825
    %v6827 = vpop.f32.mrf.mxu0
    %v6828 = vadd.f32 %v6784, %v6827
    %6829 = vmatmul.bf16.gmra.mxu0 %v2819
    %v6830 = vpop.f32.mrf.mxu0
    %v6831 = vadd.f32 %v6787, %v6830
    %v6832 = vpop.f32.mrf.mxu0
    %v6833 = vadd.f32 %v6789, %v6832
    %6834 = vmatmul.bf16.gmra.mxu0 %v2827
    %v6835 = vpop.f32.mrf.mxu0
    %v6836 = vadd.f32 %v6792, %v6835
    %v6837 = vpop.f32.mrf.mxu0
    %v6838 = vadd.f32 %v6794, %v6837
    %6839 = vmatmul.bf16.gmra.mxu0 %v2835
    %v6840 = vpop.f32.mrf.mxu0
    %v6841 = vadd.f32 %v6797, %v6840
    %v6842 = vpop.f32.mrf.mxu0
    %v6843 = vadd.f32 %v6799, %v6842
    %6844 = vmatmul.bf16.gmra.mxu0 %v2843
    %v6845 = vpop.f32.mrf.mxu0
    %v6846 = vadd.f32 %v6802, %v6845
    %v6847 = vpop.f32.mrf.mxu0
    %v6848 = vadd.f32 %v6804, %v6847
    %6849 = vdwg.mxu0
    %6850 = vmatpush.bf16.msra.mxu0 %v4409
    %6851 = vmatpush.bf16.msra.mxu0 %v4405
    %6852 = vmatpush.bf16.msra.mxu0 %v4401
    %6853 = vmatpush.bf16.msra.mxu0 %v4397
    %6854 = vmatpush.bf16.msra.mxu0 %v4393
    %6855 = vmatpush.bf16.msra.mxu0 %v4389
    %6856 = vmatpush.bf16.msra.mxu0 %v4385
    %6857 = vmatpush.bf16.msra.mxu0 %v4381
    %6858 = vmatmul.bf16.gmra.mxu0 %v2796
    %v6859 = vpop.f32.mrf.mxu0
    %v6860 = vadd.f32 %v6816, %v6859
    %v6861 = vpop.f32.mrf.mxu0
    %v6862 = vadd.f32 %v6818, %v6861
    %6863 = vmatmul.bf16.gmra.mxu0 %v2804
    %v6864 = vpop.f32.mrf.mxu0
    %v6865 = vadd.f32 %v6821, %v6864
    %v6866 = vpop.f32.mrf.mxu0
    %v6867 = vadd.f32 %v6823, %v6866
    %6868 = vmatmul.bf16.gmra.mxu0 %v2812
    %v6869 = vpop.f32.mrf.mxu0
    %v6870 = vadd.f32 %v6826, %v6869
    %v6871 = vpop.f32.mrf.mxu0
    %v6872 = vadd.f32 %v6828, %v6871
    %6873 = vmatmul.bf16.gmra.mxu0 %v2820
    %v6874 = vpop.f32.mrf.mxu0
    %v6875 = vadd.f32 %v6831, %v6874
    %v6876 = vpop.f32.mrf.mxu0
    %v6877 = vadd.f32 %v6833, %v6876
    %6878 = vmatmul.bf16.gmra.mxu0 %v2828
    %v6879 = vpop.f32.mrf.mxu0
    %v6880 = vadd.f32 %v6836, %v6879
    %v6881 = vpop.f32.mrf.mxu0
    %v6882 = vadd.f32 %v6838, %v6881
    %6883 = vmatmul.bf16.gmra.mxu0 %v2836
    %v6884 = vpop.f32.mrf.mxu0
    %v6885 = vadd.f32 %v6841, %v6884
    %v6886 = vpop.f32.mrf.mxu0
    %v6887 = vadd.f32 %v6843, %v6886
    %6888 = vmatmul.bf16.gmra.mxu0 %v2844
    %v6889 = vpop.f32.mrf.mxu0
    %v6890 = vadd.f32 %v6846, %v6889
    %v6891 = vpop.f32.mrf.mxu0
    %v6892 = vadd.f32 %v6848, %v6891
    %6893 = vdwg.mxu0
    %6894 = vmatpush.bf16.msra.mxu0 %v4441
    %6895 = vmatpush.bf16.msra.mxu0 %v4437
    %6896 = vmatpush.bf16.msra.mxu0 %v4433
    %6897 = vmatpush.bf16.msra.mxu0 %v4429
    %6898 = vmatpush.bf16.msra.mxu0 %v4425
    %6899 = vmatpush.bf16.msra.mxu0 %v4421
    %6900 = vmatpush.bf16.msra.mxu0 %v4417
    %6901 = vmatpush.bf16.msra.mxu0 %v4413
    %6902 = vmatmul.bf16.gmra.mxu0 %v2797
    %v6903 = vpop.f32.mrf.mxu0
    %v6904 = vadd.f32 %v6860, %v6903
    %v6905 = vpop.f32.mrf.mxu0
    %v6906 = vadd.f32 %v6862, %v6905
    %6907 = vmatmul.bf16.gmra.mxu0 %v2805
    %v6908 = vpop.f32.mrf.mxu0
    %v6909 = vadd.f32 %v6865, %v6908
    %v6910 = vpop.f32.mrf.mxu0
    %v6911 = vadd.f32 %v6867, %v6910
    %6912 = vmatmul.bf16.gmra.mxu0 %v2813
    %v6913 = vpop.f32.mrf.mxu0
    %v6914 = vadd.f32 %v6870, %v6913
    %v6915 = vpop.f32.mrf.mxu0
    %v6916 = vadd.f32 %v6872, %v6915
    %6917 = vmatmul.bf16.gmra.mxu0 %v2821
    %v6918 = vpop.f32.mrf.mxu0
    %v6919 = vadd.f32 %v6875, %v6918
    %v6920 = vpop.f32.mrf.mxu0
    %v6921 = vadd.f32 %v6877, %v6920
    %6922 = vmatmul.bf16.gmra.mxu0 %v2829
    %v6923 = vpop.f32.mrf.mxu0
    %v6924 = vadd.f32 %v6880, %v6923
    %v6925 = vpop.f32.mrf.mxu0
    %v6926 = vadd.f32 %v6882, %v6925
    %6927 = vmatmul.bf16.gmra.mxu0 %v2837
    %v6928 = vpop.f32.mrf.mxu0
    %v6929 = vadd.f32 %v6885, %v6928
    %v6930 = vpop.f32.mrf.mxu0
    %v6931 = vadd.f32 %v6887, %v6930
    %6932 = vmatmul.bf16.gmra.mxu0 %v2845
    %v6933 = vpop.f32.mrf.mxu0
    %v6934 = vadd.f32 %v6890, %v6933
    %v6935 = vpop.f32.mrf.mxu0
    %v6936 = vadd.f32 %v6892, %v6935
    %6937 = vdwg.mxu0
    %v6938 = vmax.f32 %v5320, 0.0
    %v6939 = vmax.f32 %v5848, 0.0
    %v6940 = vmax.f32 %v6376, 0.0
    %v6941 = vmax.f32 %v6904, 0.0
    %v6942 = vmax.f32 %v5322, 0.0
    %v6943 = vmax.f32 %v5850, 0.0
    %v6944 = vmax.f32 %v6378, 0.0
    %v6945 = vmax.f32 %v6906, 0.0
    %v6946 = vmax.f32 %v5325, 0.0
    %v6947 = vmax.f32 %v5853, 0.0
    %v6948 = vmax.f32 %v6381, 0.0
    %v6949 = vmax.f32 %v6909, 0.0
    %v6950 = vmax.f32 %v5327, 0.0
    %v6951 = vmax.f32 %v5855, 0.0
    %v6952 = vmax.f32 %v6383, 0.0
    %v6953 = vmax.f32 %v6911, 0.0
    %v6954 = vmax.f32 %v5330, 0.0
    %v6955 = vmax.f32 %v5858, 0.0
    %v6956 = vmax.f32 %v6386, 0.0
    %v6957 = vmax.f32 %v6914, 0.0
    %v6958 = vmax.f32 %v5332, 0.0
    %v6959 = vmax.f32 %v5860, 0.0
    %v6960 = vmax.f32 %v6388, 0.0
    %v6961 = vmax.f32 %v6916, 0.0
    %v6962 = vmax.f32 %v5335, 0.0
    %v6963 = vmax.f32 %v5863, 0.0
    %v6964 = vmax.f32 %v6391, 0.0
    %v6965 = vmax.f32 %v6919, 0.0
    %v6966 = vmax.f32 %v5337, 0.0
    %v6967 = vmax.f32 %v5865, 0.0
    %v6968 = vmax.f32 %v6393, 0.0
    %v6969 = vmax.f32 %v6921, 0.0
    %v6970 = vmax.f32 %v5340, 0.0
    %v6971 = vmax.f32 %v5868, 0.0
    %v6972 = vmax.f32 %v6396, 0.0
    %v6973 = vmax.f32 %v6924, 0.0
    %v6974 = vmax.f32 %v5342, 0.0
    %v6975 = vmax.f32 %v5870, 0.0
    %v6976 = vmax.f32 %v6398, 0.0
    %v6977 = vmax.f32 %v6926, 0.0
    %v6978 = vmax.f32 %v5345, 0.0
    %v6979 = vmax.f32 %v5873, 0.0
    %v6980 = vmax.f32 %v6401, 0.0
    %v6981 = vmax.f32 %v6929, 0.0
    %v6982 = vmax.f32 %v5347, 0.0
    %v6983 = vmax.f32 %v5875, 0.0
    %v6984 = vmax.f32 %v6403, 0.0
    %v6985 = vmax.f32 %v6931, 0.0
    %v6986 = vmax.f32 %v5350, 0.0
    %v6987 = vmax.f32 %v5878, 0.0
    %v6988 = vmax.f32 %v6406, 0.0
    %v6989 = vmax.f32 %v6934, 0.0
    %v6990 = vmax.f32 %v5352, 0.0
    %v6991 = vmax.f32 %v5880, 0.0
    %v6992 = vmax.f32 %v6408, 0.0
    %v6993 = vmax.f32 %v6936, 0.0
    %v6994 = vpack.c.bf16 %v6939, %v6938
    %v6995 = vpack.c.bf16 %v6941, %v6940
    %v6996 = vpack.c.bf16 %v6943, %v6942
    %v6997 = vpack.c.bf16 %v6945, %v6944
    %v6998 = vpack.c.bf16 %v6947, %v6946
    %v6999 = vpack.c.bf16 %v6949, %v6948
    %v7000 = vpack.c.bf16 %v6951, %v6950
    %v7001 = vpack.c.bf16 %v6953, %v6952
    %v7002 = vpack.c.bf16 %v6955, %v6954
    %v7003 = vpack.c.bf16 %v6957, %v6956
    %v7004 = vpack.c.bf16 %v6959, %v6958
    %v7005 = vpack.c.bf16 %v6961, %v6960
    %v7006 = vpack.c.bf16 %v6963, %v6962
    %v7007 = vpack.c.bf16 %v6965, %v6964
    %v7008 = vpack.c.bf16 %v6967, %v6966
    %v7009 = vpack.c.bf16 %v6969, %v6968
    %v7010 = vpack.c.bf16 %v6971, %v6970
    %v7011 = vpack.c.bf16 %v6973, %v6972
    %v7012 = vpack.c.bf16 %v6975, %v6974
    %v7013 = vpack.c.bf16 %v6977, %v6976
    %v7014 = vpack.c.bf16 %v6979, %v6978
    %v7015 = vpack.c.bf16 %v6981, %v6980
    %v7016 = vpack.c.bf16 %v6983, %v6982
    %v7017 = vpack.c.bf16 %v6985, %v6984
    %v7018 = vpack.c.bf16 %v6987, %v6986
    %v7019 = vpack.c.bf16 %v6989, %v6988
    %v7020 = vpack.c.bf16 %v6991, %v6990
    %v7021 = vpack.c.bf16 %v6993, %v6992
    %v7050 = vunpack.c.l.b16 %v6994
    %v7051 = vunpack.c.h.b16 %v6994
    %v7052 = vunpack.c.l.b16 %v6995
    %v7053 = vunpack.c.h.b16 %v6995
    %v7054 = vunpack.c.l.b16 %v6996
    %v7055 = vunpack.c.h.b16 %v6996
    %v7056 = vunpack.c.l.b16 %v6997
    %v7057 = vunpack.c.h.b16 %v6997
    %v7058 = vunpack.c.l.b16 %v6998
    %v7059 = vunpack.c.h.b16 %v6998
    %v7060 = vunpack.c.l.b16 %v6999
    %v7061 = vunpack.c.h.b16 %v6999
    %v7062 = vunpack.c.l.b16 %v7000
    %v7063 = vunpack.c.h.b16 %v7000
    %v7064 = vunpack.c.l.b16 %v7001
    %v7065 = vunpack.c.h.b16 %v7001
    %v7066 = vunpack.c.l.b16 %v7002
    %v7067 = vunpack.c.h.b16 %v7002
    %v7068 = vunpack.c.l.b16 %v7003
    %v7069 = vunpack.c.h.b16 %v7003
    %v7070 = vunpack.c.l.b16 %v7004
    %v7071 = vunpack.c.h.b16 %v7004
    %v7072 = vunpack.c.l.b16 %v7005
    %v7073 = vunpack.c.h.b16 %v7005
    %v7074 = vunpack.c.l.b16 %v7006
    %v7075 = vunpack.c.h.b16 %v7006
    %v7076 = vunpack.c.l.b16 %v7007
    %v7077 = vunpack.c.h.b16 %v7007
    %v7078 = vunpack.c.l.b16 %v7008
    %v7079 = vunpack.c.h.b16 %v7008
    %v7080 = vunpack.c.l.b16 %v7009
    %v7081 = vunpack.c.h.b16 %v7009
    %v7082 = vunpack.c.l.b16 %v7010
    %v7083 = vunpack.c.h.b16 %v7010
    %v7084 = vunpack.c.l.b16 %v7011
    %v7085 = vunpack.c.h.b16 %v7011
    %v7086 = vunpack.c.l.b16 %v7012
    %v7087 = vunpack.c.h.b16 %v7012
    %v7088 = vunpack.c.l.b16 %v7013
    %v7089 = vunpack.c.h.b16 %v7013
    %v7090 = vunpack.c.l.b16 %v7014
    %v7091 = vunpack.c.h.b16 %v7014
    %v7092 = vunpack.c.l.b16 %v7015
    %v7093 = vunpack.c.h.b16 %v7015
    %v7094 = vunpack.c.l.b16 %v7016
    %v7095 = vunpack.c.h.b16 %v7016
    %v7096 = vunpack.c.l.b16 %v7017
    %v7097 = vunpack.c.h.b16 %v7017
    %v7098 = vunpack.c.l.b16 %v7018
    %v7099 = vunpack.c.h.b16 %v7018
    %v7100 = vunpack.c.l.b16 %v7019
    %v7101 = vunpack.c.h.b16 %v7019
    %v7102 = vunpack.c.l.b16 %v7020
    %v7103 = vunpack.c.h.b16 %v7020
    %v7104 = vunpack.c.l.b16 %v7021
    %v7105 = vunpack.c.h.b16 %v7021
    %v7106 = vpack.c.b16 %v7054, %v7050
    %v7107 = vpack.c.b16 %v7055, %v7051
    %v7108 = vpack.c.b16 %v7056, %v7052
    %v7109 = vpack.c.b16 %v7057, %v7053
    %v7110 = vpack.c.b16 %v7062, %v7058
    %v7111 = vpack.c.b16 %v7063, %v7059
    %v7112 = vpack.c.b16 %v7064, %v7060
    %v7113 = vpack.c.b16 %v7065, %v7061
    %v7114 = vpack.c.b16 %v7070, %v7066
    %v7115 = vpack.c.b16 %v7071, %v7067
    %v7116 = vpack.c.b16 %v7072, %v7068
    %v7117 = vpack.c.b16 %v7073, %v7069
    %v7118 = vpack.c.b16 %v7078, %v7074
    %v7119 = vpack.c.b16 %v7079, %v7075
    %v7120 = vpack.c.b16 %v7080, %v7076
    %v7121 = vpack.c.b16 %v7081, %v7077
    %v7122 = vpack.c.b16 %v7086, %v7082
    %v7123 = vpack.c.b16 %v7087, %v7083
    %v7124 = vpack.c.b16 %v7088, %v7084
    %v7125 = vpack.c.b16 %v7089, %v7085
    %v7126 = vpack.c.b16 %v7094, %v7090
    %v7127 = vpack.c.b16 %v7095, %v7091
    %v7128 = vpack.c.b16 %v7096, %v7092
    %v7129 = vpack.c.b16 %v7097, %v7093
    %v7130 = vpack.c.b16 %v7102, %v7098
    %v7131 = vpack.c.b16 %v7103, %v7099
    %v7132 = vpack.c.b16 %v7104, %v7100
    %v7133 = vpack.c.b16 %v7105, %v7101
    %7134 = vrot.lane.b32.xlu0 %v7106, 96
    %v7135 = vpop.permute.xlu0 %7134
    %7136 = vrot.lane.b32.xlu0 %v7107, 96
    %v7137 = vpop.permute.xlu0 %7136
    %7138 = vrot.lane.b32.xlu0 %v7108, 96
    %v7139 = vpop.permute.xlu0 %7138
    %7140 = vrot.lane.b32.xlu0 %v7109, 96
    %v7141 = vpop.permute.xlu0 %7140
    %7142 = vrot.lane.b32.xlu0 %v7110, 96
    %v7143 = vpop.permute.xlu0 %7142
    %7144 = vrot.lane.b32.xlu0 %v7111, 96
    %v7145 = vpop.permute.xlu0 %7144
    %7146 = vrot.lane.b32.xlu0 %v7112, 96
    %v7147 = vpop.permute.xlu0 %7146
    %7148 = vrot.lane.b32.xlu0 %v7113, 96
    %v7149 = vpop.permute.xlu0 %7148
    %7150 = vrot.lane.b32.xlu0 %v7114, 96
    %v7151 = vpop.permute.xlu0 %7150
    %7152 = vrot.lane.b32.xlu0 %v7115, 96
    %v7153 = vpop.permute.xlu0 %7152
    %7154 = vrot.lane.b32.xlu0 %v7116, 96
    %v7155 = vpop.permute.xlu0 %7154
    %7156 = vrot.lane.b32.xlu0 %v7117, 96
    %v7157 = vpop.permute.xlu0 %7156
    %7158 = vrot.lane.b32.xlu0 %v7118, 96
    %v7159 = vpop.permute.xlu0 %7158
    %7160 = vrot.lane.b32.xlu0 %v7119, 96
    %v7161 = vpop.permute.xlu0 %7160
    %7162 = vrot.lane.b32.xlu0 %v7120, 96
    %v7163 = vpop.permute.xlu0 %7162
    %7164 = vrot.lane.b32.xlu0 %v7121, 96
    %v7165 = vpop.permute.xlu0 %7164
    %7166 = vrot.lane.b32.xlu0 %v7122, 96
    %v7167 = vpop.permute.xlu0 %7166
    %7168 = vrot.lane.b32.xlu0 %v7123, 96
    %v7169 = vpop.permute.xlu0 %7168
    %7170 = vrot.lane.b32.xlu0 %v7124, 96
    %v7171 = vpop.permute.xlu0 %7170
    %7172 = vrot.lane.b32.xlu0 %v7125, 96
    %v7173 = vpop.permute.xlu0 %7172
    %7174 = vrot.lane.b32.xlu0 %v7126, 96
    %v7175 = vpop.permute.xlu0 %7174
    %7176 = vrot.lane.b32.xlu0 %v7127, 96
    %v7177 = vpop.permute.xlu0 %7176
    %7178 = vrot.lane.b32.xlu0 %v7128, 96
    %v7179 = vpop.permute.xlu0 %7178
    %7180 = vrot.lane.b32.xlu0 %v7129, 96
    %v7181 = vpop.permute.xlu0 %7180
    %7182 = vrot.lane.b32.xlu0 %v7130, 96
    %v7183 = vpop.permute.xlu0 %7182
    %7184 = vrot.lane.b32.xlu0 %v7131, 96
    %v7185 = vpop.permute.xlu0 %7184
    %7186 = vrot.lane.b32.xlu0 %v7132, 96
    %v7187 = vpop.permute.xlu0 %7186
    %7188 = vrot.lane.b32.xlu0 %v7133, 96
    %v7189 = vpop.permute.xlu0 %7188
    %vm7190 = vcmask 785408
    %v7191 = vsel %vm7190, %v7135, %v7137
    %v7192 = vsel %vm7190, %v7137, %v7139
    %v7193 = vsel %vm7190, %v7139, %v7141
    %v7194 = vsel %vm7190, %v7143, %v7145
    %v7195 = vsel %vm7190, %v7145, %v7147
    %v7196 = vsel %vm7190, %v7147, %v7149
    %v7197 = vsel %vm7190, %v7151, %v7153
    %v7198 = vsel %vm7190, %v7153, %v7155
    %v7199 = vsel %vm7190, %v7155, %v7157
    %v7200 = vsel %vm7190, %v7159, %v7161
    %v7201 = vsel %vm7190, %v7161, %v7163
    %v7202 = vsel %vm7190, %v7163, %v7165
    %v7203 = vsel %vm7190, %v7167, %v7169
    %v7204 = vsel %vm7190, %v7169, %v7171
    %v7205 = vsel %vm7190, %v7171, %v7173
    %v7206 = vsel %vm7190, %v7175, %v7177
    %v7207 = vsel %vm7190, %v7177, %v7179
    %v7208 = vsel %vm7190, %v7179, %v7181
    %v7209 = vsel %vm7190, %v7183, %v7185
    %v7210 = vsel %vm7190, %v7185, %v7187
    %v7211 = vsel %vm7190, %v7187, %v7189
    %vm7233 = vcmask 785408
    %v7235 = vsel %vm7233, %v7141, 0
    %v7238 = vsel %vm7233, %v7149, 0
    %v7241 = vsel %vm7233, %v7157, 0
    %v7244 = vsel %vm7233, %v7165, 0
    %v7247 = vsel %vm7233, %v7173, 0
    %v7250 = vsel %vm7233, %v7181, 0
    %v7253 = vsel %vm7233, %v7189, 0
    %v7255 = vunpack.c.l.bf16 %v6994
    %v7256 = vunpack.c.h.bf16 %v6994
    %v7257 = vunpack.c.l.bf16 %v6995
    %v7258 = vunpack.c.h.bf16 %v6995
    %v7259 = vunpack.c.l.bf16 %v6996
    %v7260 = vunpack.c.h.bf16 %v6996
    %v7261 = vunpack.c.l.bf16 %v6997
    %v7262 = vunpack.c.h.bf16 %v6997
    %v7263 = vunpack.c.l.bf16 %v6998
    %v7264 = vunpack.c.h.bf16 %v6998
    %v7265 = vunpack.c.l.bf16 %v6999
    %v7266 = vunpack.c.h.bf16 %v6999
    %v7267 = vunpack.c.l.bf16 %v7000
    %v7268 = vunpack.c.h.bf16 %v7000
    %v7269 = vunpack.c.l.bf16 %v7001
    %v7270 = vunpack.c.h.bf16 %v7001
    %v7271 = vunpack.c.l.bf16 %v7002
    %v7272 = vunpack.c.h.bf16 %v7002
    %v7273 = vunpack.c.l.bf16 %v7003
    %v7274 = vunpack.c.h.bf16 %v7003
    %v7275 = vunpack.c.l.bf16 %v7004
    %v7276 = vunpack.c.h.bf16 %v7004
    %v7277 = vunpack.c.l.bf16 %v7005
    %v7278 = vunpack.c.h.bf16 %v7005
    %v7279 = vunpack.c.l.bf16 %v7006
    %v7280 = vunpack.c.h.bf16 %v7006
    %v7281 = vunpack.c.l.bf16 %v7007
    %v7282 = vunpack.c.h.bf16 %v7007
    %v7283 = vunpack.c.l.bf16 %v7008
    %v7284 = vunpack.c.h.bf16 %v7008
    %v7285 = vunpack.c.l.bf16 %v7009
    %v7286 = vunpack.c.h.bf16 %v7009
    %v7287 = vunpack.c.l.bf16 %v7010
    %v7288 = vunpack.c.h.bf16 %v7010
    %v7289 = vunpack.c.l.bf16 %v7011
    %v7290 = vunpack.c.h.bf16 %v7011
    %v7291 = vunpack.c.l.bf16 %v7012
    %v7292 = vunpack.c.h.bf16 %v7012
    %v7293 = vunpack.c.l.bf16 %v7013
    %v7294 = vunpack.c.h.bf16 %v7013
    %v7295 = vunpack.c.l.bf16 %v7014
    %v7296 = vunpack.c.h.bf16 %v7014
    %v7297 = vunpack.c.l.bf16 %v7015
    %v7298 = vunpack.c.h.bf16 %v7015
    %v7299 = vunpack.c.l.bf16 %v7016
    %v7300 = vunpack.c.h.bf16 %v7016
    %v7301 = vunpack.c.l.bf16 %v7017
    %v7302 = vunpack.c.h.bf16 %v7017
    %v7303 = vunpack.c.l.bf16 %v7018
    %v7304 = vunpack.c.h.bf16 %v7018
    %v7305 = vunpack.c.l.bf16 %v7019
    %v7306 = vunpack.c.h.bf16 %v7019
    %v7307 = vunpack.c.l.bf16 %v7020
    %v7308 = vunpack.c.h.bf16 %v7020
    %v7309 = vunpack.c.l.bf16 %v7021
    %v7310 = vunpack.c.h.bf16 %v7021
    %v7311 = vunpack.c.l.bf16 %v7191
    %v7312 = vunpack.c.l.bf16 %v7192
    %v7313 = vunpack.c.l.bf16 %v7193
    %v7314 = vunpack.c.l.bf16 %v7235
    %v7315 = vunpack.c.h.bf16 %v7191
    %v7316 = vunpack.c.h.bf16 %v7192
    %v7317 = vunpack.c.h.bf16 %v7193
    %v7318 = vunpack.c.h.bf16 %v7235
    %v7319 = vunpack.c.l.bf16 %v7194
    %v7320 = vunpack.c.l.bf16 %v7195
    %v7321 = vunpack.c.l.bf16 %v7196
    %v7322 = vunpack.c.l.bf16 %v7238
    %v7323 = vunpack.c.h.bf16 %v7194
    %v7324 = vunpack.c.h.bf16 %v7195
    %v7325 = vunpack.c.h.bf16 %v7196
    %v7326 = vunpack.c.h.bf16 %v7238
    %v7327 = vunpack.c.l.bf16 %v7197
    %v7328 = vunpack.c.l.bf16 %v7198
    %v7329 = vunpack.c.l.bf16 %v7199
    %v7330 = vunpack.c.l.bf16 %v7241
    %v7331 = vunpack.c.h.bf16 %v7197
    %v7332 = vunpack.c.h.bf16 %v7198
    %v7333 = vunpack.c.h.bf16 %v7199
    %v7334 = vunpack.c.h.bf16 %v7241
    %v7335 = vunpack.c.l.bf16 %v7200
    %v7336 = vunpack.c.l.bf16 %v7201
    %v7337 = vunpack.c.l.bf16 %v7202
    %v7338 = vunpack.c.l.bf16 %v7244
    %v7339 = vunpack.c.h.bf16 %v7200
    %v7340 = vunpack.c.h.bf16 %v7201
    %v7341 = vunpack.c.h.bf16 %v7202
    %v7342 = vunpack.c.h.bf16 %v7244
    %v7343 = vunpack.c.l.bf16 %v7203
    %v7344 = vunpack.c.l.bf16 %v7204
    %v7345 = vunpack.c.l.bf16 %v7205
    %v7346 = vunpack.c.l.bf16 %v7247
    %v7347 = vunpack.c.h.bf16 %v7203
    %v7348 = vunpack.c.h.bf16 %v7204
    %v7349 = vunpack.c.h.bf16 %v7205
    %v7350 = vunpack.c.h.bf16 %v7247
    %v7351 = vunpack.c.l.bf16 %v7206
    %v7352 = vunpack.c.l.bf16 %v7207
    %v7353 = vunpack.c.l.bf16 %v7208
    %v7354 = vunpack.c.l.bf16 %v7250
    %v7355 = vunpack.c.h.bf16 %v7206
    %v7356 = vunpack.c.h.bf16 %v7207
    %v7357 = vunpack.c.h.bf16 %v7208
    %v7358 = vunpack.c.h.bf16 %v7250
    %v7359 = vunpack.c.l.bf16 %v7209
    %v7360 = vunpack.c.l.bf16 %v7210
    %v7361 = vunpack.c.l.bf16 %v7211
    %v7362 = vunpack.c.l.bf16 %v7253
    %v7363 = vunpack.c.h.bf16 %v7209
    %v7364 = vunpack.c.h.bf16 %v7210
    %v7365 = vunpack.c.h.bf16 %v7211
    %v7366 = vunpack.c.h.bf16 %v7253
    %v7367 = vmax.f32 %v7255, %v7311
    %v7368 = vmax.f32 %v7256, %v7312
    %v7369 = vmax.f32 %v7257, %v7313
    %v7370 = vmax.f32 %v7258, %v7314
    %v7371 = vmax.f32 %v7259, %v7315
    %v7372 = vmax.f32 %v7260, %v7316
    %v7373 = vmax.f32 %v7261, %v7317
    %v7374 = vmax.f32 %v7262, %v7318
    %v7375 = vmax.f32 %v7263, %v7319
    %v7376 = vmax.f32 %v7264, %v7320
    %v7377 = vmax.f32 %v7265, %v7321
    %v7378 = vmax.f32 %v7266, %v7322
    %v7379 = vmax.f32 %v7267, %v7323
    %v7380 = vmax.f32 %v7268, %v7324
    %v7381 = vmax.f32 %v7269, %v7325
    %v7382 = vmax.f32 %v7270, %v7326
    %v7383 = vmax.f32 %v7271, %v7327
    %v7384 = vmax.f32 %v7272, %v7328
    %v7385 = vmax.f32 %v7273, %v7329
    %v7386 = vmax.f32 %v7274, %v7330
    %v7387 = vmax.f32 %v7275, %v7331
    %v7388 = vmax.f32 %v7276, %v7332
    %v7389 = vmax.f32 %v7277, %v7333
    %v7390 = vmax.f32 %v7278, %v7334
    %v7391 = vmax.f32 %v7279, %v7335
    %v7392 = vmax.f32 %v7280, %v7336
    %v7393 = vmax.f32 %v7281, %v7337
    %v7394 = vmax.f32 %v7282, %v7338
    %v7395 = vmax.f32 %v7283, %v7339
    %v7396 = vmax.f32 %v7284, %v7340
    %v7397 = vmax.f32 %v7285, %v7341
    %v7398 = vmax.f32 %v7286, %v7342
    %v7399 = vmax.f32 %v7287, %v7343
    %v7400 = vmax.f32 %v7288, %v7344
    %v7401 = vmax.f32 %v7289, %v7345
    %v7402 = vmax.f32 %v7290, %v7346
    %v7403 = vmax.f32 %v7291, %v7347
    %v7404 = vmax.f32 %v7292, %v7348
    %v7405 = vmax.f32 %v7293, %v7349
    %v7406 = vmax.f32 %v7294, %v7350
    %v7407 = vmax.f32 %v7295, %v7351
    %v7408 = vmax.f32 %v7296, %v7352
    %v7409 = vmax.f32 %v7297, %v7353
    %v7410 = vmax.f32 %v7298, %v7354
    %v7411 = vmax.f32 %v7299, %v7355
    %v7412 = vmax.f32 %v7300, %v7356
    %v7413 = vmax.f32 %v7301, %v7357
    %v7414 = vmax.f32 %v7302, %v7358
    %v7415 = vmax.f32 %v7303, %v7359
    %v7416 = vmax.f32 %v7304, %v7360
    %v7417 = vmax.f32 %v7305, %v7361
    %v7418 = vmax.f32 %v7306, %v7362
    %v7419 = vmax.f32 %v7307, %v7363
    %v7420 = vmax.f32 %v7308, %v7364
    %v7421 = vmax.f32 %v7309, %v7365
    %v7422 = vmax.f32 %v7310, %v7366
    %v7423 = vpack.c.bf16 %v7368, %v7367
    %v7424 = vpack.c.bf16 %v7370, %v7369
    %v7425 = vpack.c.bf16 %v7372, %v7371
    %v7426 = vpack.c.bf16 %v7374, %v7373
    %v7427 = vpack.c.bf16 %v7376, %v7375
    %v7428 = vpack.c.bf16 %v7378, %v7377
    %v7429 = vpack.c.bf16 %v7380, %v7379
    %v7430 = vpack.c.bf16 %v7382, %v7381
    %v7431 = vpack.c.bf16 %v7384, %v7383
    %v7432 = vpack.c.bf16 %v7386, %v7385
    %v7433 = vpack.c.bf16 %v7388, %v7387
    %v7434 = vpack.c.bf16 %v7390, %v7389
    %v7435 = vpack.c.bf16 %v7392, %v7391
    %v7436 = vpack.c.bf16 %v7394, %v7393
    %v7437 = vpack.c.bf16 %v7396, %v7395
    %v7438 = vpack.c.bf16 %v7398, %v7397
    %v7439 = vpack.c.bf16 %v7400, %v7399
    %v7440 = vpack.c.bf16 %v7402, %v7401
    %v7441 = vpack.c.bf16 %v7404, %v7403
    %v7442 = vpack.c.bf16 %v7406, %v7405
    %v7443 = vpack.c.bf16 %v7408, %v7407
    %v7444 = vpack.c.bf16 %v7410, %v7409
    %v7445 = vpack.c.bf16 %v7412, %v7411
    %v7446 = vpack.c.bf16 %v7414, %v7413
    %v7447 = vpack.c.bf16 %v7416, %v7415
    %v7448 = vpack.c.bf16 %v7418, %v7417
    %v7449 = vpack.c.bf16 %v7420, %v7419
    %v7450 = vpack.c.bf16 %v7422, %v7421
    %v7451 = vunpack.c.l.bf16 %v7423
    %v7452 = vunpack.c.h.bf16 %v7423
    %v7453 = vunpack.c.l.bf16 %v7424
    %v7454 = vunpack.c.h.bf16 %v7424
    %v7455 = vunpack.c.l.bf16 %v7425
    %v7456 = vunpack.c.h.bf16 %v7425
    %v7457 = vunpack.c.l.bf16 %v7426
    %v7458 = vunpack.c.h.bf16 %v7426
    %v7459 = vmax.f32 %v7451, %v7455
    %v7460 = vmax.f32 %v7452, %v7456
    %v7461 = vmax.f32 %v7453, %v7457
    %v7462 = vmax.f32 %v7454, %v7458
    %v7463 = vpack.c.bf16 %v7460, %v7459
    %v7464 = vpack.c.bf16 %v7462, %v7461
    %v7465 = vunpack.c.l.bf16 %v7427
    %v7466 = vunpack.c.h.bf16 %v7427
    %v7467 = vunpack.c.l.bf16 %v7428
    %v7468 = vunpack.c.h.bf16 %v7428
    %v7469 = vunpack.c.l.bf16 %v7429
    %v7470 = vunpack.c.h.bf16 %v7429
    %v7471 = vunpack.c.l.bf16 %v7430
    %v7472 = vunpack.c.h.bf16 %v7430
    %v7473 = vmax.f32 %v7465, %v7469
    %v7474 = vmax.f32 %v7466, %v7470
    %v7475 = vmax.f32 %v7467, %v7471
    %v7476 = vmax.f32 %v7468, %v7472
    %v7477 = vpack.c.bf16 %v7474, %v7473
    %v7478 = vpack.c.bf16 %v7476, %v7475
    %v7479 = vunpack.c.l.bf16 %v7431
    %v7480 = vunpack.c.h.bf16 %v7431
    %v7481 = vunpack.c.l.bf16 %v7432
    %v7482 = vunpack.c.h.bf16 %v7432
    %v7483 = vunpack.c.l.bf16 %v7433
    %v7484 = vunpack.c.h.bf16 %v7433
    %v7485 = vunpack.c.l.bf16 %v7434
    %v7486 = vunpack.c.h.bf16 %v7434
    %v7487 = vmax.f32 %v7479, %v7483
    %v7488 = vmax.f32 %v7480, %v7484
    %v7489 = vmax.f32 %v7481, %v7485
    %v7490 = vmax.f32 %v7482, %v7486
    %v7491 = vpack.c.bf16 %v7488, %v7487
    %v7492 = vpack.c.bf16 %v7490, %v7489
    %v7493 = vunpack.c.l.bf16 %v7435
    %v7494 = vunpack.c.h.bf16 %v7435
    %v7495 = vunpack.c.l.bf16 %v7436
    %v7496 = vunpack.c.h.bf16 %v7436
    %v7497 = vunpack.c.l.bf16 %v7437
    %v7498 = vunpack.c.h.bf16 %v7437
    %v7499 = vunpack.c.l.bf16 %v7438
    %v7500 = vunpack.c.h.bf16 %v7438
    %v7501 = vmax.f32 %v7493, %v7497
    %v7502 = vmax.f32 %v7494, %v7498
    %v7503 = vmax.f32 %v7495, %v7499
    %v7504 = vmax.f32 %v7496, %v7500
    %v7505 = vpack.c.bf16 %v7502, %v7501
    %v7506 = vpack.c.bf16 %v7504, %v7503
    %v7507 = vunpack.c.l.bf16 %v7439
    %v7508 = vunpack.c.h.bf16 %v7439
    %v7509 = vunpack.c.l.bf16 %v7440
    %v7510 = vunpack.c.h.bf16 %v7440
    %v7511 = vunpack.c.l.bf16 %v7441
    %v7512 = vunpack.c.h.bf16 %v7441
    %v7513 = vunpack.c.l.bf16 %v7442
    %v7514 = vunpack.c.h.bf16 %v7442
    %v7515 = vmax.f32 %v7507, %v7511
    %v7516 = vmax.f32 %v7508, %v7512
    %v7517 = vmax.f32 %v7509, %v7513
    %v7518 = vmax.f32 %v7510, %v7514
    %v7519 = vpack.c.bf16 %v7516, %v7515
    %v7520 = vpack.c.bf16 %v7518, %v7517
    %v7521 = vunpack.c.l.bf16 %v7443
    %v7522 = vunpack.c.h.bf16 %v7443
    %v7523 = vunpack.c.l.bf16 %v7444
    %v7524 = vunpack.c.h.bf16 %v7444
    %v7525 = vunpack.c.l.bf16 %v7445
    %v7526 = vunpack.c.h.bf16 %v7445
    %v7527 = vunpack.c.l.bf16 %v7446
    %v7528 = vunpack.c.h.bf16 %v7446
    %v7529 = vmax.f32 %v7521, %v7525
    %v7530 = vmax.f32 %v7522, %v7526
    %v7531 = vmax.f32 %v7523, %v7527
    %v7532 = vmax.f32 %v7524, %v7528
    %v7533 = vpack.c.bf16 %v7530, %v7529
    %v7534 = vpack.c.bf16 %v7532, %v7531
    %v7535 = vunpack.c.l.bf16 %v7447
    %v7536 = vunpack.c.h.bf16 %v7447
    %v7537 = vunpack.c.l.bf16 %v7448
    %v7538 = vunpack.c.h.bf16 %v7448
    %v7539 = vunpack.c.l.bf16 %v7449
    %v7540 = vunpack.c.h.bf16 %v7449
    %v7541 = vunpack.c.l.bf16 %v7450
    %v7542 = vunpack.c.h.bf16 %v7450
    %v7543 = vmax.f32 %v7535, %v7539
    %v7544 = vmax.f32 %v7536, %v7540
    %v7545 = vmax.f32 %v7537, %v7541
    %v7546 = vmax.f32 %v7538, %v7542
    %v7547 = vpack.c.bf16 %v7544, %v7543
    %v7548 = vpack.c.bf16 %v7546, %v7545
    %v7551 = vunpack.c.l.b16 %v7463
    %v7552 = vunpack.c.h.b16 %v7463
    %v7553 = vunpack.c.l.b16 %v7464
    %v7554 = vunpack.c.h.b16 %v7464
    %v7555 = vpack.c.b16 %v7551, %v7551
    %v7556 = vpack.c.b16 %v7552, %v7552
    %v7557 = vpack.c.b16 %v7553, %v7553
    %v7558 = vpack.c.b16 %v7554, %v7554
    %v7565 = vunpack.c.l.b16 %v7477
    %v7566 = vunpack.c.h.b16 %v7477
    %v7567 = vunpack.c.l.b16 %v7478
    %v7568 = vunpack.c.h.b16 %v7478
    %v7569 = vpack.c.b16 %v7565, %v7565
    %v7570 = vpack.c.b16 %v7566, %v7566
    %v7571 = vpack.c.b16 %v7567, %v7567
    %v7572 = vpack.c.b16 %v7568, %v7568
    %v7579 = vunpack.c.l.b16 %v7491
    %v7580 = vunpack.c.h.b16 %v7491
    %v7581 = vunpack.c.l.b16 %v7492
    %v7582 = vunpack.c.h.b16 %v7492
    %v7583 = vpack.c.b16 %v7579, %v7579
    %v7584 = vpack.c.b16 %v7580, %v7580
    %v7585 = vpack.c.b16 %v7581, %v7581
    %v7586 = vpack.c.b16 %v7582, %v7582
    %v7593 = vunpack.c.l.b16 %v7505
    %v7594 = vunpack.c.h.b16 %v7505
    %v7595 = vunpack.c.l.b16 %v7506
    %v7596 = vunpack.c.h.b16 %v7506
    %v7597 = vpack.c.b16 %v7593, %v7593
    %v7598 = vpack.c.b16 %v7594, %v7594
    %v7599 = vpack.c.b16 %v7595, %v7595
    %v7600 = vpack.c.b16 %v7596, %v7596
    %v7607 = vunpack.c.l.b16 %v7519
    %v7608 = vunpack.c.h.b16 %v7519
    %v7609 = vunpack.c.l.b16 %v7520
    %v7610 = vunpack.c.h.b16 %v7520
    %v7611 = vpack.c.b16 %v7607, %v7607
    %v7612 = vpack.c.b16 %v7608, %v7608
    %v7613 = vpack.c.b16 %v7609, %v7609
    %v7614 = vpack.c.b16 %v7610, %v7610
    %v7621 = vunpack.c.l.b16 %v7533
    %v7622 = vunpack.c.h.b16 %v7533
    %v7623 = vunpack.c.l.b16 %v7534
    %v7624 = vunpack.c.h.b16 %v7534
    %v7625 = vpack.c.b16 %v7621, %v7621
    %v7626 = vpack.c.b16 %v7622, %v7622
    %v7627 = vpack.c.b16 %v7623, %v7623
    %v7628 = vpack.c.b16 %v7624, %v7624
    %v7635 = vunpack.c.l.b16 %v7547
    %v7636 = vunpack.c.h.b16 %v7547
    %v7637 = vunpack.c.l.b16 %v7548
    %v7638 = vunpack.c.h.b16 %v7548
    %v7639 = vpack.c.b16 %v7635, %v7635
    %v7640 = vpack.c.b16 %v7636, %v7636
    %v7641 = vpack.c.b16 %v7637, %v7637
    %v7642 = vpack.c.b16 %v7638, %v7638
    %v7647 = vld [vmem:[#allocation9] sm:$0xf]
    %v7648 = vld [vmem:[#allocation9 + $0x4] sm:$0xf]
    %v7649 = vld [vmem:[#allocation9 + $0x8] sm:$0xf]
    %v7650 = vld [vmem:[#allocation9 + $0xc] sm:$0xf]
    %v7651 = vld [vmem:[#allocation9 + $0x10] sm:$0xf]
    %v7652 = vld [vmem:[#allocation9 + $0x14] sm:$0xf]
    %v7653 = vld [vmem:[#allocation9 + $0x18] sm:$0xf]
    %v7654 = vld [vmem:[#allocation9 + $0x1c] sm:$0xf]
    %v7655 = vld [vmem:[#allocation9 + $0x20] sm:$0xf]
    %v7656 = vld [vmem:[#allocation9 + $0x24] sm:$0xf]
    %v7657 = vld [vmem:[#allocation9 + $0x28] sm:$0xf]
    %v7658 = vld [vmem:[#allocation9 + $0x2c] sm:$0xf]
    %v7659 = vld [vmem:[#allocation9 + $0x30] sm:$0xf]
    %v7660 = vld [vmem:[#allocation9 + $0x34] sm:$0xf]
    %v7661 = vld [vmem:[#allocation9 + $0x38] sm:$0xf]
    %v7662 = vld [vmem:[#allocation9 + $0x3c] sm:$0xf]
    %v7663 = vld [vmem:[#allocation9 + $0x40] sm:$0xf]
    %v7664 = vld [vmem:[#allocation9 + $0x44] sm:$0xf]
    %v7665 = vld [vmem:[#allocation9 + $0x48] sm:$0xf]
    %v7666 = vld [vmem:[#allocation9 + $0x4c] sm:$0xf]
    %v7667 = vld [vmem:[#allocation9 + $0x50] sm:$0xf]
    %v7668 = vld [vmem:[#allocation9 + $0x54] sm:$0xf]
    %v7669 = vld [vmem:[#allocation9 + $0x58] sm:$0xf]
    %v7670 = vld [vmem:[#allocation9 + $0x5c] sm:$0xf]
    %v7671 = vld [vmem:[#allocation9 + $0x60] sm:$0xf]
    %v7672 = vld [vmem:[#allocation9 + $0x64] sm:$0xf]
    %v7673 = vld [vmem:[#allocation9 + $0x68] sm:$0xf]
    %v7674 = vld [vmem:[#allocation9 + $0x6c] sm:$0xf]
    %v7675 = vld [vmem:[#allocation9 + $0x70] sm:$0xf]
    %v7676 = vld [vmem:[#allocation9 + $0x74] sm:$0xf]
    %v7677 = vld [vmem:[#allocation9 + $0x78] sm:$0xf]
    %v7678 = vld [vmem:[#allocation9 + $0x7c] sm:$0xf]
    %v7679 = vld [vmem:[#allocation9 + $0x80] sm:$0xf]
    %v7680 = vld [vmem:[#allocation9 + $0x84] sm:$0xf]
    %v7681 = vld [vmem:[#allocation9 + $0x88] sm:$0xf]
    %v7682 = vld [vmem:[#allocation9 + $0x8c] sm:$0xf]
    %v7683 = vld [vmem:[#allocation9 + $0x90] sm:$0xf]
    %v7684 = vld [vmem:[#allocation9 + $0x94] sm:$0xf]
    %v7685 = vld [vmem:[#allocation9 + $0x98] sm:$0xf]
    %v7686 = vld [vmem:[#allocation9 + $0x9c] sm:$0xf]
    %v7687 = vld [vmem:[#allocation9 + $0xa0] sm:$0xf]
    %v7688 = vld [vmem:[#allocation9 + $0xa4] sm:$0xf]
    %v7689 = vld [vmem:[#allocation9 + $0xa8] sm:$0xf]
    %v7690 = vld [vmem:[#allocation9 + $0xac] sm:$0xf]
    %v7691 = vld [vmem:[#allocation9 + $0xb0] sm:$0xf]
    %v7692 = vld [vmem:[#allocation9 + $0xb4] sm:$0xf]
    %v7693 = vld [vmem:[#allocation9 + $0xb8] sm:$0xf]
    %v7694 = vld [vmem:[#allocation9 + $0xbc] sm:$0xf]
    %v7695 = vld [vmem:[#allocation9 + $0xc0] sm:$0xf]
    %v7696 = vld [vmem:[#allocation9 + $0xc4] sm:$0xf]
    %v7697 = vld [vmem:[#allocation9 + $0xc8] sm:$0xf]
    %v7698 = vld [vmem:[#allocation9 + $0xcc] sm:$0xf]
    %v7699 = vld [vmem:[#allocation9 + $0xd0] sm:$0xf]
    %v7700 = vld [vmem:[#allocation9 + $0xd4] sm:$0xf]
    %v7701 = vld [vmem:[#allocation9 + $0xd8] sm:$0xf]
    %v7702 = vld [vmem:[#allocation9 + $0xdc] sm:$0xf]
    %v7703 = vld [vmem:[#allocation9 + $0xe0] sm:$0xf]
    %v7704 = vld [vmem:[#allocation9 + $0xe4] sm:$0xf]
    %v7705 = vld [vmem:[#allocation9 + $0xe8] sm:$0xf]
    %v7706 = vld [vmem:[#allocation9 + $0xec] sm:$0xf]
    %v7707 = vld [vmem:[#allocation9 + $0xf0] sm:$0xf]
    %v7708 = vld [vmem:[#allocation9 + $0xf4] sm:$0xf]
    %v7709 = vld [vmem:[#allocation9 + $0xf8] sm:$0xf]
    %v7710 = vld [vmem:[#allocation9 + $0xfc] sm:$0xf]
    %v7711 = vld [vmem:[#allocation9 + $0x100] sm:$0xf]
    %v7712 = vld [vmem:[#allocation9 + $0x104] sm:$0xf]
    %v7713 = vld [vmem:[#allocation9 + $0x108] sm:$0xf]
    %v7714 = vld [vmem:[#allocation9 + $0x10c] sm:$0xf]
    %v7715 = vld [vmem:[#allocation9 + $0x110] sm:$0xf]
    %v7716 = vld [vmem:[#allocation9 + $0x114] sm:$0xf]
    %v7717 = vld [vmem:[#allocation9 + $0x118] sm:$0xf]
    %v7718 = vld [vmem:[#allocation9 + $0x11c] sm:$0xf]
    %v7719 = vld [vmem:[#allocation9 + $0x120] sm:$0xf]
    %v7720 = vld [vmem:[#allocation9 + $0x124] sm:$0xf]
    %v7721 = vld [vmem:[#allocation9 + $0x128] sm:$0xf]
    %v7722 = vld [vmem:[#allocation9 + $0x12c] sm:$0xf]
    %v7723 = vld [vmem:[#allocation9 + $0x130] sm:$0xf]
    %v7724 = vld [vmem:[#allocation9 + $0x134] sm:$0xf]
    %v7725 = vld [vmem:[#allocation9 + $0x138] sm:$0xf]
    %v7726 = vld [vmem:[#allocation9 + $0x13c] sm:$0xf]
    %v7727 = vld [vmem:[#allocation9 + $0x140] sm:$0xf]
    %v7728 = vld [vmem:[#allocation9 + $0x144] sm:$0xf]
    %v7729 = vld [vmem:[#allocation9 + $0x148] sm:$0xf]
    %v7730 = vld [vmem:[#allocation9 + $0x14c] sm:$0xf]
    %v7731 = vld [vmem:[#allocation9 + $0x150] sm:$0xf]
    %v7732 = vld [vmem:[#allocation9 + $0x154] sm:$0xf]
    %v7733 = vld [vmem:[#allocation9 + $0x158] sm:$0xf]
    %v7734 = vld [vmem:[#allocation9 + $0x15c] sm:$0xf]
    %v7735 = vld [vmem:[#allocation9 + $0x160] sm:$0xf]
    %v7736 = vld [vmem:[#allocation9 + $0x164] sm:$0xf]
    %v7737 = vld [vmem:[#allocation9 + $0x168] sm:$0xf]
    %v7738 = vld [vmem:[#allocation9 + $0x16c] sm:$0xf]
    %v7739 = vld [vmem:[#allocation9 + $0x170] sm:$0xf]
    %v7740 = vld [vmem:[#allocation9 + $0x174] sm:$0xf]
    %v7741 = vld [vmem:[#allocation9 + $0x178] sm:$0xf]
    %v7742 = vld [vmem:[#allocation9 + $0x17c] sm:$0xf]
    %v7743 = vld [vmem:[#allocation9 + $0x180] sm:$0xf]
    %v7744 = vld [vmem:[#allocation9 + $0x184] sm:$0xf]
    %v7745 = vld [vmem:[#allocation9 + $0x188] sm:$0xf]
    %v7746 = vld [vmem:[#allocation9 + $0x18c] sm:$0xf]
    %v7747 = vld [vmem:[#allocation9 + $0x190] sm:$0xf]
    %v7748 = vld [vmem:[#allocation9 + $0x194] sm:$0xf]
    %v7749 = vld [vmem:[#allocation9 + $0x198] sm:$0xf]
    %v7750 = vld [vmem:[#allocation9 + $0x19c] sm:$0xf]
    %v7751 = vld [vmem:[#allocation9 + $0x1a0] sm:$0xf]
    %v7752 = vld [vmem:[#allocation9 + $0x1a4] sm:$0xf]
    %v7753 = vld [vmem:[#allocation9 + $0x1a8] sm:$0xf]
    %v7754 = vld [vmem:[#allocation9 + $0x1ac] sm:$0xf]
    %v7755 = vld [vmem:[#allocation9 + $0x1b0] sm:$0xf]
    %v7756 = vld [vmem:[#allocation9 + $0x1b4] sm:$0xf]
    %v7757 = vld [vmem:[#allocation9 + $0x1b8] sm:$0xf]
    %v7758 = vld [vmem:[#allocation9 + $0x1bc] sm:$0xf]
    %v7759 = vld [vmem:[#allocation9 + $0x1c0] sm:$0xf]
    %v7760 = vld [vmem:[#allocation9 + $0x1c4] sm:$0xf]
    %v7761 = vld [vmem:[#allocation9 + $0x1c8] sm:$0xf]
    %v7762 = vld [vmem:[#allocation9 + $0x1cc] sm:$0xf]
    %v7763 = vld [vmem:[#allocation9 + $0x1d0] sm:$0xf]
    %v7764 = vld [vmem:[#allocation9 + $0x1d4] sm:$0xf]
    %v7765 = vld [vmem:[#allocation9 + $0x1d8] sm:$0xf]
    %v7766 = vld [vmem:[#allocation9 + $0x1dc] sm:$0xf]
    %v7767 = vld [vmem:[#allocation9 + $0x1e0] sm:$0xf]
    %v7768 = vld [vmem:[#allocation9 + $0x1e4] sm:$0xf]
    %v7769 = vld [vmem:[#allocation9 + $0x1e8] sm:$0xf]
    %v7770 = vld [vmem:[#allocation9 + $0x1ec] sm:$0xf]
    %v7771 = vld [vmem:[#allocation9 + $0x1f0] sm:$0xf]
    %v7772 = vld [vmem:[#allocation9 + $0x1f4] sm:$0xf]
    %v7773 = vld [vmem:[#allocation9 + $0x1f8] sm:$0xf]
    %v7774 = vld [vmem:[#allocation9 + $0x1fc] sm:$0xf]
    %v7775 = vld [vmem:[#allocation9 + $0x200] sm:$0xf]
    %v7776 = vld [vmem:[#allocation9 + $0x204] sm:$0xf]
    %v7777 = vld [vmem:[#allocation9 + $0x208] sm:$0xf]
    %v7778 = vld [vmem:[#allocation9 + $0x20c] sm:$0xf]
    %v7779 = vld [vmem:[#allocation9 + $0x210] sm:$0xf]
    %v7780 = vld [vmem:[#allocation9 + $0x214] sm:$0xf]
    %v7781 = vld [vmem:[#allocation9 + $0x218] sm:$0xf]
    %v7782 = vld [vmem:[#allocation9 + $0x21c] sm:$0xf]
    %v7783 = vld [vmem:[#allocation9 + $0x220] sm:$0xf]
    %v7784 = vld [vmem:[#allocation9 + $0x224] sm:$0xf]
    %v7785 = vld [vmem:[#allocation9 + $0x228] sm:$0xf]
    %v7786 = vld [vmem:[#allocation9 + $0x22c] sm:$0xf]
    %v7787 = vld [vmem:[#allocation9 + $0x230] sm:$0xf]
    %v7788 = vld [vmem:[#allocation9 + $0x234] sm:$0xf]
    %v7789 = vld [vmem:[#allocation9 + $0x238] sm:$0xf]
    %v7790 = vld [vmem:[#allocation9 + $0x23c] sm:$0xf]
    %v7791 = vld [vmem:[#allocation9 + $0x240] sm:$0xf]
    %v7792 = vld [vmem:[#allocation9 + $0x244] sm:$0xf]
    %v7793 = vld [vmem:[#allocation9 + $0x248] sm:$0xf]
    %v7794 = vld [vmem:[#allocation9 + $0x24c] sm:$0xf]
    %v7795 = vld [vmem:[#allocation9 + $0x250] sm:$0xf]
    %v7796 = vld [vmem:[#allocation9 + $0x254] sm:$0xf]
    %v7797 = vld [vmem:[#allocation9 + $0x258] sm:$0xf]
    %v7798 = vld [vmem:[#allocation9 + $0x25c] sm:$0xf]
    %v7799 = vld [vmem:[#allocation9 + $0x260] sm:$0xf]
    %v7800 = vld [vmem:[#allocation9 + $0x264] sm:$0xf]
    %v7801 = vld [vmem:[#allocation9 + $0x268] sm:$0xf]
    %v7802 = vld [vmem:[#allocation9 + $0x26c] sm:$0xf]
    %v7803 = vld [vmem:[#allocation9 + $0x270] sm:$0xf]
    %v7804 = vld [vmem:[#allocation9 + $0x274] sm:$0xf]
    %v7805 = vld [vmem:[#allocation9 + $0x278] sm:$0xf]
    %v7806 = vld [vmem:[#allocation9 + $0x27c] sm:$0xf]
    %v7807 = vld [vmem:[#allocation9 + $0x280] sm:$0xf]
    %v7808 = vld [vmem:[#allocation9 + $0x284] sm:$0xf]
    %v7809 = vld [vmem:[#allocation9 + $0x288] sm:$0xf]
    %v7810 = vld [vmem:[#allocation9 + $0x28c] sm:$0xf]
    %v7811 = vld [vmem:[#allocation9 + $0x290] sm:$0xf]
    %v7812 = vld [vmem:[#allocation9 + $0x294] sm:$0xf]
    %v7813 = vld [vmem:[#allocation9 + $0x298] sm:$0xf]
    %v7814 = vld [vmem:[#allocation9 + $0x29c] sm:$0xf]
    %v7815 = vld [vmem:[#allocation9 + $0x2a0] sm:$0xf]
    %v7816 = vld [vmem:[#allocation9 + $0x2a4] sm:$0xf]
    %v7817 = vld [vmem:[#allocation9 + $0x2a8] sm:$0xf]
    %v7818 = vld [vmem:[#allocation9 + $0x2ac] sm:$0xf]
    %v7819 = vld [vmem:[#allocation9 + $0x2b0] sm:$0xf]
    %v7820 = vld [vmem:[#allocation9 + $0x2b4] sm:$0xf]
    %v7821 = vld [vmem:[#allocation9 + $0x2b8] sm:$0xf]
    %v7822 = vld [vmem:[#allocation9 + $0x2bc] sm:$0xf]
    %v7823 = vld [vmem:[#allocation9 + $0x2c0] sm:$0xf]
    %v7824 = vld [vmem:[#allocation9 + $0x2c4] sm:$0xf]
    %v7825 = vld [vmem:[#allocation9 + $0x2c8] sm:$0xf]
    %v7826 = vld [vmem:[#allocation9 + $0x2cc] sm:$0xf]
    %v7827 = vld [vmem:[#allocation9 + $0x2d0] sm:$0xf]
    %v7828 = vld [vmem:[#allocation9 + $0x2d4] sm:$0xf]
    %v7829 = vld [vmem:[#allocation9 + $0x2d8] sm:$0xf]
    %v7830 = vld [vmem:[#allocation9 + $0x2dc] sm:$0xf]
    %v7831 = vld [vmem:[#allocation9 + $0x2e0] sm:$0xf]
    %v7832 = vld [vmem:[#allocation9 + $0x2e4] sm:$0xf]
    %v7833 = vld [vmem:[#allocation9 + $0x2e8] sm:$0xf]
    %v7834 = vld [vmem:[#allocation9 + $0x2ec] sm:$0xf]
    %v7835 = vld [vmem:[#allocation9 + $0x2f0] sm:$0xf]
    %v7836 = vld [vmem:[#allocation9 + $0x2f4] sm:$0xf]
    %v7837 = vld [vmem:[#allocation9 + $0x2f8] sm:$0xf]
    %v7838 = vld [vmem:[#allocation9 + $0x2fc] sm:$0xf]
    %v7839 = vld [vmem:[#allocation9 + $0x300] sm:$0xf]
    %v7840 = vld [vmem:[#allocation9 + $0x304] sm:$0xf]
    %v7841 = vld [vmem:[#allocation9 + $0x308] sm:$0xf]
    %v7842 = vld [vmem:[#allocation9 + $0x30c] sm:$0xf]
    %v7843 = vld [vmem:[#allocation9 + $0x310] sm:$0xf]
    %v7844 = vld [vmem:[#allocation9 + $0x314] sm:$0xf]
    %v7845 = vld [vmem:[#allocation9 + $0x318] sm:$0xf]
    %v7846 = vld [vmem:[#allocation9 + $0x31c] sm:$0xf]
    %v7847 = vld [vmem:[#allocation9 + $0x320] sm:$0xf]
    %v7848 = vld [vmem:[#allocation9 + $0x324] sm:$0xf]
    %v7849 = vld [vmem:[#allocation9 + $0x328] sm:$0xf]
    %v7850 = vld [vmem:[#allocation9 + $0x32c] sm:$0xf]
    %v7851 = vld [vmem:[#allocation9 + $0x330] sm:$0xf]
    %v7852 = vld [vmem:[#allocation9 + $0x334] sm:$0xf]
    %v7853 = vld [vmem:[#allocation9 + $0x338] sm:$0xf]
    %v7854 = vld [vmem:[#allocation9 + $0x33c] sm:$0xf]
    %v7855 = vld [vmem:[#allocation9 + $0x340] sm:$0xf]
    %v7856 = vld [vmem:[#allocation9 + $0x344] sm:$0xf]
    %v7857 = vld [vmem:[#allocation9 + $0x348] sm:$0xf]
    %v7858 = vld [vmem:[#allocation9 + $0x34c] sm:$0xf]
    %v7859 = vld [vmem:[#allocation9 + $0x350] sm:$0xf]
    %v7860 = vld [vmem:[#allocation9 + $0x354] sm:$0xf]
    %v7861 = vld [vmem:[#allocation9 + $0x358] sm:$0xf]
    %v7862 = vld [vmem:[#allocation9 + $0x35c] sm:$0xf]
    %v7863 = vld [vmem:[#allocation9 + $0x360] sm:$0xf]
    %v7864 = vld [vmem:[#allocation9 + $0x364] sm:$0xf]
    %v7865 = vld [vmem:[#allocation9 + $0x368] sm:$0xf]
    %v7866 = vld [vmem:[#allocation9 + $0x36c] sm:$0xf]
    %v7867 = vld [vmem:[#allocation9 + $0x370] sm:$0xf]
    %v7868 = vld [vmem:[#allocation9 + $0x374] sm:$0xf]
    %v7869 = vld [vmem:[#allocation9 + $0x378] sm:$0xf]
    %v7870 = vld [vmem:[#allocation9 + $0x37c] sm:$0xf]
    %v7871 = vld [vmem:[#allocation9 + $0x380] sm:$0xf]
    %v7872 = vld [vmem:[#allocation9 + $0x384] sm:$0xf]
    %v7873 = vld [vmem:[#allocation9 + $0x388] sm:$0xf]
    %v7874 = vld [vmem:[#allocation9 + $0x38c] sm:$0xf]
    %v7875 = vld [vmem:[#allocation9 + $0x390] sm:$0xf]
    %v7876 = vld [vmem:[#allocation9 + $0x394] sm:$0xf]
    %v7877 = vld [vmem:[#allocation9 + $0x398] sm:$0xf]
    %v7878 = vld [vmem:[#allocation9 + $0x39c] sm:$0xf]
    %v7879 = vld [vmem:[#allocation9 + $0x3a0] sm:$0xf]
    %v7880 = vld [vmem:[#allocation9 + $0x3a4] sm:$0xf]
    %v7881 = vld [vmem:[#allocation9 + $0x3a8] sm:$0xf]
    %v7882 = vld [vmem:[#allocation9 + $0x3ac] sm:$0xf]
    %v7883 = vld [vmem:[#allocation9 + $0x3b0] sm:$0xf]
    %v7884 = vld [vmem:[#allocation9 + $0x3b4] sm:$0xf]
    %v7885 = vld [vmem:[#allocation9 + $0x3b8] sm:$0xf]
    %v7886 = vld [vmem:[#allocation9 + $0x3bc] sm:$0xf]
    %v7887 = vld [vmem:[#allocation9 + $0x3c0] sm:$0xf]
    %v7888 = vld [vmem:[#allocation9 + $0x3c4] sm:$0xf]
    %v7889 = vld [vmem:[#allocation9 + $0x3c8] sm:$0xf]
    %v7890 = vld [vmem:[#allocation9 + $0x3cc] sm:$0xf]
    %v7891 = vld [vmem:[#allocation9 + $0x3d0] sm:$0xf]
    %v7892 = vld [vmem:[#allocation9 + $0x3d4] sm:$0xf]
    %v7893 = vld [vmem:[#allocation9 + $0x3d8] sm:$0xf]
    %v7894 = vld [vmem:[#allocation9 + $0x3dc] sm:$0xf]
    %v7895 = vld [vmem:[#allocation9 + $0x3e0] sm:$0xf]
    %v7896 = vld [vmem:[#allocation9 + $0x3e4] sm:$0xf]
    %v7897 = vld [vmem:[#allocation9 + $0x3e8] sm:$0xf]
    %v7898 = vld [vmem:[#allocation9 + $0x3ec] sm:$0xf]
    %v7899 = vld [vmem:[#allocation9 + $0x3f0] sm:$0xf]
    %v7900 = vld [vmem:[#allocation9 + $0x3f4] sm:$0xf]
    %v7901 = vld [vmem:[#allocation9 + $0x3f8] sm:$0xf]
    %v7902 = vld [vmem:[#allocation9 + $0x3fc] sm:$0xf]
    %v7903 = vld [vmem:[#allocation9 + $0x400] sm:$0xf]
    %v7904 = vld [vmem:[#allocation9 + $0x404] sm:$0xf]
    %v7905 = vld [vmem:[#allocation9 + $0x408] sm:$0xf]
    %v7906 = vld [vmem:[#allocation9 + $0x40c] sm:$0xf]
    %v7907 = vld [vmem:[#allocation9 + $0x410] sm:$0xf]
    %v7908 = vld [vmem:[#allocation9 + $0x414] sm:$0xf]
    %v7909 = vld [vmem:[#allocation9 + $0x418] sm:$0xf]
    %v7910 = vld [vmem:[#allocation9 + $0x41c] sm:$0xf]
    %v7911 = vld [vmem:[#allocation9 + $0x420] sm:$0xf]
    %v7912 = vld [vmem:[#allocation9 + $0x424] sm:$0xf]
    %v7913 = vld [vmem:[#allocation9 + $0x428] sm:$0xf]
    %v7914 = vld [vmem:[#allocation9 + $0x42c] sm:$0xf]
    %v7915 = vld [vmem:[#allocation9 + $0x430] sm:$0xf]
    %v7916 = vld [vmem:[#allocation9 + $0x434] sm:$0xf]
    %v7917 = vld [vmem:[#allocation9 + $0x438] sm:$0xf]
    %v7918 = vld [vmem:[#allocation9 + $0x43c] sm:$0xf]
    %v7919 = vld [vmem:[#allocation9 + $0x440] sm:$0xf]
    %v7920 = vld [vmem:[#allocation9 + $0x444] sm:$0xf]
    %v7921 = vld [vmem:[#allocation9 + $0x448] sm:$0xf]
    %v7922 = vld [vmem:[#allocation9 + $0x44c] sm:$0xf]
    %v7923 = vld [vmem:[#allocation9 + $0x450] sm:$0xf]
    %v7924 = vld [vmem:[#allocation9 + $0x454] sm:$0xf]
    %v7925 = vld [vmem:[#allocation9 + $0x458] sm:$0xf]
    %v7926 = vld [vmem:[#allocation9 + $0x45c] sm:$0xf]
    %v7927 = vld [vmem:[#allocation9 + $0x460] sm:$0xf]
    %v7928 = vld [vmem:[#allocation9 + $0x464] sm:$0xf]
    %v7929 = vld [vmem:[#allocation9 + $0x468] sm:$0xf]
    %v7930 = vld [vmem:[#allocation9 + $0x46c] sm:$0xf]
    %v7931 = vld [vmem:[#allocation9 + $0x470] sm:$0xf]
    %v7932 = vld [vmem:[#allocation9 + $0x474] sm:$0xf]
    %v7933 = vld [vmem:[#allocation9 + $0x478] sm:$0xf]
    %v7934 = vld [vmem:[#allocation9 + $0x47c] sm:$0xf]
    %v7935 = vld [vmem:[#allocation9 + $0x480] sm:$0xf]
    %v7936 = vld [vmem:[#allocation9 + $0x484] sm:$0xf]
    %v7937 = vld [vmem:[#allocation9 + $0x488] sm:$0xf]
    %v7938 = vld [vmem:[#allocation9 + $0x48c] sm:$0xf]
    %v7939 = vld [vmem:[#allocation9 + $0x490] sm:$0xf]
    %v7940 = vld [vmem:[#allocation9 + $0x494] sm:$0xf]
    %v7941 = vld [vmem:[#allocation9 + $0x498] sm:$0xf]
    %v7942 = vld [vmem:[#allocation9 + $0x49c] sm:$0xf]
    %v7943 = vld [vmem:[#allocation9 + $0x4a0] sm:$0xf]
    %v7944 = vld [vmem:[#allocation9 + $0x4a4] sm:$0xf]
    %v7945 = vld [vmem:[#allocation9 + $0x4a8] sm:$0xf]
    %v7946 = vld [vmem:[#allocation9 + $0x4ac] sm:$0xf]
    %v7947 = vld [vmem:[#allocation9 + $0x4b0] sm:$0xf]
    %v7948 = vld [vmem:[#allocation9 + $0x4b4] sm:$0xf]
    %v7949 = vld [vmem:[#allocation9 + $0x4b8] sm:$0xf]
    %v7950 = vld [vmem:[#allocation9 + $0x4bc] sm:$0xf]
    %v7951 = vld [vmem:[#allocation9 + $0x4c0] sm:$0xf]
    %v7952 = vld [vmem:[#allocation9 + $0x4c4] sm:$0xf]
    %v7953 = vld [vmem:[#allocation9 + $0x4c8] sm:$0xf]
    %v7954 = vld [vmem:[#allocation9 + $0x4cc] sm:$0xf]
    %v7955 = vld [vmem:[#allocation9 + $0x4d0] sm:$0xf]
    %v7956 = vld [vmem:[#allocation9 + $0x4d4] sm:$0xf]
    %v7957 = vld [vmem:[#allocation9 + $0x4d8] sm:$0xf]
    %v7958 = vld [vmem:[#allocation9 + $0x4dc] sm:$0xf]
    %v7959 = vld [vmem:[#allocation9 + $0x4e0] sm:$0xf]
    %v7960 = vld [vmem:[#allocation9 + $0x4e4] sm:$0xf]
    %v7961 = vld [vmem:[#allocation9 + $0x4e8] sm:$0xf]
    %v7962 = vld [vmem:[#allocation9 + $0x4ec] sm:$0xf]
    %v7963 = vld [vmem:[#allocation9 + $0x4f0] sm:$0xf]
    %v7964 = vld [vmem:[#allocation9 + $0x4f4] sm:$0xf]
    %v7965 = vld [vmem:[#allocation9 + $0x4f8] sm:$0xf]
    %v7966 = vld [vmem:[#allocation9 + $0x4fc] sm:$0xf]
    %v7967 = vld [vmem:[#allocation9 + $0x500] sm:$0xf]
    %v7968 = vld [vmem:[#allocation9 + $0x504] sm:$0xf]
    %v7969 = vld [vmem:[#allocation9 + $0x508] sm:$0xf]
    %v7970 = vld [vmem:[#allocation9 + $0x50c] sm:$0xf]
    %v7971 = vld [vmem:[#allocation9 + $0x510] sm:$0xf]
    %v7972 = vld [vmem:[#allocation9 + $0x514] sm:$0xf]
    %v7973 = vld [vmem:[#allocation9 + $0x518] sm:$0xf]
    %v7974 = vld [vmem:[#allocation9 + $0x51c] sm:$0xf]
    %v7975 = vld [vmem:[#allocation9 + $0x520] sm:$0xf]
    %v7976 = vld [vmem:[#allocation9 + $0x524] sm:$0xf]
    %v7977 = vld [vmem:[#allocation9 + $0x528] sm:$0xf]
    %v7978 = vld [vmem:[#allocation9 + $0x52c] sm:$0xf]
    %v7979 = vld [vmem:[#allocation9 + $0x530] sm:$0xf]
    %v7980 = vld [vmem:[#allocation9 + $0x534] sm:$0xf]
    %v7981 = vld [vmem:[#allocation9 + $0x538] sm:$0xf]
    %v7982 = vld [vmem:[#allocation9 + $0x53c] sm:$0xf]
    %v7983 = vld [vmem:[#allocation9 + $0x540] sm:$0xf]
    %v7984 = vld [vmem:[#allocation9 + $0x544] sm:$0xf]
    %v7985 = vld [vmem:[#allocation9 + $0x548] sm:$0xf]
    %v7986 = vld [vmem:[#allocation9 + $0x54c] sm:$0xf]
    %v7987 = vld [vmem:[#allocation9 + $0x550] sm:$0xf]
    %v7988 = vld [vmem:[#allocation9 + $0x554] sm:$0xf]
    %v7989 = vld [vmem:[#allocation9 + $0x558] sm:$0xf]
    %v7990 = vld [vmem:[#allocation9 + $0x55c] sm:$0xf]
    %v7991 = vld [vmem:[#allocation9 + $0x560] sm:$0xf]
    %v7992 = vld [vmem:[#allocation9 + $0x564] sm:$0xf]
    %v7993 = vld [vmem:[#allocation9 + $0x568] sm:$0xf]
    %v7994 = vld [vmem:[#allocation9 + $0x56c] sm:$0xf]
    %v7995 = vld [vmem:[#allocation9 + $0x570] sm:$0xf]
    %v7996 = vld [vmem:[#allocation9 + $0x574] sm:$0xf]
    %v7997 = vld [vmem:[#allocation9 + $0x578] sm:$0xf]
    %v7998 = vld [vmem:[#allocation9 + $0x57c] sm:$0xf]
    %v7999 = vld [vmem:[#allocation9 + $0x580] sm:$0xf]
    %v8000 = vld [vmem:[#allocation9 + $0x584] sm:$0xf]
    %v8001 = vld [vmem:[#allocation9 + $0x588] sm:$0xf]
    %v8002 = vld [vmem:[#allocation9 + $0x58c] sm:$0xf]
    %v8003 = vld [vmem:[#allocation9 + $0x590] sm:$0xf]
    %v8004 = vld [vmem:[#allocation9 + $0x594] sm:$0xf]
    %v8005 = vld [vmem:[#allocation9 + $0x598] sm:$0xf]
    %v8006 = vld [vmem:[#allocation9 + $0x59c] sm:$0xf]
    %v8007 = vld [vmem:[#allocation9 + $0x5a0] sm:$0xf]
    %v8008 = vld [vmem:[#allocation9 + $0x5a4] sm:$0xf]
    %v8009 = vld [vmem:[#allocation9 + $0x5a8] sm:$0xf]
    %v8010 = vld [vmem:[#allocation9 + $0x5ac] sm:$0xf]
    %v8011 = vld [vmem:[#allocation9 + $0x5b0] sm:$0xf]
    %v8012 = vld [vmem:[#allocation9 + $0x5b4] sm:$0xf]
    %v8013 = vld [vmem:[#allocation9 + $0x5b8] sm:$0xf]
    %v8014 = vld [vmem:[#allocation9 + $0x5bc] sm:$0xf]
    %v8015 = vld [vmem:[#allocation9 + $0x5c0] sm:$0xf]
    %v8016 = vld [vmem:[#allocation9 + $0x5c4] sm:$0xf]
    %v8017 = vld [vmem:[#allocation9 + $0x5c8] sm:$0xf]
    %v8018 = vld [vmem:[#allocation9 + $0x5cc] sm:$0xf]
    %v8019 = vld [vmem:[#allocation9 + $0x5d0] sm:$0xf]
    %v8020 = vld [vmem:[#allocation9 + $0x5d4] sm:$0xf]
    %v8021 = vld [vmem:[#allocation9 + $0x5d8] sm:$0xf]
    %v8022 = vld [vmem:[#allocation9 + $0x5dc] sm:$0xf]
    %v8023 = vld [vmem:[#allocation9 + $0x5e0] sm:$0xf]
    %v8024 = vld [vmem:[#allocation9 + $0x5e4] sm:$0xf]
    %v8025 = vld [vmem:[#allocation9 + $0x5e8] sm:$0xf]
    %v8026 = vld [vmem:[#allocation9 + $0x5ec] sm:$0xf]
    %v8027 = vld [vmem:[#allocation9 + $0x5f0] sm:$0xf]
    %v8028 = vld [vmem:[#allocation9 + $0x5f4] sm:$0xf]
    %v8029 = vld [vmem:[#allocation9 + $0x5f8] sm:$0xf]
    %v8030 = vld [vmem:[#allocation9 + $0x5fc] sm:$0xf]
    %v8031 = vld [vmem:[#allocation9 + $0x600] sm:$0xf]
    %v8032 = vld [vmem:[#allocation9 + $0x604] sm:$0xf]
    %v8033 = vld [vmem:[#allocation9 + $0x608] sm:$0xf]
    %v8034 = vld [vmem:[#allocation9 + $0x60c] sm:$0xf]
    %v8035 = vld [vmem:[#allocation9 + $0x610] sm:$0xf]
    %v8036 = vld [vmem:[#allocation9 + $0x614] sm:$0xf]
    %v8037 = vld [vmem:[#allocation9 + $0x618] sm:$0xf]
    %v8038 = vld [vmem:[#allocation9 + $0x61c] sm:$0xf]
    %v8039 = vld [vmem:[#allocation9 + $0x620] sm:$0xf]
    %v8040 = vld [vmem:[#allocation9 + $0x624] sm:$0xf]
    %v8041 = vld [vmem:[#allocation9 + $0x628] sm:$0xf]
    %v8042 = vld [vmem:[#allocation9 + $0x62c] sm:$0xf]
    %v8043 = vld [vmem:[#allocation9 + $0x630] sm:$0xf]
    %v8044 = vld [vmem:[#allocation9 + $0x634] sm:$0xf]
    %v8045 = vld [vmem:[#allocation9 + $0x638] sm:$0xf]
    %v8046 = vld [vmem:[#allocation9 + $0x63c] sm:$0xf]
    %v8047 = vld [vmem:[#allocation9 + $0x640] sm:$0xf]
    %v8048 = vld [vmem:[#allocation9 + $0x644] sm:$0xf]
    %v8049 = vld [vmem:[#allocation9 + $0x648] sm:$0xf]
    %v8050 = vld [vmem:[#allocation9 + $0x64c] sm:$0xf]
    %v8051 = vld [vmem:[#allocation9 + $0x650] sm:$0xf]
    %v8052 = vld [vmem:[#allocation9 + $0x654] sm:$0xf]
    %v8053 = vld [vmem:[#allocation9 + $0x658] sm:$0xf]
    %v8054 = vld [vmem:[#allocation9 + $0x65c] sm:$0xf]
    %v8055 = vld [vmem:[#allocation9 + $0x660] sm:$0xf]
    %v8056 = vld [vmem:[#allocation9 + $0x664] sm:$0xf]
    %v8057 = vld [vmem:[#allocation9 + $0x668] sm:$0xf]
    %v8058 = vld [vmem:[#allocation9 + $0x66c] sm:$0xf]
    %v8059 = vld [vmem:[#allocation9 + $0x670] sm:$0xf]
    %v8060 = vld [vmem:[#allocation9 + $0x674] sm:$0xf]
    %v8061 = vld [vmem:[#allocation9 + $0x678] sm:$0xf]
    %v8062 = vld [vmem:[#allocation9 + $0x67c] sm:$0xf]
    %v8063 = vld [vmem:[#allocation9 + $0x680] sm:$0xf]
    %v8064 = vld [vmem:[#allocation9 + $0x684] sm:$0xf]
    %v8065 = vld [vmem:[#allocation9 + $0x688] sm:$0xf]
    %v8066 = vld [vmem:[#allocation9 + $0x68c] sm:$0xf]
    %v8067 = vld [vmem:[#allocation9 + $0x690] sm:$0xf]
    %v8068 = vld [vmem:[#allocation9 + $0x694] sm:$0xf]
    %v8069 = vld [vmem:[#allocation9 + $0x698] sm:$0xf]
    %v8070 = vld [vmem:[#allocation9 + $0x69c] sm:$0xf]
    %v8071 = vld [vmem:[#allocation9 + $0x6a0] sm:$0xf]
    %v8072 = vld [vmem:[#allocation9 + $0x6a4] sm:$0xf]
    %v8073 = vld [vmem:[#allocation9 + $0x6a8] sm:$0xf]
    %v8074 = vld [vmem:[#allocation9 + $0x6ac] sm:$0xf]
    %v8075 = vld [vmem:[#allocation9 + $0x6b0] sm:$0xf]
    %v8076 = vld [vmem:[#allocation9 + $0x6b4] sm:$0xf]
    %v8077 = vld [vmem:[#allocation9 + $0x6b8] sm:$0xf]
    %v8078 = vld [vmem:[#allocation9 + $0x6bc] sm:$0xf]
    %v8079 = vld [vmem:[#allocation9 + $0x6c0] sm:$0xf]
    %v8080 = vld [vmem:[#allocation9 + $0x6c4] sm:$0xf]
    %v8081 = vld [vmem:[#allocation9 + $0x6c8] sm:$0xf]
    %v8082 = vld [vmem:[#allocation9 + $0x6cc] sm:$0xf]
    %v8083 = vld [vmem:[#allocation9 + $0x6d0] sm:$0xf]
    %v8084 = vld [vmem:[#allocation9 + $0x6d4] sm:$0xf]
    %v8085 = vld [vmem:[#allocation9 + $0x6d8] sm:$0xf]
    %v8086 = vld [vmem:[#allocation9 + $0x6dc] sm:$0xf]
    %v8087 = vld [vmem:[#allocation9 + $0x6e0] sm:$0xf]
    %v8088 = vld [vmem:[#allocation9 + $0x6e4] sm:$0xf]
    %v8089 = vld [vmem:[#allocation9 + $0x6e8] sm:$0xf]
    %v8090 = vld [vmem:[#allocation9 + $0x6ec] sm:$0xf]
    %v8091 = vld [vmem:[#allocation9 + $0x6f0] sm:$0xf]
    %v8092 = vld [vmem:[#allocation9 + $0x6f4] sm:$0xf]
    %v8093 = vld [vmem:[#allocation9 + $0x6f8] sm:$0xf]
    %v8094 = vld [vmem:[#allocation9 + $0x6fc] sm:$0xf]
    %v8095 = vld [vmem:[#allocation10] sm:$0x1]
    %v8097 = vperm.slane %v8095, 0
    %v8547 = vunpack.c.l.b16 %v7647
    %v8548 = vunpack.c.l.b16 %v7648
    %v8549 = vunpack.c.l.b16 %v7649
    %v8550 = vunpack.c.l.b16 %v7650
    %v8551 = vunpack.c.l.b16 %v7651
    %v8552 = vunpack.c.l.b16 %v7652
    %v8553 = vunpack.c.l.b16 %v7653
    %v8554 = vunpack.c.l.b16 %v7654
    %v8555 = vunpack.c.l.b16 %v7655
    %v8556 = vunpack.c.l.b16 %v7656
    %v8557 = vunpack.c.l.b16 %v7657
    %v8558 = vunpack.c.l.b16 %v7658
    %v8559 = vunpack.c.l.b16 %v7659
    %v8560 = vunpack.c.l.b16 %v7660
    %v8561 = vunpack.c.l.b16 %v7661
    %v8562 = vunpack.c.l.b16 %v7662
    %v8563 = vunpack.c.l.b16 %v7663
    %v8564 = vunpack.c.l.b16 %v7664
    %v8565 = vunpack.c.l.b16 %v7665
    %v8566 = vunpack.c.l.b16 %v7666
    %v8567 = vunpack.c.l.b16 %v7667
    %v8568 = vunpack.c.l.b16 %v7668
    %v8569 = vunpack.c.l.b16 %v7669
    %v8570 = vunpack.c.l.b16 %v7670
    %v8571 = vunpack.c.l.b16 %v7671
    %v8572 = vunpack.c.l.b16 %v7672
    %v8573 = vunpack.c.l.b16 %v7673
    %v8574 = vunpack.c.l.b16 %v7674
    %v8575 = vunpack.c.l.b16 %v7675
    %v8576 = vunpack.c.l.b16 %v7676
    %v8577 = vunpack.c.l.b16 %v7677
    %v8578 = vunpack.c.l.b16 %v7678
    %v8579 = vunpack.c.l.b16 %v7679
    %v8580 = vunpack.c.l.b16 %v7680
    %v8581 = vunpack.c.l.b16 %v7681
    %v8582 = vunpack.c.l.b16 %v7682
    %v8583 = vunpack.c.l.b16 %v7683
    %v8584 = vunpack.c.l.b16 %v7684
    %v8585 = vunpack.c.l.b16 %v7685
    %v8586 = vunpack.c.l.b16 %v7686
    %v8587 = vunpack.c.l.b16 %v7687
    %v8588 = vunpack.c.l.b16 %v7688
    %v8589 = vunpack.c.l.b16 %v7689
    %v8590 = vunpack.c.l.b16 %v7690
    %v8591 = vunpack.c.l.b16 %v7691
    %v8592 = vunpack.c.l.b16 %v7692
    %v8593 = vunpack.c.l.b16 %v7693
    %v8594 = vunpack.c.l.b16 %v7694
    %v8595 = vunpack.c.l.b16 %v7695
    %v8596 = vunpack.c.l.b16 %v7696
    %v8597 = vunpack.c.l.b16 %v7697
    %v8598 = vunpack.c.l.b16 %v7698
    %v8599 = vunpack.c.l.b16 %v7699
    %v8600 = vunpack.c.l.b16 %v7700
    %v8601 = vunpack.c.l.b16 %v7701
    %v8602 = vunpack.c.l.b16 %v7702
    %v8603 = vunpack.c.l.b16 %v7703
    %v8604 = vunpack.c.l.b16 %v7704
    %v8605 = vunpack.c.l.b16 %v7705
    %v8606 = vunpack.c.l.b16 %v7706
    %v8607 = vunpack.c.l.b16 %v7707
    %v8608 = vunpack.c.l.b16 %v7708
    %v8609 = vunpack.c.l.b16 %v7709
    %v8610 = vunpack.c.l.b16 %v7710
    %v8611 = vunpack.c.l.b16 %v7711
    %v8612 = vunpack.c.l.b16 %v7712
    %v8613 = vunpack.c.l.b16 %v7713
    %v8614 = vunpack.c.l.b16 %v7714
    %v8615 = vunpack.c.l.b16 %v7715
    %v8616 = vunpack.c.l.b16 %v7716
    %v8617 = vunpack.c.l.b16 %v7717
    %v8618 = vunpack.c.l.b16 %v7718
    %v8619 = vunpack.c.l.b16 %v7719
    %v8620 = vunpack.c.l.b16 %v7720
    %v8621 = vunpack.c.l.b16 %v7721
    %v8622 = vunpack.c.l.b16 %v7722
    %v8623 = vunpack.c.l.b16 %v7723
    %v8624 = vunpack.c.l.b16 %v7724
    %v8625 = vunpack.c.l.b16 %v7725
    %v8626 = vunpack.c.l.b16 %v7726
    %v8627 = vunpack.c.l.b16 %v7727
    %v8628 = vunpack.c.l.b16 %v7728
    %v8629 = vunpack.c.l.b16 %v7729
    %v8630 = vunpack.c.l.b16 %v7730
    %v8631 = vunpack.c.l.b16 %v7731
    %v8632 = vunpack.c.l.b16 %v7732
    %v8633 = vunpack.c.l.b16 %v7733
    %v8634 = vunpack.c.l.b16 %v7734
    %v8635 = vunpack.c.l.b16 %v7735
    %v8636 = vunpack.c.l.b16 %v7736
    %v8637 = vunpack.c.l.b16 %v7737
    %v8638 = vunpack.c.l.b16 %v7738
    %v8639 = vunpack.c.l.b16 %v7739
    %v8640 = vunpack.c.l.b16 %v7740
    %v8641 = vunpack.c.l.b16 %v7741
    %v8642 = vunpack.c.l.b16 %v7742
    %v8643 = vunpack.c.l.b16 %v7743
    %v8644 = vunpack.c.l.b16 %v7744
    %v8645 = vunpack.c.l.b16 %v7745
    %v8646 = vunpack.c.l.b16 %v7746
    %v8647 = vunpack.c.l.b16 %v7747
    %v8648 = vunpack.c.l.b16 %v7748
    %v8649 = vunpack.c.l.b16 %v7749
    %v8650 = vunpack.c.l.b16 %v7750
    %v8651 = vunpack.c.l.b16 %v7751
    %v8652 = vunpack.c.l.b16 %v7752
    %v8653 = vunpack.c.l.b16 %v7753
    %v8654 = vunpack.c.l.b16 %v7754
    %v8655 = vunpack.c.l.b16 %v7755
    %v8656 = vunpack.c.l.b16 %v7756
    %v8657 = vunpack.c.l.b16 %v7757
    %v8658 = vunpack.c.l.b16 %v7758
    %v8659 = vunpack.c.l.b16 %v7759
    %v8660 = vunpack.c.l.b16 %v7760
    %v8661 = vunpack.c.l.b16 %v7761
    %v8662 = vunpack.c.l.b16 %v7762
    %v8663 = vunpack.c.l.b16 %v7763
    %v8664 = vunpack.c.l.b16 %v7764
    %v8665 = vunpack.c.l.b16 %v7765
    %v8666 = vunpack.c.l.b16 %v7766
    %v8667 = vunpack.c.l.b16 %v7767
    %v8668 = vunpack.c.l.b16 %v7768
    %v8669 = vunpack.c.l.b16 %v7769
    %v8670 = vunpack.c.l.b16 %v7770
    %v8671 = vunpack.c.l.b16 %v7771
    %v8672 = vunpack.c.l.b16 %v7772
    %v8673 = vunpack.c.l.b16 %v7773
    %v8674 = vunpack.c.l.b16 %v7774
    %v8675 = vunpack.c.l.b16 %v7775
    %v8676 = vunpack.c.l.b16 %v7776
    %v8677 = vunpack.c.l.b16 %v7777
    %v8678 = vunpack.c.l.b16 %v7778
    %v8679 = vunpack.c.l.b16 %v7779
    %v8680 = vunpack.c.l.b16 %v7780
    %v8681 = vunpack.c.l.b16 %v7781
    %v8682 = vunpack.c.l.b16 %v7782
    %v8683 = vunpack.c.l.b16 %v7783
    %v8684 = vunpack.c.l.b16 %v7784
    %v8685 = vunpack.c.l.b16 %v7785
    %v8686 = vunpack.c.l.b16 %v7786
    %v8687 = vunpack.c.l.b16 %v7787
    %v8688 = vunpack.c.l.b16 %v7788
    %v8689 = vunpack.c.l.b16 %v7789
    %v8690 = vunpack.c.l.b16 %v7790
    %v8691 = vunpack.c.l.b16 %v7791
    %v8692 = vunpack.c.l.b16 %v7792
    %v8693 = vunpack.c.l.b16 %v7793
    %v8694 = vunpack.c.l.b16 %v7794
    %v8695 = vunpack.c.l.b16 %v7795
    %v8696 = vunpack.c.l.b16 %v7796
    %v8697 = vunpack.c.l.b16 %v7797
    %v8698 = vunpack.c.l.b16 %v7798
    %v8699 = vunpack.c.l.b16 %v7799
    %v8700 = vunpack.c.l.b16 %v7800
    %v8701 = vunpack.c.l.b16 %v7801
    %v8702 = vunpack.c.l.b16 %v7802
    %v8703 = vunpack.c.l.b16 %v7803
    %v8704 = vunpack.c.l.b16 %v7804
    %v8705 = vunpack.c.l.b16 %v7805
    %v8706 = vunpack.c.l.b16 %v7806
    %v8707 = vunpack.c.l.b16 %v7807
    %v8708 = vunpack.c.l.b16 %v7808
    %v8709 = vunpack.c.l.b16 %v7809
    %v8710 = vunpack.c.l.b16 %v7810
    %v8711 = vunpack.c.l.b16 %v7811
    %v8712 = vunpack.c.l.b16 %v7812
    %v8713 = vunpack.c.l.b16 %v7813
    %v8714 = vunpack.c.l.b16 %v7814
    %v8715 = vunpack.c.l.b16 %v7815
    %v8716 = vunpack.c.l.b16 %v7816
    %v8717 = vunpack.c.l.b16 %v7817
    %v8718 = vunpack.c.l.b16 %v7818
    %v8719 = vunpack.c.l.b16 %v7819
    %v8720 = vunpack.c.l.b16 %v7820
    %v8721 = vunpack.c.l.b16 %v7821
    %v8722 = vunpack.c.l.b16 %v7822
    %v8723 = vunpack.c.l.b16 %v7823
    %v8724 = vunpack.c.l.b16 %v7824
    %v8725 = vunpack.c.l.b16 %v7825
    %v8726 = vunpack.c.l.b16 %v7826
    %v8727 = vunpack.c.l.b16 %v7827
    %v8728 = vunpack.c.l.b16 %v7828
    %v8729 = vunpack.c.l.b16 %v7829
    %v8730 = vunpack.c.l.b16 %v7830
    %v8731 = vunpack.c.l.b16 %v7831
    %v8732 = vunpack.c.l.b16 %v7832
    %v8733 = vunpack.c.l.b16 %v7833
    %v8734 = vunpack.c.l.b16 %v7834
    %v8735 = vunpack.c.l.b16 %v7835
    %v8736 = vunpack.c.l.b16 %v7836
    %v8737 = vunpack.c.l.b16 %v7837
    %v8738 = vunpack.c.l.b16 %v7838
    %v8739 = vunpack.c.l.b16 %v7839
    %v8740 = vunpack.c.l.b16 %v7840
    %v8741 = vunpack.c.l.b16 %v7841
    %v8742 = vunpack.c.l.b16 %v7842
    %v8743 = vunpack.c.l.b16 %v7843
    %v8744 = vunpack.c.l.b16 %v7844
    %v8745 = vunpack.c.l.b16 %v7845
    %v8746 = vunpack.c.l.b16 %v7846
    %v8747 = vunpack.c.l.b16 %v7847
    %v8748 = vunpack.c.l.b16 %v7848
    %v8749 = vunpack.c.l.b16 %v7849
    %v8750 = vunpack.c.l.b16 %v7850
    %v8751 = vunpack.c.l.b16 %v7851
    %v8752 = vunpack.c.l.b16 %v7852
    %v8753 = vunpack.c.l.b16 %v7853
    %v8754 = vunpack.c.l.b16 %v7854
    %v8755 = vunpack.c.l.b16 %v7855
    %v8756 = vunpack.c.l.b16 %v7856
    %v8757 = vunpack.c.l.b16 %v7857
    %v8758 = vunpack.c.l.b16 %v7858
    %v8759 = vunpack.c.l.b16 %v7859
    %v8760 = vunpack.c.l.b16 %v7860
    %v8761 = vunpack.c.l.b16 %v7861
    %v8762 = vunpack.c.l.b16 %v7862
    %v8763 = vunpack.c.l.b16 %v7863
    %v8764 = vunpack.c.l.b16 %v7864
    %v8765 = vunpack.c.l.b16 %v7865
    %v8766 = vunpack.c.l.b16 %v7866
    %v8767 = vunpack.c.l.b16 %v7867
    %v8768 = vunpack.c.l.b16 %v7868
    %v8769 = vunpack.c.l.b16 %v7869
    %v8770 = vunpack.c.l.b16 %v7870
    %v8771 = vunpack.c.l.b16 %v7871
    %v8772 = vunpack.c.l.b16 %v7872
    %v8773 = vunpack.c.l.b16 %v7873
    %v8774 = vunpack.c.l.b16 %v7874
    %v8775 = vunpack.c.l.b16 %v7875
    %v8776 = vunpack.c.l.b16 %v7876
    %v8777 = vunpack.c.l.b16 %v7877
    %v8778 = vunpack.c.l.b16 %v7878
    %v8779 = vunpack.c.l.b16 %v7879
    %v8780 = vunpack.c.l.b16 %v7880
    %v8781 = vunpack.c.l.b16 %v7881
    %v8782 = vunpack.c.l.b16 %v7882
    %v8783 = vunpack.c.l.b16 %v7883
    %v8784 = vunpack.c.l.b16 %v7884
    %v8785 = vunpack.c.l.b16 %v7885
    %v8786 = vunpack.c.l.b16 %v7886
    %v8787 = vunpack.c.l.b16 %v7887
    %v8788 = vunpack.c.l.b16 %v7888
    %v8789 = vunpack.c.l.b16 %v7889
    %v8790 = vunpack.c.l.b16 %v7890
    %v8791 = vunpack.c.l.b16 %v7891
    %v8792 = vunpack.c.l.b16 %v7892
    %v8793 = vunpack.c.l.b16 %v7893
    %v8794 = vunpack.c.l.b16 %v7894
    %v8795 = vunpack.c.l.b16 %v7895
    %v8796 = vunpack.c.l.b16 %v7896
    %v8797 = vunpack.c.l.b16 %v7897
    %v8798 = vunpack.c.l.b16 %v7898
    %v8799 = vunpack.c.l.b16 %v7899
    %v8800 = vunpack.c.l.b16 %v7900
    %v8801 = vunpack.c.l.b16 %v7901
    %v8802 = vunpack.c.l.b16 %v7902
    %v8803 = vunpack.c.l.b16 %v7903
    %v8804 = vunpack.c.l.b16 %v7904
    %v8805 = vunpack.c.l.b16 %v7905
    %v8806 = vunpack.c.l.b16 %v7906
    %v8807 = vunpack.c.l.b16 %v7907
    %v8808 = vunpack.c.l.b16 %v7908
    %v8809 = vunpack.c.l.b16 %v7909
    %v8810 = vunpack.c.l.b16 %v7910
    %v8811 = vunpack.c.l.b16 %v7911
    %v8812 = vunpack.c.l.b16 %v7912
    %v8813 = vunpack.c.l.b16 %v7913
    %v8814 = vunpack.c.l.b16 %v7914
    %v8815 = vunpack.c.l.b16 %v7915
    %v8816 = vunpack.c.l.b16 %v7916
    %v8817 = vunpack.c.l.b16 %v7917
    %v8818 = vunpack.c.l.b16 %v7918
    %v8819 = vunpack.c.l.b16 %v7919
    %v8820 = vunpack.c.l.b16 %v7920
    %v8821 = vunpack.c.l.b16 %v7921
    %v8822 = vunpack.c.l.b16 %v7922
    %v8823 = vunpack.c.l.b16 %v7923
    %v8824 = vunpack.c.l.b16 %v7924
    %v8825 = vunpack.c.l.b16 %v7925
    %v8826 = vunpack.c.l.b16 %v7926
    %v8827 = vunpack.c.l.b16 %v7927
    %v8828 = vunpack.c.l.b16 %v7928
    %v8829 = vunpack.c.l.b16 %v7929
    %v8830 = vunpack.c.l.b16 %v7930
    %v8831 = vunpack.c.l.b16 %v7931
    %v8832 = vunpack.c.l.b16 %v7932
    %v8833 = vunpack.c.l.b16 %v7933
    %v8834 = vunpack.c.l.b16 %v7934
    %v8835 = vunpack.c.l.b16 %v7935
    %v8836 = vunpack.c.l.b16 %v7936
    %v8837 = vunpack.c.l.b16 %v7937
    %v8838 = vunpack.c.l.b16 %v7938
    %v8839 = vunpack.c.l.b16 %v7939
    %v8840 = vunpack.c.l.b16 %v7940
    %v8841 = vunpack.c.l.b16 %v7941
    %v8842 = vunpack.c.l.b16 %v7942
    %v8843 = vunpack.c.l.b16 %v7943
    %v8844 = vunpack.c.l.b16 %v7944
    %v8845 = vunpack.c.l.b16 %v7945
    %v8846 = vunpack.c.l.b16 %v7946
    %v8847 = vunpack.c.l.b16 %v7947
    %v8848 = vunpack.c.l.b16 %v7948
    %v8849 = vunpack.c.l.b16 %v7949
    %v8850 = vunpack.c.l.b16 %v7950
    %v8851 = vunpack.c.l.b16 %v7951
    %v8852 = vunpack.c.l.b16 %v7952
    %v8853 = vunpack.c.l.b16 %v7953
    %v8854 = vunpack.c.l.b16 %v7954
    %v8855 = vunpack.c.l.b16 %v7955
    %v8856 = vunpack.c.l.b16 %v7956
    %v8857 = vunpack.c.l.b16 %v7957
    %v8858 = vunpack.c.l.b16 %v7958
    %v8859 = vunpack.c.l.b16 %v7959
    %v8860 = vunpack.c.l.b16 %v7960
    %v8861 = vunpack.c.l.b16 %v7961
    %v8862 = vunpack.c.l.b16 %v7962
    %v8863 = vunpack.c.l.b16 %v7963
    %v8864 = vunpack.c.l.b16 %v7964
    %v8865 = vunpack.c.l.b16 %v7965
    %v8866 = vunpack.c.l.b16 %v7966
    %v8867 = vunpack.c.l.b16 %v7967
    %v8868 = vunpack.c.l.b16 %v7968
    %v8869 = vunpack.c.l.b16 %v7969
    %v8870 = vunpack.c.l.b16 %v7970
    %v8871 = vunpack.c.l.b16 %v7971
    %v8872 = vunpack.c.l.b16 %v7972
    %v8873 = vunpack.c.l.b16 %v7973
    %v8874 = vunpack.c.l.b16 %v7974
    %v8875 = vunpack.c.l.b16 %v7975
    %v8876 = vunpack.c.l.b16 %v7976
    %v8877 = vunpack.c.l.b16 %v7977
    %v8878 = vunpack.c.l.b16 %v7978
    %v8879 = vunpack.c.l.b16 %v7979
    %v8880 = vunpack.c.l.b16 %v7980
    %v8881 = vunpack.c.l.b16 %v7981
    %v8882 = vunpack.c.l.b16 %v7982
    %v8883 = vunpack.c.l.b16 %v7983
    %v8884 = vunpack.c.l.b16 %v7984
    %v8885 = vunpack.c.l.b16 %v7985
    %v8886 = vunpack.c.l.b16 %v7986
    %v8887 = vunpack.c.l.b16 %v7987
    %v8888 = vunpack.c.l.b16 %v7988
    %v8889 = vunpack.c.l.b16 %v7989
    %v8890 = vunpack.c.l.b16 %v7990
    %v8891 = vunpack.c.l.b16 %v7991
    %v8892 = vunpack.c.l.b16 %v7992
    %v8893 = vunpack.c.l.b16 %v7993
    %v8894 = vunpack.c.l.b16 %v7994
    %v8895 = vunpack.c.l.b16 %v7995
    %v8896 = vunpack.c.l.b16 %v7996
    %v8897 = vunpack.c.l.b16 %v7997
    %v8898 = vunpack.c.l.b16 %v7998
    %v8899 = vunpack.c.l.b16 %v7999
    %v8900 = vunpack.c.l.b16 %v8000
    %v8901 = vunpack.c.l.b16 %v8001
    %v8902 = vunpack.c.l.b16 %v8002
    %v8903 = vunpack.c.l.b16 %v8003
    %v8904 = vunpack.c.l.b16 %v8004
    %v8905 = vunpack.c.l.b16 %v8005
    %v8906 = vunpack.c.l.b16 %v8006
    %v8907 = vunpack.c.l.b16 %v8007
    %v8908 = vunpack.c.l.b16 %v8008
    %v8909 = vunpack.c.l.b16 %v8009
    %v8910 = vunpack.c.l.b16 %v8010
    %v8911 = vunpack.c.l.b16 %v8011
    %v8912 = vunpack.c.l.b16 %v8012
    %v8913 = vunpack.c.l.b16 %v8013
    %v8914 = vunpack.c.l.b16 %v8014
    %v8915 = vunpack.c.l.b16 %v8015
    %v8916 = vunpack.c.l.b16 %v8016
    %v8917 = vunpack.c.l.b16 %v8017
    %v8918 = vunpack.c.l.b16 %v8018
    %v8919 = vunpack.c.l.b16 %v8019
    %v8920 = vunpack.c.l.b16 %v8020
    %v8921 = vunpack.c.l.b16 %v8021
    %v8922 = vunpack.c.l.b16 %v8022
    %v8923 = vunpack.c.l.b16 %v8023
    %v8924 = vunpack.c.l.b16 %v8024
    %v8925 = vunpack.c.l.b16 %v8025
    %v8926 = vunpack.c.l.b16 %v8026
    %v8927 = vunpack.c.l.b16 %v8027
    %v8928 = vunpack.c.l.b16 %v8028
    %v8929 = vunpack.c.l.b16 %v8029
    %v8930 = vunpack.c.l.b16 %v8030
    %v8931 = vunpack.c.l.b16 %v8031
    %v8932 = vunpack.c.l.b16 %v8032
    %v8933 = vunpack.c.l.b16 %v8033
    %v8934 = vunpack.c.l.b16 %v8034
    %v8935 = vunpack.c.l.b16 %v8035
    %v8936 = vunpack.c.l.b16 %v8036
    %v8937 = vunpack.c.l.b16 %v8037
    %v8938 = vunpack.c.l.b16 %v8038
    %v8939 = vunpack.c.l.b16 %v8039
    %v8940 = vunpack.c.l.b16 %v8040
    %v8941 = vunpack.c.l.b16 %v8041
    %v8942 = vunpack.c.l.b16 %v8042
    %v8943 = vunpack.c.l.b16 %v8043
    %v8944 = vunpack.c.l.b16 %v8044
    %v8945 = vunpack.c.l.b16 %v8045
    %v8946 = vunpack.c.l.b16 %v8046
    %v8947 = vunpack.c.l.b16 %v8047
    %v8948 = vunpack.c.l.b16 %v8048
    %v8949 = vunpack.c.l.b16 %v8049
    %v8950 = vunpack.c.l.b16 %v8050
    %v8951 = vunpack.c.l.b16 %v8051
    %v8952 = vunpack.c.l.b16 %v8052
    %v8953 = vunpack.c.l.b16 %v8053
    %v8954 = vunpack.c.l.b16 %v8054
    %v8955 = vunpack.c.l.b16 %v8055
    %v8956 = vunpack.c.l.b16 %v8056
    %v8957 = vunpack.c.l.b16 %v8057
    %v8958 = vunpack.c.l.b16 %v8058
    %v8959 = vunpack.c.l.b16 %v8059
    %v8960 = vunpack.c.l.b16 %v8060
    %v8961 = vunpack.c.l.b16 %v8061
    %v8962 = vunpack.c.l.b16 %v8062
    %v8963 = vunpack.c.l.b16 %v8063
    %v8964 = vunpack.c.l.b16 %v8064
    %v8965 = vunpack.c.l.b16 %v8065
    %v8966 = vunpack.c.l.b16 %v8066
    %v8967 = vunpack.c.l.b16 %v8067
    %v8968 = vunpack.c.l.b16 %v8068
    %v8969 = vunpack.c.l.b16 %v8069
    %v8970 = vunpack.c.l.b16 %v8070
    %v8971 = vunpack.c.l.b16 %v8071
    %v8972 = vunpack.c.l.b16 %v8072
    %v8973 = vunpack.c.l.b16 %v8073
    %v8974 = vunpack.c.l.b16 %v8074
    %v8975 = vunpack.c.l.b16 %v8075
    %v8976 = vunpack.c.l.b16 %v8076
    %v8977 = vunpack.c.l.b16 %v8077
    %v8978 = vunpack.c.l.b16 %v8078
    %v8979 = vunpack.c.l.b16 %v8079
    %v8980 = vunpack.c.l.b16 %v8080
    %v8981 = vunpack.c.l.b16 %v8081
    %v8982 = vunpack.c.l.b16 %v8082
    %v8983 = vunpack.c.l.b16 %v8083
    %v8984 = vunpack.c.l.b16 %v8084
    %v8985 = vunpack.c.l.b16 %v8085
    %v8986 = vunpack.c.l.b16 %v8086
    %v8987 = vunpack.c.l.b16 %v8087
    %v8988 = vunpack.c.l.b16 %v8088
    %v8989 = vunpack.c.l.b16 %v8089
    %v8990 = vunpack.c.l.b16 %v8090
    %v8991 = vunpack.c.l.b16 %v8091
    %v8992 = vunpack.c.l.b16 %v8092
    %v8993 = vunpack.c.l.b16 %v8093
    %v8994 = vunpack.c.l.b16 %v8094
    %v8995 = vpack.c.b16 %v8548, %v8547
    %v8996 = vpack.c.b16 %v8550, %v8549
    %v8997 = vpack.c.b16 %v8552, %v8551
    %v8998 = vpack.c.b16 %v8554, %v8553
    %v8999 = vpack.c.b16 %v8556, %v8555
    %v9000 = vpack.c.b16 %v8558, %v8557
    %v9001 = vpack.c.b16 %v8560, %v8559
    %v9002 = vpack.c.b16 %v8562, %v8561
    %v9003 = vpack.c.b16 %v8564, %v8563
    %v9004 = vpack.c.b16 %v8566, %v8565
    %v9005 = vpack.c.b16 %v8568, %v8567
    %v9006 = vpack.c.b16 %v8570, %v8569
    %v9007 = vpack.c.b16 %v8572, %v8571
    %v9008 = vpack.c.b16 %v8574, %v8573
    %v9009 = vpack.c.b16 %v8576, %v8575
    %v9010 = vpack.c.b16 %v8578, %v8577
    %v9011 = vpack.c.b16 %v8580, %v8579
    %v9012 = vpack.c.b16 %v8582, %v8581
    %v9013 = vpack.c.b16 %v8584, %v8583
    %v9014 = vpack.c.b16 %v8586, %v8585
    %v9015 = vpack.c.b16 %v8588, %v8587
    %v9016 = vpack.c.b16 %v8590, %v8589
    %v9017 = vpack.c.b16 %v8592, %v8591
    %v9018 = vpack.c.b16 %v8594, %v8593
    %v9019 = vpack.c.b16 %v8596, %v8595
    %v9020 = vpack.c.b16 %v8598, %v8597
    %v9021 = vpack.c.b16 %v8600, %v8599
    %v9022 = vpack.c.b16 %v8602, %v8601
    %v9023 = vpack.c.b16 %v8604, %v8603
    %v9024 = vpack.c.b16 %v8606, %v8605
    %v9025 = vpack.c.b16 %v8608, %v8607
    %v9026 = vpack.c.b16 %v8610, %v8609
    %v9027 = vpack.c.b16 %v8612, %v8611
    %v9028 = vpack.c.b16 %v8614, %v8613
    %v9029 = vpack.c.b16 %v8616, %v8615
    %v9030 = vpack.c.b16 %v8618, %v8617
    %v9031 = vpack.c.b16 %v8620, %v8619
    %v9032 = vpack.c.b16 %v8622, %v8621
    %v9033 = vpack.c.b16 %v8624, %v8623
    %v9034 = vpack.c.b16 %v8626, %v8625
    %v9035 = vpack.c.b16 %v8628, %v8627
    %v9036 = vpack.c.b16 %v8630, %v8629
    %v9037 = vpack.c.b16 %v8632, %v8631
    %v9038 = vpack.c.b16 %v8634, %v8633
    %v9039 = vpack.c.b16 %v8636, %v8635
    %v9040 = vpack.c.b16 %v8638, %v8637
    %v9041 = vpack.c.b16 %v8640, %v8639
    %v9042 = vpack.c.b16 %v8642, %v8641
    %v9043 = vpack.c.b16 %v8644, %v8643
    %v9044 = vpack.c.b16 %v8646, %v8645
    %v9045 = vpack.c.b16 %v8648, %v8647
    %v9046 = vpack.c.b16 %v8650, %v8649
    %v9047 = vpack.c.b16 %v8652, %v8651
    %v9048 = vpack.c.b16 %v8654, %v8653
    %v9049 = vpack.c.b16 %v8656, %v8655
    %v9050 = vpack.c.b16 %v8658, %v8657
    %v9051 = vpack.c.b16 %v8660, %v8659
    %v9052 = vpack.c.b16 %v8662, %v8661
    %v9053 = vpack.c.b16 %v8664, %v8663
    %v9054 = vpack.c.b16 %v8666, %v8665
    %v9055 = vpack.c.b16 %v8668, %v8667
    %v9056 = vpack.c.b16 %v8670, %v8669
    %v9057 = vpack.c.b16 %v8672, %v8671
    %v9058 = vpack.c.b16 %v8674, %v8673
    %v9059 = vpack.c.b16 %v8676, %v8675
    %v9060 = vpack.c.b16 %v8678, %v8677
    %v9061 = vpack.c.b16 %v8680, %v8679
    %v9062 = vpack.c.b16 %v8682, %v8681
    %v9063 = vpack.c.b16 %v8684, %v8683
    %v9064 = vpack.c.b16 %v8686, %v8685
    %v9065 = vpack.c.b16 %v8688, %v8687
    %v9066 = vpack.c.b16 %v8690, %v8689
    %v9067 = vpack.c.b16 %v8692, %v8691
    %v9068 = vpack.c.b16 %v8694, %v8693
    %v9069 = vpack.c.b16 %v8696, %v8695
    %v9070 = vpack.c.b16 %v8698, %v8697
    %v9071 = vpack.c.b16 %v8700, %v8699
    %v9072 = vpack.c.b16 %v8702, %v8701
    %v9073 = vpack.c.b16 %v8704, %v8703
    %v9074 = vpack.c.b16 %v8706, %v8705
    %v9075 = vpack.c.b16 %v8708, %v8707
    %v9076 = vpack.c.b16 %v8710, %v8709
    %v9077 = vpack.c.b16 %v8712, %v8711
    %v9078 = vpack.c.b16 %v8714, %v8713
    %v9079 = vpack.c.b16 %v8716, %v8715
    %v9080 = vpack.c.b16 %v8718, %v8717
    %v9081 = vpack.c.b16 %v8720, %v8719
    %v9082 = vpack.c.b16 %v8722, %v8721
    %v9083 = vpack.c.b16 %v8724, %v8723
    %v9084 = vpack.c.b16 %v8726, %v8725
    %v9085 = vpack.c.b16 %v8728, %v8727
    %v9086 = vpack.c.b16 %v8730, %v8729
    %v9087 = vpack.c.b16 %v8732, %v8731
    %v9088 = vpack.c.b16 %v8734, %v8733
    %v9089 = vpack.c.b16 %v8736, %v8735
    %v9090 = vpack.c.b16 %v8738, %v8737
    %v9091 = vpack.c.b16 %v8740, %v8739
    %v9092 = vpack.c.b16 %v8742, %v8741
    %v9093 = vpack.c.b16 %v8744, %v8743
    %v9094 = vpack.c.b16 %v8746, %v8745
    %v9095 = vpack.c.b16 %v8748, %v8747
    %v9096 = vpack.c.b16 %v8750, %v8749
    %v9097 = vpack.c.b16 %v8752, %v8751
    %v9098 = vpack.c.b16 %v8754, %v8753
    %v9099 = vpack.c.b16 %v8756, %v8755
    %v9100 = vpack.c.b16 %v8758, %v8757
    %v9101 = vpack.c.b16 %v8760, %v8759
    %v9102 = vpack.c.b16 %v8762, %v8761
    %v9103 = vpack.c.b16 %v8764, %v8763
    %v9104 = vpack.c.b16 %v8766, %v8765
    %v9105 = vpack.c.b16 %v8768, %v8767
    %v9106 = vpack.c.b16 %v8770, %v8769
    %v9107 = vpack.c.b16 %v8772, %v8771
    %v9108 = vpack.c.b16 %v8774, %v8773
    %v9109 = vpack.c.b16 %v8776, %v8775
    %v9110 = vpack.c.b16 %v8778, %v8777
    %v9111 = vpack.c.b16 %v8780, %v8779
    %v9112 = vpack.c.b16 %v8782, %v8781
    %v9113 = vpack.c.b16 %v8784, %v8783
    %v9114 = vpack.c.b16 %v8786, %v8785
    %v9115 = vpack.c.b16 %v8788, %v8787
    %v9116 = vpack.c.b16 %v8790, %v8789
    %v9117 = vpack.c.b16 %v8792, %v8791
    %v9118 = vpack.c.b16 %v8794, %v8793
    %v9119 = vpack.c.b16 %v8796, %v8795
    %v9120 = vpack.c.b16 %v8798, %v8797
    %v9121 = vpack.c.b16 %v8800, %v8799
    %v9122 = vpack.c.b16 %v8802, %v8801
    %v9123 = vpack.c.b16 %v8804, %v8803
    %v9124 = vpack.c.b16 %v8806, %v8805
    %v9125 = vpack.c.b16 %v8808, %v8807
    %v9126 = vpack.c.b16 %v8810, %v8809
    %v9127 = vpack.c.b16 %v8812, %v8811
    %v9128 = vpack.c.b16 %v8814, %v8813
    %v9129 = vpack.c.b16 %v8816, %v8815
    %v9130 = vpack.c.b16 %v8818, %v8817
    %v9131 = vpack.c.b16 %v8820, %v8819
    %v9132 = vpack.c.b16 %v8822, %v8821
    %v9133 = vpack.c.b16 %v8824, %v8823
    %v9134 = vpack.c.b16 %v8826, %v8825
    %v9135 = vpack.c.b16 %v8828, %v8827
    %v9136 = vpack.c.b16 %v8830, %v8829
    %v9137 = vpack.c.b16 %v8832, %v8831
    %v9138 = vpack.c.b16 %v8834, %v8833
    %v9139 = vpack.c.b16 %v8836, %v8835
    %v9140 = vpack.c.b16 %v8838, %v8837
    %v9141 = vpack.c.b16 %v8840, %v8839
    %v9142 = vpack.c.b16 %v8842, %v8841
    %v9143 = vpack.c.b16 %v8844, %v8843
    %v9144 = vpack.c.b16 %v8846, %v8845
    %v9145 = vpack.c.b16 %v8848, %v8847
    %v9146 = vpack.c.b16 %v8850, %v8849
    %v9147 = vpack.c.b16 %v8852, %v8851
    %v9148 = vpack.c.b16 %v8854, %v8853
    %v9149 = vpack.c.b16 %v8856, %v8855
    %v9150 = vpack.c.b16 %v8858, %v8857
    %v9151 = vpack.c.b16 %v8860, %v8859
    %v9152 = vpack.c.b16 %v8862, %v8861
    %v9153 = vpack.c.b16 %v8864, %v8863
    %v9154 = vpack.c.b16 %v8866, %v8865
    %v9155 = vpack.c.b16 %v8868, %v8867
    %v9156 = vpack.c.b16 %v8870, %v8869
    %v9157 = vpack.c.b16 %v8872, %v8871
    %v9158 = vpack.c.b16 %v8874, %v8873
    %v9159 = vpack.c.b16 %v8876, %v8875
    %v9160 = vpack.c.b16 %v8878, %v8877
    %v9161 = vpack.c.b16 %v8880, %v8879
    %v9162 = vpack.c.b16 %v8882, %v8881
    %v9163 = vpack.c.b16 %v8884, %v8883
    %v9164 = vpack.c.b16 %v8886, %v8885
    %v9165 = vpack.c.b16 %v8888, %v8887
    %v9166 = vpack.c.b16 %v8890, %v8889
    %v9167 = vpack.c.b16 %v8892, %v8891
    %v9168 = vpack.c.b16 %v8894, %v8893
    %v9169 = vpack.c.b16 %v8896, %v8895
    %v9170 = vpack.c.b16 %v8898, %v8897
    %v9171 = vpack.c.b16 %v8900, %v8899
    %v9172 = vpack.c.b16 %v8902, %v8901
    %v9173 = vpack.c.b16 %v8904, %v8903
    %v9174 = vpack.c.b16 %v8906, %v8905
    %v9175 = vpack.c.b16 %v8908, %v8907
    %v9176 = vpack.c.b16 %v8910, %v8909
    %v9177 = vpack.c.b16 %v8912, %v8911
    %v9178 = vpack.c.b16 %v8914, %v8913
    %v9179 = vpack.c.b16 %v8916, %v8915
    %v9180 = vpack.c.b16 %v8918, %v8917
    %v9181 = vpack.c.b16 %v8920, %v8919
    %v9182 = vpack.c.b16 %v8922, %v8921
    %v9183 = vpack.c.b16 %v8924, %v8923
    %v9184 = vpack.c.b16 %v8926, %v8925
    %v9185 = vpack.c.b16 %v8928, %v8927
    %v9186 = vpack.c.b16 %v8930, %v8929
    %v9187 = vpack.c.b16 %v8932, %v8931
    %v9188 = vpack.c.b16 %v8934, %v8933
    %v9189 = vpack.c.b16 %v8936, %v8935
    %v9190 = vpack.c.b16 %v8938, %v8937
    %v9191 = vpack.c.b16 %v8940, %v8939
    %v9192 = vpack.c.b16 %v8942, %v8941
    %v9193 = vpack.c.b16 %v8944, %v8943
    %v9194 = vpack.c.b16 %v8946, %v8945
    %v9195 = vpack.c.b16 %v8948, %v8947
    %v9196 = vpack.c.b16 %v8950, %v8949
    %v9197 = vpack.c.b16 %v8952, %v8951
    %v9198 = vpack.c.b16 %v8954, %v8953
    %v9199 = vpack.c.b16 %v8956, %v8955
    %v9200 = vpack.c.b16 %v8958, %v8957
    %v9201 = vpack.c.b16 %v8960, %v8959
    %v9202 = vpack.c.b16 %v8962, %v8961
    %v9203 = vpack.c.b16 %v8964, %v8963
    %v9204 = vpack.c.b16 %v8966, %v8965
    %v9205 = vpack.c.b16 %v8968, %v8967
    %v9206 = vpack.c.b16 %v8970, %v8969
    %v9207 = vpack.c.b16 %v8972, %v8971
    %v9208 = vpack.c.b16 %v8974, %v8973
    %v9209 = vpack.c.b16 %v8976, %v8975
    %v9210 = vpack.c.b16 %v8978, %v8977
    %v9211 = vpack.c.b16 %v8980, %v8979
    %v9212 = vpack.c.b16 %v8982, %v8981
    %v9213 = vpack.c.b16 %v8984, %v8983
    %v9214 = vpack.c.b16 %v8986, %v8985
    %v9215 = vpack.c.b16 %v8988, %v8987
    %v9216 = vpack.c.b16 %v8990, %v8989
    %v9217 = vpack.c.b16 %v8992, %v8991
    %v9218 = vpack.c.b16 %v8994, %v8993
    %9443 = vmatpush.bf16.msra.mxu0 %v9002
    %9444 = vmatpush.bf16.msra.mxu0 %v9001
    %9445 = vmatpush.bf16.msra.mxu0 %v9000
    %9446 = vmatpush.bf16.msra.mxu0 %v8999
    %9447 = vmatpush.bf16.msra.mxu0 %v8998
    %9448 = vmatpush.bf16.msra.mxu0 %v8997
    %9449 = vmatpush.bf16.msra.mxu0 %v8996
    %9450 = vmatpush.bf16.msra.mxu0 %v8995
    %9451 = vmatmul.bf16.gmra.mxu0 %v7555
    %v9452 = vpop.f32.mrf.mxu0
    %v9453 = vadd.f32 %v8097, %v9452
    %v9454 = vpop.f32.mrf.mxu0
    %9455 = vdwg.mxu0
    %9456 = vmatpush.bf16.msra.mxu0 %v9010
    %9457 = vmatpush.bf16.msra.mxu0 %v9009
    %9458 = vmatpush.bf16.msra.mxu0 %v9008
    %9459 = vmatpush.bf16.msra.mxu0 %v9007
    %9460 = vmatpush.bf16.msra.mxu0 %v9006
    %9461 = vmatpush.bf16.msra.mxu0 %v9005
    %9462 = vmatpush.bf16.msra.mxu0 %v9004
    %9463 = vmatpush.bf16.msra.mxu0 %v9003
    %9464 = vmatmul.bf16.gmra.mxu0 %v7556
    %v9465 = vpop.f32.mrf.mxu0
    %v9466 = vadd.f32 %v9453, %v9465
    %v9467 = vpop.f32.mrf.mxu0
    %9468 = vdwg.mxu0
    %9469 = vmatpush.bf16.msra.mxu0 %v9018
    %9470 = vmatpush.bf16.msra.mxu0 %v9017
    %9471 = vmatpush.bf16.msra.mxu0 %v9016
    %9472 = vmatpush.bf16.msra.mxu0 %v9015
    %9473 = vmatpush.bf16.msra.mxu0 %v9014
    %9474 = vmatpush.bf16.msra.mxu0 %v9013
    %9475 = vmatpush.bf16.msra.mxu0 %v9012
    %9476 = vmatpush.bf16.msra.mxu0 %v9011
    %9477 = vmatmul.bf16.gmra.mxu0 %v7557
    %v9478 = vpop.f32.mrf.mxu0
    %v9479 = vadd.f32 %v9466, %v9478
    %v9480 = vpop.f32.mrf.mxu0
    %9481 = vdwg.mxu0
    %9482 = vmatpush.bf16.msra.mxu0 %v9026
    %9483 = vmatpush.bf16.msra.mxu0 %v9025
    %9484 = vmatpush.bf16.msra.mxu0 %v9024
    %9485 = vmatpush.bf16.msra.mxu0 %v9023
    %9486 = vmatpush.bf16.msra.mxu0 %v9022
    %9487 = vmatpush.bf16.msra.mxu0 %v9021
    %9488 = vmatpush.bf16.msra.mxu0 %v9020
    %9489 = vmatpush.bf16.msra.mxu0 %v9019
    %9490 = vmatmul.bf16.gmra.mxu0 %v7558
    %v9491 = vpop.f32.mrf.mxu0
    %v9492 = vadd.f32 %v9479, %v9491
    %v9493 = vpop.f32.mrf.mxu0
    %9494 = vdwg.mxu0
    %9495 = vmatpush.bf16.msra.mxu0 %v9034
    %9496 = vmatpush.bf16.msra.mxu0 %v9033
    %9497 = vmatpush.bf16.msra.mxu0 %v9032
    %9498 = vmatpush.bf16.msra.mxu0 %v9031
    %9499 = vmatpush.bf16.msra.mxu0 %v9030
    %9500 = vmatpush.bf16.msra.mxu0 %v9029
    %9501 = vmatpush.bf16.msra.mxu0 %v9028
    %9502 = vmatpush.bf16.msra.mxu0 %v9027
    %9503 = vmatmul.bf16.gmra.mxu0 %v7569
    %v9504 = vpop.f32.mrf.mxu0
    %v9505 = vadd.f32 %v9492, %v9504
    %v9506 = vpop.f32.mrf.mxu0
    %9507 = vdwg.mxu0
    %9508 = vmatpush.bf16.msra.mxu0 %v9042
    %9509 = vmatpush.bf16.msra.mxu0 %v9041
    %9510 = vmatpush.bf16.msra.mxu0 %v9040
    %9511 = vmatpush.bf16.msra.mxu0 %v9039
    %9512 = vmatpush.bf16.msra.mxu0 %v9038
    %9513 = vmatpush.bf16.msra.mxu0 %v9037
    %9514 = vmatpush.bf16.msra.mxu0 %v9036
    %9515 = vmatpush.bf16.msra.mxu0 %v9035
    %9516 = vmatmul.bf16.gmra.mxu0 %v7570
    %v9517 = vpop.f32.mrf.mxu0
    %v9518 = vadd.f32 %v9505, %v9517
    %v9519 = vpop.f32.mrf.mxu0
    %9520 = vdwg.mxu0
    %9521 = vmatpush.bf16.msra.mxu0 %v9050
    %9522 = vmatpush.bf16.msra.mxu0 %v9049
    %9523 = vmatpush.bf16.msra.mxu0 %v9048
    %9524 = vmatpush.bf16.msra.mxu0 %v9047
    %9525 = vmatpush.bf16.msra.mxu0 %v9046
    %9526 = vmatpush.bf16.msra.mxu0 %v9045
    %9527 = vmatpush.bf16.msra.mxu0 %v9044
    %9528 = vmatpush.bf16.msra.mxu0 %v9043
    %9529 = vmatmul.bf16.gmra.mxu0 %v7571
    %v9530 = vpop.f32.mrf.mxu0
    %v9531 = vadd.f32 %v9518, %v9530
    %v9532 = vpop.f32.mrf.mxu0
    %9533 = vdwg.mxu0
    %9534 = vmatpush.bf16.msra.mxu0 %v9058
    %9535 = vmatpush.bf16.msra.mxu0 %v9057
    %9536 = vmatpush.bf16.msra.mxu0 %v9056
    %9537 = vmatpush.bf16.msra.mxu0 %v9055
    %9538 = vmatpush.bf16.msra.mxu0 %v9054
    %9539 = vmatpush.bf16.msra.mxu0 %v9053
    %9540 = vmatpush.bf16.msra.mxu0 %v9052
    %9541 = vmatpush.bf16.msra.mxu0 %v9051
    %9542 = vmatmul.bf16.gmra.mxu0 %v7572
    %v9543 = vpop.f32.mrf.mxu0
    %v9544 = vadd.f32 %v9531, %v9543
    %v9545 = vpop.f32.mrf.mxu0
    %9546 = vdwg.mxu0
    %9547 = vmatpush.bf16.msra.mxu0 %v9066
    %9548 = vmatpush.bf16.msra.mxu0 %v9065
    %9549 = vmatpush.bf16.msra.mxu0 %v9064
    %9550 = vmatpush.bf16.msra.mxu0 %v9063
    %9551 = vmatpush.bf16.msra.mxu0 %v9062
    %9552 = vmatpush.bf16.msra.mxu0 %v9061
    %9553 = vmatpush.bf16.msra.mxu0 %v9060
    %9554 = vmatpush.bf16.msra.mxu0 %v9059
    %9555 = vmatmul.bf16.gmra.mxu0 %v7583
    %v9556 = vpop.f32.mrf.mxu0
    %v9557 = vadd.f32 %v9544, %v9556
    %v9558 = vpop.f32.mrf.mxu0
    %9559 = vdwg.mxu0
    %9560 = vmatpush.bf16.msra.mxu0 %v9074
    %9561 = vmatpush.bf16.msra.mxu0 %v9073
    %9562 = vmatpush.bf16.msra.mxu0 %v9072
    %9563 = vmatpush.bf16.msra.mxu0 %v9071
    %9564 = vmatpush.bf16.msra.mxu0 %v9070
    %9565 = vmatpush.bf16.msra.mxu0 %v9069
    %9566 = vmatpush.bf16.msra.mxu0 %v9068
    %9567 = vmatpush.bf16.msra.mxu0 %v9067
    %9568 = vmatmul.bf16.gmra.mxu0 %v7584
    %v9569 = vpop.f32.mrf.mxu0
    %v9570 = vadd.f32 %v9557, %v9569
    %v9571 = vpop.f32.mrf.mxu0
    %9572 = vdwg.mxu0
    %9573 = vmatpush.bf16.msra.mxu0 %v9082
    %9574 = vmatpush.bf16.msra.mxu0 %v9081
    %9575 = vmatpush.bf16.msra.mxu0 %v9080
    %9576 = vmatpush.bf16.msra.mxu0 %v9079
    %9577 = vmatpush.bf16.msra.mxu0 %v9078
    %9578 = vmatpush.bf16.msra.mxu0 %v9077
    %9579 = vmatpush.bf16.msra.mxu0 %v9076
    %9580 = vmatpush.bf16.msra.mxu0 %v9075
    %9581 = vmatmul.bf16.gmra.mxu0 %v7585
    %v9582 = vpop.f32.mrf.mxu0
    %v9583 = vadd.f32 %v9570, %v9582
    %v9584 = vpop.f32.mrf.mxu0
    %9585 = vdwg.mxu0
    %9586 = vmatpush.bf16.msra.mxu0 %v9090
    %9587 = vmatpush.bf16.msra.mxu0 %v9089
    %9588 = vmatpush.bf16.msra.mxu0 %v9088
    %9589 = vmatpush.bf16.msra.mxu0 %v9087
    %9590 = vmatpush.bf16.msra.mxu0 %v9086
    %9591 = vmatpush.bf16.msra.mxu0 %v9085
    %9592 = vmatpush.bf16.msra.mxu0 %v9084
    %9593 = vmatpush.bf16.msra.mxu0 %v9083
    %9594 = vmatmul.bf16.gmra.mxu0 %v7586
    %v9595 = vpop.f32.mrf.mxu0
    %v9596 = vadd.f32 %v9583, %v9595
    %v9597 = vpop.f32.mrf.mxu0
    %9598 = vdwg.mxu0
    %9599 = vmatpush.bf16.msra.mxu0 %v9098
    %9600 = vmatpush.bf16.msra.mxu0 %v9097
    %9601 = vmatpush.bf16.msra.mxu0 %v9096
    %9602 = vmatpush.bf16.msra.mxu0 %v9095
    %9603 = vmatpush.bf16.msra.mxu0 %v9094
    %9604 = vmatpush.bf16.msra.mxu0 %v9093
    %9605 = vmatpush.bf16.msra.mxu0 %v9092
    %9606 = vmatpush.bf16.msra.mxu0 %v9091
    %9607 = vmatmul.bf16.gmra.mxu0 %v7597
    %v9608 = vpop.f32.mrf.mxu0
    %v9609 = vadd.f32 %v9596, %v9608
    %v9610 = vpop.f32.mrf.mxu0
    %9611 = vdwg.mxu0
    %9612 = vmatpush.bf16.msra.mxu0 %v9106
    %9613 = vmatpush.bf16.msra.mxu0 %v9105
    %9614 = vmatpush.bf16.msra.mxu0 %v9104
    %9615 = vmatpush.bf16.msra.mxu0 %v9103
    %9616 = vmatpush.bf16.msra.mxu0 %v9102
    %9617 = vmatpush.bf16.msra.mxu0 %v9101
    %9618 = vmatpush.bf16.msra.mxu0 %v9100
    %9619 = vmatpush.bf16.msra.mxu0 %v9099
    %9620 = vmatmul.bf16.gmra.mxu0 %v7598
    %v9621 = vpop.f32.mrf.mxu0
    %v9622 = vadd.f32 %v9609, %v9621
    %v9623 = vpop.f32.mrf.mxu0
    %9624 = vdwg.mxu0
    %9625 = vmatpush.bf16.msra.mxu0 %v9114
    %9626 = vmatpush.bf16.msra.mxu0 %v9113
    %9627 = vmatpush.bf16.msra.mxu0 %v9112
    %9628 = vmatpush.bf16.msra.mxu0 %v9111
    %9629 = vmatpush.bf16.msra.mxu0 %v9110
    %9630 = vmatpush.bf16.msra.mxu0 %v9109
    %9631 = vmatpush.bf16.msra.mxu0 %v9108
    %9632 = vmatpush.bf16.msra.mxu0 %v9107
    %9633 = vmatmul.bf16.gmra.mxu0 %v7599
    %v9634 = vpop.f32.mrf.mxu0
    %v9635 = vadd.f32 %v9622, %v9634
    %v9636 = vpop.f32.mrf.mxu0
    %9637 = vdwg.mxu0
    %9638 = vmatpush.bf16.msra.mxu0 %v9122
    %9639 = vmatpush.bf16.msra.mxu0 %v9121
    %9640 = vmatpush.bf16.msra.mxu0 %v9120
    %9641 = vmatpush.bf16.msra.mxu0 %v9119
    %9642 = vmatpush.bf16.msra.mxu0 %v9118
    %9643 = vmatpush.bf16.msra.mxu0 %v9117
    %9644 = vmatpush.bf16.msra.mxu0 %v9116
    %9645 = vmatpush.bf16.msra.mxu0 %v9115
    %9646 = vmatmul.bf16.gmra.mxu0 %v7600
    %v9647 = vpop.f32.mrf.mxu0
    %v9648 = vadd.f32 %v9635, %v9647
    %v9649 = vpop.f32.mrf.mxu0
    %9650 = vdwg.mxu0
    %9651 = vmatpush.bf16.msra.mxu0 %v9130
    %9652 = vmatpush.bf16.msra.mxu0 %v9129
    %9653 = vmatpush.bf16.msra.mxu0 %v9128
    %9654 = vmatpush.bf16.msra.mxu0 %v9127
    %9655 = vmatpush.bf16.msra.mxu0 %v9126
    %9656 = vmatpush.bf16.msra.mxu0 %v9125
    %9657 = vmatpush.bf16.msra.mxu0 %v9124
    %9658 = vmatpush.bf16.msra.mxu0 %v9123
    %9659 = vmatmul.bf16.gmra.mxu0 %v7611
    %v9660 = vpop.f32.mrf.mxu0
    %v9661 = vadd.f32 %v9648, %v9660
    %v9662 = vpop.f32.mrf.mxu0
    %9663 = vdwg.mxu0
    %9664 = vmatpush.bf16.msra.mxu0 %v9138
    %9665 = vmatpush.bf16.msra.mxu0 %v9137
    %9666 = vmatpush.bf16.msra.mxu0 %v9136
    %9667 = vmatpush.bf16.msra.mxu0 %v9135
    %9668 = vmatpush.bf16.msra.mxu0 %v9134
    %9669 = vmatpush.bf16.msra.mxu0 %v9133
    %9670 = vmatpush.bf16.msra.mxu0 %v9132
    %9671 = vmatpush.bf16.msra.mxu0 %v9131
    %9672 = vmatmul.bf16.gmra.mxu0 %v7612
    %v9673 = vpop.f32.mrf.mxu0
    %v9674 = vadd.f32 %v9661, %v9673
    %v9675 = vpop.f32.mrf.mxu0
    %9676 = vdwg.mxu0
    %9677 = vmatpush.bf16.msra.mxu0 %v9146
    %9678 = vmatpush.bf16.msra.mxu0 %v9145
    %9679 = vmatpush.bf16.msra.mxu0 %v9144
    %9680 = vmatpush.bf16.msra.mxu0 %v9143
    %9681 = vmatpush.bf16.msra.mxu0 %v9142
    %9682 = vmatpush.bf16.msra.mxu0 %v9141
    %9683 = vmatpush.bf16.msra.mxu0 %v9140
    %9684 = vmatpush.bf16.msra.mxu0 %v9139
    %9685 = vmatmul.bf16.gmra.mxu0 %v7613
    %v9686 = vpop.f32.mrf.mxu0
    %v9687 = vadd.f32 %v9674, %v9686
    %v9688 = vpop.f32.mrf.mxu0
    %9689 = vdwg.mxu0
    %9690 = vmatpush.bf16.msra.mxu0 %v9154
    %9691 = vmatpush.bf16.msra.mxu0 %v9153
    %9692 = vmatpush.bf16.msra.mxu0 %v9152
    %9693 = vmatpush.bf16.msra.mxu0 %v9151
    %9694 = vmatpush.bf16.msra.mxu0 %v9150
    %9695 = vmatpush.bf16.msra.mxu0 %v9149
    %9696 = vmatpush.bf16.msra.mxu0 %v9148
    %9697 = vmatpush.bf16.msra.mxu0 %v9147
    %9698 = vmatmul.bf16.gmra.mxu0 %v7614
    %v9699 = vpop.f32.mrf.mxu0
    %v9700 = vadd.f32 %v9687, %v9699
    %v9701 = vpop.f32.mrf.mxu0
    %9702 = vdwg.mxu0
    %9703 = vmatpush.bf16.msra.mxu0 %v9162
    %9704 = vmatpush.bf16.msra.mxu0 %v9161
    %9705 = vmatpush.bf16.msra.mxu0 %v9160
    %9706 = vmatpush.bf16.msra.mxu0 %v9159
    %9707 = vmatpush.bf16.msra.mxu0 %v9158
    %9708 = vmatpush.bf16.msra.mxu0 %v9157
    %9709 = vmatpush.bf16.msra.mxu0 %v9156
    %9710 = vmatpush.bf16.msra.mxu0 %v9155
    %9711 = vmatmul.bf16.gmra.mxu0 %v7625
    %v9712 = vpop.f32.mrf.mxu0
    %v9713 = vadd.f32 %v9700, %v9712
    %v9714 = vpop.f32.mrf.mxu0
    %9715 = vdwg.mxu0
    %9716 = vmatpush.bf16.msra.mxu0 %v9170
    %9717 = vmatpush.bf16.msra.mxu0 %v9169
    %9718 = vmatpush.bf16.msra.mxu0 %v9168
    %9719 = vmatpush.bf16.msra.mxu0 %v9167
    %9720 = vmatpush.bf16.msra.mxu0 %v9166
    %9721 = vmatpush.bf16.msra.mxu0 %v9165
    %9722 = vmatpush.bf16.msra.mxu0 %v9164
    %9723 = vmatpush.bf16.msra.mxu0 %v9163
    %9724 = vmatmul.bf16.gmra.mxu0 %v7626
    %v9725 = vpop.f32.mrf.mxu0
    %v9726 = vadd.f32 %v9713, %v9725
    %v9727 = vpop.f32.mrf.mxu0
    %9728 = vdwg.mxu0
    %9729 = vmatpush.bf16.msra.mxu0 %v9178
    %9730 = vmatpush.bf16.msra.mxu0 %v9177
    %9731 = vmatpush.bf16.msra.mxu0 %v9176
    %9732 = vmatpush.bf16.msra.mxu0 %v9175
    %9733 = vmatpush.bf16.msra.mxu0 %v9174
    %9734 = vmatpush.bf16.msra.mxu0 %v9173
    %9735 = vmatpush.bf16.msra.mxu0 %v9172
    %9736 = vmatpush.bf16.msra.mxu0 %v9171
    %9737 = vmatmul.bf16.gmra.mxu0 %v7627
    %v9738 = vpop.f32.mrf.mxu0
    %v9739 = vadd.f32 %v9726, %v9738
    %v9740 = vpop.f32.mrf.mxu0
    %9741 = vdwg.mxu0
    %9742 = vmatpush.bf16.msra.mxu0 %v9186
    %9743 = vmatpush.bf16.msra.mxu0 %v9185
    %9744 = vmatpush.bf16.msra.mxu0 %v9184
    %9745 = vmatpush.bf16.msra.mxu0 %v9183
    %9746 = vmatpush.bf16.msra.mxu0 %v9182
    %9747 = vmatpush.bf16.msra.mxu0 %v9181
    %9748 = vmatpush.bf16.msra.mxu0 %v9180
    %9749 = vmatpush.bf16.msra.mxu0 %v9179
    %9750 = vmatmul.bf16.gmra.mxu0 %v7628
    %v9751 = vpop.f32.mrf.mxu0
    %v9752 = vadd.f32 %v9739, %v9751
    %v9753 = vpop.f32.mrf.mxu0
    %9754 = vdwg.mxu0
    %9755 = vmatpush.bf16.msra.mxu0 %v9194
    %9756 = vmatpush.bf16.msra.mxu0 %v9193
    %9757 = vmatpush.bf16.msra.mxu0 %v9192
    %9758 = vmatpush.bf16.msra.mxu0 %v9191
    %9759 = vmatpush.bf16.msra.mxu0 %v9190
    %9760 = vmatpush.bf16.msra.mxu0 %v9189
    %9761 = vmatpush.bf16.msra.mxu0 %v9188
    %9762 = vmatpush.bf16.msra.mxu0 %v9187
    %9763 = vmatmul.bf16.gmra.mxu0 %v7639
    %v9764 = vpop.f32.mrf.mxu0
    %v9765 = vadd.f32 %v9752, %v9764
    %v9766 = vpop.f32.mrf.mxu0
    %9767 = vdwg.mxu0
    %9768 = vmatpush.bf16.msra.mxu0 %v9202
    %9769 = vmatpush.bf16.msra.mxu0 %v9201
    %9770 = vmatpush.bf16.msra.mxu0 %v9200
    %9771 = vmatpush.bf16.msra.mxu0 %v9199
    %9772 = vmatpush.bf16.msra.mxu0 %v9198
    %9773 = vmatpush.bf16.msra.mxu0 %v9197
    %9774 = vmatpush.bf16.msra.mxu0 %v9196
    %9775 = vmatpush.bf16.msra.mxu0 %v9195
    %9776 = vmatmul.bf16.gmra.mxu0 %v7640
    %v9777 = vpop.f32.mrf.mxu0
    %v9778 = vadd.f32 %v9765, %v9777
    %v9779 = vpop.f32.mrf.mxu0
    %9780 = vdwg.mxu0
    %9781 = vmatpush.bf16.msra.mxu0 %v9210
    %9782 = vmatpush.bf16.msra.mxu0 %v9209
    %9783 = vmatpush.bf16.msra.mxu0 %v9208
    %9784 = vmatpush.bf16.msra.mxu0 %v9207
    %9785 = vmatpush.bf16.msra.mxu0 %v9206
    %9786 = vmatpush.bf16.msra.mxu0 %v9205
    %9787 = vmatpush.bf16.msra.mxu0 %v9204
    %9788 = vmatpush.bf16.msra.mxu0 %v9203
    %9789 = vmatmul.bf16.gmra.mxu0 %v7641
    %v9790 = vpop.f32.mrf.mxu0
    %v9791 = vadd.f32 %v9778, %v9790
    %v9792 = vpop.f32.mrf.mxu0
    %9793 = vdwg.mxu0
    %9794 = vmatpush.bf16.msra.mxu0 %v9218
    %9795 = vmatpush.bf16.msra.mxu0 %v9217
    %9796 = vmatpush.bf16.msra.mxu0 %v9216
    %9797 = vmatpush.bf16.msra.mxu0 %v9215
    %9798 = vmatpush.bf16.msra.mxu0 %v9214
    %9799 = vmatpush.bf16.msra.mxu0 %v9213
    %9800 = vmatpush.bf16.msra.mxu0 %v9212
    %9801 = vmatpush.bf16.msra.mxu0 %v9211
    %9802 = vmatmul.bf16.gmra.mxu0 %v7642
    %v9803 = vpop.f32.mrf.mxu0
    %v9804 = vadd.f32 %v9791, %v9803
    %v9805 = vpop.f32.mrf.mxu0
    %9806 = vdwg.mxu0
    %v9807 = vmax.f32 %v9804, 0.0
    %v9808 = vpack.c.bf16 %v9807, %v9807
    %v9809 = vld [vmem:[%s7] sm:$0xf]
    %v9810 = vld [vmem:[%s7 + $0x4] sm:$0xf]
    %v9811 = vld [vmem:[%s7 + $0x8] sm:$0xf]
    %v9812 = vld [vmem:[%s7 + $0xc] sm:$0xf]
    %v9813 = vld [vmem:[%s7 + $0x10] sm:$0xf]
    %v9814 = vld [vmem:[%s7 + $0x14] sm:$0xf]
    %v9815 = vld [vmem:[%s7 + $0x18] sm:$0xf]
    %v9816 = vld [vmem:[%s7 + $0x1c] sm:$0xf]
    %v9817 = vld [vmem:[%s7 + $0x20] sm:$0xf]
    %v9818 = vld [vmem:[%s7 + $0x24] sm:$0xf]
    %v9819 = vld [vmem:[%s7 + $0x28] sm:$0xf]
    %v9820 = vld [vmem:[%s7 + $0x2c] sm:$0xf]
    %v9821 = vld [vmem:[%s7 + $0x30] sm:$0xf]
    %v9822 = vld [vmem:[%s7 + $0x34] sm:$0xf]
    %v9823 = vld [vmem:[%s7 + $0x38] sm:$0xf]
    %v9824 = vld [vmem:[%s7 + $0x3c] sm:$0xf]
    %v9825 = vld [vmem:[#allocation12] sm:$0x1]
    %v9827 = vperm.slane %v9825, 0
    %v9845 = vunpack.c.l.b16 %v9809
    %v9846 = vunpack.c.l.b16 %v9810
    %v9847 = vunpack.c.l.b16 %v9811
    %v9848 = vunpack.c.l.b16 %v9812
    %v9849 = vunpack.c.l.b16 %v9813
    %v9850 = vunpack.c.l.b16 %v9814
    %v9851 = vunpack.c.l.b16 %v9815
    %v9852 = vunpack.c.l.b16 %v9816
    %v9853 = vunpack.c.l.b16 %v9817
    %v9854 = vunpack.c.l.b16 %v9818
    %v9855 = vunpack.c.l.b16 %v9819
    %v9856 = vunpack.c.l.b16 %v9820
    %v9857 = vunpack.c.l.b16 %v9821
    %v9858 = vunpack.c.l.b16 %v9822
    %v9859 = vunpack.c.l.b16 %v9823
    %v9860 = vunpack.c.l.b16 %v9824
    %v9861 = vpack.c.b16 %v9846, %v9845
    %v9862 = vpack.c.b16 %v9848, %v9847
    %v9863 = vpack.c.b16 %v9850, %v9849
    %v9864 = vpack.c.b16 %v9852, %v9851
    %v9865 = vpack.c.b16 %v9854, %v9853
    %v9866 = vpack.c.b16 %v9856, %v9855
    %v9867 = vpack.c.b16 %v9858, %v9857
    %v9868 = vpack.c.b16 %v9860, %v9859
    %9877 = vmatpush.bf16.msra.mxu0 %v9868
    %9878 = vmatpush.bf16.msra.mxu0 %v9867
    %9879 = vmatpush.bf16.msra.mxu0 %v9866
    %9880 = vmatpush.bf16.msra.mxu0 %v9865
    %9881 = vmatpush.bf16.msra.mxu0 %v9864
    %9882 = vmatpush.bf16.msra.mxu0 %v9863
    %9883 = vmatpush.bf16.msra.mxu0 %v9862
    %9884 = vmatpush.bf16.msra.mxu0 %v9861
    %9885 = vmatmul.bf16.gmra.mxu0 %v9808
    %v9886 = vpop.f32.mrf.mxu0
    %v9887 = vadd.f32 %v9827, %v9886
    %v9888 = vpop.f32.mrf.mxu0
    %9889 = vdwg.mxu0
    %vm9890 = vcmask 80896
    %9891 = vst.msk [vmem:[%s9] sm:$0xff] %vm9890, %v9887
    // Predicated region
    $region66: #{cnn_forward.1} parent=1 // pred_check
      _
    $region67: #{cnn_forward.1} parent=1 // pred_check_branch
      %9893 = sbr.rel (0) target = $region69
    $region68: #{cnn_forward.1} parent=1 // pred_region
      _
    $region69: #{cnn_forward.1} parent=1 // pred_fallthru
      _
    // Predicated region
    $region70: #{cnn_forward.1} parent=1 // pred_check
      _
    $region71: #{cnn_forward.1} parent=1 // pred_check_branch
      %9895 = sbr.rel (0) target = $region73
    $region72: #{cnn_forward.1} parent=1 // pred_region
      _
    $region73: #{cnn_forward.1} parent=1 // pred_fallthru
      _
    %9896 = vsyncpa [#allocation3], 1
    %9897 = vsyncpa [#allocation5], 1
    %9898 = vsyncpa [#allocation8], 1
    %9899 = vsyncpa [#allocation11], 1

</llo_original>
